<compile_context>
chip_gen: v7x
topology: tpu7x:2x2x1
jax: 0.10.0
libtpu: 0.0.40
codegen_flags: <defaults>
</compile_context>

<pallas_src>
import numpy as np
import jax
import jax.numpy as jnp
from jax import lax
from jax.experimental import pallas as pl
from jax.experimental.pallas import tpu as pltpu


# ----------------------------------------------------------------------------
# Conv stack: 4x (Conv2d(k, stride=1, pad) + MaxPool2d(2, 2)) in one kernel
# ----------------------------------------------------------------------------
_CONV_CFG = (
    (5, 2, 32),   # conv1: kernel 5, pad 2, 32 output channels
    (5, 1, 32),   # conv2
    (4, 1, 64),   # conv3
    (3, 1, 64),   # conv4
)


def _conv_layer_dims(h, w, cin):
    """Static per-layer shapes of the conv+pool stack."""
    dims = []
    for (k, pad, cout) in _CONV_CFG:
        hp, wp = h + 2 * pad, w + 2 * pad
        ho, wo = hp - k + 1, wp - k + 1
        hop, wop = ho // 2, wo // 2
        dims.append(dict(k=k, pad=pad, cin=cin, cout=cout,
                         hp=hp, wp=wp, ho=ho, wo=wo, hop=hop, wop=wop))
        h, w, cin = hop, wop, cout
    return dims


def _make_conv_stack_kernel(dims):
    d1, d2, d3, d4 = dims

    def write_aug(dst_ref, row, pooled, nxt):
        # KW-folded padded input for the next layer:
        #   dst[row, w, kw*C + c] == (zero-padded next-layer input)[row, w + kw, c]
        k, pad, c = nxt["k"], nxt["pad"], nxt["cin"]
        sw, wo_n = pooled.shape[0], nxt["wo"]
        for kw in range(k):
            lo = max(0, kw - pad)
            hi = min(sw, wo_n + kw - pad)
            if hi > lo:
                dst_lo = lo - (kw - pad)
                dst_ref[row, pl.ds(dst_lo, hi - lo), pl.ds(kw * c, c)] = pooled[lo:hi, :]

    def kernel(cols1_ref, w1_ref, b1_ref, w2_ref, b2_ref, w3_ref, b3_ref,
               w4_ref, b4_ref, x4_ref, aug2, aug3, aug4, rs1, rs2, rs3, rs4):
        # zero the padded augmented-input scratches once (padding borders stay zero)
        aug2[...] = jnp.zeros_like(aug2)
        aug3[...] = jnp.zeros_like(aug3)
        aug4[...] = jnp.zeros_like(aug4)

        # -------- layer 1: wrapper-side im2col -> one (2*Wo, 100)x(100, 32) dot per
        # pooled row (both conv rows of the pool window in one MXU matmul).
        w1m = w1_ref[...]                   # (KH*KW*Cin, Cout)
        b1 = b1_ref[...]                    # (1, Cout)
        wo1, wop1 = d1["wo"], d1["wop"]

        def l1_body(i, carry):
            r0 = pl.multiple_of(i * (2 * wo1), 2 * wo1)
            blk = jnp.dot(cols1_ref[pl.ds(r0, 2 * wo1), :], w1m,
                          preferred_element_type=jnp.float32) + b1     # (2*Wo, C)
            m = jnp.maximum(blk[0:wo1, :], blk[wo1:2 * wo1, :])        # H-pool
            rs1[...] = m
            pooled = jnp.maximum(rs1[pl.ds(0, wop1, stride=2), :],
                                 rs1[pl.ds(1, wop1, stride=2), :])     # W-pool
            write_aug(aug2, d2["pad"] + i, pooled, d2)
            return carry

        lax.fori_loop(0, d1["hop"], l1_body, 0)

        # -------- layers 2..4: KH dots per conv row with K = KW*Cin (KW folded)
        def run_layer(src_aug, w_ref, b_ref, dd, rs, emit):
            def conv_row(h):
                acc = jnp.zeros((dd["wo"], dd["cout"]), jnp.float32) + b_ref[...]
                for kh in range(dd["k"]):
                    acc = acc + jnp.dot(src_aug[h + kh, :, :], w_ref[kh],
                                        preferred_element_type=jnp.float32)
                return acc

            def body(i, carry):
                m = jnp.maximum(conv_row(2 * i), conv_row(2 * i + 1))  # H-pool
                rs[...] = m
                pooled = jnp.maximum(rs[pl.ds(0, dd["wop"], stride=2), :],
                                     rs[pl.ds(1, dd["wop"], stride=2), :])
                emit(i, pooled)
                return carry

            lax.fori_loop(0, dd["hop"], body, 0)

        run_layer(aug2, w2_ref, b2_ref, d2, rs2,
                  lambda i, v: write_aug(aug3, d3["pad"] + i, v, d3))
        run_layer(aug3, w3_ref, b3_ref, d3, rs3,
                  lambda i, v: write_aug(aug4, d4["pad"] + i, v, d4))

        def emit_out(i, pooled):
            x4_ref[i] = pooled

        run_layer(aug4, w4_ref, b4_ref, d4, rs4, emit_out)

    return kernel


def conv_stack(x_hwc, p):
    """x_hwc: (H, W, Cin) f32 -> x4 (H4, W4, 64) after four conv+maxpool layers."""
    dims = _conv_layer_dims(x_hwc.shape[0], x_hwc.shape[1], x_hwc.shape[2])
    d1, d2, d3, d4 = dims

    xp = jnp.pad(x_hwc.astype(jnp.float32),
                 ((d1["pad"], d1["pad"]), (d1["pad"], d1["pad"]), (0, 0)))
    # full im2col for conv1 (pure layout glue, done once in XLA)
    cols1 = jnp.concatenate(
        [xp[i:i + d1["ho"], j:j + d1["wo"], :]
         for i in range(d1["k"]) for j in range(d1["k"])], axis=-1)
    cols1 = cols1.reshape(d1["ho"] * d1["wo"], d1["k"] * d1["k"] * d1["cin"])

    scratch = [
        pltpu.VMEM((d2["hp"], d2["wo"], d2["k"] * d2["cin"]), jnp.float32),  # aug2
        pltpu.VMEM((d3["hp"], d3["wo"], d3["k"] * d3["cin"]), jnp.float32),  # aug3
        pltpu.VMEM((d4["hp"], d4["wo"], d4["k"] * d4["cin"]), jnp.float32),  # aug4
        pltpu.VMEM((d1["wo"], d1["cout"]), jnp.float32),                     # rs1
        pltpu.VMEM((d2["wo"], d2["cout"]), jnp.float32),                     # rs2
        pltpu.VMEM((d3["wo"], d3["cout"]), jnp.float32),                     # rs3
        pltpu.VMEM((d4["wo"], d4["cout"]), jnp.float32),                     # rs4
    ]
    return pl.pallas_call(
        _make_conv_stack_kernel(dims),
        out_shape=jax.ShapeDtypeStruct((d4["hop"], d4["wop"], d4["cout"]), jnp.float32),
        scratch_shapes=scratch,
    )(cols1,
      p["conv1_wm"], p["conv1_b"],
      p["conv2_wf"], p["conv2_b"],
      p["conv3_wf"], p["conv3_b"],
      p["conv4_wf"], p["conv4_b"])


# ----------------------------------------------------------------------------
# Fused LSTMCell + critic_linear + actor_linear (critic folded into actor matmul)
# ----------------------------------------------------------------------------
def _lstm_heads_kernel(x_ref, h_ref, c_ref, wih_ref, whh_ref, b_ref,
                       wh_ref, bh_ref, h_out, c_out, v_out, a_out):
    hid = h_ref.shape[1]
    gates = (jnp.dot(x_ref[...], wih_ref[...], preferred_element_type=jnp.float32)
             + jnp.dot(h_ref[...], whh_ref[...], preferred_element_type=jnp.float32)
             + b_ref[...])
    i_g = jax.nn.sigmoid(gates[:, 0 * hid:1 * hid])
    f_g = jax.nn.sigmoid(gates[:, 1 * hid:2 * hid])
    g_g = jnp.tanh(gates[:, 2 * hid:3 * hid])
    o_g = jax.nn.sigmoid(gates[:, 3 * hid:4 * hid])
    c_new = f_g * c_ref[...] + i_g * g_g
    h_new = o_g * jnp.tanh(c_new)
    h_out[...] = h_new
    c_out[...] = c_new
    # column 0 = critic value, columns 1.. = actor logits (one fused dot)
    heads = jnp.dot(h_new, wh_ref[...], preferred_element_type=jnp.float32) + bh_ref[...]
    v_out[...] = heads[:, 0:1]
    a_out[...] = heads[:, 1:]


def lstm_and_heads(x, hx, cx, p):
    hid = hx.shape[1]
    num_act = p["heads_w"].shape[1] - 1
    out_shapes = (jax.ShapeDtypeStruct((1, hid), jnp.float32),
                  jax.ShapeDtypeStruct((1, hid), jnp.float32),
                  jax.ShapeDtypeStruct((1, 1), jnp.float32),
                  jax.ShapeDtypeStruct((1, num_act), jnp.float32))
    return pl.pallas_call(_lstm_heads_kernel, out_shape=out_shapes)(
        x, hx, cx, p["lstm_wih_t"], p["lstm_whh_t"], p["lstm_b"],
        p["heads_w"], p["heads_b"])


# ----------------------------------------------------------------------------
# Fused upscore head: all four ConvTranspose2d stages in one kernel
# ----------------------------------------------------------------------------
def _make_upscore_kernel(k1, crop1, n1, stages):
    """stages: ((k, pad_lo, dil_n, crop, out_h, out_w), ...) for upscore2..4."""

    def kernel(x4d_ref, w1_ref, w2_ref, w3_ref, w4_ref, o_ref, sp2, sp3, sp4):
        f32 = jnp.float32

        # ---- upscore1: 64 -> 1 channels (stride-2 dilation/pad done in the wrapper
        # with one lax.pad); the [1:-1, 1:-1] crop is folded into the tap offsets.
        u = jnp.zeros((n1, n1), f32)
        for kh in range(k1):
            for kw in range(k1):
                tap = x4d_ref[crop1 + kh:crop1 + kh + n1,
                              crop1 + kw:crop1 + kw + n1, :] * w1_ref[kh, kw]
                u = u + jnp.sum(tap, axis=-1)

        # ---- upscore2..4: whole-tile scalar-weight stencils (W on lanes).  The
        # stride-2 zero dilation + (k-1 [+out_pad]) padding between stages is two tiny
        # 0/1 "spreading" matmuls (rows then cols) built from iota -- no scatter/pad.
        def spread_rows(m_out, n_in, pad_lo):
            r = lax.broadcasted_iota(jnp.int32, (m_out, n_in), 0)
            c = lax.broadcasted_iota(jnp.int32, (m_out, n_in), 1)
            return (r == pad_lo + 2 * c).astype(f32)

        def spread_cols(n_in, m_out, pad_lo):
            r = lax.broadcasted_iota(jnp.int32, (n_in, m_out), 0)
            c = lax.broadcasted_iota(jnp.int32, (n_in, m_out), 1)
            return (c == pad_lo + 2 * r).astype(f32)

        for (k, pad_lo, dil_n, crop, oh, ow), w_ref, sp in zip(
                stages, (w2_ref, w3_ref, w4_ref), (sp2, sp3, sp4)):
            n_in = u.shape[0]
            dh = spread_rows(dil_n, n_in, pad_lo)
            dw = spread_cols(n_in, dil_n, pad_lo)
            sp[...] = jnp.dot(dh, jnp.dot(u, dw, preferred_element_type=f32),
                              preferred_element_type=f32)
            acc = jnp.zeros((oh, ow), f32)
            for kh in range(k):
                for kw in range(k):
                    acc = acc + sp[crop + kh:crop + kh + oh,
                                   crop + kw:crop + kw + ow] * w_ref[kh * k + kw]
            u = acc

        o_ref[...] = u

    return kernel


def upscore_head(x4, p):
    h4, w4sp, _ = x4.shape
    assert h4 == w4sp, "upscore head assumes a square feature map"
    k1, k2, k3, k4 = 3, 4, 5, 5

    # upscore1 input: stride-2 zero dilation + (k-1) pad + output_padding, one lax.pad
    x4d = lax.pad(x4.astype(jnp.float32), jnp.array(0.0, jnp.float32),
                  ((k1 - 1, (k1 - 1) + 1, 1), (k1 - 1, (k1 - 1) + 1, 1), (0, 0, 0)))

    o1 = (h4 - 1) * 2 + k1 + 1                      # 8
    n1 = o1 - 2                                     # 6   after [1:-1, 1:-1]
    d2 = 2 * n1 - 1 + (k2 - 1) + (k2 - 1 + 1)       # 18  (output_padding=1)
    o2 = d2 - k2 + 1                                # 15
    n2 = o2 - 2                                     # 13
    d3 = 2 * n2 - 1 + 2 * (k3 - 1)                  # 33
    o3 = d3 - k3 + 1                                # 29
    d4 = 2 * o3 - 1 + 2 * (k4 - 1)                  # 65
    o4 = d4 - k4 + 1                                # 61
    out_h, out_w = o4 - 3, o4 - 5                   # [:-3, :-5]

    stages = ((k2, k2 - 1, d2, 1, n2, n2),
              (k3, k3 - 1, d3, 0, o3, o3),
              (k4, k4 - 1, d4, 0, out_h, out_w))

    vmem = pl.BlockSpec(memory_space=pltpu.MemorySpace.VMEM)
    smem = pl.BlockSpec(memory_space=pltpu.MemorySpace.SMEM)
    return pl.pallas_call(
        _make_upscore_kernel(k1, 1, n1, stages),
        out_shape=jax.ShapeDtypeStruct((out_h, out_w), jnp.float32),
        in_specs=[vmem, vmem, smem, smem, smem],
        out_specs=vmem,
        scratch_shapes=[pltpu.VMEM((d2, d2), jnp.float32),
                        pltpu.VMEM((d3, d3), jnp.float32),
                        pltpu.VMEM((d4, d4), jnp.float32)],
    )(x4d, p["up1_wf"], p["up2_wf"], p["up3_wf"], p["up4_wf"])


# ----------------------------------------------------------------------------
# Parameters (deterministic synthetic init mirroring the module's shapes/logic)
# ----------------------------------------------------------------------------
def get_upsampling_weight(in_channels, out_channels, kernel_size):
    factor = (kernel_size + 1) // 2
    center = factor - 1 if kernel_size % 2 == 1 else factor - 0.5
    og = np.ogrid[:kernel_size, :kernel_size]
    filt = (1 - abs(og[0] - center) / factor) * (1 - abs(og[1] - center) / factor)
    weight = np.zeros((in_channels, out_channels, kernel_size, kernel_size), np.float32)
    weight[range(in_channels), range(out_channels), :, :] = filt
    return jnp.asarray(weight)


def norm_col_init(key, shape, std=1.0):
    x = jax.random.normal(key, shape, jnp.float32)
    return x * std / jnp.sqrt(jnp.sum(x * x, axis=1, keepdims=True))


def init_params(key, num_inputs, action_space, hidden, lstm_in_dim):
    ks = jax.random.split(key, 10)
    relu_gain = float(np.sqrt(2.0))

    def conv_init(k, kh, kw, cin, cout):
        fan_in = kh * kw * cin
        return relu_gain * jax.random.normal(k, (kh, kw, cin, cout),
                                             jnp.float32) / np.sqrt(fan_in)

    p = {}
    p["conv1_w"] = conv_init(ks[0], 5, 5, num_inputs, 32)
    p["conv1_b"] = jnp.zeros((32,), jnp.float32)
    p["conv2_w"] = conv_init(ks[1], 5, 5, 32, 32)
    p["conv2_b"] = jnp.zeros((32,), jnp.float32)
    p["conv3_w"] = conv_init(ks[2], 4, 4, 32, 64)
    p["conv3_b"] = jnp.zeros((64,), jnp.float32)
    p["conv4_w"] = conv_init(ks[3], 3, 3, 64, 64)
    p["conv4_b"] = jnp.zeros((64,), jnp.float32)

    bound = 1.0 / np.sqrt(hidden)
    p["lstm_wih_t"] = jax.random.uniform(ks[4], (lstm_in_dim, 4 * hidden),
                                         jnp.float32, -bound, bound)
    p["lstm_whh_t"] = jax.random.uniform(ks[5], (hidden, 4 * hidden),
                                         jnp.float32, -bound, bound)
    p["lstm_b"] = jnp.zeros((1, 4 * hidden), jnp.float32)   # bias_ih + bias_hh, both 0

    p["critic_w"] = norm_col_init(ks[6], (1, hidden), 1.0)
    p["critic_b"] = jnp.zeros((1, 1), jnp.float32)
    p["actor_w_t"] = norm_col_init(ks[7], (action_space, hidden), 0.01).T
    p["actor_b"] = jnp.zeros((1, action_space), jnp.float32)

    p["upscore1_w"] = 0.02 * jax.random.normal(ks[8], (64, 1, 3, 3), jnp.float32)
    p["upscore2_w"] = get_upsampling_weight(1, 1, 4)
    p["upscore3_w"] = get_upsampling_weight(1, 1, 5)
    p["upscore4_w"] = get_upsampling_weight(1, 1, 5)
    return p


def prepare_params(p):
    """Repack module-style params into the layouts the Pallas kernels consume."""
    q = {}
    # conv weights: (KH, KW, Cin, Cout) with KW (and KH for conv1) folded into K
    q["conv1_wm"] = p["conv1_w"].reshape(-1, p["conv1_w"].shape[-1])
    for i in (2, 3, 4):
        w = p["conv%d_w" % i]
        q["conv%d_wf" % i] = w.reshape(w.shape[0], -1, w.shape[-1])
    for i in (1, 2, 3, 4):
        q["conv%d_b" % i] = p["conv%d_b" % i].reshape(1, -1)

    q["lstm_wih_t"] = p["lstm_wih_t"]
    q["lstm_whh_t"] = p["lstm_whh_t"]
    q["lstm_b"] = p["lstm_b"]
    # critic folded into the actor matmul: column 0 = value, columns 1.. = logits
    q["heads_w"] = jnp.concatenate([p["critic_w"].T, p["actor_w_t"]], axis=1)
    q["heads_b"] = jnp.concatenate([p["critic_b"], p["actor_b"]], axis=1)

    # transposed convolutions as correlations with spatially flipped kernels
    q["up1_wf"] = jnp.transpose(p["upscore1_w"][:, 0, ::-1, ::-1], (1, 2, 0))  # (3,3,64)
    q["up2_wf"] = p["upscore2_w"][0, 0, ::-1, ::-1].reshape(-1)                # (16,)
    q["up3_wf"] = p["upscore3_w"][0, 0, ::-1, ::-1].reshape(-1)                # (25,)
    q["up4_wf"] = p["upscore4_w"][0, 0, ::-1, ::-1].reshape(-1)                # (25,)
    return q


# ----------------------------------------------------------------------------
# Forward pass (mirrors A3Clstm.forward)
# ----------------------------------------------------------------------------
def a3c_lstm_forward(params, input1_nchw, hx, cx, input2):
    # NCHW (batch of 1) -> channels-last HWC
    x = jnp.transpose(input1_nchw[0], (1, 2, 0)).astype(jnp.float32)

    x4 = conv_stack(x, params)                                   # (3, 3, 64)

    # x5 = x4.view(B, -1): PyTorch flattens CHW-major
    x5 = jnp.transpose(x4, (2, 0, 1)).reshape(1, -1)
    in2 = input2.reshape(-1, input2.shape[0]).astype(jnp.float32)
    x6 = jnp.concatenate([x5, in2], axis=1)

    hx_new, cx_new, value, logits = lstm_and_heads(x6, hx, cx, params)

    upscore4 = upscore_head(x4, params)                          # (58, 56)
    return value, logits, (hx_new, cx_new), upscore4[None, None, :, :]


if __name__ == "__main__":
    num_inputs, action_space = 4, 6
    hidden = 128
    H = W = 64
    k_extra = 16

    dims = _conv_layer_dims(H, W, num_inputs)
    lstm_in_dim = dims[-1]["cout"] * dims[-1]["hop"] * dims[-1]["wop"] + k_extra

    key = jax.random.PRNGKey(0)
    kp, kk1, kk2, kk3, kk4 = jax.random.split(key, 5)
    raw = init_params(kp, num_inputs, action_space, hidden, lstm_in_dim)
    params = prepare_params(raw)

    input1 = jax.random.normal(kk1, (1, num_inputs, H, W), jnp.float32)
    hx = 0.1 * jax.random.normal(kk2, (1, hidden), jnp.float32)
    cx = 0.1 * jax.random.normal(kk3, (1, hidden), jnp.float32)
    input2 = jax.random.normal(kk4, (k_extra,), jnp.float32)

    fwd = jax.jit(a3c_lstm_forward)
    value, logits, (hx_new, cx_new), upscore4 = jax.block_until_ready(
        fwd(params, input1, hx, cx, input2))

    assert value.shape == (1, 1)
    assert logits.shape == (1, action_space)
    assert hx_new.shape == (1, hidden) and cx_new.shape == (1, hidden)
    assert upscore4.shape[:2] == (1, 1)
    assert bool(jnp.all(jnp.isfinite(value)))
    assert bool(jnp.all(jnp.isfinite(logits)))
    assert bool(jnp.all(jnp.isfinite(upscore4)))

    print("KERNEL_OK")
</pallas_src>

<mosaic_0001>
module attributes {stable_mosaic.version = 11 : i64} {
  func.func @kernel(%arg0: memref<4096x100xf32, #tpu.memory_space<vmem>>, %arg1: memref<100x32xf32, #tpu.memory_space<vmem>>, %arg2: memref<1x32xf32, #tpu.memory_space<vmem>>, %arg3: memref<5x160x32xf32, #tpu.memory_space<vmem>>, %arg4: memref<1x32xf32, #tpu.memory_space<vmem>>, %arg5: memref<4x128x64xf32, #tpu.memory_space<vmem>>, %arg6: memref<1x64xf32, #tpu.memory_space<vmem>>, %arg7: memref<3x192x64xf32, #tpu.memory_space<vmem>>, %arg8: memref<1x64xf32, #tpu.memory_space<vmem>>, %arg9: memref<3x3x64xf32, #tpu.memory_space<vmem>>, %arg10: memref<34x30x160xf32, #tpu.memory_space<vmem>>, %arg11: memref<17x14x128xf32, #tpu.memory_space<vmem>>, %arg12: memref<9x7x192xf32, #tpu.memory_space<vmem>>, %arg13: memref<64x32xf32, #tpu.memory_space<vmem>>, %arg14: memref<30x32xf32, #tpu.memory_space<vmem>>, %arg15: memref<14x64xf32, #tpu.memory_space<vmem>>, %arg16: memref<7x64xf32, #tpu.memory_space<vmem>>) attributes {dimension_semantics = [], scalar_prefetch = 0 : i64, scratch_operands = 7 : i64, tpu.core_type = #tpu.core_type<tc>} {
    %cst = arith.constant 0.000000e+00 : f32
    %0 = vector.broadcast %cst : f32 to vector<34x30x160xf32>
    %c0 = arith.constant 0 : index
    %c0_0 = arith.constant 0 : index
    %c0_1 = arith.constant 0 : index
    %1 = vector.load %arg10[%c0, %c0_0, %c0_1] : memref<34x30x160xf32, #tpu.memory_space<vmem>>, vector<34x30x160xf32>
    tpu.vector_store %arg10[%c0, %c0_0, %c0_1], %0 {strides = array<i32>} : memref<34x30x160xf32, #tpu.memory_space<vmem>>, vector<34x30x160xf32>,
    %cst_2 = arith.constant 0.000000e+00 : f32
    %2 = vector.broadcast %cst_2 : f32 to vector<17x14x128xf32>
    %c0_3 = arith.constant 0 : index
    %c0_4 = arith.constant 0 : index
    %c0_5 = arith.constant 0 : index
    %3 = vector.load %arg11[%c0_3, %c0_4, %c0_5] : memref<17x14x128xf32, #tpu.memory_space<vmem>>, vector<17x14x128xf32>
    tpu.vector_store %arg11[%c0_3, %c0_4, %c0_5], %2 {strides = array<i32>} : memref<17x14x128xf32, #tpu.memory_space<vmem>>, vector<17x14x128xf32>,
    %cst_6 = arith.constant 0.000000e+00 : f32
    %4 = vector.broadcast %cst_6 : f32 to vector<9x7x192xf32>
    %c0_7 = arith.constant 0 : index
    %c0_8 = arith.constant 0 : index
    %c0_9 = arith.constant 0 : index
    %5 = vector.load %arg12[%c0_7, %c0_8, %c0_9] : memref<9x7x192xf32, #tpu.memory_space<vmem>>, vector<9x7x192xf32>
    tpu.vector_store %arg12[%c0_7, %c0_8, %c0_9], %4 {strides = array<i32>} : memref<9x7x192xf32, #tpu.memory_space<vmem>>, vector<9x7x192xf32>,
    %c0_10 = arith.constant 0 : index
    %c0_11 = arith.constant 0 : index
    %6 = vector.load %arg1[%c0_10, %c0_11] : memref<100x32xf32, #tpu.memory_space<vmem>>, vector<100x32xf32>
    %c0_12 = arith.constant 0 : index
    %c0_13 = arith.constant 0 : index
    %7 = vector.load %arg2[%c0_12, %c0_13] : memref<1x32xf32, #tpu.memory_space<vmem>>, vector<1x32xf32>
    %c0_i32 = arith.constant 0 : i32
    %c32_i32 = arith.constant 32 : i32
    %8 = arith.addi %c0_i32, %c32_i32 : i32
    %c1_i32 = arith.constant 1 : i32
    scf.for %arg17 = %c0_i32 to %8 step %c1_i32  : i32 {
      %c128_i32 = arith.constant 128 : i32
      %12 = arith.muli %arg17, %c128_i32 : i32
      %13 = tpu.assume_multiple %12, 128 : i32
      %14 = arith.index_cast %13 : i32 to index
      %c0_24 = arith.constant 0 : index
      %15 = vector.load %arg0[%14, %c0_24] : memref<4096x100xf32, #tpu.memory_space<vmem>>, vector<128x100xf32>
      %cst_25 = arith.constant dense<0.000000e+00> : vector<128x32xf32>
      %16 = tpu.matmul %15, %6, %cst_25 {dimension_numbers = #tpu.dot_dimension_numbers<[1], [0], [0], [1], [0, 0, 1, 1], [], []>} : vector<128x100xf32>, vector<100x32xf32>, vector<128x32xf32> -> vector<128x32xf32>
      %17 = vector.broadcast %7 : vector<1x32xf32> to vector<128x32xf32>
      %18 = arith.addf %16, %17 : vector<128x32xf32>
      %19 = vector.extract_strided_slice %18 {offsets = [0, 0], sizes = [64, 32], strides = [1, 1]} : vector<128x32xf32> to vector<64x32xf32>
      %20 = vector.extract_strided_slice %18 {offsets = [64, 0], sizes = [64, 32], strides = [1, 1]} : vector<128x32xf32> to vector<64x32xf32>
      %21 = arith.maximumf %19, %20 : vector<64x32xf32>
      %c0_26 = arith.constant 0 : index
      %c0_27 = arith.constant 0 : index
      %22 = vector.load %arg13[%c0_26, %c0_27] : memref<64x32xf32, #tpu.memory_space<vmem>>, vector<64x32xf32>
      tpu.vector_store %arg13[%c0_26, %c0_27], %21 {strides = array<i32>} : memref<64x32xf32, #tpu.memory_space<vmem>>, vector<64x32xf32>,
      %c0_28 = arith.constant 0 : index
      %c0_29 = arith.constant 0 : index
      %23 = tpu.strided_load %arg13[%c0_28, %c0_29] {strides = array<i32: 2, 1>} : memref<64x32xf32, #tpu.memory_space<vmem>>, vector<32x32xf32>
      %c1 = arith.constant 1 : index
      %c0_30 = arith.constant 0 : index
      %24 = tpu.strided_load %arg13[%c1, %c0_30] {strides = array<i32: 2, 1>} : memref<64x32xf32, #tpu.memory_space<vmem>>, vector<32x32xf32>
      %25 = arith.maximumf %23, %24 : vector<32x32xf32>
      %c1_i32_31 = arith.constant 1 : i32
      %26 = arith.addi %c1_i32_31, %arg17 : i32
      %27 = vector.extract_strided_slice %25 {offsets = [0, 0], sizes = [29, 32], strides = [1, 1]} : vector<32x32xf32> to vector<29x32xf32>
      %28 = arith.index_cast %26 : i32 to index
      %c1_32 = arith.constant 1 : index
      %c0_33 = arith.constant 0 : index
      %29 = vector.load %arg10[%28, %c1_32, %c0_33] : memref<34x30x160xf32, #tpu.memory_space<vmem>>, vector<1x29x32xf32>
      %30 = vector.shape_cast %29 : vector<1x29x32xf32> to vector<29x32xf32>
      %31 = vector.shape_cast %27 : vector<29x32xf32> to vector<1x29x32xf32>
      tpu.vector_store %arg10[%28, %c1_32, %c0_33], %31 {strides = array<i32>} : memref<34x30x160xf32, #tpu.memory_space<vmem>>, vector<1x29x32xf32>,
      %32 = vector.extract_strided_slice %25 {offsets = [0, 0], sizes = [30, 32], strides = [1, 1]} : vector<32x32xf32> to vector<30x32xf32>
      %33 = arith.index_cast %26 : i32 to index
      %c0_34 = arith.constant 0 : index
      %c32 = arith.constant 32 : index
      %34 = vector.load %arg10[%33, %c0_34, %c32] : memref<34x30x160xf32, #tpu.memory_space<vmem>>, vector<1x30x32xf32>
      %35 = vector.shape_cast %34 : vector<1x30x32xf32> to vector<30x32xf32>
      %36 = vector.shape_cast %32 : vector<30x32xf32> to vector<1x30x32xf32>
      tpu.vector_store %arg10[%33, %c0_34, %c32], %36 {strides = array<i32>} : memref<34x30x160xf32, #tpu.memory_space<vmem>>, vector<1x30x32xf32>,
      %37 = vector.extract_strided_slice %25 {offsets = [1, 0], sizes = [30, 32], strides = [1, 1]} : vector<32x32xf32> to vector<30x32xf32>
      %38 = arith.index_cast %26 : i32 to index
      %c0_35 = arith.constant 0 : index
      %c64 = arith.constant 64 : index
      %39 = vector.load %arg10[%38, %c0_35, %c64] : memref<34x30x160xf32, #tpu.memory_space<vmem>>, vector<1x30x32xf32>
      %40 = vector.shape_cast %39 : vector<1x30x32xf32> to vector<30x32xf32>
      %41 = vector.shape_cast %37 : vector<30x32xf32> to vector<1x30x32xf32>
      tpu.vector_store %arg10[%38, %c0_35, %c64], %41 {strides = array<i32>} : memref<34x30x160xf32, #tpu.memory_space<vmem>>, vector<1x30x32xf32>,
      %42 = vector.extract_strided_slice %25 {offsets = [2, 0], sizes = [30, 32], strides = [1, 1]} : vector<32x32xf32> to vector<30x32xf32>
      %43 = arith.index_cast %26 : i32 to index
      %c0_36 = arith.constant 0 : index
      %c96 = arith.constant 96 : index
      %44 = vector.load %arg10[%43, %c0_36, %c96] : memref<34x30x160xf32, #tpu.memory_space<vmem>>, vector<1x30x32xf32>
      %45 = vector.shape_cast %44 : vector<1x30x32xf32> to vector<30x32xf32>
      %46 = vector.shape_cast %42 : vector<30x32xf32> to vector<1x30x32xf32>
      tpu.vector_store %arg10[%43, %c0_36, %c96], %46 {strides = array<i32>} : memref<34x30x160xf32, #tpu.memory_space<vmem>>, vector<1x30x32xf32>,
      %47 = vector.extract_strided_slice %25 {offsets = [3, 0], sizes = [29, 32], strides = [1, 1]} : vector<32x32xf32> to vector<29x32xf32>
      %48 = arith.index_cast %26 : i32 to index
      %c0_37 = arith.constant 0 : index
      %c128 = arith.constant 128 : index
      %49 = vector.load %arg10[%48, %c0_37, %c128] : memref<34x30x160xf32, #tpu.memory_space<vmem>>, vector<1x29x32xf32>
      %50 = vector.shape_cast %49 : vector<1x29x32xf32> to vector<29x32xf32>
      %51 = vector.shape_cast %47 : vector<29x32xf32> to vector<1x29x32xf32>
      tpu.vector_store %arg10[%48, %c0_37, %c128], %51 {strides = array<i32>} : memref<34x30x160xf32, #tpu.memory_space<vmem>>, vector<1x29x32xf32>,
    }
    %c32_i32_14 = arith.constant 32 : i32
    %c0_i32_15 = arith.constant 0 : i32
    %c15_i32 = arith.constant 15 : i32
    %9 = arith.addi %c0_i32_15, %c15_i32 : i32
    %c1_i32_16 = arith.constant 1 : i32
    scf.for %arg17 = %c0_i32_15 to %9 step %c1_i32_16  : i32 {
      %c2_i32 = arith.constant 2 : i32
      %12 = arith.muli %c2_i32, %arg17 : i32
      %cst_24 = arith.constant 0.000000e+00 : f32
      %13 = vector.broadcast %cst_24 : f32 to vector<30x32xf32>
      %c0_25 = arith.constant 0 : index
      %c0_26 = arith.constant 0 : index
      %14 = vector.load %arg4[%c0_25, %c0_26] : memref<1x32xf32, #tpu.memory_space<vmem>>, vector<1x32xf32>
      %15 = vector.broadcast %14 : vector<1x32xf32> to vector<30x32xf32>
      %16 = arith.addf %13, %15 : vector<30x32xf32>
      %c0_i32_27 = arith.constant 0 : i32
      %17 = arith.addi %12, %c0_i32_27 : i32
      %18 = arith.index_cast %17 : i32 to index
      %c0_28 = arith.constant 0 : index
      %c0_29 = arith.constant 0 : index
      %19 = vector.load %arg10[%18, %c0_28, %c0_29] : memref<34x30x160xf32, #tpu.memory_space<vmem>>, vector<1x30x160xf32>
      %20 = vector.shape_cast %19 : vector<1x30x160xf32> to vector<30x160xf32>
      %c0_30 = arith.constant 0 : index
      %c0_31 = arith.constant 0 : index
      %c0_32 = arith.constant 0 : index
      %21 = vector.load %arg3[%c0_30, %c0_31, %c0_32] : memref<5x160x32xf32, #tpu.memory_space<vmem>>, vector<1x160x32xf32>
      %22 = vector.shape_cast %21 : vector<1x160x32xf32> to vector<160x32xf32>
      %cst_33 = arith.constant dense<0.000000e+00> : vector<30x32xf32>
      %23 = tpu.matmul %20, %22, %cst_33 {dimension_numbers = #tpu.dot_dimension_numbers<[1], [0], [0], [1], [0, 0, 1, 1], [], []>} : vector<30x160xf32>, vector<160x32xf32>, vector<30x32xf32> -> vector<30x32xf32>
      %24 = arith.addf %16, %23 : vector<30x32xf32>
      %c1_i32_34 = arith.constant 1 : i32
      %25 = arith.addi %12, %c1_i32_34 : i32
      %26 = arith.index_cast %25 : i32 to index
      %c0_35 = arith.constant 0 : index
      %c0_36 = arith.constant 0 : index
      %27 = vector.load %arg10[%26, %c0_35, %c0_36] : memref<34x30x160xf32, #tpu.memory_space<vmem>>, vector<1x30x160xf32>
      %28 = vector.shape_cast %27 : vector<1x30x160xf32> to vector<30x160xf32>
      %c1 = arith.constant 1 : index
      %c0_37 = arith.constant 0 : index
      %c0_38 = arith.constant 0 : index
      %29 = vector.load %arg3[%c1, %c0_37, %c0_38] : memref<5x160x32xf32, #tpu.memory_space<vmem>>, vector<1x160x32xf32>
      %30 = vector.shape_cast %29 : vector<1x160x32xf32> to vector<160x32xf32>
      %cst_39 = arith.constant dense<0.000000e+00> : vector<30x32xf32>
      %31 = tpu.matmul %28, %30, %cst_39 {dimension_numbers = #tpu.dot_dimension_numbers<[1], [0], [0], [1], [0, 0, 1, 1], [], []>} : vector<30x160xf32>, vector<160x32xf32>, vector<30x32xf32> -> vector<30x32xf32>
      %32 = arith.addf %24, %31 : vector<30x32xf32>
      %c2_i32_40 = arith.constant 2 : i32
      %33 = arith.addi %12, %c2_i32_40 : i32
      %34 = arith.index_cast %33 : i32 to index
      %c0_41 = arith.constant 0 : index
      %c0_42 = arith.constant 0 : index
      %35 = vector.load %arg10[%34, %c0_41, %c0_42] : memref<34x30x160xf32, #tpu.memory_space<vmem>>, vector<1x30x160xf32>
      %36 = vector.shape_cast %35 : vector<1x30x160xf32> to vector<30x160xf32>
      %c2 = arith.constant 2 : index
      %c0_43 = arith.constant 0 : index
      %c0_44 = arith.constant 0 : index
      %37 = vector.load %arg3[%c2, %c0_43, %c0_44] : memref<5x160x32xf32, #tpu.memory_space<vmem>>, vector<1x160x32xf32>
      %38 = vector.shape_cast %37 : vector<1x160x32xf32> to vector<160x32xf32>
      %cst_45 = arith.constant dense<0.000000e+00> : vector<30x32xf32>
      %39 = tpu.matmul %36, %38, %cst_45 {dimension_numbers = #tpu.dot_dimension_numbers<[1], [0], [0], [1], [0, 0, 1, 1], [], []>} : vector<30x160xf32>, vector<160x32xf32>, vector<30x32xf32> -> vector<30x32xf32>
      %40 = arith.addf %32, %39 : vector<30x32xf32>
      %c3_i32_46 = arith.constant 3 : i32
      %41 = arith.addi %12, %c3_i32_46 : i32
      %42 = arith.index_cast %41 : i32 to index
      %c0_47 = arith.constant 0 : index
      %c0_48 = arith.constant 0 : index
      %43 = vector.load %arg10[%42, %c0_47, %c0_48] : memref<34x30x160xf32, #tpu.memory_space<vmem>>, vector<1x30x160xf32>
      %44 = vector.shape_cast %43 : vector<1x30x160xf32> to vector<30x160xf32>
      %c3 = arith.constant 3 : index
      %c0_49 = arith.constant 0 : index
      %c0_50 = arith.constant 0 : index
      %45 = vector.load %arg3[%c3, %c0_49, %c0_50] : memref<5x160x32xf32, #tpu.memory_space<vmem>>, vector<1x160x32xf32>
      %46 = vector.shape_cast %45 : vector<1x160x32xf32> to vector<160x32xf32>
      %cst_51 = arith.constant dense<0.000000e+00> : vector<30x32xf32>
      %47 = tpu.matmul %44, %46, %cst_51 {dimension_numbers = #tpu.dot_dimension_numbers<[1], [0], [0], [1], [0, 0, 1, 1], [], []>} : vector<30x160xf32>, vector<160x32xf32>, vector<30x32xf32> -> vector<30x32xf32>
      %48 = arith.addf %40, %47 : vector<30x32xf32>
      %c4_i32 = arith.constant 4 : i32
      %49 = arith.addi %12, %c4_i32 : i32
      %50 = arith.index_cast %49 : i32 to index
      %c0_52 = arith.constant 0 : index
      %c0_53 = arith.constant 0 : index
      %51 = vector.load %arg10[%50, %c0_52, %c0_53] : memref<34x30x160xf32, #tpu.memory_space<vmem>>, vector<1x30x160xf32>
      %52 = vector.shape_cast %51 : vector<1x30x160xf32> to vector<30x160xf32>
      %c4 = arith.constant 4 : index
      %c0_54 = arith.constant 0 : index
      %c0_55 = arith.constant 0 : index
      %53 = vector.load %arg3[%c4, %c0_54, %c0_55] : memref<5x160x32xf32, #tpu.memory_space<vmem>>, vector<1x160x32xf32>
      %54 = vector.shape_cast %53 : vector<1x160x32xf32> to vector<160x32xf32>
      %cst_56 = arith.constant dense<0.000000e+00> : vector<30x32xf32>
      %55 = tpu.matmul %52, %54, %cst_56 {dimension_numbers = #tpu.dot_dimension_numbers<[1], [0], [0], [1], [0, 0, 1, 1], [], []>} : vector<30x160xf32>, vector<160x32xf32>, vector<30x32xf32> -> vector<30x32xf32>
      %56 = arith.addf %48, %55 : vector<30x32xf32>
      %c2_i32_57 = arith.constant 2 : i32
      %57 = arith.muli %c2_i32_57, %arg17 : i32
      %c1_i32_58 = arith.constant 1 : i32
      %58 = arith.addi %57, %c1_i32_58 : i32
      %cst_59 = arith.constant 0.000000e+00 : f32
      %59 = vector.broadcast %cst_59 : f32 to vector<30x32xf32>
      %c0_60 = arith.constant 0 : index
      %c0_61 = arith.constant 0 : index
      %60 = vector.load %arg4[%c0_60, %c0_61] : memref<1x32xf32, #tpu.memory_space<vmem>>, vector<1x32xf32>
      %61 = vector.broadcast %60 : vector<1x32xf32> to vector<30x32xf32>
      %62 = arith.addf %59, %61 : vector<30x32xf32>
      %c0_i32_62 = arith.constant 0 : i32
      %63 = arith.addi %58, %c0_i32_62 : i32
      %64 = arith.index_cast %63 : i32 to index
      %c0_63 = arith.constant 0 : index
      %c0_64 = arith.constant 0 : index
      %65 = vector.load %arg10[%64, %c0_63, %c0_64] : memref<34x30x160xf32, #tpu.memory_space<vmem>>, vector<1x30x160xf32>
      %66 = vector.shape_cast %65 : vector<1x30x160xf32> to vector<30x160xf32>
      %c0_65 = arith.constant 0 : index
      %c0_66 = arith.constant 0 : index
      %c0_67 = arith.constant 0 : index
      %67 = vector.load %arg3[%c0_65, %c0_66, %c0_67] : memref<5x160x32xf32, #tpu.memory_space<vmem>>, vector<1x160x32xf32>
      %68 = vector.shape_cast %67 : vector<1x160x32xf32> to vector<160x32xf32>
      %cst_68 = arith.constant dense<0.000000e+00> : vector<30x32xf32>
      %69 = tpu.matmul %66, %68, %cst_68 {dimension_numbers = #tpu.dot_dimension_numbers<[1], [0], [0], [1], [0, 0, 1, 1], [], []>} : vector<30x160xf32>, vector<160x32xf32>, vector<30x32xf32> -> vector<30x32xf32>
      %70 = arith.addf %62, %69 : vector<30x32xf32>
      %c1_i32_69 = arith.constant 1 : i32
      %71 = arith.addi %58, %c1_i32_69 : i32
      %72 = arith.index_cast %71 : i32 to index
      %c0_70 = arith.constant 0 : index
      %c0_71 = arith.constant 0 : index
      %73 = vector.load %arg10[%72, %c0_70, %c0_71] : memref<34x30x160xf32, #tpu.memory_space<vmem>>, vector<1x30x160xf32>
      %74 = vector.shape_cast %73 : vector<1x30x160xf32> to vector<30x160xf32>
      %c1_72 = arith.constant 1 : index
      %c0_73 = arith.constant 0 : index
      %c0_74 = arith.constant 0 : index
      %75 = vector.load %arg3[%c1_72, %c0_73, %c0_74] : memref<5x160x32xf32, #tpu.memory_space<vmem>>, vector<1x160x32xf32>
      %76 = vector.shape_cast %75 : vector<1x160x32xf32> to vector<160x32xf32>
      %cst_75 = arith.constant dense<0.000000e+00> : vector<30x32xf32>
      %77 = tpu.matmul %74, %76, %cst_75 {dimension_numbers = #tpu.dot_dimension_numbers<[1], [0], [0], [1], [0, 0, 1, 1], [], []>} : vector<30x160xf32>, vector<160x32xf32>, vector<30x32xf32> -> vector<30x32xf32>
      %78 = arith.addf %70, %77 : vector<30x32xf32>
      %c2_i32_76 = arith.constant 2 : i32
      %79 = arith.addi %58, %c2_i32_76 : i32
      %80 = arith.index_cast %79 : i32 to index
      %c0_77 = arith.constant 0 : index
      %c0_78 = arith.constant 0 : index
      %81 = vector.load %arg10[%80, %c0_77, %c0_78] : memref<34x30x160xf32, #tpu.memory_space<vmem>>, vector<1x30x160xf32>
      %82 = vector.shape_cast %81 : vector<1x30x160xf32> to vector<30x160xf32>
      %c2_79 = arith.constant 2 : index
      %c0_80 = arith.constant 0 : index
      %c0_81 = arith.constant 0 : index
      %83 = vector.load %arg3[%c2_79, %c0_80, %c0_81] : memref<5x160x32xf32, #tpu.memory_space<vmem>>, vector<1x160x32xf32>
      %84 = vector.shape_cast %83 : vector<1x160x32xf32> to vector<160x32xf32>
      %cst_82 = arith.constant dense<0.000000e+00> : vector<30x32xf32>
      %85 = tpu.matmul %82, %84, %cst_82 {dimension_numbers = #tpu.dot_dimension_numbers<[1], [0], [0], [1], [0, 0, 1, 1], [], []>} : vector<30x160xf32>, vector<160x32xf32>, vector<30x32xf32> -> vector<30x32xf32>
      %86 = arith.addf %78, %85 : vector<30x32xf32>
      %c3_i32_83 = arith.constant 3 : i32
      %87 = arith.addi %58, %c3_i32_83 : i32
      %88 = arith.index_cast %87 : i32 to index
      %c0_84 = arith.constant 0 : index
      %c0_85 = arith.constant 0 : index
      %89 = vector.load %arg10[%88, %c0_84, %c0_85] : memref<34x30x160xf32, #tpu.memory_space<vmem>>, vector<1x30x160xf32>
      %90 = vector.shape_cast %89 : vector<1x30x160xf32> to vector<30x160xf32>
      %c3_86 = arith.constant 3 : index
      %c0_87 = arith.constant 0 : index
      %c0_88 = arith.constant 0 : index
      %91 = vector.load %arg3[%c3_86, %c0_87, %c0_88] : memref<5x160x32xf32, #tpu.memory_space<vmem>>, vector<1x160x32xf32>
      %92 = vector.shape_cast %91 : vector<1x160x32xf32> to vector<160x32xf32>
      %cst_89 = arith.constant dense<0.000000e+00> : vector<30x32xf32>
      %93 = tpu.matmul %90, %92, %cst_89 {dimension_numbers = #tpu.dot_dimension_numbers<[1], [0], [0], [1], [0, 0, 1, 1], [], []>} : vector<30x160xf32>, vector<160x32xf32>, vector<30x32xf32> -> vector<30x32xf32>
      %94 = arith.addf %86, %93 : vector<30x32xf32>
      %c4_i32_90 = arith.constant 4 : i32
      %95 = arith.addi %58, %c4_i32_90 : i32
      %96 = arith.index_cast %95 : i32 to index
      %c0_91 = arith.constant 0 : index
      %c0_92 = arith.constant 0 : index
      %97 = vector.load %arg10[%96, %c0_91, %c0_92] : memref<34x30x160xf32, #tpu.memory_space<vmem>>, vector<1x30x160xf32>
      %98 = vector.shape_cast %97 : vector<1x30x160xf32> to vector<30x160xf32>
      %c4_93 = arith.constant 4 : index
      %c0_94 = arith.constant 0 : index
      %c0_95 = arith.constant 0 : index
      %99 = vector.load %arg3[%c4_93, %c0_94, %c0_95] : memref<5x160x32xf32, #tpu.memory_space<vmem>>, vector<1x160x32xf32>
      %100 = vector.shape_cast %99 : vector<1x160x32xf32> to vector<160x32xf32>
      %cst_96 = arith.constant dense<0.000000e+00> : vector<30x32xf32>
      %101 = tpu.matmul %98, %100, %cst_96 {dimension_numbers = #tpu.dot_dimension_numbers<[1], [0], [0], [1], [0, 0, 1, 1], [], []>} : vector<30x160xf32>, vector<160x32xf32>, vector<30x32xf32> -> vector<30x32xf32>
      %102 = arith.addf %94, %101 : vector<30x32xf32>
      %103 = arith.maximumf %56, %102 : vector<30x32xf32>
      %c0_97 = arith.constant 0 : index
      %c0_98 = arith.constant 0 : index
      %104 = vector.load %arg14[%c0_97, %c0_98] : memref<30x32xf32, #tpu.memory_space<vmem>>, vector<30x32xf32>
      tpu.vector_store %arg14[%c0_97, %c0_98], %103 {strides = array<i32>} : memref<30x32xf32, #tpu.memory_space<vmem>>, vector<30x32xf32>,
      %c0_99 = arith.constant 0 : index
      %c0_100 = arith.constant 0 : index
      %105 = tpu.strided_load %arg14[%c0_99, %c0_100] {strides = array<i32: 2, 1>} : memref<30x32xf32, #tpu.memory_space<vmem>>, vector<15x32xf32>
      %c1_101 = arith.constant 1 : index
      %c0_102 = arith.constant 0 : index
      %106 = tpu.strided_load %arg14[%c1_101, %c0_102] {strides = array<i32: 2, 1>} : memref<30x32xf32, #tpu.memory_space<vmem>>, vector<15x32xf32>
      %107 = arith.maximumf %105, %106 : vector<15x32xf32>
      %c1_i32_103 = arith.constant 1 : i32
      %108 = arith.addi %c1_i32_103, %arg17 : i32
      %109 = vector.extract_strided_slice %107 {offsets = [0, 0], sizes = [13, 32], strides = [1, 1]} : vector<15x32xf32> to vector<13x32xf32>
      %110 = arith.index_cast %108 : i32 to index
      %c1_104 = arith.constant 1 : index
      %c0_105 = arith.constant 0 : index
      %111 = vector.load %arg11[%110, %c1_104, %c0_105] : memref<17x14x128xf32, #tpu.memory_space<vmem>>, vector<1x13x32xf32>
      %112 = vector.shape_cast %111 : vector<1x13x32xf32> to vector<13x32xf32>
      %113 = vector.shape_cast %109 : vector<13x32xf32> to vector<1x13x32xf32>
      tpu.vector_store %arg11[%110, %c1_104, %c0_105], %113 {strides = array<i32>} : memref<17x14x128xf32, #tpu.memory_space<vmem>>, vector<1x13x32xf32>,
      %114 = vector.extract_strided_slice %107 {offsets = [0, 0], sizes = [14, 32], strides = [1, 1]} : vector<15x32xf32> to vector<14x32xf32>
      %115 = arith.index_cast %108 : i32 to index
      %c0_106 = arith.constant 0 : index
      %c32 = arith.constant 32 : index
      %116 = vector.load %arg11[%115, %c0_106, %c32] : memref<17x14x128xf32, #tpu.memory_space<vmem>>, vector<1x14x32xf32>
      %117 = vector.shape_cast %116 : vector<1x14x32xf32> to vector<14x32xf32>
      %118 = vector.shape_cast %114 : vector<14x32xf32> to vector<1x14x32xf32>
      tpu.vector_store %arg11[%115, %c0_106, %c32], %118 {strides = array<i32>} : memref<17x14x128xf32, #tpu.memory_space<vmem>>, vector<1x14x32xf32>,
      %119 = vector.extract_strided_slice %107 {offsets = [1, 0], sizes = [14, 32], strides = [1, 1]} : vector<15x32xf32> to vector<14x32xf32>
      %120 = arith.index_cast %108 : i32 to index
      %c0_107 = arith.constant 0 : index
      %c64 = arith.constant 64 : index
      %121 = vector.load %arg11[%120, %c0_107, %c64] : memref<17x14x128xf32, #tpu.memory_space<vmem>>, vector<1x14x32xf32>
      %122 = vector.shape_cast %121 : vector<1x14x32xf32> to vector<14x32xf32>
      %123 = vector.shape_cast %119 : vector<14x32xf32> to vector<1x14x32xf32>
      tpu.vector_store %arg11[%120, %c0_107, %c64], %123 {strides = array<i32>} : memref<17x14x128xf32, #tpu.memory_space<vmem>>, vector<1x14x32xf32>,
      %124 = vector.extract_strided_slice %107 {offsets = [2, 0], sizes = [13, 32], strides = [1, 1]} : vector<15x32xf32> to vector<13x32xf32>
      %125 = arith.index_cast %108 : i32 to index
      %c0_108 = arith.constant 0 : index
      %c96 = arith.constant 96 : index
      %126 = vector.load %arg11[%125, %c0_108, %c96] : memref<17x14x128xf32, #tpu.memory_space<vmem>>, vector<1x13x32xf32>
      %127 = vector.shape_cast %126 : vector<1x13x32xf32> to vector<13x32xf32>
      %128 = vector.shape_cast %124 : vector<13x32xf32> to vector<1x13x32xf32>
      tpu.vector_store %arg11[%125, %c0_108, %c96], %128 {strides = array<i32>} : memref<17x14x128xf32, #tpu.memory_space<vmem>>, vector<1x13x32xf32>,
    }
    %c15_i32_17 = arith.constant 15 : i32
    %c0_i32_18 = arith.constant 0 : i32
    %c7_i32 = arith.constant 7 : i32
    %10 = arith.addi %c0_i32_18, %c7_i32 : i32
    %c1_i32_19 = arith.constant 1 : i32
    scf.for %arg17 = %c0_i32_18 to %10 step %c1_i32_19  : i32 {
      %c2_i32 = arith.constant 2 : i32
      %12 = arith.muli %c2_i32, %arg17 : i32
      %cst_24 = arith.constant 0.000000e+00 : f32
      %13 = vector.broadcast %cst_24 : f32 to vector<14x64xf32>
      %c0_25 = arith.constant 0 : index
      %c0_26 = arith.constant 0 : index
      %14 = vector.load %arg6[%c0_25, %c0_26] : memref<1x64xf32, #tpu.memory_space<vmem>>, vector<1x64xf32>
      %15 = vector.broadcast %14 : vector<1x64xf32> to vector<14x64xf32>
      %16 = arith.addf %13, %15 : vector<14x64xf32>
      %c0_i32_27 = arith.constant 0 : i32
      %17 = arith.addi %12, %c0_i32_27 : i32
      %18 = arith.index_cast %17 : i32 to index
      %c0_28 = arith.constant 0 : index
      %c0_29 = arith.constant 0 : index
      %19 = vector.load %arg11[%18, %c0_28, %c0_29] : memref<17x14x128xf32, #tpu.memory_space<vmem>>, vector<1x14x128xf32>
      %20 = vector.shape_cast %19 : vector<1x14x128xf32> to vector<14x128xf32>
      %c0_30 = arith.constant 0 : index
      %c0_31 = arith.constant 0 : index
      %c0_32 = arith.constant 0 : index
      %21 = vector.load %arg5[%c0_30, %c0_31, %c0_32] : memref<4x128x64xf32, #tpu.memory_space<vmem>>, vector<1x128x64xf32>
      %22 = vector.shape_cast %21 : vector<1x128x64xf32> to vector<128x64xf32>
      %cst_33 = arith.constant dense<0.000000e+00> : vector<14x64xf32>
      %23 = tpu.matmul %20, %22, %cst_33 {dimension_numbers = #tpu.dot_dimension_numbers<[1], [0], [0], [1], [0, 0, 1, 1], [], []>} : vector<14x128xf32>, vector<128x64xf32>, vector<14x64xf32> -> vector<14x64xf32>
      %24 = arith.addf %16, %23 : vector<14x64xf32>
      %c1_i32_34 = arith.constant 1 : i32
      %25 = arith.addi %12, %c1_i32_34 : i32
      %26 = arith.index_cast %25 : i32 to index
      %c0_35 = arith.constant 0 : index
      %c0_36 = arith.constant 0 : index
      %27 = vector.load %arg11[%26, %c0_35, %c0_36] : memref<17x14x128xf32, #tpu.memory_space<vmem>>, vector<1x14x128xf32>
      %28 = vector.shape_cast %27 : vector<1x14x128xf32> to vector<14x128xf32>
      %c1 = arith.constant 1 : index
      %c0_37 = arith.constant 0 : index
      %c0_38 = arith.constant 0 : index
      %29 = vector.load %arg5[%c1, %c0_37, %c0_38] : memref<4x128x64xf32, #tpu.memory_space<vmem>>, vector<1x128x64xf32>
      %30 = vector.shape_cast %29 : vector<1x128x64xf32> to vector<128x64xf32>
      %cst_39 = arith.constant dense<0.000000e+00> : vector<14x64xf32>
      %31 = tpu.matmul %28, %30, %cst_39 {dimension_numbers = #tpu.dot_dimension_numbers<[1], [0], [0], [1], [0, 0, 1, 1], [], []>} : vector<14x128xf32>, vector<128x64xf32>, vector<14x64xf32> -> vector<14x64xf32>
      %32 = arith.addf %24, %31 : vector<14x64xf32>
      %c2_i32_40 = arith.constant 2 : i32
      %33 = arith.addi %12, %c2_i32_40 : i32
      %34 = arith.index_cast %33 : i32 to index
      %c0_41 = arith.constant 0 : index
      %c0_42 = arith.constant 0 : index
      %35 = vector.load %arg11[%34, %c0_41, %c0_42] : memref<17x14x128xf32, #tpu.memory_space<vmem>>, vector<1x14x128xf32>
      %36 = vector.shape_cast %35 : vector<1x14x128xf32> to vector<14x128xf32>
      %c2 = arith.constant 2 : index
      %c0_43 = arith.constant 0 : index
      %c0_44 = arith.constant 0 : index
      %37 = vector.load %arg5[%c2, %c0_43, %c0_44] : memref<4x128x64xf32, #tpu.memory_space<vmem>>, vector<1x128x64xf32>
      %38 = vector.shape_cast %37 : vector<1x128x64xf32> to vector<128x64xf32>
      %cst_45 = arith.constant dense<0.000000e+00> : vector<14x64xf32>
      %39 = tpu.matmul %36, %38, %cst_45 {dimension_numbers = #tpu.dot_dimension_numbers<[1], [0], [0], [1], [0, 0, 1, 1], [], []>} : vector<14x128xf32>, vector<128x64xf32>, vector<14x64xf32> -> vector<14x64xf32>
      %40 = arith.addf %32, %39 : vector<14x64xf32>
      %c3_i32_46 = arith.constant 3 : i32
      %41 = arith.addi %12, %c3_i32_46 : i32
      %42 = arith.index_cast %41 : i32 to index
      %c0_47 = arith.constant 0 : index
      %c0_48 = arith.constant 0 : index
      %43 = vector.load %arg11[%42, %c0_47, %c0_48] : memref<17x14x128xf32, #tpu.memory_space<vmem>>, vector<1x14x128xf32>
      %44 = vector.shape_cast %43 : vector<1x14x128xf32> to vector<14x128xf32>
      %c3 = arith.constant 3 : index
      %c0_49 = arith.constant 0 : index
      %c0_50 = arith.constant 0 : index
      %45 = vector.load %arg5[%c3, %c0_49, %c0_50] : memref<4x128x64xf32, #tpu.memory_space<vmem>>, vector<1x128x64xf32>
      %46 = vector.shape_cast %45 : vector<1x128x64xf32> to vector<128x64xf32>
      %cst_51 = arith.constant dense<0.000000e+00> : vector<14x64xf32>
      %47 = tpu.matmul %44, %46, %cst_51 {dimension_numbers = #tpu.dot_dimension_numbers<[1], [0], [0], [1], [0, 0, 1, 1], [], []>} : vector<14x128xf32>, vector<128x64xf32>, vector<14x64xf32> -> vector<14x64xf32>
      %48 = arith.addf %40, %47 : vector<14x64xf32>
      %c2_i32_52 = arith.constant 2 : i32
      %49 = arith.muli %c2_i32_52, %arg17 : i32
      %c1_i32_53 = arith.constant 1 : i32
      %50 = arith.addi %49, %c1_i32_53 : i32
      %cst_54 = arith.constant 0.000000e+00 : f32
      %51 = vector.broadcast %cst_54 : f32 to vector<14x64xf32>
      %c0_55 = arith.constant 0 : index
      %c0_56 = arith.constant 0 : index
      %52 = vector.load %arg6[%c0_55, %c0_56] : memref<1x64xf32, #tpu.memory_space<vmem>>, vector<1x64xf32>
      %53 = vector.broadcast %52 : vector<1x64xf32> to vector<14x64xf32>
      %54 = arith.addf %51, %53 : vector<14x64xf32>
      %c0_i32_57 = arith.constant 0 : i32
      %55 = arith.addi %50, %c0_i32_57 : i32
      %56 = arith.index_cast %55 : i32 to index
      %c0_58 = arith.constant 0 : index
      %c0_59 = arith.constant 0 : index
      %57 = vector.load %arg11[%56, %c0_58, %c0_59] : memref<17x14x128xf32, #tpu.memory_space<vmem>>, vector<1x14x128xf32>
      %58 = vector.shape_cast %57 : vector<1x14x128xf32> to vector<14x128xf32>
      %c0_60 = arith.constant 0 : index
      %c0_61 = arith.constant 0 : index
      %c0_62 = arith.constant 0 : index
      %59 = vector.load %arg5[%c0_60, %c0_61, %c0_62] : memref<4x128x64xf32, #tpu.memory_space<vmem>>, vector<1x128x64xf32>
      %60 = vector.shape_cast %59 : vector<1x128x64xf32> to vector<128x64xf32>
      %cst_63 = arith.constant dense<0.000000e+00> : vector<14x64xf32>
      %61 = tpu.matmul %58, %60, %cst_63 {dimension_numbers = #tpu.dot_dimension_numbers<[1], [0], [0], [1], [0, 0, 1, 1], [], []>} : vector<14x128xf32>, vector<128x64xf32>, vector<14x64xf32> -> vector<14x64xf32>
      %62 = arith.addf %54, %61 : vector<14x64xf32>
      %c1_i32_64 = arith.constant 1 : i32
      %63 = arith.addi %50, %c1_i32_64 : i32
      %64 = arith.index_cast %63 : i32 to index
      %c0_65 = arith.constant 0 : index
      %c0_66 = arith.constant 0 : index
      %65 = vector.load %arg11[%64, %c0_65, %c0_66] : memref<17x14x128xf32, #tpu.memory_space<vmem>>, vector<1x14x128xf32>
      %66 = vector.shape_cast %65 : vector<1x14x128xf32> to vector<14x128xf32>
      %c1_67 = arith.constant 1 : index
      %c0_68 = arith.constant 0 : index
      %c0_69 = arith.constant 0 : index
      %67 = vector.load %arg5[%c1_67, %c0_68, %c0_69] : memref<4x128x64xf32, #tpu.memory_space<vmem>>, vector<1x128x64xf32>
      %68 = vector.shape_cast %67 : vector<1x128x64xf32> to vector<128x64xf32>
      %cst_70 = arith.constant dense<0.000000e+00> : vector<14x64xf32>
      %69 = tpu.matmul %66, %68, %cst_70 {dimension_numbers = #tpu.dot_dimension_numbers<[1], [0], [0], [1], [0, 0, 1, 1], [], []>} : vector<14x128xf32>, vector<128x64xf32>, vector<14x64xf32> -> vector<14x64xf32>
      %70 = arith.addf %62, %69 : vector<14x64xf32>
      %c2_i32_71 = arith.constant 2 : i32
      %71 = arith.addi %50, %c2_i32_71 : i32
      %72 = arith.index_cast %71 : i32 to index
      %c0_72 = arith.constant 0 : index
      %c0_73 = arith.constant 0 : index
      %73 = vector.load %arg11[%72, %c0_72, %c0_73] : memref<17x14x128xf32, #tpu.memory_space<vmem>>, vector<1x14x128xf32>
      %74 = vector.shape_cast %73 : vector<1x14x128xf32> to vector<14x128xf32>
      %c2_74 = arith.constant 2 : index
      %c0_75 = arith.constant 0 : index
      %c0_76 = arith.constant 0 : index
      %75 = vector.load %arg5[%c2_74, %c0_75, %c0_76] : memref<4x128x64xf32, #tpu.memory_space<vmem>>, vector<1x128x64xf32>
      %76 = vector.shape_cast %75 : vector<1x128x64xf32> to vector<128x64xf32>
      %cst_77 = arith.constant dense<0.000000e+00> : vector<14x64xf32>
      %77 = tpu.matmul %74, %76, %cst_77 {dimension_numbers = #tpu.dot_dimension_numbers<[1], [0], [0], [1], [0, 0, 1, 1], [], []>} : vector<14x128xf32>, vector<128x64xf32>, vector<14x64xf32> -> vector<14x64xf32>
      %78 = arith.addf %70, %77 : vector<14x64xf32>
      %c3_i32_78 = arith.constant 3 : i32
      %79 = arith.addi %50, %c3_i32_78 : i32
      %80 = arith.index_cast %79 : i32 to index
      %c0_79 = arith.constant 0 : index
      %c0_80 = arith.constant 0 : index
      %81 = vector.load %arg11[%80, %c0_79, %c0_80] : memref<17x14x128xf32, #tpu.memory_space<vmem>>, vector<1x14x128xf32>
      %82 = vector.shape_cast %81 : vector<1x14x128xf32> to vector<14x128xf32>
      %c3_81 = arith.constant 3 : index
      %c0_82 = arith.constant 0 : index
      %c0_83 = arith.constant 0 : index
      %83 = vector.load %arg5[%c3_81, %c0_82, %c0_83] : memref<4x128x64xf32, #tpu.memory_space<vmem>>, vector<1x128x64xf32>
      %84 = vector.shape_cast %83 : vector<1x128x64xf32> to vector<128x64xf32>
      %cst_84 = arith.constant dense<0.000000e+00> : vector<14x64xf32>
      %85 = tpu.matmul %82, %84, %cst_84 {dimension_numbers = #tpu.dot_dimension_numbers<[1], [0], [0], [1], [0, 0, 1, 1], [], []>} : vector<14x128xf32>, vector<128x64xf32>, vector<14x64xf32> -> vector<14x64xf32>
      %86 = arith.addf %78, %85 : vector<14x64xf32>
      %87 = arith.maximumf %48, %86 : vector<14x64xf32>
      %c0_85 = arith.constant 0 : index
      %c0_86 = arith.constant 0 : index
      %88 = vector.load %arg15[%c0_85, %c0_86] : memref<14x64xf32, #tpu.memory_space<vmem>>, vector<14x64xf32>
      tpu.vector_store %arg15[%c0_85, %c0_86], %87 {strides = array<i32>} : memref<14x64xf32, #tpu.memory_space<vmem>>, vector<14x64xf32>,
      %c0_87 = arith.constant 0 : index
      %c0_88 = arith.constant 0 : index
      %89 = tpu.strided_load %arg15[%c0_87, %c0_88] {strides = array<i32: 2, 1>} : memref<14x64xf32, #tpu.memory_space<vmem>>, vector<7x64xf32>
      %c1_89 = arith.constant 1 : index
      %c0_90 = arith.constant 0 : index
      %90 = tpu.strided_load %arg15[%c1_89, %c0_90] {strides = array<i32: 2, 1>} : memref<14x64xf32, #tpu.memory_space<vmem>>, vector<7x64xf32>
      %91 = arith.maximumf %89, %90 : vector<7x64xf32>
      %c1_i32_91 = arith.constant 1 : i32
      %92 = arith.addi %c1_i32_91, %arg17 : i32
      %93 = vector.extract_strided_slice %91 {offsets = [0, 0], sizes = [6, 64], strides = [1, 1]} : vector<7x64xf32> to vector<6x64xf32>
      %94 = arith.index_cast %92 : i32 to index
      %c1_92 = arith.constant 1 : index
      %c0_93 = arith.constant 0 : index
      %95 = vector.load %arg12[%94, %c1_92, %c0_93] : memref<9x7x192xf32, #tpu.memory_space<vmem>>, vector<1x6x64xf32>
      %96 = vector.shape_cast %95 : vector<1x6x64xf32> to vector<6x64xf32>
      %97 = vector.shape_cast %93 : vector<6x64xf32> to vector<1x6x64xf32>
      tpu.vector_store %arg12[%94, %c1_92, %c0_93], %97 {strides = array<i32>} : memref<9x7x192xf32, #tpu.memory_space<vmem>>, vector<1x6x64xf32>,
      %98 = arith.index_cast %92 : i32 to index
      %c0_94 = arith.constant 0 : index
      %c64 = arith.constant 64 : index
      %99 = vector.load %arg12[%98, %c0_94, %c64] : memref<9x7x192xf32, #tpu.memory_space<vmem>>, vector<1x7x64xf32>
      %100 = vector.shape_cast %99 : vector<1x7x64xf32> to vector<7x64xf32>
      %101 = vector.shape_cast %91 : vector<7x64xf32> to vector<1x7x64xf32>
      tpu.vector_store %arg12[%98, %c0_94, %c64], %101 {strides = array<i32>} : memref<9x7x192xf32, #tpu.memory_space<vmem>>, vector<1x7x64xf32>,
      %102 = vector.extract_strided_slice %91 {offsets = [1, 0], sizes = [6, 64], strides = [1, 1]} : vector<7x64xf32> to vector<6x64xf32>
      %103 = arith.index_cast %92 : i32 to index
      %c0_95 = arith.constant 0 : index
      %c128 = arith.constant 128 : index
      %104 = vector.load %arg12[%103, %c0_95, %c128] : memref<9x7x192xf32, #tpu.memory_space<vmem>>, vector<1x6x64xf32>
      %105 = vector.shape_cast %104 : vector<1x6x64xf32> to vector<6x64xf32>
      %106 = vector.shape_cast %102 : vector<6x64xf32> to vector<1x6x64xf32>
      tpu.vector_store %arg12[%103, %c0_95, %c128], %106 {strides = array<i32>} : memref<9x7x192xf32, #tpu.memory_space<vmem>>, vector<1x6x64xf32>,
    }
    %c7_i32_20 = arith.constant 7 : i32
    %c0_i32_21 = arith.constant 0 : i32
    %c3_i32 = arith.constant 3 : i32
    %11 = arith.addi %c0_i32_21, %c3_i32 : i32
    %c1_i32_22 = arith.constant 1 : i32
    scf.for %arg17 = %c0_i32_21 to %11 step %c1_i32_22  : i32 {
      %c2_i32 = arith.constant 2 : i32
      %12 = arith.muli %c2_i32, %arg17 : i32
      %cst_24 = arith.constant 0.000000e+00 : f32
      %13 = vector.broadcast %cst_24 : f32 to vector<7x64xf32>
      %c0_25 = arith.constant 0 : index
      %c0_26 = arith.constant 0 : index
      %14 = vector.load %arg8[%c0_25, %c0_26] : memref<1x64xf32, #tpu.memory_space<vmem>>, vector<1x64xf32>
      %15 = vector.broadcast %14 : vector<1x64xf32> to vector<7x64xf32>
      %16 = arith.addf %13, %15 : vector<7x64xf32>
      %c0_i32_27 = arith.constant 0 : i32
      %17 = arith.addi %12, %c0_i32_27 : i32
      %18 = arith.index_cast %17 : i32 to index
      %c0_28 = arith.constant 0 : index
      %c0_29 = arith.constant 0 : index
      %19 = vector.load %arg12[%18, %c0_28, %c0_29] : memref<9x7x192xf32, #tpu.memory_space<vmem>>, vector<1x7x192xf32>
      %20 = vector.shape_cast %19 : vector<1x7x192xf32> to vector<7x192xf32>
      %c0_30 = arith.constant 0 : index
      %c0_31 = arith.constant 0 : index
      %c0_32 = arith.constant 0 : index
      %21 = vector.load %arg7[%c0_30, %c0_31, %c0_32] : memref<3x192x64xf32, #tpu.memory_space<vmem>>, vector<1x192x64xf32>
      %22 = vector.shape_cast %21 : vector<1x192x64xf32> to vector<192x64xf32>
      %cst_33 = arith.constant dense<0.000000e+00> : vector<7x64xf32>
      %23 = tpu.matmul %20, %22, %cst_33 {dimension_numbers = #tpu.dot_dimension_numbers<[1], [0], [0], [1], [0, 0, 1, 1], [], []>} : vector<7x192xf32>, vector<192x64xf32>, vector<7x64xf32> -> vector<7x64xf32>
      %24 = arith.addf %16, %23 : vector<7x64xf32>
      %c1_i32_34 = arith.constant 1 : i32
      %25 = arith.addi %12, %c1_i32_34 : i32
      %26 = arith.index_cast %25 : i32 to index
      %c0_35 = arith.constant 0 : index
      %c0_36 = arith.constant 0 : index
      %27 = vector.load %arg12[%26, %c0_35, %c0_36] : memref<9x7x192xf32, #tpu.memory_space<vmem>>, vector<1x7x192xf32>
      %28 = vector.shape_cast %27 : vector<1x7x192xf32> to vector<7x192xf32>
      %c1 = arith.constant 1 : index
      %c0_37 = arith.constant 0 : index
      %c0_38 = arith.constant 0 : index
      %29 = vector.load %arg7[%c1, %c0_37, %c0_38] : memref<3x192x64xf32, #tpu.memory_space<vmem>>, vector<1x192x64xf32>
      %30 = vector.shape_cast %29 : vector<1x192x64xf32> to vector<192x64xf32>
      %cst_39 = arith.constant dense<0.000000e+00> : vector<7x64xf32>
      %31 = tpu.matmul %28, %30, %cst_39 {dimension_numbers = #tpu.dot_dimension_numbers<[1], [0], [0], [1], [0, 0, 1, 1], [], []>} : vector<7x192xf32>, vector<192x64xf32>, vector<7x64xf32> -> vector<7x64xf32>
      %32 = arith.addf %24, %31 : vector<7x64xf32>
      %c2_i32_40 = arith.constant 2 : i32
      %33 = arith.addi %12, %c2_i32_40 : i32
      %34 = arith.index_cast %33 : i32 to index
      %c0_41 = arith.constant 0 : index
      %c0_42 = arith.constant 0 : index
      %35 = vector.load %arg12[%34, %c0_41, %c0_42] : memref<9x7x192xf32, #tpu.memory_space<vmem>>, vector<1x7x192xf32>
      %36 = vector.shape_cast %35 : vector<1x7x192xf32> to vector<7x192xf32>
      %c2 = arith.constant 2 : index
      %c0_43 = arith.constant 0 : index
      %c0_44 = arith.constant 0 : index
      %37 = vector.load %arg7[%c2, %c0_43, %c0_44] : memref<3x192x64xf32, #tpu.memory_space<vmem>>, vector<1x192x64xf32>
      %38 = vector.shape_cast %37 : vector<1x192x64xf32> to vector<192x64xf32>
      %cst_45 = arith.constant dense<0.000000e+00> : vector<7x64xf32>
      %39 = tpu.matmul %36, %38, %cst_45 {dimension_numbers = #tpu.dot_dimension_numbers<[1], [0], [0], [1], [0, 0, 1, 1], [], []>} : vector<7x192xf32>, vector<192x64xf32>, vector<7x64xf32> -> vector<7x64xf32>
      %40 = arith.addf %32, %39 : vector<7x64xf32>
      %c2_i32_46 = arith.constant 2 : i32
      %41 = arith.muli %c2_i32_46, %arg17 : i32
      %c1_i32_47 = arith.constant 1 : i32
      %42 = arith.addi %41, %c1_i32_47 : i32
      %cst_48 = arith.constant 0.000000e+00 : f32
      %43 = vector.broadcast %cst_48 : f32 to vector<7x64xf32>
      %c0_49 = arith.constant 0 : index
      %c0_50 = arith.constant 0 : index
      %44 = vector.load %arg8[%c0_49, %c0_50] : memref<1x64xf32, #tpu.memory_space<vmem>>, vector<1x64xf32>
      %45 = vector.broadcast %44 : vector<1x64xf32> to vector<7x64xf32>
      %46 = arith.addf %43, %45 : vector<7x64xf32>
      %c0_i32_51 = arith.constant 0 : i32
      %47 = arith.addi %42, %c0_i32_51 : i32
      %48 = arith.index_cast %47 : i32 to index
      %c0_52 = arith.constant 0 : index
      %c0_53 = arith.constant 0 : index
      %49 = vector.load %arg12[%48, %c0_52, %c0_53] : memref<9x7x192xf32, #tpu.memory_space<vmem>>, vector<1x7x192xf32>
      %50 = vector.shape_cast %49 : vector<1x7x192xf32> to vector<7x192xf32>
      %c0_54 = arith.constant 0 : index
      %c0_55 = arith.constant 0 : index
      %c0_56 = arith.constant 0 : index
      %51 = vector.load %arg7[%c0_54, %c0_55, %c0_56] : memref<3x192x64xf32, #tpu.memory_space<vmem>>, vector<1x192x64xf32>
      %52 = vector.shape_cast %51 : vector<1x192x64xf32> to vector<192x64xf32>
      %cst_57 = arith.constant dense<0.000000e+00> : vector<7x64xf32>
      %53 = tpu.matmul %50, %52, %cst_57 {dimension_numbers = #tpu.dot_dimension_numbers<[1], [0], [0], [1], [0, 0, 1, 1], [], []>} : vector<7x192xf32>, vector<192x64xf32>, vector<7x64xf32> -> vector<7x64xf32>
      %54 = arith.addf %46, %53 : vector<7x64xf32>
      %c1_i32_58 = arith.constant 1 : i32
      %55 = arith.addi %42, %c1_i32_58 : i32
      %56 = arith.index_cast %55 : i32 to index
      %c0_59 = arith.constant 0 : index
      %c0_60 = arith.constant 0 : index
      %57 = vector.load %arg12[%56, %c0_59, %c0_60] : memref<9x7x192xf32, #tpu.memory_space<vmem>>, vector<1x7x192xf32>
      %58 = vector.shape_cast %57 : vector<1x7x192xf32> to vector<7x192xf32>
      %c1_61 = arith.constant 1 : index
      %c0_62 = arith.constant 0 : index
      %c0_63 = arith.constant 0 : index
      %59 = vector.load %arg7[%c1_61, %c0_62, %c0_63] : memref<3x192x64xf32, #tpu.memory_space<vmem>>, vector<1x192x64xf32>
      %60 = vector.shape_cast %59 : vector<1x192x64xf32> to vector<192x64xf32>
      %cst_64 = arith.constant dense<0.000000e+00> : vector<7x64xf32>
      %61 = tpu.matmul %58, %60, %cst_64 {dimension_numbers = #tpu.dot_dimension_numbers<[1], [0], [0], [1], [0, 0, 1, 1], [], []>} : vector<7x192xf32>, vector<192x64xf32>, vector<7x64xf32> -> vector<7x64xf32>
      %62 = arith.addf %54, %61 : vector<7x64xf32>
      %c2_i32_65 = arith.constant 2 : i32
      %63 = arith.addi %42, %c2_i32_65 : i32
      %64 = arith.index_cast %63 : i32 to index
      %c0_66 = arith.constant 0 : index
      %c0_67 = arith.constant 0 : index
      %65 = vector.load %arg12[%64, %c0_66, %c0_67] : memref<9x7x192xf32, #tpu.memory_space<vmem>>, vector<1x7x192xf32>
      %66 = vector.shape_cast %65 : vector<1x7x192xf32> to vector<7x192xf32>
      %c2_68 = arith.constant 2 : index
      %c0_69 = arith.constant 0 : index
      %c0_70 = arith.constant 0 : index
      %67 = vector.load %arg7[%c2_68, %c0_69, %c0_70] : memref<3x192x64xf32, #tpu.memory_space<vmem>>, vector<1x192x64xf32>
      %68 = vector.shape_cast %67 : vector<1x192x64xf32> to vector<192x64xf32>
      %cst_71 = arith.constant dense<0.000000e+00> : vector<7x64xf32>
      %69 = tpu.matmul %66, %68, %cst_71 {dimension_numbers = #tpu.dot_dimension_numbers<[1], [0], [0], [1], [0, 0, 1, 1], [], []>} : vector<7x192xf32>, vector<192x64xf32>, vector<7x64xf32> -> vector<7x64xf32>
      %70 = arith.addf %62, %69 : vector<7x64xf32>
      %71 = arith.maximumf %40, %70 : vector<7x64xf32>
      %c0_72 = arith.constant 0 : index
      %c0_73 = arith.constant 0 : index
      %72 = vector.load %arg16[%c0_72, %c0_73] : memref<7x64xf32, #tpu.memory_space<vmem>>, vector<7x64xf32>
      tpu.vector_store %arg16[%c0_72, %c0_73], %71 {strides = array<i32>} : memref<7x64xf32, #tpu.memory_space<vmem>>, vector<7x64xf32>,
      %c0_74 = arith.constant 0 : index
      %c0_75 = arith.constant 0 : index
      %73 = tpu.strided_load %arg16[%c0_74, %c0_75] {strides = array<i32: 2, 1>} : memref<7x64xf32, #tpu.memory_space<vmem>>, vector<3x64xf32>
      %c1_76 = arith.constant 1 : index
      %c0_77 = arith.constant 0 : index
      %74 = tpu.strided_load %arg16[%c1_76, %c0_77] {strides = array<i32: 2, 1>} : memref<7x64xf32, #tpu.memory_space<vmem>>, vector<3x64xf32>
      %75 = arith.maximumf %73, %74 : vector<3x64xf32>
      %76 = arith.index_cast %arg17 : i32 to index
      %c0_78 = arith.constant 0 : index
      %c0_79 = arith.constant 0 : index
      %77 = vector.load %arg9[%76, %c0_78, %c0_79] : memref<3x3x64xf32, #tpu.memory_space<vmem>>, vector<1x3x64xf32>
      %78 = vector.shape_cast %77 : vector<1x3x64xf32> to vector<3x64xf32>
      %79 = vector.shape_cast %75 : vector<3x64xf32> to vector<1x3x64xf32>
      tpu.vector_store %arg9[%76, %c0_78, %c0_79], %79 {strides = array<i32>} : memref<3x3x64xf32, #tpu.memory_space<vmem>>, vector<1x3x64xf32>,
    }
    %c3_i32_23 = arith.constant 3 : i32
    return
  }
}

module attributes {stable_mosaic.version = 11 : i64} {
  func.func @_lstm_heads_kernel(%arg0: memref<1x592xf32, #tpu.memory_space<vmem>>, %arg1: memref<1x128xf32, #tpu.memory_space<vmem>>, %arg2: memref<1x128xf32, #tpu.memory_space<vmem>>, %arg3: memref<592x512xf32, #tpu.memory_space<vmem>>, %arg4: memref<128x512xf32, #tpu.memory_space<vmem>>, %arg5: memref<1x512xf32, #tpu.memory_space<vmem>>, %arg6: memref<128x7xf32, #tpu.memory_space<vmem>>, %arg7: memref<1x7xf32, #tpu.memory_space<vmem>>, %arg8: memref<1x128xf32, #tpu.memory_space<vmem>>, %arg9: memref<1x128xf32, #tpu.memory_space<vmem>>, %arg10: memref<1x1xf32, #tpu.memory_space<vmem>>, %arg11: memref<1x6xf32, #tpu.memory_space<vmem>>) attributes {dimension_semantics = [], scalar_prefetch = 0 : i64, scratch_operands = 0 : i64, tpu.core_type = #tpu.core_type<tc>} {
    %c0 = arith.constant 0 : index
    %c0_0 = arith.constant 0 : index
    %0 = vector.load %arg0[%c0, %c0_0] : memref<1x592xf32, #tpu.memory_space<vmem>>, vector<1x592xf32>
    %c0_1 = arith.constant 0 : index
    %c0_2 = arith.constant 0 : index
    %1 = vector.load %arg3[%c0_1, %c0_2] : memref<592x512xf32, #tpu.memory_space<vmem>>, vector<592x512xf32>
    %cst = arith.constant dense<0.000000e+00> : vector<1x512xf32>
    %2 = tpu.matmul %0, %1, %cst {dimension_numbers = #tpu.dot_dimension_numbers<[1], [0], [0], [1], [0, 0, 1, 1], [], []>} : vector<1x592xf32>, vector<592x512xf32>, vector<1x512xf32> -> vector<1x512xf32>
    %c0_3 = arith.constant 0 : index
    %c0_4 = arith.constant 0 : index
    %3 = vector.load %arg1[%c0_3, %c0_4] : memref<1x128xf32, #tpu.memory_space<vmem>>, vector<1x128xf32>
    %c0_5 = arith.constant 0 : index
    %c0_6 = arith.constant 0 : index
    %4 = vector.load %arg4[%c0_5, %c0_6] : memref<128x512xf32, #tpu.memory_space<vmem>>, vector<128x512xf32>
    %cst_7 = arith.constant dense<0.000000e+00> : vector<1x512xf32>
    %5 = tpu.matmul %3, %4, %cst_7 {dimension_numbers = #tpu.dot_dimension_numbers<[1], [0], [0], [1], [0, 0, 1, 1], [], []>} : vector<1x128xf32>, vector<128x512xf32>, vector<1x512xf32> -> vector<1x512xf32>
    %6 = arith.addf %2, %5 : vector<1x512xf32>
    %c0_8 = arith.constant 0 : index
    %c0_9 = arith.constant 0 : index
    %7 = vector.load %arg5[%c0_8, %c0_9] : memref<1x512xf32, #tpu.memory_space<vmem>>, vector<1x512xf32>
    %8 = arith.addf %6, %7 : vector<1x512xf32>
    %9 = vector.extract_strided_slice %8 {offsets = [0, 0], sizes = [1, 128], strides = [1, 1]} : vector<1x512xf32> to vector<1x128xf32>
    %10 = arith.negf %9 : vector<1x128xf32>
    %11 = math.exp %10 : vector<1x128xf32>
    %cst_10 = arith.constant 1.000000e+00 : f32
    %12 = vector.broadcast %cst_10 : f32 to vector<1x128xf32>
    %13 = arith.addf %12, %11 : vector<1x128xf32>
    %14 = arith.divf %12, %13 : vector<1x128xf32>
    %15 = vector.extract_strided_slice %8 {offsets = [0, 128], sizes = [1, 128], strides = [1, 1]} : vector<1x512xf32> to vector<1x128xf32>
    %16 = arith.negf %15 : vector<1x128xf32>
    %17 = math.exp %16 : vector<1x128xf32>
    %cst_11 = arith.constant 1.000000e+00 : f32
    %18 = vector.broadcast %cst_11 : f32 to vector<1x128xf32>
    %19 = arith.addf %18, %17 : vector<1x128xf32>
    %20 = arith.divf %18, %19 : vector<1x128xf32>
    %21 = vector.extract_strided_slice %8 {offsets = [0, 256], sizes = [1, 128], strides = [1, 1]} : vector<1x512xf32> to vector<1x128xf32>
    %22 = math.tanh %21 : vector<1x128xf32>
    %23 = vector.extract_strided_slice %8 {offsets = [0, 384], sizes = [1, 128], strides = [1, 1]} : vector<1x512xf32> to vector<1x128xf32>
    %24 = arith.negf %23 : vector<1x128xf32>
    %25 = math.exp %24 : vector<1x128xf32>
    %cst_12 = arith.constant 1.000000e+00 : f32
    %26 = vector.broadcast %cst_12 : f32 to vector<1x128xf32>
    %27 = arith.addf %26, %25 : vector<1x128xf32>
    %28 = arith.divf %26, %27 : vector<1x128xf32>
    %c0_13 = arith.constant 0 : index
    %c0_14 = arith.constant 0 : index
    %29 = vector.load %arg2[%c0_13, %c0_14] : memref<1x128xf32, #tpu.memory_space<vmem>>, vector<1x128xf32>
    %30 = arith.mulf %20, %29 : vector<1x128xf32>
    %31 = arith.mulf %14, %22 : vector<1x128xf32>
    %32 = arith.addf %30, %31 : vector<1x128xf32>
    %33 = math.tanh %32 : vector<1x128xf32>
    %34 = arith.mulf %28, %33 : vector<1x128xf32>
    %c0_15 = arith.constant 0 : index
    %c0_16 = arith.constant 0 : index
    %35 = vector.load %arg8[%c0_15, %c0_16] : memref<1x128xf32, #tpu.memory_space<vmem>>, vector<1x128xf32>
    tpu.vector_store %arg8[%c0_15, %c0_16], %34 {strides = array<i32>} : memref<1x128xf32, #tpu.memory_space<vmem>>, vector<1x128xf32>,
    %c0_17 = arith.constant 0 : index
    %c0_18 = arith.constant 0 : index
    %36 = vector.load %arg9[%c0_17, %c0_18] : memref<1x128xf32, #tpu.memory_space<vmem>>, vector<1x128xf32>
    tpu.vector_store %arg9[%c0_17, %c0_18], %32 {strides = array<i32>} : memref<1x128xf32, #tpu.memory_space<vmem>>, vector<1x128xf32>,
    %c0_19 = arith.constant 0 : index
    %c0_20 = arith.constant 0 : index
    %37 = vector.load %arg6[%c0_19, %c0_20] : memref<128x7xf32, #tpu.memory_space<vmem>>, vector<128x7xf32>
    %cst_21 = arith.constant dense<0.000000e+00> : vector<1x7xf32>
    %38 = tpu.matmul %34, %37, %cst_21 {dimension_numbers = #tpu.dot_dimension_numbers<[1], [0], [0], [1], [0, 0, 1, 1], [], []>} : vector<1x128xf32>, vector<128x7xf32>, vector<1x7xf32> -> vector<1x7xf32>
    %c0_22 = arith.constant 0 : index
    %c0_23 = arith.constant 0 : index
    %39 = vector.load %arg7[%c0_22, %c0_23] : memref<1x7xf32, #tpu.memory_space<vmem>>, vector<1x7xf32>
    %40 = arith.addf %38, %39 : vector<1x7xf32>
    %41 = vector.extract_strided_slice %40 {offsets = [0, 0], sizes = [1, 1], strides = [1, 1]} : vector<1x7xf32> to vector<1x1xf32>
    %c0_24 = arith.constant 0 : index
    %c0_25 = arith.constant 0 : index
    %42 = vector.load %arg10[%c0_24, %c0_25] : memref<1x1xf32, #tpu.memory_space<vmem>>, vector<1x1xf32>
    tpu.vector_store %arg10[%c0_24, %c0_25], %41 {strides = array<i32>} : memref<1x1xf32, #tpu.memory_space<vmem>>, vector<1x1xf32>,
    %43 = vector.extract_strided_slice %40 {offsets = [0, 1], sizes = [1, 6], strides = [1, 1]} : vector<1x7xf32> to vector<1x6xf32>
    %c0_26 = arith.constant 0 : index
    %c0_27 = arith.constant 0 : index
    %44 = vector.load %arg11[%c0_26, %c0_27] : memref<1x6xf32, #tpu.memory_space<vmem>>, vector<1x6xf32>
    tpu.vector_store %arg11[%c0_26, %c0_27], %43 {strides = array<i32>} : memref<1x6xf32, #tpu.memory_space<vmem>>, vector<1x6xf32>,
    return
  }
}

module attributes {stable_mosaic.version = 11 : i64} {
  func.func @kernel(%arg0: memref<10x10x64xf32, #tpu.memory_space<vmem>>, %arg1: memref<3x3x64xf32, #tpu.memory_space<vmem>>, %arg2: memref<16xf32, #tpu.memory_space<smem>>, %arg3: memref<25xf32, #tpu.memory_space<smem>>, %arg4: memref<25xf32, #tpu.memory_space<smem>>, %arg5: memref<58x56xf32, #tpu.memory_space<vmem>>, %arg6: memref<18x18xf32, #tpu.memory_space<vmem>>, %arg7: memref<33x33xf32, #tpu.memory_space<vmem>>, %arg8: memref<65x65xf32, #tpu.memory_space<vmem>>) attributes {dimension_semantics = [], scalar_prefetch = 0 : i64, scratch_operands = 3 : i64, tpu.core_type = #tpu.core_type<tc>} {
    %cst = arith.constant 0.000000e+00 : f32
    %0 = vector.broadcast %cst : f32 to vector<6x6xf32>
    %c1 = arith.constant 1 : index
    %c1_0 = arith.constant 1 : index
    %c0 = arith.constant 0 : index
    %1 = vector.load %arg0[%c1, %c1_0, %c0] : memref<10x10x64xf32, #tpu.memory_space<vmem>>, vector<6x6x64xf32>
    %c0_1 = arith.constant 0 : index
    %c0_2 = arith.constant 0 : index
    %c0_3 = arith.constant 0 : index
    %2 = vector.load %arg1[%c0_1, %c0_2, %c0_3] : memref<3x3x64xf32, #tpu.memory_space<vmem>>, vector<1x1x64xf32>
    %3 = vector.shape_cast %2 : vector<1x1x64xf32> to vector<64xf32>
    %4 = vector.shape_cast %3 : vector<64xf32> to vector<1x1x64xf32>
    %5 = vector.broadcast %4 : vector<1x1x64xf32> to vector<6x6x64xf32>
    %6 = arith.mulf %1, %5 : vector<6x6x64xf32>
    %cst_4 = arith.constant dense<0.000000e+00> : vector<6x6xf32>
    %7 = vector.multi_reduction <add>, %6, %cst_4 [2] : vector<6x6x64xf32> to vector<6x6xf32>
    %8 = arith.addf %0, %7 : vector<6x6xf32>
    %c1_5 = arith.constant 1 : index
    %c2 = arith.constant 2 : index
    %c0_6 = arith.constant 0 : index
    %9 = vector.load %arg0[%c1_5, %c2, %c0_6] : memref<10x10x64xf32, #tpu.memory_space<vmem>>, vector<6x6x64xf32>
    %c0_7 = arith.constant 0 : index
    %c1_8 = arith.constant 1 : index
    %c0_9 = arith.constant 0 : index
    %10 = vector.load %arg1[%c0_7, %c1_8, %c0_9] : memref<3x3x64xf32, #tpu.memory_space<vmem>>, vector<1x1x64xf32>
    %11 = vector.shape_cast %10 : vector<1x1x64xf32> to vector<64xf32>
    %12 = vector.shape_cast %11 : vector<64xf32> to vector<1x1x64xf32>
    %13 = vector.broadcast %12 : vector<1x1x64xf32> to vector<6x6x64xf32>
    %14 = arith.mulf %9, %13 : vector<6x6x64xf32>
    %cst_10 = arith.constant dense<0.000000e+00> : vector<6x6xf32>
    %15 = vector.multi_reduction <add>, %14, %cst_10 [2] : vector<6x6x64xf32> to vector<6x6xf32>
    %16 = arith.addf %8, %15 : vector<6x6xf32>
    %c1_11 = arith.constant 1 : index
    %c3 = arith.constant 3 : index
    %c0_12 = arith.constant 0 : index
    %17 = vector.load %arg0[%c1_11, %c3, %c0_12] : memref<10x10x64xf32, #tpu.memory_space<vmem>>, vector<6x6x64xf32>
    %c0_13 = arith.constant 0 : index
    %c2_14 = arith.constant 2 : index
    %c0_15 = arith.constant 0 : index
    %18 = vector.load %arg1[%c0_13, %c2_14, %c0_15] : memref<3x3x64xf32, #tpu.memory_space<vmem>>, vector<1x1x64xf32>
    %19 = vector.shape_cast %18 : vector<1x1x64xf32> to vector<64xf32>
    %20 = vector.shape_cast %19 : vector<64xf32> to vector<1x1x64xf32>
    %21 = vector.broadcast %20 : vector<1x1x64xf32> to vector<6x6x64xf32>
    %22 = arith.mulf %17, %21 : vector<6x6x64xf32>
    %cst_16 = arith.constant dense<0.000000e+00> : vector<6x6xf32>
    %23 = vector.multi_reduction <add>, %22, %cst_16 [2] : vector<6x6x64xf32> to vector<6x6xf32>
    %24 = arith.addf %16, %23 : vector<6x6xf32>
    %c2_17 = arith.constant 2 : index
    %c1_18 = arith.constant 1 : index
    %c0_19 = arith.constant 0 : index
    %25 = vector.load %arg0[%c2_17, %c1_18, %c0_19] : memref<10x10x64xf32, #tpu.memory_space<vmem>>, vector<6x6x64xf32>
    %c1_20 = arith.constant 1 : index
    %c0_21 = arith.constant 0 : index
    %c0_22 = arith.constant 0 : index
    %26 = vector.load %arg1[%c1_20, %c0_21, %c0_22] : memref<3x3x64xf32, #tpu.memory_space<vmem>>, vector<1x1x64xf32>
    %27 = vector.shape_cast %26 : vector<1x1x64xf32> to vector<64xf32>
    %28 = vector.shape_cast %27 : vector<64xf32> to vector<1x1x64xf32>
    %29 = vector.broadcast %28 : vector<1x1x64xf32> to vector<6x6x64xf32>
    %30 = arith.mulf %25, %29 : vector<6x6x64xf32>
    %cst_23 = arith.constant dense<0.000000e+00> : vector<6x6xf32>
    %31 = vector.multi_reduction <add>, %30, %cst_23 [2] : vector<6x6x64xf32> to vector<6x6xf32>
    %32 = arith.addf %24, %31 : vector<6x6xf32>
    %c2_24 = arith.constant 2 : index
    %c2_25 = arith.constant 2 : index
    %c0_26 = arith.constant 0 : index
    %33 = vector.load %arg0[%c2_24, %c2_25, %c0_26] : memref<10x10x64xf32, #tpu.memory_space<vmem>>, vector<6x6x64xf32>
    %c1_27 = arith.constant 1 : index
    %c1_28 = arith.constant 1 : index
    %c0_29 = arith.constant 0 : index
    %34 = vector.load %arg1[%c1_27, %c1_28, %c0_29] : memref<3x3x64xf32, #tpu.memory_space<vmem>>, vector<1x1x64xf32>
    %35 = vector.shape_cast %34 : vector<1x1x64xf32> to vector<64xf32>
    %36 = vector.shape_cast %35 : vector<64xf32> to vector<1x1x64xf32>
    %37 = vector.broadcast %36 : vector<1x1x64xf32> to vector<6x6x64xf32>
    %38 = arith.mulf %33, %37 : vector<6x6x64xf32>
    %cst_30 = arith.constant dense<0.000000e+00> : vector<6x6xf32>
    %39 = vector.multi_reduction <add>, %38, %cst_30 [2] : vector<6x6x64xf32> to vector<6x6xf32>
    %40 = arith.addf %32, %39 : vector<6x6xf32>
    %c2_31 = arith.constant 2 : index
    %c3_32 = arith.constant 3 : index
    %c0_33 = arith.constant 0 : index
    %41 = vector.load %arg0[%c2_31, %c3_32, %c0_33] : memref<10x10x64xf32, #tpu.memory_space<vmem>>, vector<6x6x64xf32>
    %c1_34 = arith.constant 1 : index
    %c2_35 = arith.constant 2 : index
    %c0_36 = arith.constant 0 : index
    %42 = vector.load %arg1[%c1_34, %c2_35, %c0_36] : memref<3x3x64xf32, #tpu.memory_space<vmem>>, vector<1x1x64xf32>
    %43 = vector.shape_cast %42 : vector<1x1x64xf32> to vector<64xf32>
    %44 = vector.shape_cast %43 : vector<64xf32> to vector<1x1x64xf32>
    %45 = vector.broadcast %44 : vector<1x1x64xf32> to vector<6x6x64xf32>
    %46 = arith.mulf %41, %45 : vector<6x6x64xf32>
    %cst_37 = arith.constant dense<0.000000e+00> : vector<6x6xf32>
    %47 = vector.multi_reduction <add>, %46, %cst_37 [2] : vector<6x6x64xf32> to vector<6x6xf32>
    %48 = arith.addf %40, %47 : vector<6x6xf32>
    %c3_38 = arith.constant 3 : index
    %c1_39 = arith.constant 1 : index
    %c0_40 = arith.constant 0 : index
    %49 = vector.load %arg0[%c3_38, %c1_39, %c0_40] : memref<10x10x64xf32, #tpu.memory_space<vmem>>, vector<6x6x64xf32>
    %c2_41 = arith.constant 2 : index
    %c0_42 = arith.constant 0 : index
    %c0_43 = arith.constant 0 : index
    %50 = vector.load %arg1[%c2_41, %c0_42, %c0_43] : memref<3x3x64xf32, #tpu.memory_space<vmem>>, vector<1x1x64xf32>
    %51 = vector.shape_cast %50 : vector<1x1x64xf32> to vector<64xf32>
    %52 = vector.shape_cast %51 : vector<64xf32> to vector<1x1x64xf32>
    %53 = vector.broadcast %52 : vector<1x1x64xf32> to vector<6x6x64xf32>
    %54 = arith.mulf %49, %53 : vector<6x6x64xf32>
    %cst_44 = arith.constant dense<0.000000e+00> : vector<6x6xf32>
    %55 = vector.multi_reduction <add>, %54, %cst_44 [2] : vector<6x6x64xf32> to vector<6x6xf32>
    %56 = arith.addf %48, %55 : vector<6x6xf32>
    %c3_45 = arith.constant 3 : index
    %c2_46 = arith.constant 2 : index
    %c0_47 = arith.constant 0 : index
    %57 = vector.load %arg0[%c3_45, %c2_46, %c0_47] : memref<10x10x64xf32, #tpu.memory_space<vmem>>, vector<6x6x64xf32>
    %c2_48 = arith.constant 2 : index
    %c1_49 = arith.constant 1 : index
    %c0_50 = arith.constant 0 : index
    %58 = vector.load %arg1[%c2_48, %c1_49, %c0_50] : memref<3x3x64xf32, #tpu.memory_space<vmem>>, vector<1x1x64xf32>
    %59 = vector.shape_cast %58 : vector<1x1x64xf32> to vector<64xf32>
    %60 = vector.shape_cast %59 : vector<64xf32> to vector<1x1x64xf32>
    %61 = vector.broadcast %60 : vector<1x1x64xf32> to vector<6x6x64xf32>
    %62 = arith.mulf %57, %61 : vector<6x6x64xf32>
    %cst_51 = arith.constant dense<0.000000e+00> : vector<6x6xf32>
    %63 = vector.multi_reduction <add>, %62, %cst_51 [2] : vector<6x6x64xf32> to vector<6x6xf32>
    %64 = arith.addf %56, %63 : vector<6x6xf32>
    %c3_52 = arith.constant 3 : index
    %c3_53 = arith.constant 3 : index
    %c0_54 = arith.constant 0 : index
    %65 = vector.load %arg0[%c3_52, %c3_53, %c0_54] : memref<10x10x64xf32, #tpu.memory_space<vmem>>, vector<6x6x64xf32>
    %c2_55 = arith.constant 2 : index
    %c2_56 = arith.constant 2 : index
    %c0_57 = arith.constant 0 : index
    %66 = vector.load %arg1[%c2_55, %c2_56, %c0_57] : memref<3x3x64xf32, #tpu.memory_space<vmem>>, vector<1x1x64xf32>
    %67 = vector.shape_cast %66 : vector<1x1x64xf32> to vector<64xf32>
    %68 = vector.shape_cast %67 : vector<64xf32> to vector<1x1x64xf32>
    %69 = vector.broadcast %68 : vector<1x1x64xf32> to vector<6x6x64xf32>
    %70 = arith.mulf %65, %69 : vector<6x6x64xf32>
    %cst_58 = arith.constant dense<0.000000e+00> : vector<6x6xf32>
    %71 = vector.multi_reduction <add>, %70, %cst_58 [2] : vector<6x6x64xf32> to vector<6x6xf32>
    %72 = arith.addf %64, %71 : vector<6x6xf32>
    %73 = tpu.iota {dimensions = array<i32: 0>} : vector<18x6xi32>
    %74 = tpu.iota {dimensions = array<i32: 1>} : vector<18x6xi32>
    %c2_i32 = arith.constant 2 : i32
    %75 = vector.broadcast %c2_i32 : i32 to vector<18x6xi32>
    %76 = arith.muli %75, %74 : vector<18x6xi32>
    %c3_i32 = arith.constant 3 : i32
    %77 = vector.broadcast %c3_i32 : i32 to vector<18x6xi32>
    %78 = arith.addi %77, %76 : vector<18x6xi32>
    %79 = arith.cmpi eq, %73, %78 : vector<18x6xi32>
    %80 = arith.extui %79 : vector<18x6xi1> to vector<18x6xi32>
    %81 = arith.sitofp %80 : vector<18x6xi32> to vector<18x6xf32>
    %82 = tpu.iota {dimensions = array<i32: 0>} : vector<6x18xi32>
    %83 = tpu.iota {dimensions = array<i32: 1>} : vector<6x18xi32>
    %c2_i32_59 = arith.constant 2 : i32
    %84 = vector.broadcast %c2_i32_59 : i32 to vector<6x18xi32>
    %85 = arith.muli %84, %82 : vector<6x18xi32>
    %c3_i32_60 = arith.constant 3 : i32
    %86 = vector.broadcast %c3_i32_60 : i32 to vector<6x18xi32>
    %87 = arith.addi %86, %85 : vector<6x18xi32>
    %88 = arith.cmpi eq, %83, %87 : vector<6x18xi32>
    %89 = arith.extui %88 : vector<6x18xi1> to vector<6x18xi32>
    %90 = arith.sitofp %89 : vector<6x18xi32> to vector<6x18xf32>
    %cst_61 = arith.constant dense<0.000000e+00> : vector<6x18xf32>
    %91 = tpu.matmul %72, %90, %cst_61 {dimension_numbers = #tpu.dot_dimension_numbers<[1], [0], [0], [1], [0, 0, 1, 1], [], []>} : vector<6x6xf32>, vector<6x18xf32>, vector<6x18xf32> -> vector<6x18xf32>
    %cst_62 = arith.constant dense<0.000000e+00> : vector<18x18xf32>
    %92 = tpu.matmul %81, %91, %cst_62 {dimension_numbers = #tpu.dot_dimension_numbers<[1], [0], [0], [1], [0, 0, 1, 1], [], []>} : vector<18x6xf32>, vector<6x18xf32>, vector<18x18xf32> -> vector<18x18xf32>
    %c0_63 = arith.constant 0 : index
    %c0_64 = arith.constant 0 : index
    %93 = vector.load %arg6[%c0_63, %c0_64] : memref<18x18xf32, #tpu.memory_space<vmem>>, vector<18x18xf32>
    tpu.vector_store %arg6[%c0_63, %c0_64], %92 {strides = array<i32>} : memref<18x18xf32, #tpu.memory_space<vmem>>, vector<18x18xf32>,
    %cst_65 = arith.constant 0.000000e+00 : f32
    %94 = vector.broadcast %cst_65 : f32 to vector<13x13xf32>
    %c1_66 = arith.constant 1 : index
    %c1_67 = arith.constant 1 : index
    %95 = vector.load %arg6[%c1_66, %c1_67] : memref<18x18xf32, #tpu.memory_space<vmem>>, vector<13x13xf32>
    %c0_68 = arith.constant 0 : index
    %96 = memref.load %arg2[%c0_68] : memref<16xf32, #tpu.memory_space<smem>>
    %97 = vector.broadcast %96 : f32 to vector<13x13xf32>
    %98 = arith.mulf %95, %97 : vector<13x13xf32>
    %99 = arith.addf %94, %98 : vector<13x13xf32>
    %c1_69 = arith.constant 1 : index
    %c2_70 = arith.constant 2 : index
    %100 = vector.load %arg6[%c1_69, %c2_70] : memref<18x18xf32, #tpu.memory_space<vmem>>, vector<13x13xf32>
    %c1_71 = arith.constant 1 : index
    %101 = memref.load %arg2[%c1_71] : memref<16xf32, #tpu.memory_space<smem>>
    %102 = vector.broadcast %101 : f32 to vector<13x13xf32>
    %103 = arith.mulf %100, %102 : vector<13x13xf32>
    %104 = arith.addf %99, %103 : vector<13x13xf32>
    %c1_72 = arith.constant 1 : index
    %c3_73 = arith.constant 3 : index
    %105 = vector.load %arg6[%c1_72, %c3_73] : memref<18x18xf32, #tpu.memory_space<vmem>>, vector<13x13xf32>
    %c2_74 = arith.constant 2 : index
    %106 = memref.load %arg2[%c2_74] : memref<16xf32, #tpu.memory_space<smem>>
    %107 = vector.broadcast %106 : f32 to vector<13x13xf32>
    %108 = arith.mulf %105, %107 : vector<13x13xf32>
    %109 = arith.addf %104, %108 : vector<13x13xf32>
    %c1_75 = arith.constant 1 : index
    %c4 = arith.constant 4 : index
    %110 = vector.load %arg6[%c1_75, %c4] : memref<18x18xf32, #tpu.memory_space<vmem>>, vector<13x13xf32>
    %c3_76 = arith.constant 3 : index
    %111 = memref.load %arg2[%c3_76] : memref<16xf32, #tpu.memory_space<smem>>
    %112 = vector.broadcast %111 : f32 to vector<13x13xf32>
    %113 = arith.mulf %110, %112 : vector<13x13xf32>
    %114 = arith.addf %109, %113 : vector<13x13xf32>
    %c2_77 = arith.constant 2 : index
    %c1_78 = arith.constant 1 : index
    %115 = vector.load %arg6[%c2_77, %c1_78] : memref<18x18xf32, #tpu.memory_space<vmem>>, vector<13x13xf32>
    %c4_79 = arith.constant 4 : index
    %116 = memref.load %arg2[%c4_79] : memref<16xf32, #tpu.memory_space<smem>>
    %117 = vector.broadcast %116 : f32 to vector<13x13xf32>
    %118 = arith.mulf %115, %117 : vector<13x13xf32>
    %119 = arith.addf %114, %118 : vector<13x13xf32>
    %c2_80 = arith.constant 2 : index
    %c2_81 = arith.constant 2 : index
    %120 = vector.load %arg6[%c2_80, %c2_81] : memref<18x18xf32, #tpu.memory_space<vmem>>, vector<13x13xf32>
    %c5 = arith.constant 5 : index
    %121 = memref.load %arg2[%c5] : memref<16xf32, #tpu.memory_space<smem>>
    %122 = vector.broadcast %121 : f32 to vector<13x13xf32>
    %123 = arith.mulf %120, %122 : vector<13x13xf32>
    %124 = arith.addf %119, %123 : vector<13x13xf32>
    %c2_82 = arith.constant 2 : index
    %c3_83 = arith.constant 3 : index
    %125 = vector.load %arg6[%c2_82, %c3_83] : memref<18x18xf32, #tpu.memory_space<vmem>>, vector<13x13xf32>
    %c6 = arith.constant 6 : index
    %126 = memref.load %arg2[%c6] : memref<16xf32, #tpu.memory_space<smem>>
    %127 = vector.broadcast %126 : f32 to vector<13x13xf32>
    %128 = arith.mulf %125, %127 : vector<13x13xf32>
    %129 = arith.addf %124, %128 : vector<13x13xf32>
    %c2_84 = arith.constant 2 : index
    %c4_85 = arith.constant 4 : index
    %130 = vector.load %arg6[%c2_84, %c4_85] : memref<18x18xf32, #tpu.memory_space<vmem>>, vector<13x13xf32>
    %c7 = arith.constant 7 : index
    %131 = memref.load %arg2[%c7] : memref<16xf32, #tpu.memory_space<smem>>
    %132 = vector.broadcast %131 : f32 to vector<13x13xf32>
    %133 = arith.mulf %130, %132 : vector<13x13xf32>
    %134 = arith.addf %129, %133 : vector<13x13xf32>
    %c3_86 = arith.constant 3 : index
    %c1_87 = arith.constant 1 : index
    %135 = vector.load %arg6[%c3_86, %c1_87] : memref<18x18xf32, #tpu.memory_space<vmem>>, vector<13x13xf32>
    %c8 = arith.constant 8 : index
    %136 = memref.load %arg2[%c8] : memref<16xf32, #tpu.memory_space<smem>>
    %137 = vector.broadcast %136 : f32 to vector<13x13xf32>
    %138 = arith.mulf %135, %137 : vector<13x13xf32>
    %139 = arith.addf %134, %138 : vector<13x13xf32>
    %c3_88 = arith.constant 3 : index
    %c2_89 = arith.constant 2 : index
    %140 = vector.load %arg6[%c3_88, %c2_89] : memref<18x18xf32, #tpu.memory_space<vmem>>, vector<13x13xf32>
    %c9 = arith.constant 9 : index
    %141 = memref.load %arg2[%c9] : memref<16xf32, #tpu.memory_space<smem>>
    %142 = vector.broadcast %141 : f32 to vector<13x13xf32>
    %143 = arith.mulf %140, %142 : vector<13x13xf32>
    %144 = arith.addf %139, %143 : vector<13x13xf32>
    %c3_90 = arith.constant 3 : index
    %c3_91 = arith.constant 3 : index
    %145 = vector.load %arg6[%c3_90, %c3_91] : memref<18x18xf32, #tpu.memory_space<vmem>>, vector<13x13xf32>
    %c10 = arith.constant 10 : index
    %146 = memref.load %arg2[%c10] : memref<16xf32, #tpu.memory_space<smem>>
    %147 = vector.broadcast %146 : f32 to vector<13x13xf32>
    %148 = arith.mulf %145, %147 : vector<13x13xf32>
    %149 = arith.addf %144, %148 : vector<13x13xf32>
    %c3_92 = arith.constant 3 : index
    %c4_93 = arith.constant 4 : index
    %150 = vector.load %arg6[%c3_92, %c4_93] : memref<18x18xf32, #tpu.memory_space<vmem>>, vector<13x13xf32>
    %c11 = arith.constant 11 : index
    %151 = memref.load %arg2[%c11] : memref<16xf32, #tpu.memory_space<smem>>
    %152 = vector.broadcast %151 : f32 to vector<13x13xf32>
    %153 = arith.mulf %150, %152 : vector<13x13xf32>
    %154 = arith.addf %149, %153 : vector<13x13xf32>
    %c4_94 = arith.constant 4 : index
    %c1_95 = arith.constant 1 : index
    %155 = vector.load %arg6[%c4_94, %c1_95] : memref<18x18xf32, #tpu.memory_space<vmem>>, vector<13x13xf32>
    %c12 = arith.constant 12 : index
    %156 = memref.load %arg2[%c12] : memref<16xf32, #tpu.memory_space<smem>>
    %157 = vector.broadcast %156 : f32 to vector<13x13xf32>
    %158 = arith.mulf %155, %157 : vector<13x13xf32>
    %159 = arith.addf %154, %158 : vector<13x13xf32>
    %c4_96 = arith.constant 4 : index
    %c2_97 = arith.constant 2 : index
    %160 = vector.load %arg6[%c4_96, %c2_97] : memref<18x18xf32, #tpu.memory_space<vmem>>, vector<13x13xf32>
    %c13 = arith.constant 13 : index
    %161 = memref.load %arg2[%c13] : memref<16xf32, #tpu.memory_space<smem>>
    %162 = vector.broadcast %161 : f32 to vector<13x13xf32>
    %163 = arith.mulf %160, %162 : vector<13x13xf32>
    %164 = arith.addf %159, %163 : vector<13x13xf32>
    %c4_98 = arith.constant 4 : index
    %c3_99 = arith.constant 3 : index
    %165 = vector.load %arg6[%c4_98, %c3_99] : memref<18x18xf32, #tpu.memory_space<vmem>>, vector<13x13xf32>
    %c14 = arith.constant 14 : index
    %166 = memref.load %arg2[%c14] : memref<16xf32, #tpu.memory_space<smem>>
    %167 = vector.broadcast %166 : f32 to vector<13x13xf32>
    %168 = arith.mulf %165, %167 : vector<13x13xf32>
    %169 = arith.addf %164, %168 : vector<13x13xf32>
    %c4_100 = arith.constant 4 : index
    %c4_101 = arith.constant 4 : index
    %170 = vector.load %arg6[%c4_100, %c4_101] : memref<18x18xf32, #tpu.memory_space<vmem>>, vector<13x13xf32>
    %c15 = arith.constant 15 : index
    %171 = memref.load %arg2[%c15] : memref<16xf32, #tpu.memory_space<smem>>
    %172 = vector.broadcast %171 : f32 to vector<13x13xf32>
    %173 = arith.mulf %170, %172 : vector<13x13xf32>
    %174 = arith.addf %169, %173 : vector<13x13xf32>
    %175 = tpu.iota {dimensions = array<i32: 0>} : vector<33x13xi32>
    %176 = tpu.iota {dimensions = array<i32: 1>} : vector<33x13xi32>
    %c2_i32_102 = arith.constant 2 : i32
    %177 = vector.broadcast %c2_i32_102 : i32 to vector<33x13xi32>
    %178 = arith.muli %177, %176 : vector<33x13xi32>
    %c4_i32 = arith.constant 4 : i32
    %179 = vector.broadcast %c4_i32 : i32 to vector<33x13xi32>
    %180 = arith.addi %179, %178 : vector<33x13xi32>
    %181 = arith.cmpi eq, %175, %180 : vector<33x13xi32>
    %182 = arith.extui %181 : vector<33x13xi1> to vector<33x13xi32>
    %183 = arith.sitofp %182 : vector<33x13xi32> to vector<33x13xf32>
    %184 = tpu.iota {dimensions = array<i32: 0>} : vector<13x33xi32>
    %185 = tpu.iota {dimensions = array<i32: 1>} : vector<13x33xi32>
    %c2_i32_103 = arith.constant 2 : i32
    %186 = vector.broadcast %c2_i32_103 : i32 to vector<13x33xi32>
    %187 = arith.muli %186, %184 : vector<13x33xi32>
    %c4_i32_104 = arith.constant 4 : i32
    %188 = vector.broadcast %c4_i32_104 : i32 to vector<13x33xi32>
    %189 = arith.addi %188, %187 : vector<13x33xi32>
    %190 = arith.cmpi eq, %185, %189 : vector<13x33xi32>
    %191 = arith.extui %190 : vector<13x33xi1> to vector<13x33xi32>
    %192 = arith.sitofp %191 : vector<13x33xi32> to vector<13x33xf32>
    %cst_105 = arith.constant dense<0.000000e+00> : vector<13x33xf32>
    %193 = tpu.matmul %174, %192, %cst_105 {dimension_numbers = #tpu.dot_dimension_numbers<[1], [0], [0], [1], [0, 0, 1, 1], [], []>} : vector<13x13xf32>, vector<13x33xf32>, vector<13x33xf32> -> vector<13x33xf32>
    %cst_106 = arith.constant dense<0.000000e+00> : vector<33x33xf32>
    %194 = tpu.matmul %183, %193, %cst_106 {dimension_numbers = #tpu.dot_dimension_numbers<[1], [0], [0], [1], [0, 0, 1, 1], [], []>} : vector<33x13xf32>, vector<13x33xf32>, vector<33x33xf32> -> vector<33x33xf32>
    %c0_107 = arith.constant 0 : index
    %c0_108 = arith.constant 0 : index
    %195 = vector.load %arg7[%c0_107, %c0_108] : memref<33x33xf32, #tpu.memory_space<vmem>>, vector<33x33xf32>
    tpu.vector_store %arg7[%c0_107, %c0_108], %194 {strides = array<i32>} : memref<33x33xf32, #tpu.memory_space<vmem>>, vector<33x33xf32>,
    %cst_109 = arith.constant 0.000000e+00 : f32
    %196 = vector.broadcast %cst_109 : f32 to vector<29x29xf32>
    %c0_110 = arith.constant 0 : index
    %c0_111 = arith.constant 0 : index
    %197 = vector.load %arg7[%c0_110, %c0_111] : memref<33x33xf32, #tpu.memory_space<vmem>>, vector<29x29xf32>
    %c0_112 = arith.constant 0 : index
    %198 = memref.load %arg3[%c0_112] : memref<25xf32, #tpu.memory_space<smem>>
    %199 = vector.broadcast %198 : f32 to vector<29x29xf32>
    %200 = arith.mulf %197, %199 : vector<29x29xf32>
    %201 = arith.addf %196, %200 : vector<29x29xf32>
    %c0_113 = arith.constant 0 : index
    %c1_114 = arith.constant 1 : index
    %202 = vector.load %arg7[%c0_113, %c1_114] : memref<33x33xf32, #tpu.memory_space<vmem>>, vector<29x29xf32>
    %c1_115 = arith.constant 1 : index
    %203 = memref.load %arg3[%c1_115] : memref<25xf32, #tpu.memory_space<smem>>
    %204 = vector.broadcast %203 : f32 to vector<29x29xf32>
    %205 = arith.mulf %202, %204 : vector<29x29xf32>
    %206 = arith.addf %201, %205 : vector<29x29xf32>
    %c0_116 = arith.constant 0 : index
    %c2_117 = arith.constant 2 : index
    %207 = vector.load %arg7[%c0_116, %c2_117] : memref<33x33xf32, #tpu.memory_space<vmem>>, vector<29x29xf32>
    %c2_118 = arith.constant 2 : index
    %208 = memref.load %arg3[%c2_118] : memref<25xf32, #tpu.memory_space<smem>>
    %209 = vector.broadcast %208 : f32 to vector<29x29xf32>
    %210 = arith.mulf %207, %209 : vector<29x29xf32>
    %211 = arith.addf %206, %210 : vector<29x29xf32>
    %c0_119 = arith.constant 0 : index
    %c3_120 = arith.constant 3 : index
    %212 = vector.load %arg7[%c0_119, %c3_120] : memref<33x33xf32, #tpu.memory_space<vmem>>, vector<29x29xf32>
    %c3_121 = arith.constant 3 : index
    %213 = memref.load %arg3[%c3_121] : memref<25xf32, #tpu.memory_space<smem>>
    %214 = vector.broadcast %213 : f32 to vector<29x29xf32>
    %215 = arith.mulf %212, %214 : vector<29x29xf32>
    %216 = arith.addf %211, %215 : vector<29x29xf32>
    %c0_122 = arith.constant 0 : index
    %c4_123 = arith.constant 4 : index
    %217 = vector.load %arg7[%c0_122, %c4_123] : memref<33x33xf32, #tpu.memory_space<vmem>>, vector<29x29xf32>
    %c4_124 = arith.constant 4 : index
    %218 = memref.load %arg3[%c4_124] : memref<25xf32, #tpu.memory_space<smem>>
    %219 = vector.broadcast %218 : f32 to vector<29x29xf32>
    %220 = arith.mulf %217, %219 : vector<29x29xf32>
    %221 = arith.addf %216, %220 : vector<29x29xf32>
    %c1_125 = arith.constant 1 : index
    %c0_126 = arith.constant 0 : index
    %222 = vector.load %arg7[%c1_125, %c0_126] : memref<33x33xf32, #tpu.memory_space<vmem>>, vector<29x29xf32>
    %c5_127 = arith.constant 5 : index
    %223 = memref.load %arg3[%c5_127] : memref<25xf32, #tpu.memory_space<smem>>
    %224 = vector.broadcast %223 : f32 to vector<29x29xf32>
    %225 = arith.mulf %222, %224 : vector<29x29xf32>
    %226 = arith.addf %221, %225 : vector<29x29xf32>
    %c1_128 = arith.constant 1 : index
    %c1_129 = arith.constant 1 : index
    %227 = vector.load %arg7[%c1_128, %c1_129] : memref<33x33xf32, #tpu.memory_space<vmem>>, vector<29x29xf32>
    %c6_130 = arith.constant 6 : index
    %228 = memref.load %arg3[%c6_130] : memref<25xf32, #tpu.memory_space<smem>>
    %229 = vector.broadcast %228 : f32 to vector<29x29xf32>
    %230 = arith.mulf %227, %229 : vector<29x29xf32>
    %231 = arith.addf %226, %230 : vector<29x29xf32>
    %c1_131 = arith.constant 1 : index
    %c2_132 = arith.constant 2 : index
    %232 = vector.load %arg7[%c1_131, %c2_132] : memref<33x33xf32, #tpu.memory_space<vmem>>, vector<29x29xf32>
    %c7_133 = arith.constant 7 : index
    %233 = memref.load %arg3[%c7_133] : memref<25xf32, #tpu.memory_space<smem>>
    %234 = vector.broadcast %233 : f32 to vector<29x29xf32>
    %235 = arith.mulf %232, %234 : vector<29x29xf32>
    %236 = arith.addf %231, %235 : vector<29x29xf32>
    %c1_134 = arith.constant 1 : index
    %c3_135 = arith.constant 3 : index
    %237 = vector.load %arg7[%c1_134, %c3_135] : memref<33x33xf32, #tpu.memory_space<vmem>>, vector<29x29xf32>
    %c8_136 = arith.constant 8 : index
    %238 = memref.load %arg3[%c8_136] : memref<25xf32, #tpu.memory_space<smem>>
    %239 = vector.broadcast %238 : f32 to vector<29x29xf32>
    %240 = arith.mulf %237, %239 : vector<29x29xf32>
    %241 = arith.addf %236, %240 : vector<29x29xf32>
    %c1_137 = arith.constant 1 : index
    %c4_138 = arith.constant 4 : index
    %242 = vector.load %arg7[%c1_137, %c4_138] : memref<33x33xf32, #tpu.memory_space<vmem>>, vector<29x29xf32>
    %c9_139 = arith.constant 9 : index
    %243 = memref.load %arg3[%c9_139] : memref<25xf32, #tpu.memory_space<smem>>
    %244 = vector.broadcast %243 : f32 to vector<29x29xf32>
    %245 = arith.mulf %242, %244 : vector<29x29xf32>
    %246 = arith.addf %241, %245 : vector<29x29xf32>
    %c2_140 = arith.constant 2 : index
    %c0_141 = arith.constant 0 : index
    %247 = vector.load %arg7[%c2_140, %c0_141] : memref<33x33xf32, #tpu.memory_space<vmem>>, vector<29x29xf32>
    %c10_142 = arith.constant 10 : index
    %248 = memref.load %arg3[%c10_142] : memref<25xf32, #tpu.memory_space<smem>>
    %249 = vector.broadcast %248 : f32 to vector<29x29xf32>
    %250 = arith.mulf %247, %249 : vector<29x29xf32>
    %251 = arith.addf %246, %250 : vector<29x29xf32>
    %c2_143 = arith.constant 2 : index
    %c1_144 = arith.constant 1 : index
    %252 = vector.load %arg7[%c2_143, %c1_144] : memref<33x33xf32, #tpu.memory_space<vmem>>, vector<29x29xf32>
    %c11_145 = arith.constant 11 : index
    %253 = memref.load %arg3[%c11_145] : memref<25xf32, #tpu.memory_space<smem>>
    %254 = vector.broadcast %253 : f32 to vector<29x29xf32>
    %255 = arith.mulf %252, %254 : vector<29x29xf32>
    %256 = arith.addf %251, %255 : vector<29x29xf32>
    %c2_146 = arith.constant 2 : index
    %c2_147 = arith.constant 2 : index
    %257 = vector.load %arg7[%c2_146, %c2_147] : memref<33x33xf32, #tpu.memory_space<vmem>>, vector<29x29xf32>
    %c12_148 = arith.constant 12 : index
    %258 = memref.load %arg3[%c12_148] : memref<25xf32, #tpu.memory_space<smem>>
    %259 = vector.broadcast %258 : f32 to vector<29x29xf32>
    %260 = arith.mulf %257, %259 : vector<29x29xf32>
    %261 = arith.addf %256, %260 : vector<29x29xf32>
    %c2_149 = arith.constant 2 : index
    %c3_150 = arith.constant 3 : index
    %262 = vector.load %arg7[%c2_149, %c3_150] : memref<33x33xf32, #tpu.memory_space<vmem>>, vector<29x29xf32>
    %c13_151 = arith.constant 13 : index
    %263 = memref.load %arg3[%c13_151] : memref<25xf32, #tpu.memory_space<smem>>
    %264 = vector.broadcast %263 : f32 to vector<29x29xf32>
    %265 = arith.mulf %262, %264 : vector<29x29xf32>
    %266 = arith.addf %261, %265 : vector<29x29xf32>
    %c2_152 = arith.constant 2 : index
    %c4_153 = arith.constant 4 : index
    %267 = vector.load %arg7[%c2_152, %c4_153] : memref<33x33xf32, #tpu.memory_space<vmem>>, vector<29x29xf32>
    %c14_154 = arith.constant 14 : index
    %268 = memref.load %arg3[%c14_154] : memref<25xf32, #tpu.memory_space<smem>>
    %269 = vector.broadcast %268 : f32 to vector<29x29xf32>
    %270 = arith.mulf %267, %269 : vector<29x29xf32>
    %271 = arith.addf %266, %270 : vector<29x29xf32>
    %c3_155 = arith.constant 3 : index
    %c0_156 = arith.constant 0 : index
    %272 = vector.load %arg7[%c3_155, %c0_156] : memref<33x33xf32, #tpu.memory_space<vmem>>, vector<29x29xf32>
    %c15_157 = arith.constant 15 : index
    %273 = memref.load %arg3[%c15_157] : memref<25xf32, #tpu.memory_space<smem>>
    %274 = vector.broadcast %273 : f32 to vector<29x29xf32>
    %275 = arith.mulf %272, %274 : vector<29x29xf32>
    %276 = arith.addf %271, %275 : vector<29x29xf32>
    %c3_158 = arith.constant 3 : index
    %c1_159 = arith.constant 1 : index
    %277 = vector.load %arg7[%c3_158, %c1_159] : memref<33x33xf32, #tpu.memory_space<vmem>>, vector<29x29xf32>
    %c16 = arith.constant 16 : index
    %278 = memref.load %arg3[%c16] : memref<25xf32, #tpu.memory_space<smem>>
    %279 = vector.broadcast %278 : f32 to vector<29x29xf32>
    %280 = arith.mulf %277, %279 : vector<29x29xf32>
    %281 = arith.addf %276, %280 : vector<29x29xf32>
    %c3_160 = arith.constant 3 : index
    %c2_161 = arith.constant 2 : index
    %282 = vector.load %arg7[%c3_160, %c2_161] : memref<33x33xf32, #tpu.memory_space<vmem>>, vector<29x29xf32>
    %c17 = arith.constant 17 : index
    %283 = memref.load %arg3[%c17] : memref<25xf32, #tpu.memory_space<smem>>
    %284 = vector.broadcast %283 : f32 to vector<29x29xf32>
    %285 = arith.mulf %282, %284 : vector<29x29xf32>
    %286 = arith.addf %281, %285 : vector<29x29xf32>
    %c3_162 = arith.constant 3 : index
    %c3_163 = arith.constant 3 : index
    %287 = vector.load %arg7[%c3_162, %c3_163] : memref<33x33xf32, #tpu.memory_space<vmem>>, vector<29x29xf32>
    %c18 = arith.constant 18 : index
    %288 = memref.load %arg3[%c18] : memref<25xf32, #tpu.memory_space<smem>>
    %289 = vector.broadcast %288 : f32 to vector<29x29xf32>
    %290 = arith.mulf %287, %289 : vector<29x29xf32>
    %291 = arith.addf %286, %290 : vector<29x29xf32>
    %c3_164 = arith.constant 3 : index
    %c4_165 = arith.constant 4 : index
    %292 = vector.load %arg7[%c3_164, %c4_165] : memref<33x33xf32, #tpu.memory_space<vmem>>, vector<29x29xf32>
    %c19 = arith.constant 19 : index
    %293 = memref.load %arg3[%c19] : memref<25xf32, #tpu.memory_space<smem>>
    %294 = vector.broadcast %293 : f32 to vector<29x29xf32>
    %295 = arith.mulf %292, %294 : vector<29x29xf32>
    %296 = arith.addf %291, %295 : vector<29x29xf32>
    %c4_166 = arith.constant 4 : index
    %c0_167 = arith.constant 0 : index
    %297 = vector.load %arg7[%c4_166, %c0_167] : memref<33x33xf32, #tpu.memory_space<vmem>>, vector<29x29xf32>
    %c20 = arith.constant 20 : index
    %298 = memref.load %arg3[%c20] : memref<25xf32, #tpu.memory_space<smem>>
    %299 = vector.broadcast %298 : f32 to vector<29x29xf32>
    %300 = arith.mulf %297, %299 : vector<29x29xf32>
    %301 = arith.addf %296, %300 : vector<29x29xf32>
    %c4_168 = arith.constant 4 : index
    %c1_169 = arith.constant 1 : index
    %302 = vector.load %arg7[%c4_168, %c1_169] : memref<33x33xf32, #tpu.memory_space<vmem>>, vector<29x29xf32>
    %c21 = arith.constant 21 : index
    %303 = memref.load %arg3[%c21] : memref<25xf32, #tpu.memory_space<smem>>
    %304 = vector.broadcast %303 : f32 to vector<29x29xf32>
    %305 = arith.mulf %302, %304 : vector<29x29xf32>
    %306 = arith.addf %301, %305 : vector<29x29xf32>
    %c4_170 = arith.constant 4 : index
    %c2_171 = arith.constant 2 : index
    %307 = vector.load %arg7[%c4_170, %c2_171] : memref<33x33xf32, #tpu.memory_space<vmem>>, vector<29x29xf32>
    %c22 = arith.constant 22 : index
    %308 = memref.load %arg3[%c22] : memref<25xf32, #tpu.memory_space<smem>>
    %309 = vector.broadcast %308 : f32 to vector<29x29xf32>
    %310 = arith.mulf %307, %309 : vector<29x29xf32>
    %311 = arith.addf %306, %310 : vector<29x29xf32>
    %c4_172 = arith.constant 4 : index
    %c3_173 = arith.constant 3 : index
    %312 = vector.load %arg7[%c4_172, %c3_173] : memref<33x33xf32, #tpu.memory_space<vmem>>, vector<29x29xf32>
    %c23 = arith.constant 23 : index
    %313 = memref.load %arg3[%c23] : memref<25xf32, #tpu.memory_space<smem>>
    %314 = vector.broadcast %313 : f32 to vector<29x29xf32>
    %315 = arith.mulf %312, %314 : vector<29x29xf32>
    %316 = arith.addf %311, %315 : vector<29x29xf32>
    %c4_174 = arith.constant 4 : index
    %c4_175 = arith.constant 4 : index
    %317 = vector.load %arg7[%c4_174, %c4_175] : memref<33x33xf32, #tpu.memory_space<vmem>>, vector<29x29xf32>
    %c24 = arith.constant 24 : index
    %318 = memref.load %arg3[%c24] : memref<25xf32, #tpu.memory_space<smem>>
    %319 = vector.broadcast %318 : f32 to vector<29x29xf32>
    %320 = arith.mulf %317, %319 : vector<29x29xf32>
    %321 = arith.addf %316, %320 : vector<29x29xf32>
    %322 = tpu.iota {dimensions = array<i32: 0>} : vector<65x29xi32>
    %323 = tpu.iota {dimensions = array<i32: 1>} : vector<65x29xi32>
    %c2_i32_176 = arith.constant 2 : i32
    %324 = vector.broadcast %c2_i32_176 : i32 to vector<65x29xi32>
    %325 = arith.muli %324, %323 : vector<65x29xi32>
    %c4_i32_177 = arith.constant 4 : i32
    %326 = vector.broadcast %c4_i32_177 : i32 to vector<65x29xi32>
    %327 = arith.addi %326, %325 : vector<65x29xi32>
    %328 = arith.cmpi eq, %322, %327 : vector<65x29xi32>
    %329 = arith.extui %328 : vector<65x29xi1> to vector<65x29xi32>
    %330 = arith.sitofp %329 : vector<65x29xi32> to vector<65x29xf32>
    %331 = tpu.iota {dimensions = array<i32: 0>} : vector<29x65xi32>
    %332 = tpu.iota {dimensions = array<i32: 1>} : vector<29x65xi32>
    %c2_i32_178 = arith.constant 2 : i32
    %333 = vector.broadcast %c2_i32_178 : i32 to vector<29x65xi32>
    %334 = arith.muli %333, %331 : vector<29x65xi32>
    %c4_i32_179 = arith.constant 4 : i32
    %335 = vector.broadcast %c4_i32_179 : i32 to vector<29x65xi32>
    %336 = arith.addi %335, %334 : vector<29x65xi32>
    %337 = arith.cmpi eq, %332, %336 : vector<29x65xi32>
    %338 = arith.extui %337 : vector<29x65xi1> to vector<29x65xi32>
    %339 = arith.sitofp %338 : vector<29x65xi32> to vector<29x65xf32>
    %cst_180 = arith.constant dense<0.000000e+00> : vector<29x65xf32>
    %340 = tpu.matmul %321, %339, %cst_180 {dimension_numbers = #tpu.dot_dimension_numbers<[1], [0], [0], [1], [0, 0, 1, 1], [], []>} : vector<29x29xf32>, vector<29x65xf32>, vector<29x65xf32> -> vector<29x65xf32>
    %cst_181 = arith.constant dense<0.000000e+00> : vector<65x65xf32>
    %341 = tpu.matmul %330, %340, %cst_181 {dimension_numbers = #tpu.dot_dimension_numbers<[1], [0], [0], [1], [0, 0, 1, 1], [], []>} : vector<65x29xf32>, vector<29x65xf32>, vector<65x65xf32> -> vector<65x65xf32>
    %c0_182 = arith.constant 0 : index
    %c0_183 = arith.constant 0 : index
    %342 = vector.load %arg8[%c0_182, %c0_183] : memref<65x65xf32, #tpu.memory_space<vmem>>, vector<65x65xf32>
    tpu.vector_store %arg8[%c0_182, %c0_183], %341 {strides = array<i32>} : memref<65x65xf32, #tpu.memory_space<vmem>>, vector<65x65xf32>,
    %cst_184 = arith.constant 0.000000e+00 : f32
    %343 = vector.broadcast %cst_184 : f32 to vector<58x56xf32>
    %c0_185 = arith.constant 0 : index
    %c0_186 = arith.constant 0 : index
    %344 = vector.load %arg8[%c0_185, %c0_186] : memref<65x65xf32, #tpu.memory_space<vmem>>, vector<58x56xf32>
    %c0_187 = arith.constant 0 : index
    %345 = memref.load %arg4[%c0_187] : memref<25xf32, #tpu.memory_space<smem>>
    %346 = vector.broadcast %345 : f32 to vector<58x56xf32>
    %347 = arith.mulf %344, %346 : vector<58x56xf32>
    %348 = arith.addf %343, %347 : vector<58x56xf32>
    %c0_188 = arith.constant 0 : index
    %c1_189 = arith.constant 1 : index
    %349 = vector.load %arg8[%c0_188, %c1_189] : memref<65x65xf32, #tpu.memory_space<vmem>>, vector<58x56xf32>
    %c1_190 = arith.constant 1 : index
    %350 = memref.load %arg4[%c1_190] : memref<25xf32, #tpu.memory_space<smem>>
    %351 = vector.broadcast %350 : f32 to vector<58x56xf32>
    %352 = arith.mulf %349, %351 : vector<58x56xf32>
    %353 = arith.addf %348, %352 : vector<58x56xf32>
    %c0_191 = arith.constant 0 : index
    %c2_192 = arith.constant 2 : index
    %354 = vector.load %arg8[%c0_191, %c2_192] : memref<65x65xf32, #tpu.memory_space<vmem>>, vector<58x56xf32>
    %c2_193 = arith.constant 2 : index
    %355 = memref.load %arg4[%c2_193] : memref<25xf32, #tpu.memory_space<smem>>
    %356 = vector.broadcast %355 : f32 to vector<58x56xf32>
    %357 = arith.mulf %354, %356 : vector<58x56xf32>
    %358 = arith.addf %353, %357 : vector<58x56xf32>
    %c0_194 = arith.constant 0 : index
    %c3_195 = arith.constant 3 : index
    %359 = vector.load %arg8[%c0_194, %c3_195] : memref<65x65xf32, #tpu.memory_space<vmem>>, vector<58x56xf32>
    %c3_196 = arith.constant 3 : index
    %360 = memref.load %arg4[%c3_196] : memref<25xf32, #tpu.memory_space<smem>>
    %361 = vector.broadcast %360 : f32 to vector<58x56xf32>
    %362 = arith.mulf %359, %361 : vector<58x56xf32>
    %363 = arith.addf %358, %362 : vector<58x56xf32>
    %c0_197 = arith.constant 0 : index
    %c4_198 = arith.constant 4 : index
    %364 = vector.load %arg8[%c0_197, %c4_198] : memref<65x65xf32, #tpu.memory_space<vmem>>, vector<58x56xf32>
    %c4_199 = arith.constant 4 : index
    %365 = memref.load %arg4[%c4_199] : memref<25xf32, #tpu.memory_space<smem>>
    %366 = vector.broadcast %365 : f32 to vector<58x56xf32>
    %367 = arith.mulf %364, %366 : vector<58x56xf32>
    %368 = arith.addf %363, %367 : vector<58x56xf32>
    %c1_200 = arith.constant 1 : index
    %c0_201 = arith.constant 0 : index
    %369 = vector.load %arg8[%c1_200, %c0_201] : memref<65x65xf32, #tpu.memory_space<vmem>>, vector<58x56xf32>
    %c5_202 = arith.constant 5 : index
    %370 = memref.load %arg4[%c5_202] : memref<25xf32, #tpu.memory_space<smem>>
    %371 = vector.broadcast %370 : f32 to vector<58x56xf32>
    %372 = arith.mulf %369, %371 : vector<58x56xf32>
    %373 = arith.addf %368, %372 : vector<58x56xf32>
    %c1_203 = arith.constant 1 : index
    %c1_204 = arith.constant 1 : index
    %374 = vector.load %arg8[%c1_203, %c1_204] : memref<65x65xf32, #tpu.memory_space<vmem>>, vector<58x56xf32>
    %c6_205 = arith.constant 6 : index
    %375 = memref.load %arg4[%c6_205] : memref<25xf32, #tpu.memory_space<smem>>
    %376 = vector.broadcast %375 : f32 to vector<58x56xf32>
    %377 = arith.mulf %374, %376 : vector<58x56xf32>
    %378 = arith.addf %373, %377 : vector<58x56xf32>
    %c1_206 = arith.constant 1 : index
    %c2_207 = arith.constant 2 : index
    %379 = vector.load %arg8[%c1_206, %c2_207] : memref<65x65xf32, #tpu.memory_space<vmem>>, vector<58x56xf32>
    %c7_208 = arith.constant 7 : index
    %380 = memref.load %arg4[%c7_208] : memref<25xf32, #tpu.memory_space<smem>>
    %381 = vector.broadcast %380 : f32 to vector<58x56xf32>
    %382 = arith.mulf %379, %381 : vector<58x56xf32>
    %383 = arith.addf %378, %382 : vector<58x56xf32>
    %c1_209 = arith.constant 1 : index
    %c3_210 = arith.constant 3 : index
    %384 = vector.load %arg8[%c1_209, %c3_210] : memref<65x65xf32, #tpu.memory_space<vmem>>, vector<58x56xf32>
    %c8_211 = arith.constant 8 : index
    %385 = memref.load %arg4[%c8_211] : memref<25xf32, #tpu.memory_space<smem>>
    %386 = vector.broadcast %385 : f32 to vector<58x56xf32>
    %387 = arith.mulf %384, %386 : vector<58x56xf32>
    %388 = arith.addf %383, %387 : vector<58x56xf32>
    %c1_212 = arith.constant 1 : index
    %c4_213 = arith.constant 4 : index
    %389 = vector.load %arg8[%c1_212, %c4_213] : memref<65x65xf32, #tpu.memory_space<vmem>>, vector<58x56xf32>
    %c9_214 = arith.constant 9 : index
    %390 = memref.load %arg4[%c9_214] : memref<25xf32, #tpu.memory_space<smem>>
    %391 = vector.broadcast %390 : f32 to vector<58x56xf32>
    %392 = arith.mulf %389, %391 : vector<58x56xf32>
    %393 = arith.addf %388, %392 : vector<58x56xf32>
    %c2_215 = arith.constant 2 : index
    %c0_216 = arith.constant 0 : index
    %394 = vector.load %arg8[%c2_215, %c0_216] : memref<65x65xf32, #tpu.memory_space<vmem>>, vector<58x56xf32>
    %c10_217 = arith.constant 10 : index
    %395 = memref.load %arg4[%c10_217] : memref<25xf32, #tpu.memory_space<smem>>
    %396 = vector.broadcast %395 : f32 to vector<58x56xf32>
    %397 = arith.mulf %394, %396 : vector<58x56xf32>
    %398 = arith.addf %393, %397 : vector<58x56xf32>
    %c2_218 = arith.constant 2 : index
    %c1_219 = arith.constant 1 : index
    %399 = vector.load %arg8[%c2_218, %c1_219] : memref<65x65xf32, #tpu.memory_space<vmem>>, vector<58x56xf32>
    %c11_220 = arith.constant 11 : index
    %400 = memref.load %arg4[%c11_220] : memref<25xf32, #tpu.memory_space<smem>>
    %401 = vector.broadcast %400 : f32 to vector<58x56xf32>
    %402 = arith.mulf %399, %401 : vector<58x56xf32>
    %403 = arith.addf %398, %402 : vector<58x56xf32>
    %c2_221 = arith.constant 2 : index
    %c2_222 = arith.constant 2 : index
    %404 = vector.load %arg8[%c2_221, %c2_222] : memref<65x65xf32, #tpu.memory_space<vmem>>, vector<58x56xf32>
    %c12_223 = arith.constant 12 : index
    %405 = memref.load %arg4[%c12_223] : memref<25xf32, #tpu.memory_space<smem>>
    %406 = vector.broadcast %405 : f32 to vector<58x56xf32>
    %407 = arith.mulf %404, %406 : vector<58x56xf32>
    %408 = arith.addf %403, %407 : vector<58x56xf32>
    %c2_224 = arith.constant 2 : index
    %c3_225 = arith.constant 3 : index
    %409 = vector.load %arg8[%c2_224, %c3_225] : memref<65x65xf32, #tpu.memory_space<vmem>>, vector<58x56xf32>
    %c13_226 = arith.constant 13 : index
    %410 = memref.load %arg4[%c13_226] : memref<25xf32, #tpu.memory_space<smem>>
    %411 = vector.broadcast %410 : f32 to vector<58x56xf32>
    %412 = arith.mulf %409, %411 : vector<58x56xf32>
    %413 = arith.addf %408, %412 : vector<58x56xf32>
    %c2_227 = arith.constant 2 : index
    %c4_228 = arith.constant 4 : index
    %414 = vector.load %arg8[%c2_227, %c4_228] : memref<65x65xf32, #tpu.memory_space<vmem>>, vector<58x56xf32>
    %c14_229 = arith.constant 14 : index
    %415 = memref.load %arg4[%c14_229] : memref<25xf32, #tpu.memory_space<smem>>
    %416 = vector.broadcast %415 : f32 to vector<58x56xf32>
    %417 = arith.mulf %414, %416 : vector<58x56xf32>
    %418 = arith.addf %413, %417 : vector<58x56xf32>
    %c3_230 = arith.constant 3 : index
    %c0_231 = arith.constant 0 : index
    %419 = vector.load %arg8[%c3_230, %c0_231] : memref<65x65xf32, #tpu.memory_space<vmem>>, vector<58x56xf32>
    %c15_232 = arith.constant 15 : index
    %420 = memref.load %arg4[%c15_232] : memref<25xf32, #tpu.memory_space<smem>>
    %421 = vector.broadcast %420 : f32 to vector<58x56xf32>
    %422 = arith.mulf %419, %421 : vector<58x56xf32>
    %423 = arith.addf %418, %422 : vector<58x56xf32>
    %c3_233 = arith.constant 3 : index
    %c1_234 = arith.constant 1 : index
    %424 = vector.load %arg8[%c3_233, %c1_234] : memref<65x65xf32, #tpu.memory_space<vmem>>, vector<58x56xf32>
    %c16_235 = arith.constant 16 : index
    %425 = memref.load %arg4[%c16_235] : memref<25xf32, #tpu.memory_space<smem>>
    %426 = vector.broadcast %425 : f32 to vector<58x56xf32>
    %427 = arith.mulf %424, %426 : vector<58x56xf32>
    %428 = arith.addf %423, %427 : vector<58x56xf32>
    %c3_236 = arith.constant 3 : index
    %c2_237 = arith.constant 2 : index
    %429 = vector.load %arg8[%c3_236, %c2_237] : memref<65x65xf32, #tpu.memory_space<vmem>>, vector<58x56xf32>
    %c17_238 = arith.constant 17 : index
    %430 = memref.load %arg4[%c17_238] : memref<25xf32, #tpu.memory_space<smem>>
    %431 = vector.broadcast %430 : f32 to vector<58x56xf32>
    %432 = arith.mulf %429, %431 : vector<58x56xf32>
    %433 = arith.addf %428, %432 : vector<58x56xf32>
    %c3_239 = arith.constant 3 : index
    %c3_240 = arith.constant 3 : index
    %434 = vector.load %arg8[%c3_239, %c3_240] : memref<65x65xf32, #tpu.memory_space<vmem>>, vector<58x56xf32>
    %c18_241 = arith.constant 18 : index
    %435 = memref.load %arg4[%c18_241] : memref<25xf32, #tpu.memory_space<smem>>
    %436 = vector.broadcast %435 : f32 to vector<58x56xf32>
    %437 = arith.mulf %434, %436 : vector<58x56xf32>
    %438 = arith.addf %433, %437 : vector<58x56xf32>
    %c3_242 = arith.constant 3 : index
    %c4_243 = arith.constant 4 : index
    %439 = vector.load %arg8[%c3_242, %c4_243] : memref<65x65xf32, #tpu.memory_space<vmem>>, vector<58x56xf32>
    %c19_244 = arith.constant 19 : index
    %440 = memref.load %arg4[%c19_244] : memref<25xf32, #tpu.memory_space<smem>>
    %441 = vector.broadcast %440 : f32 to vector<58x56xf32>
    %442 = arith.mulf %439, %441 : vector<58x56xf32>
    %443 = arith.addf %438, %442 : vector<58x56xf32>
    %c4_245 = arith.constant 4 : index
    %c0_246 = arith.constant 0 : index
    %444 = vector.load %arg8[%c4_245, %c0_246] : memref<65x65xf32, #tpu.memory_space<vmem>>, vector<58x56xf32>
    %c20_247 = arith.constant 20 : index
    %445 = memref.load %arg4[%c20_247] : memref<25xf32, #tpu.memory_space<smem>>
    %446 = vector.broadcast %445 : f32 to vector<58x56xf32>
    %447 = arith.mulf %444, %446 : vector<58x56xf32>
    %448 = arith.addf %443, %447 : vector<58x56xf32>
    %c4_248 = arith.constant 4 : index
    %c1_249 = arith.constant 1 : index
    %449 = vector.load %arg8[%c4_248, %c1_249] : memref<65x65xf32, #tpu.memory_space<vmem>>, vector<58x56xf32>
    %c21_250 = arith.constant 21 : index
    %450 = memref.load %arg4[%c21_250] : memref<25xf32, #tpu.memory_space<smem>>
    %451 = vector.broadcast %450 : f32 to vector<58x56xf32>
    %452 = arith.mulf %449, %451 : vector<58x56xf32>
    %453 = arith.addf %448, %452 : vector<58x56xf32>
    %c4_251 = arith.constant 4 : index
    %c2_252 = arith.constant 2 : index
    %454 = vector.load %arg8[%c4_251, %c2_252] : memref<65x65xf32, #tpu.memory_space<vmem>>, vector<58x56xf32>
    %c22_253 = arith.constant 22 : index
    %455 = memref.load %arg4[%c22_253] : memref<25xf32, #tpu.memory_space<smem>>
    %456 = vector.broadcast %455 : f32 to vector<58x56xf32>
    %457 = arith.mulf %454, %456 : vector<58x56xf32>
    %458 = arith.addf %453, %457 : vector<58x56xf32>
    %c4_254 = arith.constant 4 : index
    %c3_255 = arith.constant 3 : index
    %459 = vector.load %arg8[%c4_254, %c3_255] : memref<65x65xf32, #tpu.memory_space<vmem>>, vector<58x56xf32>
    %c23_256 = arith.constant 23 : index
    %460 = memref.load %arg4[%c23_256] : memref<25xf32, #tpu.memory_space<smem>>
    %461 = vector.broadcast %460 : f32 to vector<58x56xf32>
    %462 = arith.mulf %459, %461 : vector<58x56xf32>
    %463 = arith.addf %458, %462 : vector<58x56xf32>
    %c4_257 = arith.constant 4 : index
    %c4_258 = arith.constant 4 : index
    %464 = vector.load %arg8[%c4_257, %c4_258] : memref<65x65xf32, #tpu.memory_space<vmem>>, vector<58x56xf32>
    %c24_259 = arith.constant 24 : index
    %465 = memref.load %arg4[%c24_259] : memref<25xf32, #tpu.memory_space<smem>>
    %466 = vector.broadcast %465 : f32 to vector<58x56xf32>
    %467 = arith.mulf %464, %466 : vector<58x56xf32>
    %468 = arith.addf %463, %467 : vector<58x56xf32>
    %c0_260 = arith.constant 0 : index
    %c0_261 = arith.constant 0 : index
    %469 = vector.load %arg5[%c0_260, %c0_261] : memref<58x56xf32, #tpu.memory_space<vmem>>, vector<58x56xf32>
    tpu.vector_store %arg5[%c0_260, %c0_261], %468 {strides = array<i32>} : memref<58x56xf32, #tpu.memory_space<vmem>>, vector<58x56xf32>,
    return
  }
}

</mosaic_0001>

<llo_original>
// kernel: a3c_lstm_forward.4
$region0: #{a3c_lstm_forward.4}
  #allocation0 [shape = 'u32[]', space=smem, size = 0x4, offset = 0x4, fixed_abs, tag = 'smem constant byte address 0x4 - core index']
  #allocation1 [shape = 'u32[144,128]{1,0:T(1,128)}', space=vmem, size = 0x12000, scoped, tag = 'internal scratch']
  %s0 = inlined_call_operand.vmem [shape: f32[1,592], index: 0, kind: input, shape index: {}]
  %s1 = inlined_call_operand.vmem [shape: f32[1,128], index: 1, kind: input, shape index: {}]
  %s2 = inlined_call_operand.vmem [shape: f32[1,128], index: 2, kind: input, shape index: {}]
  %s3 = inlined_call_operand.vmem [shape: f32[592,512], index: 3, kind: input, shape index: {}]
  %s4 = inlined_call_operand.vmem [shape: f32[128,512], index: 4, kind: input, shape index: {}]
  %s5 = inlined_call_operand.vmem [shape: f32[1,512], index: 5, kind: input, shape index: {}]
  %s6 = inlined_call_operand.vmem [shape: f32[128,7], index: 6, kind: input, shape index: {}]
  %s7 = inlined_call_operand.vmem [shape: f32[1,7], index: 7, kind: input, shape index: {}]
  %s8 = inlined_call_operand.hbm [shape: f32[1,128], index: 8, kind: output, shape index: {0}]
  %s9 = inlined_call_operand.hbm [shape: f32[1,128], index: 9, kind: output, shape index: {1}]
  %s10 = inlined_call_operand.hbm [shape: f32[1,1], index: 10, kind: output, shape index: {2}]
  %s11 = inlined_call_operand.hbm [shape: f32[1,6], index: 11, kind: output, shape index: {3}]
  %12 = xla_tuple %s8, %s9, %s10, %s11
  %s13 = sld [smem:[#allocation0]]
  $region66: #{a3c_lstm_forward.4} parent=0
    _
  %s15 = ssub.s32 1, %s13
  %s16 = scalar_select 0, %s15, %s13
  $region1: #{a3c_lstm_forward.4} parent=0
    #allocation2 [shape = 'u8[512]{0}', space=vmem, size = 0x400, scoped, tag = 'output window, operand 0, single buffered']
    #allocation3 [shape = 's32[1]{0}', space=sflag, size = 0x4, scoped, tag = 'scoped memory for a3c_lstm_forward.4']
    #allocation4 [shape = 'u8[512]{0}', space=vmem, size = 0x400, scoped, tag = 'output window, operand 1, single buffered']
    #allocation5 [shape = 's32[1]{0}', space=sflag, size = 0x4, scoped, tag = 'scoped memory for a3c_lstm_forward.4']
    #allocation6 [shape = 'u8[512]{0}', space=vmem, size = 0x400, scoped, tag = 'output window, operand 2, single buffered']
    #allocation7 [shape = 'u8[512]{0}', space=vmem, size = 0x400, scoped, tag = 'output window, operand 3, single buffered']
    #allocation8 [shape = 's32[1]{0}', space=sflag, size = 0x4, scoped, tag = 'scoped memory for a3c_lstm_forward.4']
    %17 = vsyncpa [#allocation3], 0
    %18 = vsyncpa [#allocation5], 0
    %19 = vsyncpa [#allocation8], 0
    // Predicated region
    $region2: #{a3c_lstm_forward.4} parent=1 // pred_check
      _
    $region3: #{a3c_lstm_forward.4} parent=1 // pred_check_branch
      %21 = sbr.rel (0) target = $region5
    $region4: #{a3c_lstm_forward.4} parent=1 // pred_region
      _
    $region5: #{a3c_lstm_forward.4} parent=1 // pred_fallthru
      _
    // Predicated region
    $region6: #{a3c_lstm_forward.4} parent=1 // pred_check
      _
    $region7: #{a3c_lstm_forward.4} parent=1 // pred_check_branch
      %23 = sbr.rel (0) target = $region9
    $region8: #{a3c_lstm_forward.4} parent=1 // pred_region
      _
    $region9: #{a3c_lstm_forward.4} parent=1 // pred_fallthru
      _
    // Predicated region
    $region10: #{a3c_lstm_forward.4} parent=1 // pred_check
      _
    $region11: #{a3c_lstm_forward.4} parent=1 // pred_check_branch
      %25 = sbr.rel (0) target = $region13
    $region12: #{a3c_lstm_forward.4} parent=1 // pred_region
      _
    $region13: #{a3c_lstm_forward.4} parent=1 // pred_fallthru
      _
    // Predicated region
    $region14: #{a3c_lstm_forward.4} parent=1 // pred_check
      _
    $region15: #{a3c_lstm_forward.4} parent=1 // pred_check_branch
      %27 = sbr.rel (0) target = $region17
    $region16: #{a3c_lstm_forward.4} parent=1 // pred_region
      _
    $region17: #{a3c_lstm_forward.4} parent=1 // pred_fallthru
      _
    // Predicated region
    $region18: #{a3c_lstm_forward.4} parent=1 // pred_check
      _
    $region19: #{a3c_lstm_forward.4} parent=1 // pred_check_branch
      %29 = sbr.rel (0) target = $region21
    $region20: #{a3c_lstm_forward.4} parent=1 // pred_region
      _
    $region21: #{a3c_lstm_forward.4} parent=1 // pred_fallthru
      _
    // Predicated region
    $region22: #{a3c_lstm_forward.4} parent=1 // pred_check
      _
    $region23: #{a3c_lstm_forward.4} parent=1 // pred_check_branch
      %31 = sbr.rel (0) target = $region25
    $region24: #{a3c_lstm_forward.4} parent=1 // pred_region
      _
    $region25: #{a3c_lstm_forward.4} parent=1 // pred_fallthru
      _
    // Predicated region
    $region26: #{a3c_lstm_forward.4} parent=1 // pred_check
      _
    $region27: #{a3c_lstm_forward.4} parent=1 // pred_check_branch
      %33 = sbr.rel (0) target = $region29
    $region28: #{a3c_lstm_forward.4} parent=1 // pred_region
      _
    $region29: #{a3c_lstm_forward.4} parent=1 // pred_fallthru
      _
    // Predicated region
    $region30: #{a3c_lstm_forward.4} parent=1 // pred_check
      _
    $region31: #{a3c_lstm_forward.4} parent=1 // pred_check_branch
      %35 = sbr.rel (0) target = $region33
    $region32: #{a3c_lstm_forward.4} parent=1 // pred_region
      _
    $region33: #{a3c_lstm_forward.4} parent=1 // pred_fallthru
      _
    %v36 = vld [vmem:[%s0] sm:$0x1f]
    %v37 = vld [vmem:[%s3] sm:$0xff]
    %v38 = vld [vmem:[%s3 + $0x8] sm:$0xff]
    %v39 = vld [vmem:[%s3 + $0x10] sm:$0xff]
    %v40 = vld [vmem:[%s3 + $0x18] sm:$0xff]
    %v41 = vld [vmem:[%s3 + $0x20] sm:$0xff]
    %v42 = vld [vmem:[%s3 + $0x28] sm:$0xff]
    %v43 = vld [vmem:[%s3 + $0x30] sm:$0xff]
    %v44 = vld [vmem:[%s3 + $0x38] sm:$0xff]
    %v45 = vld [vmem:[%s3 + $0x40] sm:$0xff]
    %v46 = vld [vmem:[%s3 + $0x48] sm:$0xff]
    %v47 = vld [vmem:[%s3 + $0x50] sm:$0xff]
    %v48 = vld [vmem:[%s3 + $0x58] sm:$0xff]
    %v49 = vld [vmem:[%s3 + $0x60] sm:$0xff]
    %v50 = vld [vmem:[%s3 + $0x68] sm:$0xff]
    %v51 = vld [vmem:[%s3 + $0x70] sm:$0xff]
    %v52 = vld [vmem:[%s3 + $0x78] sm:$0xff]
    %v53 = vld [vmem:[%s3 + $0x80] sm:$0xff]
    %v54 = vld [vmem:[%s3 + $0x88] sm:$0xff]
    %v55 = vld [vmem:[%s3 + $0x90] sm:$0xff]
    %v56 = vld [vmem:[%s3 + $0x98] sm:$0xff]
    %v57 = vld [vmem:[%s3 + $0xa0] sm:$0xff]
    %v58 = vld [vmem:[%s3 + $0xa8] sm:$0xff]
    %v59 = vld [vmem:[%s3 + $0xb0] sm:$0xff]
    %v60 = vld [vmem:[%s3 + $0xb8] sm:$0xff]
    %v61 = vld [vmem:[%s3 + $0xc0] sm:$0xff]
    %v62 = vld [vmem:[%s3 + $0xc8] sm:$0xff]
    %v63 = vld [vmem:[%s3 + $0xd0] sm:$0xff]
    %v64 = vld [vmem:[%s3 + $0xd8] sm:$0xff]
    %v65 = vld [vmem:[%s3 + $0xe0] sm:$0xff]
    %v66 = vld [vmem:[%s3 + $0xe8] sm:$0xff]
    %v67 = vld [vmem:[%s3 + $0xf0] sm:$0xff]
    %v68 = vld [vmem:[%s3 + $0xf8] sm:$0xff]
    %v69 = vld [vmem:[%s3 + $0x100] sm:$0xff]
    %v70 = vld [vmem:[%s3 + $0x108] sm:$0xff]
    %v71 = vld [vmem:[%s3 + $0x110] sm:$0xff]
    %v72 = vld [vmem:[%s3 + $0x118] sm:$0xff]
    %v73 = vld [vmem:[%s3 + $0x120] sm:$0xff]
    %v74 = vld [vmem:[%s3 + $0x128] sm:$0xff]
    %v75 = vld [vmem:[%s3 + $0x130] sm:$0xff]
    %v76 = vld [vmem:[%s3 + $0x138] sm:$0xff]
    %v77 = vld [vmem:[%s3 + $0x140] sm:$0xff]
    %v78 = vld [vmem:[%s3 + $0x148] sm:$0xff]
    %v79 = vld [vmem:[%s3 + $0x150] sm:$0xff]
    %v80 = vld [vmem:[%s3 + $0x158] sm:$0xff]
    %v81 = vld [vmem:[%s3 + $0x160] sm:$0xff]
    %v82 = vld [vmem:[%s3 + $0x168] sm:$0xff]
    %v83 = vld [vmem:[%s3 + $0x170] sm:$0xff]
    %v84 = vld [vmem:[%s3 + $0x178] sm:$0xff]
    %v85 = vld [vmem:[%s3 + $0x180] sm:$0xff]
    %v86 = vld [vmem:[%s3 + $0x188] sm:$0xff]
    %v87 = vld [vmem:[%s3 + $0x190] sm:$0xff]
    %v88 = vld [vmem:[%s3 + $0x198] sm:$0xff]
    %v89 = vld [vmem:[%s3 + $0x1a0] sm:$0xff]
    %v90 = vld [vmem:[%s3 + $0x1a8] sm:$0xff]
    %v91 = vld [vmem:[%s3 + $0x1b0] sm:$0xff]
    %v92 = vld [vmem:[%s3 + $0x1b8] sm:$0xff]
    %v93 = vld [vmem:[%s3 + $0x1c0] sm:$0xff]
    %v94 = vld [vmem:[%s3 + $0x1c8] sm:$0xff]
    %v95 = vld [vmem:[%s3 + $0x1d0] sm:$0xff]
    %v96 = vld [vmem:[%s3 + $0x1d8] sm:$0xff]
    %v97 = vld [vmem:[%s3 + $0x1e0] sm:$0xff]
    %v98 = vld [vmem:[%s3 + $0x1e8] sm:$0xff]
    %v99 = vld [vmem:[%s3 + $0x1f0] sm:$0xff]
    %v100 = vld [vmem:[%s3 + $0x1f8] sm:$0xff]
    %v101 = vld [vmem:[%s3 + $0x200] sm:$0xff]
    %v102 = vld [vmem:[%s3 + $0x208] sm:$0xff]
    %v103 = vld [vmem:[%s3 + $0x210] sm:$0xff]
    %v104 = vld [vmem:[%s3 + $0x218] sm:$0xff]
    %v105 = vld [vmem:[%s3 + $0x220] sm:$0xff]
    %v106 = vld [vmem:[%s3 + $0x228] sm:$0xff]
    %v107 = vld [vmem:[%s3 + $0x230] sm:$0xff]
    %v108 = vld [vmem:[%s3 + $0x238] sm:$0xff]
    %v109 = vld [vmem:[%s3 + $0x240] sm:$0xff]
    %v110 = vld [vmem:[%s3 + $0x248] sm:$0xff]
    %v111 = vld [vmem:[%s3 + $0x250] sm:$0xff]
    %v112 = vld [vmem:[%s3 + $0x258] sm:$0xff]
    %v113 = vld [vmem:[%s3 + $0x260] sm:$0xff]
    %v114 = vld [vmem:[%s3 + $0x268] sm:$0xff]
    %v115 = vld [vmem:[%s3 + $0x270] sm:$0xff]
    %v116 = vld [vmem:[%s3 + $0x278] sm:$0xff]
    %v117 = vld [vmem:[%s3 + $0x280] sm:$0xff]
    %v118 = vld [vmem:[%s3 + $0x288] sm:$0xff]
    %v119 = vld [vmem:[%s3 + $0x290] sm:$0xff]
    %v120 = vld [vmem:[%s3 + $0x298] sm:$0xff]
    %v121 = vld [vmem:[%s3 + $0x2a0] sm:$0xff]
    %v122 = vld [vmem:[%s3 + $0x2a8] sm:$0xff]
    %v123 = vld [vmem:[%s3 + $0x2b0] sm:$0xff]
    %v124 = vld [vmem:[%s3 + $0x2b8] sm:$0xff]
    %v125 = vld [vmem:[%s3 + $0x2c0] sm:$0xff]
    %v126 = vld [vmem:[%s3 + $0x2c8] sm:$0xff]
    %v127 = vld [vmem:[%s3 + $0x2d0] sm:$0xff]
    %v128 = vld [vmem:[%s3 + $0x2d8] sm:$0xff]
    %v129 = vld [vmem:[%s3 + $0x2e0] sm:$0xff]
    %v130 = vld [vmem:[%s3 + $0x2e8] sm:$0xff]
    %v131 = vld [vmem:[%s3 + $0x2f0] sm:$0xff]
    %v132 = vld [vmem:[%s3 + $0x2f8] sm:$0xff]
    %v133 = vld [vmem:[%s3 + $0x300] sm:$0xff]
    %v134 = vld [vmem:[%s3 + $0x308] sm:$0xff]
    %v135 = vld [vmem:[%s3 + $0x310] sm:$0xff]
    %v136 = vld [vmem:[%s3 + $0x318] sm:$0xff]
    %v137 = vld [vmem:[%s3 + $0x320] sm:$0xff]
    %v138 = vld [vmem:[%s3 + $0x328] sm:$0xff]
    %v139 = vld [vmem:[%s3 + $0x330] sm:$0xff]
    %v140 = vld [vmem:[%s3 + $0x338] sm:$0xff]
    %v141 = vld [vmem:[%s3 + $0x340] sm:$0xff]
    %v142 = vld [vmem:[%s3 + $0x348] sm:$0xff]
    %v143 = vld [vmem:[%s3 + $0x350] sm:$0xff]
    %v144 = vld [vmem:[%s3 + $0x358] sm:$0xff]
    %v145 = vld [vmem:[%s3 + $0x360] sm:$0xff]
    %v146 = vld [vmem:[%s3 + $0x368] sm:$0xff]
    %v147 = vld [vmem:[%s3 + $0x370] sm:$0xff]
    %v148 = vld [vmem:[%s3 + $0x378] sm:$0xff]
    %v149 = vld [vmem:[%s3 + $0x380] sm:$0xff]
    %v150 = vld [vmem:[%s3 + $0x388] sm:$0xff]
    %v151 = vld [vmem:[%s3 + $0x390] sm:$0xff]
    %v152 = vld [vmem:[%s3 + $0x398] sm:$0xff]
    %v153 = vld [vmem:[%s3 + $0x3a0] sm:$0xff]
    %v154 = vld [vmem:[%s3 + $0x3a8] sm:$0xff]
    %v155 = vld [vmem:[%s3 + $0x3b0] sm:$0xff]
    %v156 = vld [vmem:[%s3 + $0x3b8] sm:$0xff]
    %v157 = vld [vmem:[%s3 + $0x3c0] sm:$0xff]
    %v158 = vld [vmem:[%s3 + $0x3c8] sm:$0xff]
    %v159 = vld [vmem:[%s3 + $0x3d0] sm:$0xff]
    %v160 = vld [vmem:[%s3 + $0x3d8] sm:$0xff]
    %v161 = vld [vmem:[%s3 + $0x3e0] sm:$0xff]
    %v162 = vld [vmem:[%s3 + $0x3e8] sm:$0xff]
    %v163 = vld [vmem:[%s3 + $0x3f0] sm:$0xff]
    %v164 = vld [vmem:[%s3 + $0x3f8] sm:$0xff]
    %v165 = vld [vmem:[%s3 + $0x400] sm:$0xff]
    %v166 = vld [vmem:[%s3 + $0x408] sm:$0xff]
    %v167 = vld [vmem:[%s3 + $0x410] sm:$0xff]
    %v168 = vld [vmem:[%s3 + $0x418] sm:$0xff]
    %v169 = vld [vmem:[%s3 + $0x420] sm:$0xff]
    %v170 = vld [vmem:[%s3 + $0x428] sm:$0xff]
    %v171 = vld [vmem:[%s3 + $0x430] sm:$0xff]
    %v172 = vld [vmem:[%s3 + $0x438] sm:$0xff]
    %v173 = vld [vmem:[%s3 + $0x440] sm:$0xff]
    %v174 = vld [vmem:[%s3 + $0x448] sm:$0xff]
    %v175 = vld [vmem:[%s3 + $0x450] sm:$0xff]
    %v176 = vld [vmem:[%s3 + $0x458] sm:$0xff]
    %v177 = vld [vmem:[%s3 + $0x460] sm:$0xff]
    %v178 = vld [vmem:[%s3 + $0x468] sm:$0xff]
    %v179 = vld [vmem:[%s3 + $0x470] sm:$0xff]
    %v180 = vld [vmem:[%s3 + $0x478] sm:$0xff]
    %v181 = vld [vmem:[%s3 + $0x480] sm:$0xff]
    %v182 = vld [vmem:[%s3 + $0x488] sm:$0xff]
    %v183 = vld [vmem:[%s3 + $0x490] sm:$0xff]
    %v184 = vld [vmem:[%s3 + $0x498] sm:$0xff]
    %v185 = vld [vmem:[%s3 + $0x4a0] sm:$0xff]
    %v186 = vld [vmem:[%s3 + $0x4a8] sm:$0xff]
    %v187 = vld [vmem:[%s3 + $0x4b0] sm:$0xff]
    %v188 = vld [vmem:[%s3 + $0x4b8] sm:$0xff]
    %v189 = vld [vmem:[%s3 + $0x4c0] sm:$0xff]
    %v190 = vld [vmem:[%s3 + $0x4c8] sm:$0xff]
    %v191 = vld [vmem:[%s3 + $0x4d0] sm:$0xff]
    %v192 = vld [vmem:[%s3 + $0x4d8] sm:$0xff]
    %v193 = vld [vmem:[%s3 + $0x4e0] sm:$0xff]
    %v194 = vld [vmem:[%s3 + $0x4e8] sm:$0xff]
    %v195 = vld [vmem:[%s3 + $0x4f0] sm:$0xff]
    %v196 = vld [vmem:[%s3 + $0x4f8] sm:$0xff]
    %v197 = vld [vmem:[%s3 + $0x500] sm:$0xff]
    %v198 = vld [vmem:[%s3 + $0x508] sm:$0xff]
    %v199 = vld [vmem:[%s3 + $0x510] sm:$0xff]
    %v200 = vld [vmem:[%s3 + $0x518] sm:$0xff]
    %v201 = vld [vmem:[%s3 + $0x520] sm:$0xff]
    %v202 = vld [vmem:[%s3 + $0x528] sm:$0xff]
    %v203 = vld [vmem:[%s3 + $0x530] sm:$0xff]
    %v204 = vld [vmem:[%s3 + $0x538] sm:$0xff]
    %v205 = vld [vmem:[%s3 + $0x540] sm:$0xff]
    %v206 = vld [vmem:[%s3 + $0x548] sm:$0xff]
    %v207 = vld [vmem:[%s3 + $0x550] sm:$0xff]
    %v208 = vld [vmem:[%s3 + $0x558] sm:$0xff]
    %v209 = vld [vmem:[%s3 + $0x560] sm:$0xff]
    %v210 = vld [vmem:[%s3 + $0x568] sm:$0xff]
    %v211 = vld [vmem:[%s3 + $0x570] sm:$0xff]
    %v212 = vld [vmem:[%s3 + $0x578] sm:$0xff]
    %v213 = vld [vmem:[%s3 + $0x580] sm:$0xff]
    %v214 = vld [vmem:[%s3 + $0x588] sm:$0xff]
    %v215 = vld [vmem:[%s3 + $0x590] sm:$0xff]
    %v216 = vld [vmem:[%s3 + $0x598] sm:$0xff]
    %v217 = vld [vmem:[%s3 + $0x5a0] sm:$0xff]
    %v218 = vld [vmem:[%s3 + $0x5a8] sm:$0xff]
    %v219 = vld [vmem:[%s3 + $0x5b0] sm:$0xff]
    %v220 = vld [vmem:[%s3 + $0x5b8] sm:$0xff]
    %v221 = vld [vmem:[%s3 + $0x5c0] sm:$0xff]
    %v222 = vld [vmem:[%s3 + $0x5c8] sm:$0xff]
    %v223 = vld [vmem:[%s3 + $0x5d0] sm:$0xff]
    %v224 = vld [vmem:[%s3 + $0x5d8] sm:$0xff]
    %v225 = vld [vmem:[%s3 + $0x5e0] sm:$0xff]
    %v226 = vld [vmem:[%s3 + $0x5e8] sm:$0xff]
    %v227 = vld [vmem:[%s3 + $0x5f0] sm:$0xff]
    %v228 = vld [vmem:[%s3 + $0x5f8] sm:$0xff]
    %v229 = vld [vmem:[%s3 + $0x600] sm:$0xff]
    %v230 = vld [vmem:[%s3 + $0x608] sm:$0xff]
    %v231 = vld [vmem:[%s3 + $0x610] sm:$0xff]
    %v232 = vld [vmem:[%s3 + $0x618] sm:$0xff]
    %v233 = vld [vmem:[%s3 + $0x620] sm:$0xff]
    %v234 = vld [vmem:[%s3 + $0x628] sm:$0xff]
    %v235 = vld [vmem:[%s3 + $0x630] sm:$0xff]
    %v236 = vld [vmem:[%s3 + $0x638] sm:$0xff]
    %v237 = vld [vmem:[%s3 + $0x640] sm:$0xff]
    %v238 = vld [vmem:[%s3 + $0x648] sm:$0xff]
    %v239 = vld [vmem:[%s3 + $0x650] sm:$0xff]
    %v240 = vld [vmem:[%s3 + $0x658] sm:$0xff]
    %v241 = vld [vmem:[%s3 + $0x660] sm:$0xff]
    %v242 = vld [vmem:[%s3 + $0x668] sm:$0xff]
    %v243 = vld [vmem:[%s3 + $0x670] sm:$0xff]
    %v244 = vld [vmem:[%s3 + $0x678] sm:$0xff]
    %v245 = vld [vmem:[%s3 + $0x680] sm:$0xff]
    %v246 = vld [vmem:[%s3 + $0x688] sm:$0xff]
    %v247 = vld [vmem:[%s3 + $0x690] sm:$0xff]
    %v248 = vld [vmem:[%s3 + $0x698] sm:$0xff]
    %v249 = vld [vmem:[%s3 + $0x6a0] sm:$0xff]
    %v250 = vld [vmem:[%s3 + $0x6a8] sm:$0xff]
    %v251 = vld [vmem:[%s3 + $0x6b0] sm:$0xff]
    %v252 = vld [vmem:[%s3 + $0x6b8] sm:$0xff]
    %v253 = vld [vmem:[%s3 + $0x6c0] sm:$0xff]
    %v254 = vld [vmem:[%s3 + $0x6c8] sm:$0xff]
    %v255 = vld [vmem:[%s3 + $0x6d0] sm:$0xff]
    %v256 = vld [vmem:[%s3 + $0x6d8] sm:$0xff]
    %v257 = vld [vmem:[%s3 + $0x6e0] sm:$0xff]
    %v258 = vld [vmem:[%s3 + $0x6e8] sm:$0xff]
    %v259 = vld [vmem:[%s3 + $0x6f0] sm:$0xff]
    %v260 = vld [vmem:[%s3 + $0x6f8] sm:$0xff]
    %v261 = vld [vmem:[%s3 + $0x700] sm:$0xff]
    %v262 = vld [vmem:[%s3 + $0x708] sm:$0xff]
    %v263 = vld [vmem:[%s3 + $0x710] sm:$0xff]
    %v264 = vld [vmem:[%s3 + $0x718] sm:$0xff]
    %v265 = vld [vmem:[%s3 + $0x720] sm:$0xff]
    %v266 = vld [vmem:[%s3 + $0x728] sm:$0xff]
    %v267 = vld [vmem:[%s3 + $0x730] sm:$0xff]
    %v268 = vld [vmem:[%s3 + $0x738] sm:$0xff]
    %v269 = vld [vmem:[%s3 + $0x740] sm:$0xff]
    %v270 = vld [vmem:[%s3 + $0x748] sm:$0xff]
    %v271 = vld [vmem:[%s3 + $0x750] sm:$0xff]
    %v272 = vld [vmem:[%s3 + $0x758] sm:$0xff]
    %v273 = vld [vmem:[%s3 + $0x760] sm:$0xff]
    %v274 = vld [vmem:[%s3 + $0x768] sm:$0xff]
    %v275 = vld [vmem:[%s3 + $0x770] sm:$0xff]
    %v276 = vld [vmem:[%s3 + $0x778] sm:$0xff]
    %v277 = vld [vmem:[%s3 + $0x780] sm:$0xff]
    %v278 = vld [vmem:[%s3 + $0x788] sm:$0xff]
    %v279 = vld [vmem:[%s3 + $0x790] sm:$0xff]
    %v280 = vld [vmem:[%s3 + $0x798] sm:$0xff]
    %v281 = vld [vmem:[%s3 + $0x7a0] sm:$0xff]
    %v282 = vld [vmem:[%s3 + $0x7a8] sm:$0xff]
    %v283 = vld [vmem:[%s3 + $0x7b0] sm:$0xff]
    %v284 = vld [vmem:[%s3 + $0x7b8] sm:$0xff]
    %v285 = vld [vmem:[%s3 + $0x7c0] sm:$0xff]
    %v286 = vld [vmem:[%s3 + $0x7c8] sm:$0xff]
    %v287 = vld [vmem:[%s3 + $0x7d0] sm:$0xff]
    %v288 = vld [vmem:[%s3 + $0x7d8] sm:$0xff]
    %v289 = vld [vmem:[%s3 + $0x7e0] sm:$0xff]
    %v290 = vld [vmem:[%s3 + $0x7e8] sm:$0xff]
    %v291 = vld [vmem:[%s3 + $0x7f0] sm:$0xff]
    %v292 = vld [vmem:[%s3 + $0x7f8] sm:$0xff]
    %v293 = vld [vmem:[%s3 + $0x800] sm:$0xff]
    %v294 = vld [vmem:[%s3 + $0x808] sm:$0xff]
    %v295 = vld [vmem:[%s3 + $0x810] sm:$0xff]
    %v296 = vld [vmem:[%s3 + $0x818] sm:$0xff]
    %v297 = vld [vmem:[%s3 + $0x820] sm:$0xff]
    %v298 = vld [vmem:[%s3 + $0x828] sm:$0xff]
    %v299 = vld [vmem:[%s3 + $0x830] sm:$0xff]
    %v300 = vld [vmem:[%s3 + $0x838] sm:$0xff]
    %v301 = vld [vmem:[%s3 + $0x840] sm:$0xff]
    %v302 = vld [vmem:[%s3 + $0x848] sm:$0xff]
    %v303 = vld [vmem:[%s3 + $0x850] sm:$0xff]
    %v304 = vld [vmem:[%s3 + $0x858] sm:$0xff]
    %v305 = vld [vmem:[%s3 + $0x860] sm:$0xff]
    %v306 = vld [vmem:[%s3 + $0x868] sm:$0xff]
    %v307 = vld [vmem:[%s3 + $0x870] sm:$0xff]
    %v308 = vld [vmem:[%s3 + $0x878] sm:$0xff]
    %v309 = vld [vmem:[%s3 + $0x880] sm:$0xff]
    %v310 = vld [vmem:[%s3 + $0x888] sm:$0xff]
    %v311 = vld [vmem:[%s3 + $0x890] sm:$0xff]
    %v312 = vld [vmem:[%s3 + $0x898] sm:$0xff]
    %v313 = vld [vmem:[%s3 + $0x8a0] sm:$0xff]
    %v314 = vld [vmem:[%s3 + $0x8a8] sm:$0xff]
    %v315 = vld [vmem:[%s3 + $0x8b0] sm:$0xff]
    %v316 = vld [vmem:[%s3 + $0x8b8] sm:$0xff]
    %v317 = vld [vmem:[%s3 + $0x8c0] sm:$0xff]
    %v318 = vld [vmem:[%s3 + $0x8c8] sm:$0xff]
    %v319 = vld [vmem:[%s3 + $0x8d0] sm:$0xff]
    %v320 = vld [vmem:[%s3 + $0x8d8] sm:$0xff]
    %v321 = vld [vmem:[%s3 + $0x8e0] sm:$0xff]
    %v322 = vld [vmem:[%s3 + $0x8e8] sm:$0xff]
    %v323 = vld [vmem:[%s3 + $0x8f0] sm:$0xff]
    %v324 = vld [vmem:[%s3 + $0x8f8] sm:$0xff]
    %v325 = vld [vmem:[%s3 + $0x900] sm:$0xff]
    %v326 = vld [vmem:[%s3 + $0x908] sm:$0xff]
    %v327 = vld [vmem:[%s3 + $0x910] sm:$0xff]
    %v328 = vld [vmem:[%s3 + $0x918] sm:$0xff]
    %v329 = vld [vmem:[%s3 + $0x920] sm:$0xff]
    %v330 = vld [vmem:[%s3 + $0x928] sm:$0xff]
    %v331 = vld [vmem:[%s3 + $0x930] sm:$0xff]
    %v332 = vld [vmem:[%s3 + $0x938] sm:$0xff]
    %v333 = vld [vmem:[%s1] sm:$0x1]
    %v334 = vld [vmem:[%s4] sm:$0xff]
    %v335 = vld [vmem:[%s4 + $0x8] sm:$0xff]
    %v336 = vld [vmem:[%s4 + $0x10] sm:$0xff]
    %v337 = vld [vmem:[%s4 + $0x18] sm:$0xff]
    %v338 = vld [vmem:[%s4 + $0x20] sm:$0xff]
    %v339 = vld [vmem:[%s4 + $0x28] sm:$0xff]
    %v340 = vld [vmem:[%s4 + $0x30] sm:$0xff]
    %v341 = vld [vmem:[%s4 + $0x38] sm:$0xff]
    %v342 = vld [vmem:[%s4 + $0x40] sm:$0xff]
    %v343 = vld [vmem:[%s4 + $0x48] sm:$0xff]
    %v344 = vld [vmem:[%s4 + $0x50] sm:$0xff]
    %v345 = vld [vmem:[%s4 + $0x58] sm:$0xff]
    %v346 = vld [vmem:[%s4 + $0x60] sm:$0xff]
    %v347 = vld [vmem:[%s4 + $0x68] sm:$0xff]
    %v348 = vld [vmem:[%s4 + $0x70] sm:$0xff]
    %v349 = vld [vmem:[%s4 + $0x78] sm:$0xff]
    %v350 = vld [vmem:[%s4 + $0x80] sm:$0xff]
    %v351 = vld [vmem:[%s4 + $0x88] sm:$0xff]
    %v352 = vld [vmem:[%s4 + $0x90] sm:$0xff]
    %v353 = vld [vmem:[%s4 + $0x98] sm:$0xff]
    %v354 = vld [vmem:[%s4 + $0xa0] sm:$0xff]
    %v355 = vld [vmem:[%s4 + $0xa8] sm:$0xff]
    %v356 = vld [vmem:[%s4 + $0xb0] sm:$0xff]
    %v357 = vld [vmem:[%s4 + $0xb8] sm:$0xff]
    %v358 = vld [vmem:[%s4 + $0xc0] sm:$0xff]
    %v359 = vld [vmem:[%s4 + $0xc8] sm:$0xff]
    %v360 = vld [vmem:[%s4 + $0xd0] sm:$0xff]
    %v361 = vld [vmem:[%s4 + $0xd8] sm:$0xff]
    %v362 = vld [vmem:[%s4 + $0xe0] sm:$0xff]
    %v363 = vld [vmem:[%s4 + $0xe8] sm:$0xff]
    %v364 = vld [vmem:[%s4 + $0xf0] sm:$0xff]
    %v365 = vld [vmem:[%s4 + $0xf8] sm:$0xff]
    %v366 = vld [vmem:[%s4 + $0x100] sm:$0xff]
    %v367 = vld [vmem:[%s4 + $0x108] sm:$0xff]
    %v368 = vld [vmem:[%s4 + $0x110] sm:$0xff]
    %v369 = vld [vmem:[%s4 + $0x118] sm:$0xff]
    %v370 = vld [vmem:[%s4 + $0x120] sm:$0xff]
    %v371 = vld [vmem:[%s4 + $0x128] sm:$0xff]
    %v372 = vld [vmem:[%s4 + $0x130] sm:$0xff]
    %v373 = vld [vmem:[%s4 + $0x138] sm:$0xff]
    %v374 = vld [vmem:[%s4 + $0x140] sm:$0xff]
    %v375 = vld [vmem:[%s4 + $0x148] sm:$0xff]
    %v376 = vld [vmem:[%s4 + $0x150] sm:$0xff]
    %v377 = vld [vmem:[%s4 + $0x158] sm:$0xff]
    %v378 = vld [vmem:[%s4 + $0x160] sm:$0xff]
    %v379 = vld [vmem:[%s4 + $0x168] sm:$0xff]
    %v380 = vld [vmem:[%s4 + $0x170] sm:$0xff]
    %v381 = vld [vmem:[%s4 + $0x178] sm:$0xff]
    %v382 = vld [vmem:[%s4 + $0x180] sm:$0xff]
    %v383 = vld [vmem:[%s4 + $0x188] sm:$0xff]
    %v384 = vld [vmem:[%s4 + $0x190] sm:$0xff]
    %v385 = vld [vmem:[%s4 + $0x198] sm:$0xff]
    %v386 = vld [vmem:[%s4 + $0x1a0] sm:$0xff]
    %v387 = vld [vmem:[%s4 + $0x1a8] sm:$0xff]
    %v388 = vld [vmem:[%s4 + $0x1b0] sm:$0xff]
    %v389 = vld [vmem:[%s4 + $0x1b8] sm:$0xff]
    %v390 = vld [vmem:[%s4 + $0x1c0] sm:$0xff]
    %v391 = vld [vmem:[%s4 + $0x1c8] sm:$0xff]
    %v392 = vld [vmem:[%s4 + $0x1d0] sm:$0xff]
    %v393 = vld [vmem:[%s4 + $0x1d8] sm:$0xff]
    %v394 = vld [vmem:[%s4 + $0x1e0] sm:$0xff]
    %v395 = vld [vmem:[%s4 + $0x1e8] sm:$0xff]
    %v396 = vld [vmem:[%s4 + $0x1f0] sm:$0xff]
    %v397 = vld [vmem:[%s4 + $0x1f8] sm:$0xff]
    %398 = vmatprep.subr.mxu0 %v335
    %399 = vmatpush1.msra.mxu0 %v334
    %400 = vmatprep.subr.mxu0 %v339
    %401 = vmatpush1.msra.mxu0 %v338
    %402 = vmatprep.subr.mxu0 %v343
    %403 = vmatpush1.msra.mxu0 %v342
    %404 = vmatprep.subr.mxu0 %v347
    %405 = vmatpush1.msra.mxu0 %v346
    %406 = vmatprep.subr.mxu0 %v351
    %407 = vmatpush1.msra.mxu0 %v350
    %408 = vmatprep.subr.mxu0 %v355
    %409 = vmatpush1.msra.mxu0 %v354
    %410 = vmatprep.subr.mxu0 %v359
    %411 = vmatpush1.msra.mxu0 %v358
    %412 = vmatprep.subr.mxu0 %v363
    %413 = vmatpush1.msra.mxu0 %v362
    %414 = vmatprep.subr.mxu0 %v367
    %415 = vmatpush1.msra.mxu0 %v366
    %416 = vmatprep.subr.mxu0 %v371
    %417 = vmatpush1.msra.mxu0 %v370
    %418 = vmatprep.subr.mxu0 %v375
    %419 = vmatpush1.msra.mxu0 %v374
    %420 = vmatprep.subr.mxu0 %v379
    %421 = vmatpush1.msra.mxu0 %v378
    %422 = vmatprep.subr.mxu0 %v383
    %423 = vmatpush1.msra.mxu0 %v382
    %424 = vmatprep.subr.mxu0 %v387
    %425 = vmatpush1.msra.mxu0 %v386
    %426 = vmatprep.subr.mxu0 %v391
    %427 = vmatpush1.msra.mxu0 %v390
    %428 = vmatprep.subr.mxu0 %v395
    %429 = vmatpush1.msra.mxu0 %v394
    %430 = vmatprep.subr.mxu0 0.0
    %431 = vmatpush1.msra.mxu0 0.0
    %432 = vmatprep.subr.mxu0 0.0
    %433 = vmatpush1.msra.mxu0 0.0
    %434 = vmatprep.subr.mxu0 0.0
    %435 = vmatpush1.msra.mxu0 0.0
    %436 = vmatprep.subr.mxu0 0.0
    %437 = vmatpush1.msra.mxu0 0.0
    %438 = vmatprep.subr.mxu0 0.0
    %439 = vmatpush1.msra.mxu0 0.0
    %440 = vmatprep.subr.mxu0 0.0
    %441 = vmatpush1.msra.mxu0 0.0
    %442 = vmatprep.subr.mxu0 0.0
    %443 = vmatpush1.msra.mxu0 0.0
    %444 = vmatprep.subr.mxu0 0.0
    %445 = vmatpush1.msra.mxu0 0.0
    %446 = vmatprep.subr.mxu0 0.0
    %447 = vmatpush1.msra.mxu0 0.0
    %448 = vmatprep.subr.mxu0 0.0
    %449 = vmatpush1.msra.mxu0 0.0
    %450 = vmatprep.subr.mxu0 0.0
    %451 = vmatpush1.msra.mxu0 0.0
    %452 = vmatprep.subr.mxu0 0.0
    %453 = vmatpush1.msra.mxu0 0.0
    %454 = vmatprep.subr.mxu0 0.0
    %455 = vmatpush1.msra.mxu0 0.0
    %456 = vmatprep.subr.mxu0 0.0
    %457 = vmatpush1.msra.mxu0 0.0
    %458 = vmatprep.subr.mxu0 0.0
    %459 = vmatpush1.msra.mxu0 0.0
    %460 = vmatprep.subr.mxu0 0.0
    %461 = vmatpush1.msra.mxu0 0.0
    %462 = vmatprep.mubr.f32.mxu0 0.0
    %463 = vmatmul.mubr.f32.gmra.mrb[0].mxu0 %v333
    %v464 = vpop.f32.mrb[0].mxu0
    %v465 = vadd.f32 0.0, %v464
    %v466 = vpop.f32.mrb[0].mxu0
    %v467 = vadd.f32 0.0, %v466
    %468 = vdwg.mxu0
    %469 = vmatprep.subr.mxu0 %v337
    %470 = vmatpush1.msra.mxu0 %v336
    %471 = vmatprep.subr.mxu0 %v341
    %472 = vmatpush1.msra.mxu0 %v340
    %473 = vmatprep.subr.mxu0 %v345
    %474 = vmatpush1.msra.mxu0 %v344
    %475 = vmatprep.subr.mxu0 %v349
    %476 = vmatpush1.msra.mxu0 %v348
    %477 = vmatprep.subr.mxu0 %v353
    %478 = vmatpush1.msra.mxu0 %v352
    %479 = vmatprep.subr.mxu0 %v357
    %480 = vmatpush1.msra.mxu0 %v356
    %481 = vmatprep.subr.mxu0 %v361
    %482 = vmatpush1.msra.mxu0 %v360
    %483 = vmatprep.subr.mxu0 %v365
    %484 = vmatpush1.msra.mxu0 %v364
    %485 = vmatprep.subr.mxu0 %v369
    %486 = vmatpush1.msra.mxu0 %v368
    %487 = vmatprep.subr.mxu0 %v373
    %488 = vmatpush1.msra.mxu0 %v372
    %489 = vmatprep.subr.mxu0 %v377
    %490 = vmatpush1.msra.mxu0 %v376
    %491 = vmatprep.subr.mxu0 %v381
    %492 = vmatpush1.msra.mxu0 %v380
    %493 = vmatprep.subr.mxu0 %v385
    %494 = vmatpush1.msra.mxu0 %v384
    %495 = vmatprep.subr.mxu0 %v389
    %496 = vmatpush1.msra.mxu0 %v388
    %497 = vmatprep.subr.mxu0 %v393
    %498 = vmatpush1.msra.mxu0 %v392
    %499 = vmatprep.subr.mxu0 %v397
    %500 = vmatpush1.msra.mxu0 %v396
    %501 = vmatprep.subr.mxu0 0.0
    %502 = vmatpush1.msra.mxu0 0.0
    %503 = vmatprep.subr.mxu0 0.0
    %504 = vmatpush1.msra.mxu0 0.0
    %505 = vmatprep.subr.mxu0 0.0
    %506 = vmatpush1.msra.mxu0 0.0
    %507 = vmatprep.subr.mxu0 0.0
    %508 = vmatpush1.msra.mxu0 0.0
    %509 = vmatprep.subr.mxu0 0.0
    %510 = vmatpush1.msra.mxu0 0.0
    %511 = vmatprep.subr.mxu0 0.0
    %512 = vmatpush1.msra.mxu0 0.0
    %513 = vmatprep.subr.mxu0 0.0
    %514 = vmatpush1.msra.mxu0 0.0
    %515 = vmatprep.subr.mxu0 0.0
    %516 = vmatpush1.msra.mxu0 0.0
    %517 = vmatprep.subr.mxu0 0.0
    %518 = vmatpush1.msra.mxu0 0.0
    %519 = vmatprep.subr.mxu0 0.0
    %520 = vmatpush1.msra.mxu0 0.0
    %521 = vmatprep.subr.mxu0 0.0
    %522 = vmatpush1.msra.mxu0 0.0
    %523 = vmatprep.subr.mxu0 0.0
    %524 = vmatpush1.msra.mxu0 0.0
    %525 = vmatprep.subr.mxu0 0.0
    %526 = vmatpush1.msra.mxu0 0.0
    %527 = vmatprep.subr.mxu0 0.0
    %528 = vmatpush1.msra.mxu0 0.0
    %529 = vmatprep.subr.mxu0 0.0
    %530 = vmatpush1.msra.mxu0 0.0
    %531 = vmatprep.subr.mxu0 0.0
    %532 = vmatpush1.msra.mxu0 0.0
    %533 = vmatprep.mubr.f32.mxu0 0.0
    %534 = vmatmul.mubr.f32.gmra.mrb[0].mxu0 %v333
    %v535 = vpop.f32.mrb[0].mxu0
    %v536 = vadd.f32 0.0, %v535
    %v537 = vpop.f32.mrb[0].mxu0
    %v538 = vadd.f32 0.0, %v537
    %539 = vdwg.mxu0
    %v541 = vlaneseq
    %v542 = vshrl.u32 %v541, 7
    %v543 = vsub.s32 0, %v542
    %v544 = vrot.slane %v36, %v543
    %v545 = vlaneseq
    %v546 = vshrl.u32 %v545, 7
    %v547 = vsub.s32 1, %v546
    %v548 = vrot.slane %v36, %v547
    %v549 = vlaneseq
    %v550 = vshrl.u32 %v549, 7
    %v551 = vsub.s32 2, %v550
    %v552 = vrot.slane %v36, %v551
    %v553 = vlaneseq
    %v554 = vshrl.u32 %v553, 7
    %v555 = vsub.s32 3, %v554
    %v556 = vrot.slane %v36, %v555
    %v557 = vlaneseq
    %v558 = vshrl.u32 %v557, 7
    %v559 = vsub.s32 4, %v558
    %v560 = vrot.slane %v36, %v559
    %vm565 = vcmask 654336
    %v566 = vsel %vm565, %v560, 0
    %568 = vmatprep.subr.mxu0 %v38
    %569 = vmatpush1.msra.mxu0 %v37
    %570 = vmatprep.subr.mxu0 %v42
    %571 = vmatpush1.msra.mxu0 %v41
    %572 = vmatprep.subr.mxu0 %v46
    %573 = vmatpush1.msra.mxu0 %v45
    %574 = vmatprep.subr.mxu0 %v50
    %575 = vmatpush1.msra.mxu0 %v49
    %576 = vmatprep.subr.mxu0 %v54
    %577 = vmatpush1.msra.mxu0 %v53
    %578 = vmatprep.subr.mxu0 %v58
    %579 = vmatpush1.msra.mxu0 %v57
    %580 = vmatprep.subr.mxu0 %v62
    %581 = vmatpush1.msra.mxu0 %v61
    %582 = vmatprep.subr.mxu0 %v66
    %583 = vmatpush1.msra.mxu0 %v65
    %584 = vmatprep.subr.mxu0 %v70
    %585 = vmatpush1.msra.mxu0 %v69
    %586 = vmatprep.subr.mxu0 %v74
    %587 = vmatpush1.msra.mxu0 %v73
    %588 = vmatprep.subr.mxu0 %v78
    %589 = vmatpush1.msra.mxu0 %v77
    %590 = vmatprep.subr.mxu0 %v82
    %591 = vmatpush1.msra.mxu0 %v81
    %592 = vmatprep.subr.mxu0 %v86
    %593 = vmatpush1.msra.mxu0 %v85
    %594 = vmatprep.subr.mxu0 %v90
    %595 = vmatpush1.msra.mxu0 %v89
    %596 = vmatprep.subr.mxu0 %v94
    %597 = vmatpush1.msra.mxu0 %v93
    %598 = vmatprep.subr.mxu0 %v98
    %599 = vmatpush1.msra.mxu0 %v97
    %600 = vmatprep.subr.mxu0 %v102
    %601 = vmatpush1.msra.mxu0 %v101
    %602 = vmatprep.subr.mxu0 %v106
    %603 = vmatpush1.msra.mxu0 %v105
    %604 = vmatprep.subr.mxu0 %v110
    %605 = vmatpush1.msra.mxu0 %v109
    %606 = vmatprep.subr.mxu0 %v114
    %607 = vmatpush1.msra.mxu0 %v113
    %608 = vmatprep.subr.mxu0 %v118
    %609 = vmatpush1.msra.mxu0 %v117
    %610 = vmatprep.subr.mxu0 %v122
    %611 = vmatpush1.msra.mxu0 %v121
    %612 = vmatprep.subr.mxu0 %v126
    %613 = vmatpush1.msra.mxu0 %v125
    %614 = vmatprep.subr.mxu0 %v130
    %615 = vmatpush1.msra.mxu0 %v129
    %616 = vmatprep.subr.mxu0 %v134
    %617 = vmatpush1.msra.mxu0 %v133
    %618 = vmatprep.subr.mxu0 %v138
    %619 = vmatpush1.msra.mxu0 %v137
    %620 = vmatprep.subr.mxu0 %v142
    %621 = vmatpush1.msra.mxu0 %v141
    %622 = vmatprep.subr.mxu0 %v146
    %623 = vmatpush1.msra.mxu0 %v145
    %624 = vmatprep.subr.mxu0 %v150
    %625 = vmatpush1.msra.mxu0 %v149
    %626 = vmatprep.subr.mxu0 %v154
    %627 = vmatpush1.msra.mxu0 %v153
    %628 = vmatprep.subr.mxu0 %v158
    %629 = vmatpush1.msra.mxu0 %v157
    %630 = vmatprep.subr.mxu0 %v162
    %631 = vmatpush1.msra.mxu0 %v161
    %632 = vmatprep.mubr.f32.mxu0 %v548
    %633 = vmatmul.mubr.f32.gmra.mrb[0].mxu0 %v544
    %v634 = vpop.f32.mrb[0].mxu0
    %v635 = vadd.f32 %v465, %v634
    %v636 = vpop.f32.mrb[0].mxu0
    %v637 = vadd.f32 %v467, %v636
    %638 = vdwg.mxu0
    %639 = vmatprep.subr.mxu0 %v166
    %640 = vmatpush1.msra.mxu0 %v165
    %641 = vmatprep.subr.mxu0 %v170
    %642 = vmatpush1.msra.mxu0 %v169
    %643 = vmatprep.subr.mxu0 %v174
    %644 = vmatpush1.msra.mxu0 %v173
    %645 = vmatprep.subr.mxu0 %v178
    %646 = vmatpush1.msra.mxu0 %v177
    %647 = vmatprep.subr.mxu0 %v182
    %648 = vmatpush1.msra.mxu0 %v181
    %649 = vmatprep.subr.mxu0 %v186
    %650 = vmatpush1.msra.mxu0 %v185
    %651 = vmatprep.subr.mxu0 %v190
    %652 = vmatpush1.msra.mxu0 %v189
    %653 = vmatprep.subr.mxu0 %v194
    %654 = vmatpush1.msra.mxu0 %v193
    %655 = vmatprep.subr.mxu0 %v198
    %656 = vmatpush1.msra.mxu0 %v197
    %657 = vmatprep.subr.mxu0 %v202
    %658 = vmatpush1.msra.mxu0 %v201
    %659 = vmatprep.subr.mxu0 %v206
    %660 = vmatpush1.msra.mxu0 %v205
    %661 = vmatprep.subr.mxu0 %v210
    %662 = vmatpush1.msra.mxu0 %v209
    %663 = vmatprep.subr.mxu0 %v214
    %664 = vmatpush1.msra.mxu0 %v213
    %665 = vmatprep.subr.mxu0 %v218
    %666 = vmatpush1.msra.mxu0 %v217
    %667 = vmatprep.subr.mxu0 %v222
    %668 = vmatpush1.msra.mxu0 %v221
    %669 = vmatprep.subr.mxu0 %v226
    %670 = vmatpush1.msra.mxu0 %v225
    %671 = vmatprep.subr.mxu0 %v230
    %672 = vmatpush1.msra.mxu0 %v229
    %673 = vmatprep.subr.mxu0 %v234
    %674 = vmatpush1.msra.mxu0 %v233
    %675 = vmatprep.subr.mxu0 %v238
    %676 = vmatpush1.msra.mxu0 %v237
    %677 = vmatprep.subr.mxu0 %v242
    %678 = vmatpush1.msra.mxu0 %v241
    %679 = vmatprep.subr.mxu0 %v246
    %680 = vmatpush1.msra.mxu0 %v245
    %681 = vmatprep.subr.mxu0 %v250
    %682 = vmatpush1.msra.mxu0 %v249
    %683 = vmatprep.subr.mxu0 %v254
    %684 = vmatpush1.msra.mxu0 %v253
    %685 = vmatprep.subr.mxu0 %v258
    %686 = vmatpush1.msra.mxu0 %v257
    %687 = vmatprep.subr.mxu0 %v262
    %688 = vmatpush1.msra.mxu0 %v261
    %689 = vmatprep.subr.mxu0 %v266
    %690 = vmatpush1.msra.mxu0 %v265
    %691 = vmatprep.subr.mxu0 %v270
    %692 = vmatpush1.msra.mxu0 %v269
    %693 = vmatprep.subr.mxu0 %v274
    %694 = vmatpush1.msra.mxu0 %v273
    %695 = vmatprep.subr.mxu0 %v278
    %696 = vmatpush1.msra.mxu0 %v277
    %697 = vmatprep.subr.mxu0 %v282
    %698 = vmatpush1.msra.mxu0 %v281
    %699 = vmatprep.subr.mxu0 %v286
    %700 = vmatpush1.msra.mxu0 %v285
    %701 = vmatprep.subr.mxu0 %v290
    %702 = vmatpush1.msra.mxu0 %v289
    %703 = vmatprep.mubr.f32.mxu0 %v556
    %704 = vmatmul.mubr.f32.gmra.mrb[0].mxu0 %v552
    %v705 = vpop.f32.mrb[0].mxu0
    %v706 = vadd.f32 %v635, %v705
    %v707 = vpop.f32.mrb[0].mxu0
    %v708 = vadd.f32 %v637, %v707
    %709 = vdwg.mxu0
    %710 = vmatprep.subr.mxu0 %v294
    %711 = vmatpush1.msra.mxu0 %v293
    %712 = vmatprep.subr.mxu0 %v298
    %713 = vmatpush1.msra.mxu0 %v297
    %714 = vmatprep.subr.mxu0 %v302
    %715 = vmatpush1.msra.mxu0 %v301
    %716 = vmatprep.subr.mxu0 %v306
    %717 = vmatpush1.msra.mxu0 %v305
    %718 = vmatprep.subr.mxu0 %v310
    %719 = vmatpush1.msra.mxu0 %v309
    %720 = vmatprep.subr.mxu0 %v314
    %721 = vmatpush1.msra.mxu0 %v313
    %722 = vmatprep.subr.mxu0 %v318
    %723 = vmatpush1.msra.mxu0 %v317
    %724 = vmatprep.subr.mxu0 %v322
    %725 = vmatpush1.msra.mxu0 %v321
    %726 = vmatprep.subr.mxu0 %v326
    %727 = vmatpush1.msra.mxu0 %v325
    %728 = vmatprep.subr.mxu0 %v330
    %729 = vmatpush1.msra.mxu0 %v329
    %730 = vmatprep.subr.mxu0 0.0
    %731 = vmatpush1.msra.mxu0 0.0
    %732 = vmatprep.subr.mxu0 0.0
    %733 = vmatpush1.msra.mxu0 0.0
    %734 = vmatprep.subr.mxu0 0.0
    %735 = vmatpush1.msra.mxu0 0.0
    %736 = vmatprep.subr.mxu0 0.0
    %737 = vmatpush1.msra.mxu0 0.0
    %738 = vmatprep.subr.mxu0 0.0
    %739 = vmatpush1.msra.mxu0 0.0
    %740 = vmatprep.subr.mxu0 0.0
    %741 = vmatpush1.msra.mxu0 0.0
    %742 = vmatprep.subr.mxu0 0.0
    %743 = vmatpush1.msra.mxu0 0.0
    %744 = vmatprep.subr.mxu0 0.0
    %745 = vmatpush1.msra.mxu0 0.0
    %746 = vmatprep.subr.mxu0 0.0
    %747 = vmatpush1.msra.mxu0 0.0
    %748 = vmatprep.subr.mxu0 0.0
    %749 = vmatpush1.msra.mxu0 0.0
    %750 = vmatprep.subr.mxu0 0.0
    %751 = vmatpush1.msra.mxu0 0.0
    %752 = vmatprep.subr.mxu0 0.0
    %753 = vmatpush1.msra.mxu0 0.0
    %754 = vmatprep.subr.mxu0 0.0
    %755 = vmatpush1.msra.mxu0 0.0
    %756 = vmatprep.subr.mxu0 0.0
    %757 = vmatpush1.msra.mxu0 0.0
    %758 = vmatprep.subr.mxu0 0.0
    %759 = vmatpush1.msra.mxu0 0.0
    %760 = vmatprep.subr.mxu0 0.0
    %761 = vmatpush1.msra.mxu0 0.0
    %762 = vmatprep.subr.mxu0 0.0
    %763 = vmatpush1.msra.mxu0 0.0
    %764 = vmatprep.subr.mxu0 0.0
    %765 = vmatpush1.msra.mxu0 0.0
    %766 = vmatprep.subr.mxu0 0.0
    %767 = vmatpush1.msra.mxu0 0.0
    %768 = vmatprep.subr.mxu0 0.0
    %769 = vmatpush1.msra.mxu0 0.0
    %770 = vmatprep.subr.mxu0 0.0
    %771 = vmatpush1.msra.mxu0 0.0
    %772 = vmatprep.subr.mxu0 0.0
    %773 = vmatpush1.msra.mxu0 0.0
    %774 = vmatprep.mubr.f32.mxu0 0.0
    %775 = vmatmul.mubr.f32.gmra.mrb[0].mxu0 %v566
    %v776 = vpop.f32.mrb[0].mxu0
    %v777 = vadd.f32 %v706, %v776
    %v778 = vpop.f32.mrb[0].mxu0
    %v779 = vadd.f32 %v708, %v778
    %780 = vdwg.mxu0
    %781 = vmatprep.subr.mxu0 %v40
    %782 = vmatpush1.msra.mxu0 %v39
    %783 = vmatprep.subr.mxu0 %v44
    %784 = vmatpush1.msra.mxu0 %v43
    %785 = vmatprep.subr.mxu0 %v48
    %786 = vmatpush1.msra.mxu0 %v47
    %787 = vmatprep.subr.mxu0 %v52
    %788 = vmatpush1.msra.mxu0 %v51
    %789 = vmatprep.subr.mxu0 %v56
    %790 = vmatpush1.msra.mxu0 %v55
    %791 = vmatprep.subr.mxu0 %v60
    %792 = vmatpush1.msra.mxu0 %v59
    %793 = vmatprep.subr.mxu0 %v64
    %794 = vmatpush1.msra.mxu0 %v63
    %795 = vmatprep.subr.mxu0 %v68
    %796 = vmatpush1.msra.mxu0 %v67
    %797 = vmatprep.subr.mxu0 %v72
    %798 = vmatpush1.msra.mxu0 %v71
    %799 = vmatprep.subr.mxu0 %v76
    %800 = vmatpush1.msra.mxu0 %v75
    %801 = vmatprep.subr.mxu0 %v80
    %802 = vmatpush1.msra.mxu0 %v79
    %803 = vmatprep.subr.mxu0 %v84
    %804 = vmatpush1.msra.mxu0 %v83
    %805 = vmatprep.subr.mxu0 %v88
    %806 = vmatpush1.msra.mxu0 %v87
    %807 = vmatprep.subr.mxu0 %v92
    %808 = vmatpush1.msra.mxu0 %v91
    %809 = vmatprep.subr.mxu0 %v96
    %810 = vmatpush1.msra.mxu0 %v95
    %811 = vmatprep.subr.mxu0 %v100
    %812 = vmatpush1.msra.mxu0 %v99
    %813 = vmatprep.subr.mxu0 %v104
    %814 = vmatpush1.msra.mxu0 %v103
    %815 = vmatprep.subr.mxu0 %v108
    %816 = vmatpush1.msra.mxu0 %v107
    %817 = vmatprep.subr.mxu0 %v112
    %818 = vmatpush1.msra.mxu0 %v111
    %819 = vmatprep.subr.mxu0 %v116
    %820 = vmatpush1.msra.mxu0 %v115
    %821 = vmatprep.subr.mxu0 %v120
    %822 = vmatpush1.msra.mxu0 %v119
    %823 = vmatprep.subr.mxu0 %v124
    %824 = vmatpush1.msra.mxu0 %v123
    %825 = vmatprep.subr.mxu0 %v128
    %826 = vmatpush1.msra.mxu0 %v127
    %827 = vmatprep.subr.mxu0 %v132
    %828 = vmatpush1.msra.mxu0 %v131
    %829 = vmatprep.subr.mxu0 %v136
    %830 = vmatpush1.msra.mxu0 %v135
    %831 = vmatprep.subr.mxu0 %v140
    %832 = vmatpush1.msra.mxu0 %v139
    %833 = vmatprep.subr.mxu0 %v144
    %834 = vmatpush1.msra.mxu0 %v143
    %835 = vmatprep.subr.mxu0 %v148
    %836 = vmatpush1.msra.mxu0 %v147
    %837 = vmatprep.subr.mxu0 %v152
    %838 = vmatpush1.msra.mxu0 %v151
    %839 = vmatprep.subr.mxu0 %v156
    %840 = vmatpush1.msra.mxu0 %v155
    %841 = vmatprep.subr.mxu0 %v160
    %842 = vmatpush1.msra.mxu0 %v159
    %843 = vmatprep.subr.mxu0 %v164
    %844 = vmatpush1.msra.mxu0 %v163
    %845 = vmatprep.mubr.f32.mxu0 %v548
    %846 = vmatmul.mubr.f32.gmra.mrb[0].mxu0 %v544
    %v847 = vpop.f32.mrb[0].mxu0
    %v848 = vadd.f32 %v536, %v847
    %v849 = vpop.f32.mrb[0].mxu0
    %v850 = vadd.f32 %v538, %v849
    %851 = vdwg.mxu0
    %852 = vmatprep.subr.mxu0 %v168
    %853 = vmatpush1.msra.mxu0 %v167
    %854 = vmatprep.subr.mxu0 %v172
    %855 = vmatpush1.msra.mxu0 %v171
    %856 = vmatprep.subr.mxu0 %v176
    %857 = vmatpush1.msra.mxu0 %v175
    %858 = vmatprep.subr.mxu0 %v180
    %859 = vmatpush1.msra.mxu0 %v179
    %860 = vmatprep.subr.mxu0 %v184
    %861 = vmatpush1.msra.mxu0 %v183
    %862 = vmatprep.subr.mxu0 %v188
    %863 = vmatpush1.msra.mxu0 %v187
    %864 = vmatprep.subr.mxu0 %v192
    %865 = vmatpush1.msra.mxu0 %v191
    %866 = vmatprep.subr.mxu0 %v196
    %867 = vmatpush1.msra.mxu0 %v195
    %868 = vmatprep.subr.mxu0 %v200
    %869 = vmatpush1.msra.mxu0 %v199
    %870 = vmatprep.subr.mxu0 %v204
    %871 = vmatpush1.msra.mxu0 %v203
    %872 = vmatprep.subr.mxu0 %v208
    %873 = vmatpush1.msra.mxu0 %v207
    %874 = vmatprep.subr.mxu0 %v212
    %875 = vmatpush1.msra.mxu0 %v211
    %876 = vmatprep.subr.mxu0 %v216
    %877 = vmatpush1.msra.mxu0 %v215
    %878 = vmatprep.subr.mxu0 %v220
    %879 = vmatpush1.msra.mxu0 %v219
    %880 = vmatprep.subr.mxu0 %v224
    %881 = vmatpush1.msra.mxu0 %v223
    %882 = vmatprep.subr.mxu0 %v228
    %883 = vmatpush1.msra.mxu0 %v227
    %884 = vmatprep.subr.mxu0 %v232
    %885 = vmatpush1.msra.mxu0 %v231
    %886 = vmatprep.subr.mxu0 %v236
    %887 = vmatpush1.msra.mxu0 %v235
    %888 = vmatprep.subr.mxu0 %v240
    %889 = vmatpush1.msra.mxu0 %v239
    %890 = vmatprep.subr.mxu0 %v244
    %891 = vmatpush1.msra.mxu0 %v243
    %892 = vmatprep.subr.mxu0 %v248
    %893 = vmatpush1.msra.mxu0 %v247
    %894 = vmatprep.subr.mxu0 %v252
    %895 = vmatpush1.msra.mxu0 %v251
    %896 = vmatprep.subr.mxu0 %v256
    %897 = vmatpush1.msra.mxu0 %v255
    %898 = vmatprep.subr.mxu0 %v260
    %899 = vmatpush1.msra.mxu0 %v259
    %900 = vmatprep.subr.mxu0 %v264
    %901 = vmatpush1.msra.mxu0 %v263
    %902 = vmatprep.subr.mxu0 %v268
    %903 = vmatpush1.msra.mxu0 %v267
    %904 = vmatprep.subr.mxu0 %v272
    %905 = vmatpush1.msra.mxu0 %v271
    %906 = vmatprep.subr.mxu0 %v276
    %907 = vmatpush1.msra.mxu0 %v275
    %908 = vmatprep.subr.mxu0 %v280
    %909 = vmatpush1.msra.mxu0 %v279
    %910 = vmatprep.subr.mxu0 %v284
    %911 = vmatpush1.msra.mxu0 %v283
    %912 = vmatprep.subr.mxu0 %v288
    %913 = vmatpush1.msra.mxu0 %v287
    %914 = vmatprep.subr.mxu0 %v292
    %915 = vmatpush1.msra.mxu0 %v291
    %916 = vmatprep.mubr.f32.mxu0 %v556
    %917 = vmatmul.mubr.f32.gmra.mrb[0].mxu0 %v552
    %v918 = vpop.f32.mrb[0].mxu0
    %v919 = vadd.f32 %v848, %v918
    %v920 = vpop.f32.mrb[0].mxu0
    %v921 = vadd.f32 %v850, %v920
    %922 = vdwg.mxu0
    %923 = vmatprep.subr.mxu0 %v296
    %924 = vmatpush1.msra.mxu0 %v295
    %925 = vmatprep.subr.mxu0 %v300
    %926 = vmatpush1.msra.mxu0 %v299
    %927 = vmatprep.subr.mxu0 %v304
    %928 = vmatpush1.msra.mxu0 %v303
    %929 = vmatprep.subr.mxu0 %v308
    %930 = vmatpush1.msra.mxu0 %v307
    %931 = vmatprep.subr.mxu0 %v312
    %932 = vmatpush1.msra.mxu0 %v311
    %933 = vmatprep.subr.mxu0 %v316
    %934 = vmatpush1.msra.mxu0 %v315
    %935 = vmatprep.subr.mxu0 %v320
    %936 = vmatpush1.msra.mxu0 %v319
    %937 = vmatprep.subr.mxu0 %v324
    %938 = vmatpush1.msra.mxu0 %v323
    %939 = vmatprep.subr.mxu0 %v328
    %940 = vmatpush1.msra.mxu0 %v327
    %941 = vmatprep.subr.mxu0 %v332
    %942 = vmatpush1.msra.mxu0 %v331
    %943 = vmatprep.subr.mxu0 0.0
    %944 = vmatpush1.msra.mxu0 0.0
    %945 = vmatprep.subr.mxu0 0.0
    %946 = vmatpush1.msra.mxu0 0.0
    %947 = vmatprep.subr.mxu0 0.0
    %948 = vmatpush1.msra.mxu0 0.0
    %949 = vmatprep.subr.mxu0 0.0
    %950 = vmatpush1.msra.mxu0 0.0
    %951 = vmatprep.subr.mxu0 0.0
    %952 = vmatpush1.msra.mxu0 0.0
    %953 = vmatprep.subr.mxu0 0.0
    %954 = vmatpush1.msra.mxu0 0.0
    %955 = vmatprep.subr.mxu0 0.0
    %956 = vmatpush1.msra.mxu0 0.0
    %957 = vmatprep.subr.mxu0 0.0
    %958 = vmatpush1.msra.mxu0 0.0
    %959 = vmatprep.subr.mxu0 0.0
    %960 = vmatpush1.msra.mxu0 0.0
    %961 = vmatprep.subr.mxu0 0.0
    %962 = vmatpush1.msra.mxu0 0.0
    %963 = vmatprep.subr.mxu0 0.0
    %964 = vmatpush1.msra.mxu0 0.0
    %965 = vmatprep.subr.mxu0 0.0
    %966 = vmatpush1.msra.mxu0 0.0
    %967 = vmatprep.subr.mxu0 0.0
    %968 = vmatpush1.msra.mxu0 0.0
    %969 = vmatprep.subr.mxu0 0.0
    %970 = vmatpush1.msra.mxu0 0.0
    %971 = vmatprep.subr.mxu0 0.0
    %972 = vmatpush1.msra.mxu0 0.0
    %973 = vmatprep.subr.mxu0 0.0
    %974 = vmatpush1.msra.mxu0 0.0
    %975 = vmatprep.subr.mxu0 0.0
    %976 = vmatpush1.msra.mxu0 0.0
    %977 = vmatprep.subr.mxu0 0.0
    %978 = vmatpush1.msra.mxu0 0.0
    %979 = vmatprep.subr.mxu0 0.0
    %980 = vmatpush1.msra.mxu0 0.0
    %981 = vmatprep.subr.mxu0 0.0
    %982 = vmatpush1.msra.mxu0 0.0
    %983 = vmatprep.subr.mxu0 0.0
    %984 = vmatpush1.msra.mxu0 0.0
    %985 = vmatprep.subr.mxu0 0.0
    %986 = vmatpush1.msra.mxu0 0.0
    %987 = vmatprep.mubr.f32.mxu0 0.0
    %988 = vmatmul.mubr.f32.gmra.mrb[0].mxu0 %v566
    %v989 = vpop.f32.mrb[0].mxu0
    %v990 = vadd.f32 %v919, %v989
    %v991 = vpop.f32.mrb[0].mxu0
    %v992 = vadd.f32 %v921, %v991
    %993 = vdwg.mxu0
    %v994 = vld [vmem:[%s5] sm:$0xf]
    %v996 = vlaneseq
    %v997 = vshrl.u32 %v996, 7
    %v998 = vsub.s32 0, %v997
    %v999 = vrot.slane %v994, %v998
    %v1000 = vlaneseq
    %v1001 = vshrl.u32 %v1000, 7
    %v1002 = vsub.s32 1, %v1001
    %v1003 = vrot.slane %v994, %v1002
    %v1004 = vlaneseq
    %v1005 = vshrl.u32 %v1004, 7
    %v1006 = vsub.s32 2, %v1005
    %v1007 = vrot.slane %v994, %v1006
    %v1008 = vlaneseq
    %v1009 = vshrl.u32 %v1008, 7
    %v1010 = vsub.s32 3, %v1009
    %v1011 = vrot.slane %v994, %v1010
    %v1016 = vadd.f32 %v777, %v999
    %v1017 = vadd.f32 %v779, %v1003
    %v1018 = vadd.f32 %v990, %v1007
    %v1019 = vadd.f32 %v992, %v1011
    %v1020 = vxor.u32 %v1016, 2147483648
    %v1021 = vmul.f32 %v1020, 1.442695
    %v1022 = vpow.pop %v1021
    %v1023 = vadd.f32 %v1022, 1.0
    %v1024 = vrcp.pop %v1023
    %v1025 = vmul.f32 1.0, %v1024
    %v1026 = vxor.u32 %v1017, 2147483648
    %v1027 = vmul.f32 %v1026, 1.442695
    %v1028 = vpow.pop %v1027
    %v1029 = vadd.f32 %v1028, 1.0
    %v1030 = vrcp.pop %v1029
    %v1031 = vmul.f32 1.0, %v1030
    %v1032 = vtanh.pop %v1018
    %v1033 = vxor.u32 %v1019, 2147483648
    %v1034 = vmul.f32 %v1033, 1.442695
    %v1035 = vpow.pop %v1034
    %v1036 = vadd.f32 %v1035, 1.0
    %v1037 = vrcp.pop %v1036
    %v1038 = vmul.f32 1.0, %v1037
    %v1039 = vld [vmem:[%s2] sm:$0x1]
    %v1040 = vmul.f32 %v1031, %v1039
    %v1041 = vmul.f32 %v1025, %v1032
    %v1042 = vadd.f32 %v1040, %v1041
    %v1043 = vtanh.pop %v1042
    %v1044 = vmul.f32 %v1038, %v1043
    %1045 = vst [vmem:[#allocation2] sm:$0x1] %v1044
    %1046 = vst [vmem:[#allocation4] sm:$0x1] %v1042
    %v1047 = vld [vmem:[%s6] sm:$0xff]
    %v1048 = vld [vmem:[%s6 + $0x8] sm:$0xff]
    %v1049 = vld [vmem:[%s6 + $0x10] sm:$0xff]
    %v1050 = vld [vmem:[%s6 + $0x18] sm:$0xff]
    %v1051 = vld [vmem:[%s6 + $0x20] sm:$0xff]
    %v1052 = vld [vmem:[%s6 + $0x28] sm:$0xff]
    %v1053 = vld [vmem:[%s6 + $0x30] sm:$0xff]
    %v1054 = vld [vmem:[%s6 + $0x38] sm:$0xff]
    %v1055 = vld [vmem:[%s6 + $0x40] sm:$0xff]
    %v1056 = vld [vmem:[%s6 + $0x48] sm:$0xff]
    %v1057 = vld [vmem:[%s6 + $0x50] sm:$0xff]
    %v1058 = vld [vmem:[%s6 + $0x58] sm:$0xff]
    %v1059 = vld [vmem:[%s6 + $0x60] sm:$0xff]
    %v1060 = vld [vmem:[%s6 + $0x68] sm:$0xff]
    %v1061 = vld [vmem:[%s6 + $0x70] sm:$0xff]
    %v1062 = vld [vmem:[%s6 + $0x78] sm:$0xff]
    %v1063 = vld [vmem:[%s7] sm:$0x1]
    %1064 = vmatprep.subr.mxu0 0.0
    %1065 = vmatpush1.msra.mxu0 %v1047
    %1066 = vmatprep.subr.mxu0 0.0
    %1067 = vmatpush1.msra.mxu0 %v1048
    %1068 = vmatprep.subr.mxu0 0.0
    %1069 = vmatpush1.msra.mxu0 %v1049
    %1070 = vmatprep.subr.mxu0 0.0
    %1071 = vmatpush1.msra.mxu0 %v1050
    %1072 = vmatprep.subr.mxu0 0.0
    %1073 = vmatpush1.msra.mxu0 %v1051
    %1074 = vmatprep.subr.mxu0 0.0
    %1075 = vmatpush1.msra.mxu0 %v1052
    %1076 = vmatprep.subr.mxu0 0.0
    %1077 = vmatpush1.msra.mxu0 %v1053
    %1078 = vmatprep.subr.mxu0 0.0
    %1079 = vmatpush1.msra.mxu0 %v1054
    %1080 = vmatprep.subr.mxu0 0.0
    %1081 = vmatpush1.msra.mxu0 %v1055
    %1082 = vmatprep.subr.mxu0 0.0
    %1083 = vmatpush1.msra.mxu0 %v1056
    %1084 = vmatprep.subr.mxu0 0.0
    %1085 = vmatpush1.msra.mxu0 %v1057
    %1086 = vmatprep.subr.mxu0 0.0
    %1087 = vmatpush1.msra.mxu0 %v1058
    %1088 = vmatprep.subr.mxu0 0.0
    %1089 = vmatpush1.msra.mxu0 %v1059
    %1090 = vmatprep.subr.mxu0 0.0
    %1091 = vmatpush1.msra.mxu0 %v1060
    %1092 = vmatprep.subr.mxu0 0.0
    %1093 = vmatpush1.msra.mxu0 %v1061
    %1094 = vmatprep.subr.mxu0 0.0
    %1095 = vmatpush1.msra.mxu0 %v1062
    %1096 = vmatprep.subr.mxu0 0.0
    %1097 = vmatpush1.msra.mxu0 0.0
    %1098 = vmatprep.subr.mxu0 0.0
    %1099 = vmatpush1.msra.mxu0 0.0
    %1100 = vmatprep.subr.mxu0 0.0
    %1101 = vmatpush1.msra.mxu0 0.0
    %1102 = vmatprep.subr.mxu0 0.0
    %1103 = vmatpush1.msra.mxu0 0.0
    %1104 = vmatprep.subr.mxu0 0.0
    %1105 = vmatpush1.msra.mxu0 0.0
    %1106 = vmatprep.subr.mxu0 0.0
    %1107 = vmatpush1.msra.mxu0 0.0
    %1108 = vmatprep.subr.mxu0 0.0
    %1109 = vmatpush1.msra.mxu0 0.0
    %1110 = vmatprep.subr.mxu0 0.0
    %1111 = vmatpush1.msra.mxu0 0.0
    %1112 = vmatprep.subr.mxu0 0.0
    %1113 = vmatpush1.msra.mxu0 0.0
    %1114 = vmatprep.subr.mxu0 0.0
    %1115 = vmatpush1.msra.mxu0 0.0
    %1116 = vmatprep.subr.mxu0 0.0
    %1117 = vmatpush1.msra.mxu0 0.0
    %1118 = vmatprep.subr.mxu0 0.0
    %1119 = vmatpush1.msra.mxu0 0.0
    %1120 = vmatprep.subr.mxu0 0.0
    %1121 = vmatpush1.msra.mxu0 0.0
    %1122 = vmatprep.subr.mxu0 0.0
    %1123 = vmatpush1.msra.mxu0 0.0
    %1124 = vmatprep.subr.mxu0 0.0
    %1125 = vmatpush1.msra.mxu0 0.0
    %1126 = vmatprep.subr.mxu0 0.0
    %1127 = vmatpush1.msra.mxu0 0.0
    %1128 = vmatprep.mubr.f32.mxu0 0.0
    %1129 = vmatmul.mubr.f32.gmra.mrb[0].mxu0 %v1044
    %v1130 = vpop.f32.mrb[0].mxu0
    %v1131 = vadd.f32 %v1063, %v1130
    %v1132 = vpop.f32.mrb[0].mxu0
    %1133 = vdwg.mxu0
    %vm1134 = vcmask 0
    %1135 = vst.msk [vmem:[#allocation6] sm:$0x1] %vm1134, %v1131
    %1137 = vrot.lane.b32.xlu0 %v1131, 127
    %v1138 = vpop.permute.xlu0 %1137
    %vm1140 = vcmask 40960
    %1141 = vst.msk [vmem:[#allocation7] sm:$0x1] %vm1140, %v1138
    // Predicated region
    $region34: #{a3c_lstm_forward.4} parent=1 // pred_check
      _
    $region35: #{a3c_lstm_forward.4} parent=1 // pred_check_branch
      %1143 = sbr.rel (0) target = $region37
    $region36: #{a3c_lstm_forward.4} parent=1 // pred_region
      %s1145 = ssub.s32 16, 16
      %1146 = vsyncadd [#allocation3], %s1145
      %s1148 = sshll.u32 [#allocation2], 4
      %s1149 = int_to_ptr.vmem [resolvable:$true] %s1148
      %1151 = dma.vmem_to_hbm [thread:$0]  %s1149, 16, %s8, [#allocation3]
    $region37: #{a3c_lstm_forward.4} parent=1 // pred_fallthru
      _
    // Predicated region
    $region38: #{a3c_lstm_forward.4} parent=1 // pred_check
      _
    $region39: #{a3c_lstm_forward.4} parent=1 // pred_check_branch
      %1153 = sbr.rel (0) target = $region41
    $region40: #{a3c_lstm_forward.4} parent=1 // pred_region
      %s1155 = ssub.s32 16, 16
      %1156 = vsyncadd [#allocation5], %s1155
      %s1158 = sshll.u32 [#allocation4], 4
      %s1159 = int_to_ptr.vmem [resolvable:$true] %s1158
      %1161 = dma.vmem_to_hbm [thread:$0]  %s1159, 16, %s9, [#allocation5]
    $region41: #{a3c_lstm_forward.4} parent=1 // pred_fallthru
      _
    // Predicated region
    $region42: #{a3c_lstm_forward.4} parent=1 // pred_check
      _
    $region43: #{a3c_lstm_forward.4} parent=1 // pred_check_branch
      %1163 = sbr.rel (0) target = $region45
    $region44: #{a3c_lstm_forward.4} parent=1 // pred_region
      %s1165 = ssub.s32 16, 16
      %1166 = vsyncadd [#allocation5], %s1165
      %s1168 = sshll.u32 [#allocation6], 4
      %s1169 = int_to_ptr.vmem [resolvable:$true] %s1168
      %1171 = dma.vmem_to_hbm [thread:$0]  %s1169, 16, %s10, [#allocation5]
    $region45: #{a3c_lstm_forward.4} parent=1 // pred_fallthru
      _
    // Predicated region
    $region46: #{a3c_lstm_forward.4} parent=1 // pred_check
      _
    $region47: #{a3c_lstm_forward.4} parent=1 // pred_check_branch
      %1173 = sbr.rel (0) target = $region49
    $region48: #{a3c_lstm_forward.4} parent=1 // pred_region
      %s1175 = ssub.s32 16, 16
      %1176 = vsyncadd [#allocation8], %s1175
      %s1178 = sshll.u32 [#allocation7], 4
      %s1179 = int_to_ptr.vmem [resolvable:$true] %s1178
      %1181 = dma.vmem_to_hbm [thread:$0]  %s1179, 16, %s11, [#allocation8]
    $region49: #{a3c_lstm_forward.4} parent=1 // pred_fallthru
      _
    // Predicated region
    $region50: #{a3c_lstm_forward.4} parent=1 // pred_check
      _
    $region51: #{a3c_lstm_forward.4} parent=1 // pred_check_branch
      %1183 = sbr.rel (0) target = $region53
    $region52: #{a3c_lstm_forward.4} parent=1 // pred_region
      %1184 = dma.done [#allocation3], 16
    $region53: #{a3c_lstm_forward.4} parent=1 // pred_fallthru
      _
    // Predicated region
    $region54: #{a3c_lstm_forward.4} parent=1 // pred_check
      _
    $region55: #{a3c_lstm_forward.4} parent=1 // pred_check_branch
      %1186 = sbr.rel (0) target = $region57
    $region56: #{a3c_lstm_forward.4} parent=1 // pred_region
      %1187 = dma.done [#allocation5], 16
    $region57: #{a3c_lstm_forward.4} parent=1 // pred_fallthru
      _
    // Predicated region
    $region58: #{a3c_lstm_forward.4} parent=1 // pred_check
      _
    $region59: #{a3c_lstm_forward.4} parent=1 // pred_check_branch
      %1189 = sbr.rel (0) target = $region61
    $region60: #{a3c_lstm_forward.4} parent=1 // pred_region
      %1190 = dma.done [#allocation5], 16
    $region61: #{a3c_lstm_forward.4} parent=1 // pred_fallthru
      _
    // Predicated region
    $region62: #{a3c_lstm_forward.4} parent=1 // pred_check
      _
    $region63: #{a3c_lstm_forward.4} parent=1 // pred_check_branch
      %1192 = sbr.rel (0) target = $region65
    $region64: #{a3c_lstm_forward.4} parent=1 // pred_region
      %1193 = dma.done [#allocation8], 16
    $region65: #{a3c_lstm_forward.4} parent=1 // pred_fallthru
      _
    %1194 = vsyncpa [#allocation3], 1
    %1195 = vsyncpa [#allocation5], 1
    %1196 = vsyncpa [#allocation8], 1

// kernel: a3c_lstm_forward.5
$region0: #{a3c_lstm_forward.5}
  #allocation0 [shape = 'u32[]', space=smem, size = 0x4, offset = 0x4, fixed_abs, tag = 'smem constant byte address 0x4 - core index']
  #allocation1 [shape = 'u32[144,128]{1,0:T(1,128)}', space=vmem, size = 0x12000, scoped, tag = 'internal scratch']
  #allocation2 [shape = 'f32[18,18]{1,0:T(8,128)}', space=vmem, size = 0x3000, scoped, tag = 'scratch operand']
  #allocation3 [shape = 'f32[33,33]{1,0:T(8,128)}', space=vmem, size = 0x5000, scoped, tag = 'scratch operand']
  #allocation4 [shape = 'f32[65,65]{1,0:T(8,128)}', space=vmem, size = 0x9000, scoped, tag = 'scratch operand']
  %s0 = inlined_call_operand.vmem [shape: f32[10,10,64], index: 0, kind: input, shape index: {}]
  %s1 = inlined_call_operand.vmem [shape: f32[3,3,64], index: 1, kind: input, shape index: {}]
  %s2 = inlined_call_operand.vmem [shape: f32[16], index: 2, kind: input, shape index: {}]
  %s3 = inlined_call_operand.vmem [shape: f32[25], index: 3, kind: input, shape index: {}]
  %s4 = inlined_call_operand.vmem [shape: f32[25], index: 4, kind: input, shape index: {}]
  %s5 = inlined_call_operand.vmem [shape: f32[58,56], index: 5, kind: output, shape index: {}]
  %s6 = sld [smem:[#allocation0]]
  $region42: #{a3c_lstm_forward.5} parent=0
    _
  %s8 = ssub.s32 1, %s6
  %s9 = scalar_select 0, %s8, %s6
  $region1: #{a3c_lstm_forward.5} parent=0
    #allocation5 [shape = 'u8[512]{0}', space=smem, size = 0x200, scoped, tag = 'input window, operand 2, single buffered']
    #allocation6 [shape = 's32[1]{0}', space=sflag, size = 0x4, scoped, tag = 'scoped memory for a3c_lstm_forward.5']
    #allocation7 [shape = 'u8[512]{0}', space=smem, size = 0x200, scoped, tag = 'input window, operand 3, single buffered']
    #allocation8 [shape = 's32[1]{0}', space=sflag, size = 0x4, scoped, tag = 'scoped memory for a3c_lstm_forward.5']
    #allocation9 [shape = 'u8[512]{0}', space=smem, size = 0x200, scoped, tag = 'input window, operand 4, single buffered']
    %10 = vsyncpa [#allocation6], 0
    %11 = vsyncpa [#allocation8], 0
    // Predicated region
    $region2: #{a3c_lstm_forward.5} parent=1 // pred_check
      _
    $region3: #{a3c_lstm_forward.5} parent=1 // pred_check_branch
      %13 = sbr.rel (0) target = $region5
    $region4: #{a3c_lstm_forward.5} parent=1 // pred_region
      _
    $region5: #{a3c_lstm_forward.5} parent=1 // pred_fallthru
      _
    // Predicated region
    $region6: #{a3c_lstm_forward.5} parent=1 // pred_check
      _
    $region7: #{a3c_lstm_forward.5} parent=1 // pred_check_branch
      %15 = sbr.rel (0) target = $region9
    $region8: #{a3c_lstm_forward.5} parent=1 // pred_region
      _
    $region9: #{a3c_lstm_forward.5} parent=1 // pred_fallthru
      _
    // Predicated region
    $region10: #{a3c_lstm_forward.5} parent=1 // pred_check
      _
    $region11: #{a3c_lstm_forward.5} parent=1 // pred_check_branch
      %17 = sbr.rel (0) target = $region13
    $region12: #{a3c_lstm_forward.5} parent=1 // pred_region
      %s19 = ssub.s32 16, 16
      %20 = vsyncadd [#allocation6], %s19
      %s22 = sshll.u32 %s2, 4
      %s23 = int_to_ptr.vmem [resolvable:$true] %s22
      %25 = dma.vmem_to_smem %s23, 16, [#allocation5], [#allocation6]
    $region13: #{a3c_lstm_forward.5} parent=1 // pred_fallthru
      _
    // Predicated region
    $region14: #{a3c_lstm_forward.5} parent=1 // pred_check
      _
    $region15: #{a3c_lstm_forward.5} parent=1 // pred_check_branch
      %27 = sbr.rel (0) target = $region17
    $region16: #{a3c_lstm_forward.5} parent=1 // pred_region
      %s29 = ssub.s32 16, 16
      %30 = vsyncadd [#allocation8], %s29
      %s32 = sshll.u32 %s3, 4
      %s33 = int_to_ptr.vmem [resolvable:$true] %s32
      %35 = dma.vmem_to_smem %s33, 16, [#allocation7], [#allocation8]
    $region17: #{a3c_lstm_forward.5} parent=1 // pred_fallthru
      _
    // Predicated region
    $region18: #{a3c_lstm_forward.5} parent=1 // pred_check
      _
    $region19: #{a3c_lstm_forward.5} parent=1 // pred_check_branch
      %37 = sbr.rel (0) target = $region21
    $region20: #{a3c_lstm_forward.5} parent=1 // pred_region
      %s39 = ssub.s32 16, 16
      %40 = vsyncadd [#allocation8], %s39
      %s42 = sshll.u32 %s4, 4
      %s43 = int_to_ptr.vmem [resolvable:$true] %s42
      %45 = dma.vmem_to_smem %s43, 16, [#allocation9], [#allocation8]
    $region21: #{a3c_lstm_forward.5} parent=1 // pred_fallthru
      _
    // Predicated region
    $region22: #{a3c_lstm_forward.5} parent=1 // pred_check
      _
    $region23: #{a3c_lstm_forward.5} parent=1 // pred_check_branch
      %47 = sbr.rel (0) target = $region25
    $region24: #{a3c_lstm_forward.5} parent=1 // pred_region
      %48 = dma.done [#allocation6], 16
    $region25: #{a3c_lstm_forward.5} parent=1 // pred_fallthru
      _
    // Predicated region
    $region26: #{a3c_lstm_forward.5} parent=1 // pred_check
      _
    $region27: #{a3c_lstm_forward.5} parent=1 // pred_check_branch
      %50 = sbr.rel (0) target = $region29
    $region28: #{a3c_lstm_forward.5} parent=1 // pred_region
      %51 = dma.done [#allocation8], 16
    $region29: #{a3c_lstm_forward.5} parent=1 // pred_fallthru
      _
    // Predicated region
    $region30: #{a3c_lstm_forward.5} parent=1 // pred_check
      _
    $region31: #{a3c_lstm_forward.5} parent=1 // pred_check_branch
      %53 = sbr.rel (0) target = $region33
    $region32: #{a3c_lstm_forward.5} parent=1 // pred_region
      %54 = dma.done [#allocation8], 16
    $region33: #{a3c_lstm_forward.5} parent=1 // pred_fallthru
      _
    %55 = sfence
    %s56 = scalar_lea.vmem %s0, 16
    %v57 = vld [vmem:[%s56 + $0x1] sm:$0x3f]
    %v58 = vld [vmem:[%s56 + $0x11] sm:$0x3f]
    %v59 = vld [vmem:[%s56 + $0x21] sm:$0x3f]
    %v60 = vld [vmem:[%s56 + $0x31] sm:$0x3f]
    %v61 = vld [vmem:[%s56 + $0x41] sm:$0x3f]
    %v62 = vld [vmem:[%s56 + $0x51] sm:$0x3f]
    %v63 = vld [vmem:[%s1] sm:$0x1]
    %v64 = vlaneseq
    %v65 = vshrl.u32 %v64, 7
    %v66 = vsub.s32 0, %v65
    %v67 = vrot.slane %v63, %v66
    %v68 = vmul.f32 %v57, %v67
    %v69 = vmul.f32 %v58, %v67
    %v70 = vmul.f32 %v59, %v67
    %v71 = vmul.f32 %v60, %v67
    %v72 = vmul.f32 %v61, %v67
    %v73 = vmul.f32 %v62, %v67
    %vm74 = vcmask 521216
    %v75 = vsel %vm74, %v68, 0.0
    %76 = vadd.xlane.f32.xlu0 %v75
    %v77 = vpop.xlane.xlu0 %76
    %v78 = vsel %vm74, %v69, 0.0
    %79 = vadd.xlane.f32.xlu0 %v78
    %v80 = vpop.xlane.xlu0 %79
    %v81 = vsel %vm74, %v70, 0.0
    %82 = vadd.xlane.f32.xlu0 %v81
    %v83 = vpop.xlane.xlu0 %82
    %v84 = vsel %vm74, %v71, 0.0
    %85 = vadd.xlane.f32.xlu0 %v84
    %v86 = vpop.xlane.xlu0 %85
    %v87 = vsel %vm74, %v72, 0.0
    %88 = vadd.xlane.f32.xlu0 %v87
    %v89 = vpop.xlane.xlu0 %88
    %v90 = vsel %vm74, %v73, 0.0
    %91 = vadd.xlane.f32.xlu0 %v90
    %v92 = vpop.xlane.xlu0 %91
    %v93 = vadd.f32 %v77, 0.0
    %v94 = vadd.f32 %v80, 0.0
    %v95 = vadd.f32 %v83, 0.0
    %v96 = vadd.f32 %v86, 0.0
    %v97 = vadd.f32 %v89, 0.0
    %v98 = vadd.f32 %v92, 0.0
    %v99 = vld [vmem:[%s56 + $0x2] sm:$0x3f]
    %v100 = vld [vmem:[%s56 + $0x12] sm:$0x3f]
    %v101 = vld [vmem:[%s56 + $0x22] sm:$0x3f]
    %v102 = vld [vmem:[%s56 + $0x32] sm:$0x3f]
    %v103 = vld [vmem:[%s56 + $0x42] sm:$0x3f]
    %v104 = vld [vmem:[%s56 + $0x52] sm:$0x3f]
    %v105 = vld [vmem:[%s1 + $0x1] sm:$0x1]
    %v106 = vlaneseq
    %v107 = vshrl.u32 %v106, 7
    %v108 = vsub.s32 0, %v107
    %v109 = vrot.slane %v105, %v108
    %v110 = vmul.f32 %v99, %v109
    %v111 = vmul.f32 %v100, %v109
    %v112 = vmul.f32 %v101, %v109
    %v113 = vmul.f32 %v102, %v109
    %v114 = vmul.f32 %v103, %v109
    %v115 = vmul.f32 %v104, %v109
    %v116 = vsel %vm74, %v110, 0.0
    %117 = vadd.xlane.f32.xlu0 %v116
    %v118 = vpop.xlane.xlu0 %117
    %v119 = vsel %vm74, %v111, 0.0
    %120 = vadd.xlane.f32.xlu0 %v119
    %v121 = vpop.xlane.xlu0 %120
    %v122 = vsel %vm74, %v112, 0.0
    %123 = vadd.xlane.f32.xlu0 %v122
    %v124 = vpop.xlane.xlu0 %123
    %v125 = vsel %vm74, %v113, 0.0
    %126 = vadd.xlane.f32.xlu0 %v125
    %v127 = vpop.xlane.xlu0 %126
    %v128 = vsel %vm74, %v114, 0.0
    %129 = vadd.xlane.f32.xlu0 %v128
    %v130 = vpop.xlane.xlu0 %129
    %v131 = vsel %vm74, %v115, 0.0
    %132 = vadd.xlane.f32.xlu0 %v131
    %v133 = vpop.xlane.xlu0 %132
    %v134 = vadd.f32 %v93, %v118
    %v135 = vadd.f32 %v94, %v121
    %v136 = vadd.f32 %v95, %v124
    %v137 = vadd.f32 %v96, %v127
    %v138 = vadd.f32 %v97, %v130
    %v139 = vadd.f32 %v98, %v133
    %v140 = vld [vmem:[%s56 + $0x3] sm:$0x3f]
    %v141 = vld [vmem:[%s56 + $0x13] sm:$0x3f]
    %v142 = vld [vmem:[%s56 + $0x23] sm:$0x3f]
    %v143 = vld [vmem:[%s56 + $0x33] sm:$0x3f]
    %v144 = vld [vmem:[%s56 + $0x43] sm:$0x3f]
    %v145 = vld [vmem:[%s56 + $0x53] sm:$0x3f]
    %v146 = vld [vmem:[%s1 + $0x2] sm:$0x1]
    %v147 = vlaneseq
    %v148 = vshrl.u32 %v147, 7
    %v149 = vsub.s32 0, %v148
    %v150 = vrot.slane %v146, %v149
    %v151 = vmul.f32 %v140, %v150
    %v152 = vmul.f32 %v141, %v150
    %v153 = vmul.f32 %v142, %v150
    %v154 = vmul.f32 %v143, %v150
    %v155 = vmul.f32 %v144, %v150
    %v156 = vmul.f32 %v145, %v150
    %v157 = vsel %vm74, %v151, 0.0
    %158 = vadd.xlane.f32.xlu0 %v157
    %v159 = vpop.xlane.xlu0 %158
    %v160 = vsel %vm74, %v152, 0.0
    %161 = vadd.xlane.f32.xlu0 %v160
    %v162 = vpop.xlane.xlu0 %161
    %v163 = vsel %vm74, %v153, 0.0
    %164 = vadd.xlane.f32.xlu0 %v163
    %v165 = vpop.xlane.xlu0 %164
    %v166 = vsel %vm74, %v154, 0.0
    %167 = vadd.xlane.f32.xlu0 %v166
    %v168 = vpop.xlane.xlu0 %167
    %v169 = vsel %vm74, %v155, 0.0
    %170 = vadd.xlane.f32.xlu0 %v169
    %v171 = vpop.xlane.xlu0 %170
    %v172 = vsel %vm74, %v156, 0.0
    %173 = vadd.xlane.f32.xlu0 %v172
    %v174 = vpop.xlane.xlu0 %173
    %v175 = vadd.f32 %v134, %v159
    %v176 = vadd.f32 %v135, %v162
    %v177 = vadd.f32 %v136, %v165
    %v178 = vadd.f32 %v137, %v168
    %v179 = vadd.f32 %v138, %v171
    %v180 = vadd.f32 %v139, %v174
    %s181 = scalar_lea.vmem %s0, 32
    %v182 = vld [vmem:[%s181 + $0x1] sm:$0x3f]
    %v183 = vld [vmem:[%s181 + $0x11] sm:$0x3f]
    %v184 = vld [vmem:[%s181 + $0x21] sm:$0x3f]
    %v185 = vld [vmem:[%s181 + $0x31] sm:$0x3f]
    %v186 = vld [vmem:[%s181 + $0x41] sm:$0x3f]
    %v187 = vld [vmem:[%s181 + $0x51] sm:$0x3f]
    %s188 = scalar_lea.vmem %s1, 4
    %v189 = vld [vmem:[%s188] sm:$0x1]
    %v190 = vlaneseq
    %v191 = vshrl.u32 %v190, 7
    %v192 = vsub.s32 0, %v191
    %v193 = vrot.slane %v189, %v192
    %v194 = vmul.f32 %v182, %v193
    %v195 = vmul.f32 %v183, %v193
    %v196 = vmul.f32 %v184, %v193
    %v197 = vmul.f32 %v185, %v193
    %v198 = vmul.f32 %v186, %v193
    %v199 = vmul.f32 %v187, %v193
    %v200 = vsel %vm74, %v194, 0.0
    %201 = vadd.xlane.f32.xlu0 %v200
    %v202 = vpop.xlane.xlu0 %201
    %v203 = vsel %vm74, %v195, 0.0
    %204 = vadd.xlane.f32.xlu0 %v203
    %v205 = vpop.xlane.xlu0 %204
    %v206 = vsel %vm74, %v196, 0.0
    %207 = vadd.xlane.f32.xlu0 %v206
    %v208 = vpop.xlane.xlu0 %207
    %v209 = vsel %vm74, %v197, 0.0
    %210 = vadd.xlane.f32.xlu0 %v209
    %v211 = vpop.xlane.xlu0 %210
    %v212 = vsel %vm74, %v198, 0.0
    %213 = vadd.xlane.f32.xlu0 %v212
    %v214 = vpop.xlane.xlu0 %213
    %v215 = vsel %vm74, %v199, 0.0
    %216 = vadd.xlane.f32.xlu0 %v215
    %v217 = vpop.xlane.xlu0 %216
    %v218 = vadd.f32 %v175, %v202
    %v219 = vadd.f32 %v176, %v205
    %v220 = vadd.f32 %v177, %v208
    %v221 = vadd.f32 %v178, %v211
    %v222 = vadd.f32 %v179, %v214
    %v223 = vadd.f32 %v180, %v217
    %v224 = vld [vmem:[%s181 + $0x2] sm:$0x3f]
    %v225 = vld [vmem:[%s181 + $0x12] sm:$0x3f]
    %v226 = vld [vmem:[%s181 + $0x22] sm:$0x3f]
    %v227 = vld [vmem:[%s181 + $0x32] sm:$0x3f]
    %v228 = vld [vmem:[%s181 + $0x42] sm:$0x3f]
    %v229 = vld [vmem:[%s181 + $0x52] sm:$0x3f]
    %v230 = vld [vmem:[%s188 + $0x1] sm:$0x1]
    %v231 = vlaneseq
    %v232 = vshrl.u32 %v231, 7
    %v233 = vsub.s32 0, %v232
    %v234 = vrot.slane %v230, %v233
    %v235 = vmul.f32 %v224, %v234
    %v236 = vmul.f32 %v225, %v234
    %v237 = vmul.f32 %v226, %v234
    %v238 = vmul.f32 %v227, %v234
    %v239 = vmul.f32 %v228, %v234
    %v240 = vmul.f32 %v229, %v234
    %v241 = vsel %vm74, %v235, 0.0
    %242 = vadd.xlane.f32.xlu0 %v241
    %v243 = vpop.xlane.xlu0 %242
    %v244 = vsel %vm74, %v236, 0.0
    %245 = vadd.xlane.f32.xlu0 %v244
    %v246 = vpop.xlane.xlu0 %245
    %v247 = vsel %vm74, %v237, 0.0
    %248 = vadd.xlane.f32.xlu0 %v247
    %v249 = vpop.xlane.xlu0 %248
    %v250 = vsel %vm74, %v238, 0.0
    %251 = vadd.xlane.f32.xlu0 %v250
    %v252 = vpop.xlane.xlu0 %251
    %v253 = vsel %vm74, %v239, 0.0
    %254 = vadd.xlane.f32.xlu0 %v253
    %v255 = vpop.xlane.xlu0 %254
    %v256 = vsel %vm74, %v240, 0.0
    %257 = vadd.xlane.f32.xlu0 %v256
    %v258 = vpop.xlane.xlu0 %257
    %v259 = vadd.f32 %v218, %v243
    %v260 = vadd.f32 %v219, %v246
    %v261 = vadd.f32 %v220, %v249
    %v262 = vadd.f32 %v221, %v252
    %v263 = vadd.f32 %v222, %v255
    %v264 = vadd.f32 %v223, %v258
    %v265 = vld [vmem:[%s181 + $0x3] sm:$0x3f]
    %v266 = vld [vmem:[%s181 + $0x13] sm:$0x3f]
    %v267 = vld [vmem:[%s181 + $0x23] sm:$0x3f]
    %v268 = vld [vmem:[%s181 + $0x33] sm:$0x3f]
    %v269 = vld [vmem:[%s181 + $0x43] sm:$0x3f]
    %v270 = vld [vmem:[%s181 + $0x53] sm:$0x3f]
    %v271 = vld [vmem:[%s188 + $0x2] sm:$0x1]
    %v272 = vlaneseq
    %v273 = vshrl.u32 %v272, 7
    %v274 = vsub.s32 0, %v273
    %v275 = vrot.slane %v271, %v274
    %v276 = vmul.f32 %v265, %v275
    %v277 = vmul.f32 %v266, %v275
    %v278 = vmul.f32 %v267, %v275
    %v279 = vmul.f32 %v268, %v275
    %v280 = vmul.f32 %v269, %v275
    %v281 = vmul.f32 %v270, %v275
    %v282 = vsel %vm74, %v276, 0.0
    %283 = vadd.xlane.f32.xlu0 %v282
    %v284 = vpop.xlane.xlu0 %283
    %v285 = vsel %vm74, %v277, 0.0
    %286 = vadd.xlane.f32.xlu0 %v285
    %v287 = vpop.xlane.xlu0 %286
    %v288 = vsel %vm74, %v278, 0.0
    %289 = vadd.xlane.f32.xlu0 %v288
    %v290 = vpop.xlane.xlu0 %289
    %v291 = vsel %vm74, %v279, 0.0
    %292 = vadd.xlane.f32.xlu0 %v291
    %v293 = vpop.xlane.xlu0 %292
    %v294 = vsel %vm74, %v280, 0.0
    %295 = vadd.xlane.f32.xlu0 %v294
    %v296 = vpop.xlane.xlu0 %295
    %v297 = vsel %vm74, %v281, 0.0
    %298 = vadd.xlane.f32.xlu0 %v297
    %v299 = vpop.xlane.xlu0 %298
    %v300 = vadd.f32 %v259, %v284
    %v301 = vadd.f32 %v260, %v287
    %v302 = vadd.f32 %v261, %v290
    %v303 = vadd.f32 %v262, %v293
    %v304 = vadd.f32 %v263, %v296
    %v305 = vadd.f32 %v264, %v299
    %s306 = scalar_lea.vmem %s0, 48
    %v307 = vld [vmem:[%s306 + $0x1] sm:$0x3f]
    %v308 = vld [vmem:[%s306 + $0x11] sm:$0x3f]
    %v309 = vld [vmem:[%s306 + $0x21] sm:$0x3f]
    %v310 = vld [vmem:[%s306 + $0x31] sm:$0x3f]
    %v311 = vld [vmem:[%s306 + $0x41] sm:$0x3f]
    %v312 = vld [vmem:[%s306 + $0x51] sm:$0x3f]
    %s313 = scalar_lea.vmem %s1, 8
    %v314 = vld [vmem:[%s313] sm:$0x1]
    %v315 = vlaneseq
    %v316 = vshrl.u32 %v315, 7
    %v317 = vsub.s32 0, %v316
    %v318 = vrot.slane %v314, %v317
    %v319 = vmul.f32 %v307, %v318
    %v320 = vmul.f32 %v308, %v318
    %v321 = vmul.f32 %v309, %v318
    %v322 = vmul.f32 %v310, %v318
    %v323 = vmul.f32 %v311, %v318
    %v324 = vmul.f32 %v312, %v318
    %v325 = vsel %vm74, %v319, 0.0
    %326 = vadd.xlane.f32.xlu0 %v325
    %v327 = vpop.xlane.xlu0 %326
    %v328 = vsel %vm74, %v320, 0.0
    %329 = vadd.xlane.f32.xlu0 %v328
    %v330 = vpop.xlane.xlu0 %329
    %v331 = vsel %vm74, %v321, 0.0
    %332 = vadd.xlane.f32.xlu0 %v331
    %v333 = vpop.xlane.xlu0 %332
    %v334 = vsel %vm74, %v322, 0.0
    %335 = vadd.xlane.f32.xlu0 %v334
    %v336 = vpop.xlane.xlu0 %335
    %v337 = vsel %vm74, %v323, 0.0
    %338 = vadd.xlane.f32.xlu0 %v337
    %v339 = vpop.xlane.xlu0 %338
    %v340 = vsel %vm74, %v324, 0.0
    %341 = vadd.xlane.f32.xlu0 %v340
    %v342 = vpop.xlane.xlu0 %341
    %v343 = vadd.f32 %v300, %v327
    %v344 = vadd.f32 %v301, %v330
    %v345 = vadd.f32 %v302, %v333
    %v346 = vadd.f32 %v303, %v336
    %v347 = vadd.f32 %v304, %v339
    %v348 = vadd.f32 %v305, %v342
    %v349 = vld [vmem:[%s306 + $0x2] sm:$0x3f]
    %v350 = vld [vmem:[%s306 + $0x12] sm:$0x3f]
    %v351 = vld [vmem:[%s306 + $0x22] sm:$0x3f]
    %v352 = vld [vmem:[%s306 + $0x32] sm:$0x3f]
    %v353 = vld [vmem:[%s306 + $0x42] sm:$0x3f]
    %v354 = vld [vmem:[%s306 + $0x52] sm:$0x3f]
    %v355 = vld [vmem:[%s313 + $0x1] sm:$0x1]
    %v356 = vlaneseq
    %v357 = vshrl.u32 %v356, 7
    %v358 = vsub.s32 0, %v357
    %v359 = vrot.slane %v355, %v358
    %v360 = vmul.f32 %v349, %v359
    %v361 = vmul.f32 %v350, %v359
    %v362 = vmul.f32 %v351, %v359
    %v363 = vmul.f32 %v352, %v359
    %v364 = vmul.f32 %v353, %v359
    %v365 = vmul.f32 %v354, %v359
    %v366 = vsel %vm74, %v360, 0.0
    %367 = vadd.xlane.f32.xlu0 %v366
    %v368 = vpop.xlane.xlu0 %367
    %v369 = vsel %vm74, %v361, 0.0
    %370 = vadd.xlane.f32.xlu0 %v369
    %v371 = vpop.xlane.xlu0 %370
    %v372 = vsel %vm74, %v362, 0.0
    %373 = vadd.xlane.f32.xlu0 %v372
    %v374 = vpop.xlane.xlu0 %373
    %v375 = vsel %vm74, %v363, 0.0
    %376 = vadd.xlane.f32.xlu0 %v375
    %v377 = vpop.xlane.xlu0 %376
    %v378 = vsel %vm74, %v364, 0.0
    %379 = vadd.xlane.f32.xlu0 %v378
    %v380 = vpop.xlane.xlu0 %379
    %v381 = vsel %vm74, %v365, 0.0
    %382 = vadd.xlane.f32.xlu0 %v381
    %v383 = vpop.xlane.xlu0 %382
    %v384 = vadd.f32 %v343, %v368
    %v385 = vadd.f32 %v344, %v371
    %v386 = vadd.f32 %v345, %v374
    %v387 = vadd.f32 %v346, %v377
    %v388 = vadd.f32 %v347, %v380
    %v389 = vadd.f32 %v348, %v383
    %v390 = vld [vmem:[%s306 + $0x3] sm:$0x3f]
    %v391 = vld [vmem:[%s306 + $0x13] sm:$0x3f]
    %v392 = vld [vmem:[%s306 + $0x23] sm:$0x3f]
    %v393 = vld [vmem:[%s306 + $0x33] sm:$0x3f]
    %v394 = vld [vmem:[%s306 + $0x43] sm:$0x3f]
    %v395 = vld [vmem:[%s306 + $0x53] sm:$0x3f]
    %v396 = vld [vmem:[%s313 + $0x2] sm:$0x1]
    %v397 = vlaneseq
    %v398 = vshrl.u32 %v397, 7
    %v399 = vsub.s32 0, %v398
    %v400 = vrot.slane %v396, %v399
    %v401 = vmul.f32 %v390, %v400
    %v402 = vmul.f32 %v391, %v400
    %v403 = vmul.f32 %v392, %v400
    %v404 = vmul.f32 %v393, %v400
    %v405 = vmul.f32 %v394, %v400
    %v406 = vmul.f32 %v395, %v400
    %v407 = vsel %vm74, %v401, 0.0
    %408 = vadd.xlane.f32.xlu0 %v407
    %v409 = vpop.xlane.xlu0 %408
    %v410 = vsel %vm74, %v402, 0.0
    %411 = vadd.xlane.f32.xlu0 %v410
    %v412 = vpop.xlane.xlu0 %411
    %v413 = vsel %vm74, %v403, 0.0
    %414 = vadd.xlane.f32.xlu0 %v413
    %v415 = vpop.xlane.xlu0 %414
    %v416 = vsel %vm74, %v404, 0.0
    %417 = vadd.xlane.f32.xlu0 %v416
    %v418 = vpop.xlane.xlu0 %417
    %v419 = vsel %vm74, %v405, 0.0
    %420 = vadd.xlane.f32.xlu0 %v419
    %v421 = vpop.xlane.xlu0 %420
    %v422 = vsel %vm74, %v406, 0.0
    %423 = vadd.xlane.f32.xlu0 %v422
    %v424 = vpop.xlane.xlu0 %423
    %v425 = vadd.f32 %v384, %v409
    %v426 = vadd.f32 %v385, %v412
    %v427 = vadd.f32 %v386, %v415
    %v428 = vadd.f32 %v387, %v418
    %v429 = vadd.f32 %v388, %v421
    %v430 = vadd.f32 %v389, %v424
    %v431 = vlaneseq
    %v432 = vshrl.u32 %v431, 7
    %v433 = vadd.s32 %v432, 8
    %v434 = vadd.s32 %v432, 16
    %v435 = vlaneseq
    %v436 = vand.u32 %v435, 127
    %v437 = vmul.u32 %v436, 2
    %v438 = vadd.s32 %v437, 3
    %vm439 = vcmp.eq.s32.totalorder %v432, %v438
    %vm440 = vcmp.eq.s32.totalorder %v433, %v438
    %vm441 = vcmp.eq.s32.totalorder %v434, %v438
    %v442 = vsel %vm439, 1, 0
    %v443 = vsel %vm440, 1, 0
    %v444 = vsel %vm441, 1, 0
    %v445 = vcvt.s32.f32 %v442
    %v446 = vcvt.s32.f32 %v443
    %v447 = vcvt.s32.f32 %v444
    %v448 = vmul.u32 %v432, 2
    %v449 = vadd.s32 %v448, 3
    %vm450 = vcmp.eq.s32.totalorder %v436, %v449
    %v451 = vsel %vm450, 1, 0
    %v452 = vcvt.s32.f32 %v451
    %v459 = vlaneseq
    %v460 = vshrl.u32 %v459, 7
    %v461 = vsub.s32 %v436, %v460
    %v462 = vrot.slane %v425, %v461
    %v463 = vlaneseq
    %v464 = vshrl.u32 %v463, 7
    %v465 = vsub.s32 %v436, %v464
    %v466 = vrot.slane %v426, %v465
    %v467 = vlaneseq
    %v468 = vshrl.u32 %v467, 7
    %v469 = vsub.s32 %v436, %v468
    %v470 = vrot.slane %v427, %v469
    %v471 = vlaneseq
    %v472 = vshrl.u32 %v471, 7
    %v473 = vsub.s32 %v436, %v472
    %v474 = vrot.slane %v428, %v473
    %v475 = vlaneseq
    %v476 = vshrl.u32 %v475, 7
    %v477 = vsub.s32 %v436, %v476
    %v478 = vrot.slane %v429, %v477
    %v479 = vlaneseq
    %v480 = vshrl.u32 %v479, 7
    %v481 = vsub.s32 %v436, %v480
    %v482 = vrot.slane %v430, %v481
    %vm483 = vcmask 1041409
    %v484 = vsel %vm483, %v466, %v462
    %vm485 = vcmask 1042434
    %v486 = vsel %vm485, %v470, %v484
    %vm487 = vcmask 1043459
    %v488 = vsel %vm487, %v474, %v486
    %vm489 = vcmask 1044484
    %v490 = vsel %vm489, %v478, %v488
    %vm491 = vcmask 1045509
    %v492 = vsel %vm491, %v482, %v490
    %vm493 = vcmask 48128
    %v494 = vsel %vm493, %v492, 0
    %vm496 = vcmask 1045504
    %v498 = vsel %vm496, %v452, 0
    %500 = vmatprep.subr.mxu0 0.0
    %501 = vmatpush1.msra.mxu0 %v498
    %502 = vmatprep.subr.mxu0 0.0
    %503 = vmatpush1.msra.mxu0 0.0
    %504 = vmatprep.subr.mxu0 0.0
    %505 = vmatpush1.msra.mxu0 0.0
    %506 = vmatprep.subr.mxu0 0.0
    %507 = vmatpush1.msra.mxu0 0.0
    %508 = vmatprep.subr.mxu0 0.0
    %509 = vmatpush1.msra.mxu0 0.0
    %510 = vmatprep.subr.mxu0 0.0
    %511 = vmatpush1.msra.mxu0 0.0
    %512 = vmatprep.subr.mxu0 0.0
    %513 = vmatpush1.msra.mxu0 0.0
    %514 = vmatprep.subr.mxu0 0.0
    %515 = vmatpush1.msra.mxu0 0.0
    %516 = vmatprep.subr.mxu0 0.0
    %517 = vmatpush1.msra.mxu0 0.0
    %518 = vmatprep.subr.mxu0 0.0
    %519 = vmatpush1.msra.mxu0 0.0
    %520 = vmatprep.subr.mxu0 0.0
    %521 = vmatpush1.msra.mxu0 0.0
    %522 = vmatprep.subr.mxu0 0.0
    %523 = vmatpush1.msra.mxu0 0.0
    %524 = vmatprep.subr.mxu0 0.0
    %525 = vmatpush1.msra.mxu0 0.0
    %526 = vmatprep.subr.mxu0 0.0
    %527 = vmatpush1.msra.mxu0 0.0
    %528 = vmatprep.subr.mxu0 0.0
    %529 = vmatpush1.msra.mxu0 0.0
    %530 = vmatprep.subr.mxu0 0.0
    %531 = vmatpush1.msra.mxu0 0.0
    %532 = vmatprep.subr.mxu0 0.0
    %533 = vmatpush1.msra.mxu0 0.0
    %534 = vmatprep.subr.mxu0 0.0
    %535 = vmatpush1.msra.mxu0 0.0
    %536 = vmatprep.subr.mxu0 0.0
    %537 = vmatpush1.msra.mxu0 0.0
    %538 = vmatprep.subr.mxu0 0.0
    %539 = vmatpush1.msra.mxu0 0.0
    %540 = vmatprep.subr.mxu0 0.0
    %541 = vmatpush1.msra.mxu0 0.0
    %542 = vmatprep.subr.mxu0 0.0
    %543 = vmatpush1.msra.mxu0 0.0
    %544 = vmatprep.subr.mxu0 0.0
    %545 = vmatpush1.msra.mxu0 0.0
    %546 = vmatprep.subr.mxu0 0.0
    %547 = vmatpush1.msra.mxu0 0.0
    %548 = vmatprep.subr.mxu0 0.0
    %549 = vmatpush1.msra.mxu0 0.0
    %550 = vmatprep.subr.mxu0 0.0
    %551 = vmatpush1.msra.mxu0 0.0
    %552 = vmatprep.subr.mxu0 0.0
    %553 = vmatpush1.msra.mxu0 0.0
    %554 = vmatprep.subr.mxu0 0.0
    %555 = vmatpush1.msra.mxu0 0.0
    %556 = vmatprep.subr.mxu0 0.0
    %557 = vmatpush1.msra.mxu0 0.0
    %558 = vmatprep.subr.mxu0 0.0
    %559 = vmatpush1.msra.mxu0 0.0
    %560 = vmatprep.subr.mxu0 0.0
    %561 = vmatpush1.msra.mxu0 0.0
    %562 = vmatprep.subr.mxu0 0.0
    %563 = vmatpush1.msra.mxu0 0.0
    %564 = vmatprep.mubr.f32.mxu0 0.0
    %565 = vmatmul.mubr.f32.gmra.mrb[0].mxu0 %v494
    %v566 = vpop.f32.mrb[0].mxu0
    %v567 = vadd.f32 0.0, %v566
    %v568 = vpop.f32.mrb[0].mxu0
    %569 = vdwg.mxu0
    %v571 = vsel %vm493, %v445, 0
    %v574 = vsel %vm493, %v446, 0
    %v577 = vsel %vm493, %v447, 0
    %v580 = vsel %vm496, %v567, 0
    %582 = vmatprep.subr.mxu0 0.0
    %583 = vmatpush1.msra.mxu0 %v580
    %584 = vmatprep.subr.mxu0 0.0
    %585 = vmatpush1.msra.mxu0 0.0
    %586 = vmatprep.subr.mxu0 0.0
    %587 = vmatpush1.msra.mxu0 0.0
    %588 = vmatprep.subr.mxu0 0.0
    %589 = vmatpush1.msra.mxu0 0.0
    %590 = vmatprep.subr.mxu0 0.0
    %591 = vmatpush1.msra.mxu0 0.0
    %592 = vmatprep.subr.mxu0 0.0
    %593 = vmatpush1.msra.mxu0 0.0
    %594 = vmatprep.subr.mxu0 0.0
    %595 = vmatpush1.msra.mxu0 0.0
    %596 = vmatprep.subr.mxu0 0.0
    %597 = vmatpush1.msra.mxu0 0.0
    %598 = vmatprep.subr.mxu0 0.0
    %599 = vmatpush1.msra.mxu0 0.0
    %600 = vmatprep.subr.mxu0 0.0
    %601 = vmatpush1.msra.mxu0 0.0
    %602 = vmatprep.subr.mxu0 0.0
    %603 = vmatpush1.msra.mxu0 0.0
    %604 = vmatprep.subr.mxu0 0.0
    %605 = vmatpush1.msra.mxu0 0.0
    %606 = vmatprep.subr.mxu0 0.0
    %607 = vmatpush1.msra.mxu0 0.0
    %608 = vmatprep.subr.mxu0 0.0
    %609 = vmatpush1.msra.mxu0 0.0
    %610 = vmatprep.subr.mxu0 0.0
    %611 = vmatpush1.msra.mxu0 0.0
    %612 = vmatprep.subr.mxu0 0.0
    %613 = vmatpush1.msra.mxu0 0.0
    %614 = vmatprep.subr.mxu0 0.0
    %615 = vmatpush1.msra.mxu0 0.0
    %616 = vmatprep.subr.mxu0 0.0
    %617 = vmatpush1.msra.mxu0 0.0
    %618 = vmatprep.subr.mxu0 0.0
    %619 = vmatpush1.msra.mxu0 0.0
    %620 = vmatprep.subr.mxu0 0.0
    %621 = vmatpush1.msra.mxu0 0.0
    %622 = vmatprep.subr.mxu0 0.0
    %623 = vmatpush1.msra.mxu0 0.0
    %624 = vmatprep.subr.mxu0 0.0
    %625 = vmatpush1.msra.mxu0 0.0
    %626 = vmatprep.subr.mxu0 0.0
    %627 = vmatpush1.msra.mxu0 0.0
    %628 = vmatprep.subr.mxu0 0.0
    %629 = vmatpush1.msra.mxu0 0.0
    %630 = vmatprep.subr.mxu0 0.0
    %631 = vmatpush1.msra.mxu0 0.0
    %632 = vmatprep.subr.mxu0 0.0
    %633 = vmatpush1.msra.mxu0 0.0
    %634 = vmatprep.subr.mxu0 0.0
    %635 = vmatpush1.msra.mxu0 0.0
    %636 = vmatprep.subr.mxu0 0.0
    %637 = vmatpush1.msra.mxu0 0.0
    %638 = vmatprep.subr.mxu0 0.0
    %639 = vmatpush1.msra.mxu0 0.0
    %640 = vmatprep.subr.mxu0 0.0
    %641 = vmatpush1.msra.mxu0 0.0
    %642 = vmatprep.subr.mxu0 0.0
    %643 = vmatpush1.msra.mxu0 0.0
    %644 = vmatprep.subr.mxu0 0.0
    %645 = vmatpush1.msra.mxu0 0.0
    %646 = vmatprep.mubr.f32.mxu0 0.0
    %647 = vmatmul.mubr.f32.gmra.mrb[0].mxu0 %v571
    %v648 = vpop.f32.mrb[0].mxu0
    %v649 = vadd.f32 0.0, %v648
    %v650 = vpop.f32.mrb[0].mxu0
    %651 = vmatprep.mubr.f32.mxu0 0.0
    %652 = vmatmul.mubr.f32.gmra.mrb[0].mxu0 %v574
    %v653 = vpop.f32.mrb[0].mxu0
    %v654 = vadd.f32 0.0, %v653
    %v655 = vpop.f32.mrb[0].mxu0
    %656 = vmatprep.mubr.f32.mxu0 0.0
    %657 = vmatmul.mubr.f32.gmra.mrb[0].mxu0 %v577
    %v658 = vpop.f32.mrb[0].mxu0
    %v659 = vadd.f32 0.0, %v658
    %v660 = vpop.f32.mrb[0].mxu0
    %661 = vdwg.mxu0
    %vm662 = vcmask 146432
    %663 = vst.msk [vmem:[#allocation2] sm:$0xff] %vm662, %v649
    %664 = vst.msk [vmem:[#allocation2 + $0x8] sm:$0xff] %vm662, %v654
    %vm665 = vcmask 140288
    %666 = vst.msk [vmem:[#allocation2 + $0x10] sm:$0x3] %vm665, %v659
    %v667 = vld [vmem:[#allocation2 + $0x1] sm:$0xff]
    %v668 = vld [vmem:[#allocation2 + $0x9] sm:$0x1f]
    %s669 = sld [smem:[#allocation5]]
    %v670 = vstv %s669
    %v671 = vmul.f32 %v667, %v670
    %v672 = vmul.f32 %v668, %v670
    %v673 = vadd.f32 %v671, 0.0
    %v674 = vadd.f32 %v672, 0.0
    %s675 = sld [smem:[#allocation5 + $0x1]]
    %v676 = vstv %s675
    %v677 = vmul.f32 %v667, %v676
    %v678 = vmul.f32 %v668, %v676
    %681 = vrot.lane.b32.xlu0 %v677, 127
    %v682 = vpop.permute.xlu0 %681
    %683 = vrot.lane.b32.xlu0 %v678, 127
    %v684 = vpop.permute.xlu0 %683
    %v687 = vadd.f32 %v673, %v682
    %v688 = vadd.f32 %v674, %v684
    %s689 = sld [smem:[#allocation5 + $0x2]]
    %v690 = vstv %s689
    %v691 = vmul.f32 %v667, %v690
    %v692 = vmul.f32 %v668, %v690
    %695 = vrot.lane.b32.xlu0 %v691, 126
    %v696 = vpop.permute.xlu0 %695
    %697 = vrot.lane.b32.xlu0 %v692, 126
    %v698 = vpop.permute.xlu0 %697
    %v701 = vadd.f32 %v687, %v696
    %v702 = vadd.f32 %v688, %v698
    %s703 = sld [smem:[#allocation5 + $0x3]]
    %v704 = vstv %s703
    %v705 = vmul.f32 %v667, %v704
    %v706 = vmul.f32 %v668, %v704
    %709 = vrot.lane.b32.xlu0 %v705, 125
    %v710 = vpop.permute.xlu0 %709
    %711 = vrot.lane.b32.xlu0 %v706, 125
    %v712 = vpop.permute.xlu0 %711
    %v715 = vadd.f32 %v701, %v710
    %v716 = vadd.f32 %v702, %v712
    %v717 = vld [vmem:[#allocation2 + $0x2] sm:$0xff]
    %v718 = vld [vmem:[#allocation2 + $0xa] sm:$0x1f]
    %s719 = sld [smem:[#allocation5 + $0x4]]
    %v720 = vstv %s719
    %v721 = vmul.f32 %v717, %v720
    %v722 = vmul.f32 %v718, %v720
    %v723 = vadd.f32 %v715, %v721
    %v724 = vadd.f32 %v716, %v722
    %s725 = sld [smem:[#allocation5 + $0x5]]
    %v726 = vstv %s725
    %v727 = vmul.f32 %v717, %v726
    %v728 = vmul.f32 %v718, %v726
    %731 = vrot.lane.b32.xlu0 %v727, 127
    %v732 = vpop.permute.xlu0 %731
    %733 = vrot.lane.b32.xlu0 %v728, 127
    %v734 = vpop.permute.xlu0 %733
    %v737 = vadd.f32 %v723, %v732
    %v738 = vadd.f32 %v724, %v734
    %s739 = sld [smem:[#allocation5 + $0x6]]
    %v740 = vstv %s739
    %v741 = vmul.f32 %v717, %v740
    %v742 = vmul.f32 %v718, %v740
    %745 = vrot.lane.b32.xlu0 %v741, 126
    %v746 = vpop.permute.xlu0 %745
    %747 = vrot.lane.b32.xlu0 %v742, 126
    %v748 = vpop.permute.xlu0 %747
    %v751 = vadd.f32 %v737, %v746
    %v752 = vadd.f32 %v738, %v748
    %s753 = sld [smem:[#allocation5 + $0x7]]
    %v754 = vstv %s753
    %v755 = vmul.f32 %v717, %v754
    %v756 = vmul.f32 %v718, %v754
    %759 = vrot.lane.b32.xlu0 %v755, 125
    %v760 = vpop.permute.xlu0 %759
    %761 = vrot.lane.b32.xlu0 %v756, 125
    %v762 = vpop.permute.xlu0 %761
    %v765 = vadd.f32 %v751, %v760
    %v766 = vadd.f32 %v752, %v762
    %v767 = vld [vmem:[#allocation2 + $0x3] sm:$0xff]
    %v768 = vld [vmem:[#allocation2 + $0xb] sm:$0x1f]
    %s769 = sld [smem:[#allocation5 + $0x8]]
    %v770 = vstv %s769
    %v771 = vmul.f32 %v767, %v770
    %v772 = vmul.f32 %v768, %v770
    %v773 = vadd.f32 %v765, %v771
    %v774 = vadd.f32 %v766, %v772
    %s775 = sld [smem:[#allocation5 + $0x9]]
    %v776 = vstv %s775
    %v777 = vmul.f32 %v767, %v776
    %v778 = vmul.f32 %v768, %v776
    %781 = vrot.lane.b32.xlu0 %v777, 127
    %v782 = vpop.permute.xlu0 %781
    %783 = vrot.lane.b32.xlu0 %v778, 127
    %v784 = vpop.permute.xlu0 %783
    %v787 = vadd.f32 %v773, %v782
    %v788 = vadd.f32 %v774, %v784
    %s789 = sld [smem:[#allocation5 + $0xa]]
    %v790 = vstv %s789
    %v791 = vmul.f32 %v767, %v790
    %v792 = vmul.f32 %v768, %v790
    %795 = vrot.lane.b32.xlu0 %v791, 126
    %v796 = vpop.permute.xlu0 %795
    %797 = vrot.lane.b32.xlu0 %v792, 126
    %v798 = vpop.permute.xlu0 %797
    %v801 = vadd.f32 %v787, %v796
    %v802 = vadd.f32 %v788, %v798
    %s803 = sld [smem:[#allocation5 + $0xb]]
    %v804 = vstv %s803
    %v805 = vmul.f32 %v767, %v804
    %v806 = vmul.f32 %v768, %v804
    %809 = vrot.lane.b32.xlu0 %v805, 125
    %v810 = vpop.permute.xlu0 %809
    %811 = vrot.lane.b32.xlu0 %v806, 125
    %v812 = vpop.permute.xlu0 %811
    %v815 = vadd.f32 %v801, %v810
    %v816 = vadd.f32 %v802, %v812
    %v817 = vld [vmem:[#allocation2 + $0x4] sm:$0xff]
    %v818 = vld [vmem:[#allocation2 + $0xc] sm:$0x1f]
    %s819 = sld [smem:[#allocation5 + $0xc]]
    %v820 = vstv %s819
    %v821 = vmul.f32 %v817, %v820
    %v822 = vmul.f32 %v818, %v820
    %v823 = vadd.f32 %v815, %v821
    %v824 = vadd.f32 %v816, %v822
    %s825 = sld [smem:[#allocation5 + $0xd]]
    %v826 = vstv %s825
    %v827 = vmul.f32 %v817, %v826
    %v828 = vmul.f32 %v818, %v826
    %831 = vrot.lane.b32.xlu0 %v827, 127
    %v832 = vpop.permute.xlu0 %831
    %833 = vrot.lane.b32.xlu0 %v828, 127
    %v834 = vpop.permute.xlu0 %833
    %v837 = vadd.f32 %v823, %v832
    %v838 = vadd.f32 %v824, %v834
    %s839 = sld [smem:[#allocation5 + $0xe]]
    %v840 = vstv %s839
    %v841 = vmul.f32 %v817, %v840
    %v842 = vmul.f32 %v818, %v840
    %845 = vrot.lane.b32.xlu0 %v841, 126
    %v846 = vpop.permute.xlu0 %845
    %847 = vrot.lane.b32.xlu0 %v842, 126
    %v848 = vpop.permute.xlu0 %847
    %v851 = vadd.f32 %v837, %v846
    %v852 = vadd.f32 %v838, %v848
    %s853 = sld [smem:[#allocation5 + $0xf]]
    %v854 = vstv %s853
    %v855 = vmul.f32 %v817, %v854
    %v856 = vmul.f32 %v818, %v854
    %859 = vrot.lane.b32.xlu0 %v855, 125
    %v860 = vpop.permute.xlu0 %859
    %861 = vrot.lane.b32.xlu0 %v856, 125
    %v862 = vpop.permute.xlu0 %861
    %v865 = vadd.f32 %v851, %v860
    %v866 = vadd.f32 %v852, %v862
    %v867 = vadd.s32 %v432, 24
    %v868 = vadd.s32 %v432, 32
    %v869 = vadd.s32 %v437, 4
    %vm870 = vcmp.eq.s32.totalorder %v432, %v869
    %vm871 = vcmp.eq.s32.totalorder %v433, %v869
    %vm872 = vcmp.eq.s32.totalorder %v434, %v869
    %vm873 = vcmp.eq.s32.totalorder %v867, %v869
    %vm874 = vcmp.eq.s32.totalorder %v868, %v869
    %v875 = vsel %vm870, 1, 0
    %v876 = vsel %vm871, 1, 0
    %v877 = vsel %vm872, 1, 0
    %v878 = vsel %vm873, 1, 0
    %v879 = vsel %vm874, 1, 0
    %v880 = vcvt.s32.f32 %v875
    %v881 = vcvt.s32.f32 %v876
    %v882 = vcvt.s32.f32 %v877
    %v883 = vcvt.s32.f32 %v878
    %v884 = vcvt.s32.f32 %v879
    %v885 = vmul.u32 %v433, 2
    %v886 = vadd.s32 %v448, 4
    %v887 = vadd.s32 %v885, 4
    %vm888 = vcmp.eq.s32.totalorder %v436, %v886
    %vm889 = vcmp.eq.s32.totalorder %v436, %v887
    %v890 = vsel %vm888, 1, 0
    %v891 = vsel %vm889, 1, 0
    %v892 = vcvt.s32.f32 %v890
    %v893 = vcvt.s32.f32 %v891
    %896 = vrot.lane.b32.xlu0 %v865, 127
    %v897 = vpop.permute.xlu0 %896
    %898 = vrot.lane.b32.xlu0 %v866, 127
    %v899 = vpop.permute.xlu0 %898
    %vm900 = vcmask 105472
    %v901 = vsel %vm900, %v897, 0
    %v903 = vsel %vm900, %v899, 0
    %vm905 = vcmask 1044480
    %v907 = vsel %vm905, %v893, 0
    %909 = vmatprep.subr.mxu0 0.0
    %910 = vmatpush1.msra.mxu0 %v892
    %911 = vmatprep.subr.mxu0 0.0
    %912 = vmatpush1.msra.mxu0 %v907
    %913 = vmatprep.subr.mxu0 0.0
    %914 = vmatpush1.msra.mxu0 0.0
    %915 = vmatprep.subr.mxu0 0.0
    %916 = vmatpush1.msra.mxu0 0.0
    %917 = vmatprep.subr.mxu0 0.0
    %918 = vmatpush1.msra.mxu0 0.0
    %919 = vmatprep.subr.mxu0 0.0
    %920 = vmatpush1.msra.mxu0 0.0
    %921 = vmatprep.subr.mxu0 0.0
    %922 = vmatpush1.msra.mxu0 0.0
    %923 = vmatprep.subr.mxu0 0.0
    %924 = vmatpush1.msra.mxu0 0.0
    %925 = vmatprep.subr.mxu0 0.0
    %926 = vmatpush1.msra.mxu0 0.0
    %927 = vmatprep.subr.mxu0 0.0
    %928 = vmatpush1.msra.mxu0 0.0
    %929 = vmatprep.subr.mxu0 0.0
    %930 = vmatpush1.msra.mxu0 0.0
    %931 = vmatprep.subr.mxu0 0.0
    %932 = vmatpush1.msra.mxu0 0.0
    %933 = vmatprep.subr.mxu0 0.0
    %934 = vmatpush1.msra.mxu0 0.0
    %935 = vmatprep.subr.mxu0 0.0
    %936 = vmatpush1.msra.mxu0 0.0
    %937 = vmatprep.subr.mxu0 0.0
    %938 = vmatpush1.msra.mxu0 0.0
    %939 = vmatprep.subr.mxu0 0.0
    %940 = vmatpush1.msra.mxu0 0.0
    %941 = vmatprep.subr.mxu0 0.0
    %942 = vmatpush1.msra.mxu0 0.0
    %943 = vmatprep.subr.mxu0 0.0
    %944 = vmatpush1.msra.mxu0 0.0
    %945 = vmatprep.subr.mxu0 0.0
    %946 = vmatpush1.msra.mxu0 0.0
    %947 = vmatprep.subr.mxu0 0.0
    %948 = vmatpush1.msra.mxu0 0.0
    %949 = vmatprep.subr.mxu0 0.0
    %950 = vmatpush1.msra.mxu0 0.0
    %951 = vmatprep.subr.mxu0 0.0
    %952 = vmatpush1.msra.mxu0 0.0
    %953 = vmatprep.subr.mxu0 0.0
    %954 = vmatpush1.msra.mxu0 0.0
    %955 = vmatprep.subr.mxu0 0.0
    %956 = vmatpush1.msra.mxu0 0.0
    %957 = vmatprep.subr.mxu0 0.0
    %958 = vmatpush1.msra.mxu0 0.0
    %959 = vmatprep.subr.mxu0 0.0
    %960 = vmatpush1.msra.mxu0 0.0
    %961 = vmatprep.subr.mxu0 0.0
    %962 = vmatpush1.msra.mxu0 0.0
    %963 = vmatprep.subr.mxu0 0.0
    %964 = vmatpush1.msra.mxu0 0.0
    %965 = vmatprep.subr.mxu0 0.0
    %966 = vmatpush1.msra.mxu0 0.0
    %967 = vmatprep.subr.mxu0 0.0
    %968 = vmatpush1.msra.mxu0 0.0
    %969 = vmatprep.subr.mxu0 0.0
    %970 = vmatpush1.msra.mxu0 0.0
    %971 = vmatprep.subr.mxu0 0.0
    %972 = vmatpush1.msra.mxu0 0.0
    %973 = vmatprep.mubr.f32.mxu0 0.0
    %974 = vmatmul.mubr.f32.gmra.mrb[0].mxu0 %v901
    %v975 = vpop.f32.mrb[0].mxu0
    %v976 = vadd.f32 0.0, %v975
    %v977 = vpop.f32.mrb[0].mxu0
    %978 = vmatprep.mubr.f32.mxu0 0.0
    %979 = vmatmul.mubr.f32.gmra.mrb[0].mxu0 %v903
    %v980 = vpop.f32.mrb[0].mxu0
    %v981 = vadd.f32 0.0, %v980
    %v982 = vpop.f32.mrb[0].mxu0
    %983 = vdwg.mxu0
    %v985 = vsel %vm900, %v880, 0
    %v988 = vsel %vm900, %v881, 0
    %v991 = vsel %vm900, %v882, 0
    %v994 = vsel %vm900, %v883, 0
    %v997 = vsel %vm900, %v884, 0
    %v1000 = vsel %vm905, %v981, 0
    %1002 = vmatprep.subr.mxu0 0.0
    %1003 = vmatpush1.msra.mxu0 %v976
    %1004 = vmatprep.subr.mxu0 0.0
    %1005 = vmatpush1.msra.mxu0 %v1000
    %1006 = vmatprep.subr.mxu0 0.0
    %1007 = vmatpush1.msra.mxu0 0.0
    %1008 = vmatprep.subr.mxu0 0.0
    %1009 = vmatpush1.msra.mxu0 0.0
    %1010 = vmatprep.subr.mxu0 0.0
    %1011 = vmatpush1.msra.mxu0 0.0
    %1012 = vmatprep.subr.mxu0 0.0
    %1013 = vmatpush1.msra.mxu0 0.0
    %1014 = vmatprep.subr.mxu0 0.0
    %1015 = vmatpush1.msra.mxu0 0.0
    %1016 = vmatprep.subr.mxu0 0.0
    %1017 = vmatpush1.msra.mxu0 0.0
    %1018 = vmatprep.subr.mxu0 0.0
    %1019 = vmatpush1.msra.mxu0 0.0
    %1020 = vmatprep.subr.mxu0 0.0
    %1021 = vmatpush1.msra.mxu0 0.0
    %1022 = vmatprep.subr.mxu0 0.0
    %1023 = vmatpush1.msra.mxu0 0.0
    %1024 = vmatprep.subr.mxu0 0.0
    %1025 = vmatpush1.msra.mxu0 0.0
    %1026 = vmatprep.subr.mxu0 0.0
    %1027 = vmatpush1.msra.mxu0 0.0
    %1028 = vmatprep.subr.mxu0 0.0
    %1029 = vmatpush1.msra.mxu0 0.0
    %1030 = vmatprep.subr.mxu0 0.0
    %1031 = vmatpush1.msra.mxu0 0.0
    %1032 = vmatprep.subr.mxu0 0.0
    %1033 = vmatpush1.msra.mxu0 0.0
    %1034 = vmatprep.subr.mxu0 0.0
    %1035 = vmatpush1.msra.mxu0 0.0
    %1036 = vmatprep.subr.mxu0 0.0
    %1037 = vmatpush1.msra.mxu0 0.0
    %1038 = vmatprep.subr.mxu0 0.0
    %1039 = vmatpush1.msra.mxu0 0.0
    %1040 = vmatprep.subr.mxu0 0.0
    %1041 = vmatpush1.msra.mxu0 0.0
    %1042 = vmatprep.subr.mxu0 0.0
    %1043 = vmatpush1.msra.mxu0 0.0
    %1044 = vmatprep.subr.mxu0 0.0
    %1045 = vmatpush1.msra.mxu0 0.0
    %1046 = vmatprep.subr.mxu0 0.0
    %1047 = vmatpush1.msra.mxu0 0.0
    %1048 = vmatprep.subr.mxu0 0.0
    %1049 = vmatpush1.msra.mxu0 0.0
    %1050 = vmatprep.subr.mxu0 0.0
    %1051 = vmatpush1.msra.mxu0 0.0
    %1052 = vmatprep.subr.mxu0 0.0
    %1053 = vmatpush1.msra.mxu0 0.0
    %1054 = vmatprep.subr.mxu0 0.0
    %1055 = vmatpush1.msra.mxu0 0.0
    %1056 = vmatprep.subr.mxu0 0.0
    %1057 = vmatpush1.msra.mxu0 0.0
    %1058 = vmatprep.subr.mxu0 0.0
    %1059 = vmatpush1.msra.mxu0 0.0
    %1060 = vmatprep.subr.mxu0 0.0
    %1061 = vmatpush1.msra.mxu0 0.0
    %1062 = vmatprep.subr.mxu0 0.0
    %1063 = vmatpush1.msra.mxu0 0.0
    %1064 = vmatprep.subr.mxu0 0.0
    %1065 = vmatpush1.msra.mxu0 0.0
    %1066 = vmatprep.mubr.f32.mxu0 0.0
    %1067 = vmatmul.mubr.f32.gmra.mrb[0].mxu0 %v985
    %v1068 = vpop.f32.mrb[0].mxu0
    %v1069 = vadd.f32 0.0, %v1068
    %v1070 = vpop.f32.mrb[0].mxu0
    %1071 = vmatprep.mubr.f32.mxu0 0.0
    %1072 = vmatmul.mubr.f32.gmra.mrb[0].mxu0 %v988
    %v1073 = vpop.f32.mrb[0].mxu0
    %v1074 = vadd.f32 0.0, %v1073
    %v1075 = vpop.f32.mrb[0].mxu0
    %1076 = vmatprep.mubr.f32.mxu0 0.0
    %1077 = vmatmul.mubr.f32.gmra.mrb[0].mxu0 %v991
    %v1078 = vpop.f32.mrb[0].mxu0
    %v1079 = vadd.f32 0.0, %v1078
    %v1080 = vpop.f32.mrb[0].mxu0
    %1081 = vmatprep.mubr.f32.mxu0 0.0
    %1082 = vmatmul.mubr.f32.gmra.mrb[0].mxu0 %v994
    %v1083 = vpop.f32.mrb[0].mxu0
    %v1084 = vadd.f32 0.0, %v1083
    %v1085 = vpop.f32.mrb[0].mxu0
    %1086 = vmatprep.mubr.f32.mxu0 0.0
    %1087 = vmatmul.mubr.f32.gmra.mrb[0].mxu0 %v997
    %v1088 = vpop.f32.mrb[0].mxu0
    %v1089 = vadd.f32 0.0, %v1088
    %v1090 = vpop.f32.mrb[0].mxu0
    %1091 = vdwg.mxu0
    %vm1092 = vcmask 269312
    %1093 = vst.msk [vmem:[#allocation3] sm:$0xff] %vm1092, %v1069
    %1094 = vst.msk [vmem:[#allocation3 + $0x8] sm:$0xff] %vm1092, %v1074
    %1095 = vst.msk [vmem:[#allocation3 + $0x10] sm:$0xff] %vm1092, %v1079
    %1096 = vst.msk [vmem:[#allocation3 + $0x18] sm:$0xff] %vm1092, %v1084
    %vm1097 = vcmask 262144
    %1098 = vst.msk [vmem:[#allocation3 + $0x20] sm:$0x1] %vm1097, %v1089
    %v1099 = vld [vmem:[#allocation3] sm:$0xff]
    %v1100 = vld [vmem:[#allocation3 + $0x8] sm:$0xff]
    %v1101 = vld [vmem:[#allocation3 + $0x10] sm:$0xff]
    %v1102 = vld [vmem:[#allocation3 + $0x18] sm:$0x1f]
    %s1103 = sld [smem:[#allocation7]]
    %v1104 = vstv %s1103
    %v1105 = vmul.f32 %v1099, %v1104
    %v1106 = vmul.f32 %v1100, %v1104
    %v1107 = vmul.f32 %v1101, %v1104
    %v1108 = vmul.f32 %v1102, %v1104
    %v1109 = vadd.f32 %v1105, 0.0
    %v1110 = vadd.f32 %v1106, 0.0
    %v1111 = vadd.f32 %v1107, 0.0
    %v1112 = vadd.f32 %v1108, 0.0
    %s1113 = sld [smem:[#allocation7 + $0x1]]
    %v1114 = vstv %s1113
    %v1115 = vmul.f32 %v1099, %v1114
    %v1116 = vmul.f32 %v1100, %v1114
    %v1117 = vmul.f32 %v1101, %v1114
    %v1118 = vmul.f32 %v1102, %v1114
    %1123 = vrot.lane.b32.xlu0 %v1115, 127
    %v1124 = vpop.permute.xlu0 %1123
    %1125 = vrot.lane.b32.xlu0 %v1116, 127
    %v1126 = vpop.permute.xlu0 %1125
    %1127 = vrot.lane.b32.xlu0 %v1117, 127
    %v1128 = vpop.permute.xlu0 %1127
    %1129 = vrot.lane.b32.xlu0 %v1118, 127
    %v1130 = vpop.permute.xlu0 %1129
    %v1135 = vadd.f32 %v1109, %v1124
    %v1136 = vadd.f32 %v1110, %v1126
    %v1137 = vadd.f32 %v1111, %v1128
    %v1138 = vadd.f32 %v1112, %v1130
    %s1139 = sld [smem:[#allocation7 + $0x2]]
    %v1140 = vstv %s1139
    %v1141 = vmul.f32 %v1099, %v1140
    %v1142 = vmul.f32 %v1100, %v1140
    %v1143 = vmul.f32 %v1101, %v1140
    %v1144 = vmul.f32 %v1102, %v1140
    %1149 = vrot.lane.b32.xlu0 %v1141, 126
    %v1150 = vpop.permute.xlu0 %1149
    %1151 = vrot.lane.b32.xlu0 %v1142, 126
    %v1152 = vpop.permute.xlu0 %1151
    %1153 = vrot.lane.b32.xlu0 %v1143, 126
    %v1154 = vpop.permute.xlu0 %1153
    %1155 = vrot.lane.b32.xlu0 %v1144, 126
    %v1156 = vpop.permute.xlu0 %1155
    %v1161 = vadd.f32 %v1135, %v1150
    %v1162 = vadd.f32 %v1136, %v1152
    %v1163 = vadd.f32 %v1137, %v1154
    %v1164 = vadd.f32 %v1138, %v1156
    %s1165 = sld [smem:[#allocation7 + $0x3]]
    %v1166 = vstv %s1165
    %v1167 = vmul.f32 %v1099, %v1166
    %v1168 = vmul.f32 %v1100, %v1166
    %v1169 = vmul.f32 %v1101, %v1166
    %v1170 = vmul.f32 %v1102, %v1166
    %1175 = vrot.lane.b32.xlu0 %v1167, 125
    %v1176 = vpop.permute.xlu0 %1175
    %1177 = vrot.lane.b32.xlu0 %v1168, 125
    %v1178 = vpop.permute.xlu0 %1177
    %1179 = vrot.lane.b32.xlu0 %v1169, 125
    %v1180 = vpop.permute.xlu0 %1179
    %1181 = vrot.lane.b32.xlu0 %v1170, 125
    %v1182 = vpop.permute.xlu0 %1181
    %v1187 = vadd.f32 %v1161, %v1176
    %v1188 = vadd.f32 %v1162, %v1178
    %v1189 = vadd.f32 %v1163, %v1180
    %v1190 = vadd.f32 %v1164, %v1182
    %s1191 = sld [smem:[#allocation7 + $0x4]]
    %v1192 = vstv %s1191
    %v1193 = vmul.f32 %v1099, %v1192
    %v1194 = vmul.f32 %v1100, %v1192
    %v1195 = vmul.f32 %v1101, %v1192
    %v1196 = vmul.f32 %v1102, %v1192
    %1201 = vrot.lane.b32.xlu0 %v1193, 124
    %v1202 = vpop.permute.xlu0 %1201
    %1203 = vrot.lane.b32.xlu0 %v1194, 124
    %v1204 = vpop.permute.xlu0 %1203
    %1205 = vrot.lane.b32.xlu0 %v1195, 124
    %v1206 = vpop.permute.xlu0 %1205
    %1207 = vrot.lane.b32.xlu0 %v1196, 124
    %v1208 = vpop.permute.xlu0 %1207
    %v1213 = vadd.f32 %v1187, %v1202
    %v1214 = vadd.f32 %v1188, %v1204
    %v1215 = vadd.f32 %v1189, %v1206
    %v1216 = vadd.f32 %v1190, %v1208
    %v1217 = vld [vmem:[#allocation3 + $0x1] sm:$0xff]
    %v1218 = vld [vmem:[#allocation3 + $0x9] sm:$0xff]
    %v1219 = vld [vmem:[#allocation3 + $0x11] sm:$0xff]
    %v1220 = vld [vmem:[#allocation3 + $0x19] sm:$0x1f]
    %s1221 = sld [smem:[#allocation7 + $0x5]]
    %v1222 = vstv %s1221
    %v1223 = vmul.f32 %v1217, %v1222
    %v1224 = vmul.f32 %v1218, %v1222
    %v1225 = vmul.f32 %v1219, %v1222
    %v1226 = vmul.f32 %v1220, %v1222
    %v1227 = vadd.f32 %v1213, %v1223
    %v1228 = vadd.f32 %v1214, %v1224
    %v1229 = vadd.f32 %v1215, %v1225
    %v1230 = vadd.f32 %v1216, %v1226
    %s1231 = sld [smem:[#allocation7 + $0x6]]
    %v1232 = vstv %s1231
    %v1233 = vmul.f32 %v1217, %v1232
    %v1234 = vmul.f32 %v1218, %v1232
    %v1235 = vmul.f32 %v1219, %v1232
    %v1236 = vmul.f32 %v1220, %v1232
    %1241 = vrot.lane.b32.xlu0 %v1233, 127
    %v1242 = vpop.permute.xlu0 %1241
    %1243 = vrot.lane.b32.xlu0 %v1234, 127
    %v1244 = vpop.permute.xlu0 %1243
    %1245 = vrot.lane.b32.xlu0 %v1235, 127
    %v1246 = vpop.permute.xlu0 %1245
    %1247 = vrot.lane.b32.xlu0 %v1236, 127
    %v1248 = vpop.permute.xlu0 %1247
    %v1253 = vadd.f32 %v1227, %v1242
    %v1254 = vadd.f32 %v1228, %v1244
    %v1255 = vadd.f32 %v1229, %v1246
    %v1256 = vadd.f32 %v1230, %v1248
    %s1257 = sld [smem:[#allocation7 + $0x7]]
    %v1258 = vstv %s1257
    %v1259 = vmul.f32 %v1217, %v1258
    %v1260 = vmul.f32 %v1218, %v1258
    %v1261 = vmul.f32 %v1219, %v1258
    %v1262 = vmul.f32 %v1220, %v1258
    %1267 = vrot.lane.b32.xlu0 %v1259, 126
    %v1268 = vpop.permute.xlu0 %1267
    %1269 = vrot.lane.b32.xlu0 %v1260, 126
    %v1270 = vpop.permute.xlu0 %1269
    %1271 = vrot.lane.b32.xlu0 %v1261, 126
    %v1272 = vpop.permute.xlu0 %1271
    %1273 = vrot.lane.b32.xlu0 %v1262, 126
    %v1274 = vpop.permute.xlu0 %1273
    %v1279 = vadd.f32 %v1253, %v1268
    %v1280 = vadd.f32 %v1254, %v1270
    %v1281 = vadd.f32 %v1255, %v1272
    %v1282 = vadd.f32 %v1256, %v1274
    %s1283 = sld [smem:[#allocation7 + $0x8]]
    %v1284 = vstv %s1283
    %v1285 = vmul.f32 %v1217, %v1284
    %v1286 = vmul.f32 %v1218, %v1284
    %v1287 = vmul.f32 %v1219, %v1284
    %v1288 = vmul.f32 %v1220, %v1284
    %1293 = vrot.lane.b32.xlu0 %v1285, 125
    %v1294 = vpop.permute.xlu0 %1293
    %1295 = vrot.lane.b32.xlu0 %v1286, 125
    %v1296 = vpop.permute.xlu0 %1295
    %1297 = vrot.lane.b32.xlu0 %v1287, 125
    %v1298 = vpop.permute.xlu0 %1297
    %1299 = vrot.lane.b32.xlu0 %v1288, 125
    %v1300 = vpop.permute.xlu0 %1299
    %v1305 = vadd.f32 %v1279, %v1294
    %v1306 = vadd.f32 %v1280, %v1296
    %v1307 = vadd.f32 %v1281, %v1298
    %v1308 = vadd.f32 %v1282, %v1300
    %s1309 = sld [smem:[#allocation7 + $0x9]]
    %v1310 = vstv %s1309
    %v1311 = vmul.f32 %v1217, %v1310
    %v1312 = vmul.f32 %v1218, %v1310
    %v1313 = vmul.f32 %v1219, %v1310
    %v1314 = vmul.f32 %v1220, %v1310
    %1319 = vrot.lane.b32.xlu0 %v1311, 124
    %v1320 = vpop.permute.xlu0 %1319
    %1321 = vrot.lane.b32.xlu0 %v1312, 124
    %v1322 = vpop.permute.xlu0 %1321
    %1323 = vrot.lane.b32.xlu0 %v1313, 124
    %v1324 = vpop.permute.xlu0 %1323
    %1325 = vrot.lane.b32.xlu0 %v1314, 124
    %v1326 = vpop.permute.xlu0 %1325
    %v1331 = vadd.f32 %v1305, %v1320
    %v1332 = vadd.f32 %v1306, %v1322
    %v1333 = vadd.f32 %v1307, %v1324
    %v1334 = vadd.f32 %v1308, %v1326
    %v1335 = vld [vmem:[#allocation3 + $0x2] sm:$0xff]
    %v1336 = vld [vmem:[#allocation3 + $0xa] sm:$0xff]
    %v1337 = vld [vmem:[#allocation3 + $0x12] sm:$0xff]
    %v1338 = vld [vmem:[#allocation3 + $0x1a] sm:$0x1f]
    %s1339 = sld [smem:[#allocation7 + $0xa]]
    %v1340 = vstv %s1339
    %v1341 = vmul.f32 %v1335, %v1340
    %v1342 = vmul.f32 %v1336, %v1340
    %v1343 = vmul.f32 %v1337, %v1340
    %v1344 = vmul.f32 %v1338, %v1340
    %v1345 = vadd.f32 %v1331, %v1341
    %v1346 = vadd.f32 %v1332, %v1342
    %v1347 = vadd.f32 %v1333, %v1343
    %v1348 = vadd.f32 %v1334, %v1344
    %s1349 = sld [smem:[#allocation7 + $0xb]]
    %v1350 = vstv %s1349
    %v1351 = vmul.f32 %v1335, %v1350
    %v1352 = vmul.f32 %v1336, %v1350
    %v1353 = vmul.f32 %v1337, %v1350
    %v1354 = vmul.f32 %v1338, %v1350
    %1359 = vrot.lane.b32.xlu0 %v1351, 127
    %v1360 = vpop.permute.xlu0 %1359
    %1361 = vrot.lane.b32.xlu0 %v1352, 127
    %v1362 = vpop.permute.xlu0 %1361
    %1363 = vrot.lane.b32.xlu0 %v1353, 127
    %v1364 = vpop.permute.xlu0 %1363
    %1365 = vrot.lane.b32.xlu0 %v1354, 127
    %v1366 = vpop.permute.xlu0 %1365
    %v1371 = vadd.f32 %v1345, %v1360
    %v1372 = vadd.f32 %v1346, %v1362
    %v1373 = vadd.f32 %v1347, %v1364
    %v1374 = vadd.f32 %v1348, %v1366
    %s1375 = sld [smem:[#allocation7 + $0xc]]
    %v1376 = vstv %s1375
    %v1377 = vmul.f32 %v1335, %v1376
    %v1378 = vmul.f32 %v1336, %v1376
    %v1379 = vmul.f32 %v1337, %v1376
    %v1380 = vmul.f32 %v1338, %v1376
    %1385 = vrot.lane.b32.xlu0 %v1377, 126
    %v1386 = vpop.permute.xlu0 %1385
    %1387 = vrot.lane.b32.xlu0 %v1378, 126
    %v1388 = vpop.permute.xlu0 %1387
    %1389 = vrot.lane.b32.xlu0 %v1379, 126
    %v1390 = vpop.permute.xlu0 %1389
    %1391 = vrot.lane.b32.xlu0 %v1380, 126
    %v1392 = vpop.permute.xlu0 %1391
    %v1397 = vadd.f32 %v1371, %v1386
    %v1398 = vadd.f32 %v1372, %v1388
    %v1399 = vadd.f32 %v1373, %v1390
    %v1400 = vadd.f32 %v1374, %v1392
    %s1401 = sld [smem:[#allocation7 + $0xd]]
    %v1402 = vstv %s1401
    %v1403 = vmul.f32 %v1335, %v1402
    %v1404 = vmul.f32 %v1336, %v1402
    %v1405 = vmul.f32 %v1337, %v1402
    %v1406 = vmul.f32 %v1338, %v1402
    %1411 = vrot.lane.b32.xlu0 %v1403, 125
    %v1412 = vpop.permute.xlu0 %1411
    %1413 = vrot.lane.b32.xlu0 %v1404, 125
    %v1414 = vpop.permute.xlu0 %1413
    %1415 = vrot.lane.b32.xlu0 %v1405, 125
    %v1416 = vpop.permute.xlu0 %1415
    %1417 = vrot.lane.b32.xlu0 %v1406, 125
    %v1418 = vpop.permute.xlu0 %1417
    %v1423 = vadd.f32 %v1397, %v1412
    %v1424 = vadd.f32 %v1398, %v1414
    %v1425 = vadd.f32 %v1399, %v1416
    %v1426 = vadd.f32 %v1400, %v1418
    %s1427 = sld [smem:[#allocation7 + $0xe]]
    %v1428 = vstv %s1427
    %v1429 = vmul.f32 %v1335, %v1428
    %v1430 = vmul.f32 %v1336, %v1428
    %v1431 = vmul.f32 %v1337, %v1428
    %v1432 = vmul.f32 %v1338, %v1428
    %1437 = vrot.lane.b32.xlu0 %v1429, 124
    %v1438 = vpop.permute.xlu0 %1437
    %1439 = vrot.lane.b32.xlu0 %v1430, 124
    %v1440 = vpop.permute.xlu0 %1439
    %1441 = vrot.lane.b32.xlu0 %v1431, 124
    %v1442 = vpop.permute.xlu0 %1441
    %1443 = vrot.lane.b32.xlu0 %v1432, 124
    %v1444 = vpop.permute.xlu0 %1443
    %v1449 = vadd.f32 %v1423, %v1438
    %v1450 = vadd.f32 %v1424, %v1440
    %v1451 = vadd.f32 %v1425, %v1442
    %v1452 = vadd.f32 %v1426, %v1444
    %v1453 = vld [vmem:[#allocation3 + $0x3] sm:$0xff]
    %v1454 = vld [vmem:[#allocation3 + $0xb] sm:$0xff]
    %v1455 = vld [vmem:[#allocation3 + $0x13] sm:$0xff]
    %v1456 = vld [vmem:[#allocation3 + $0x1b] sm:$0x1f]
    %s1457 = sld [smem:[#allocation7 + $0xf]]
    %v1458 = vstv %s1457
    %v1459 = vmul.f32 %v1453, %v1458
    %v1460 = vmul.f32 %v1454, %v1458
    %v1461 = vmul.f32 %v1455, %v1458
    %v1462 = vmul.f32 %v1456, %v1458
    %v1463 = vadd.f32 %v1449, %v1459
    %v1464 = vadd.f32 %v1450, %v1460
    %v1465 = vadd.f32 %v1451, %v1461
    %v1466 = vadd.f32 %v1452, %v1462
    %s1467 = sld [smem:[#allocation7 + $0x10]]
    %v1468 = vstv %s1467
    %v1469 = vmul.f32 %v1453, %v1468
    %v1470 = vmul.f32 %v1454, %v1468
    %v1471 = vmul.f32 %v1455, %v1468
    %v1472 = vmul.f32 %v1456, %v1468
    %1477 = vrot.lane.b32.xlu0 %v1469, 127
    %v1478 = vpop.permute.xlu0 %1477
    %1479 = vrot.lane.b32.xlu0 %v1470, 127
    %v1480 = vpop.permute.xlu0 %1479
    %1481 = vrot.lane.b32.xlu0 %v1471, 127
    %v1482 = vpop.permute.xlu0 %1481
    %1483 = vrot.lane.b32.xlu0 %v1472, 127
    %v1484 = vpop.permute.xlu0 %1483
    %v1489 = vadd.f32 %v1463, %v1478
    %v1490 = vadd.f32 %v1464, %v1480
    %v1491 = vadd.f32 %v1465, %v1482
    %v1492 = vadd.f32 %v1466, %v1484
    %s1493 = sld [smem:[#allocation7 + $0x11]]
    %v1494 = vstv %s1493
    %v1495 = vmul.f32 %v1453, %v1494
    %v1496 = vmul.f32 %v1454, %v1494
    %v1497 = vmul.f32 %v1455, %v1494
    %v1498 = vmul.f32 %v1456, %v1494
    %1503 = vrot.lane.b32.xlu0 %v1495, 126
    %v1504 = vpop.permute.xlu0 %1503
    %1505 = vrot.lane.b32.xlu0 %v1496, 126
    %v1506 = vpop.permute.xlu0 %1505
    %1507 = vrot.lane.b32.xlu0 %v1497, 126
    %v1508 = vpop.permute.xlu0 %1507
    %1509 = vrot.lane.b32.xlu0 %v1498, 126
    %v1510 = vpop.permute.xlu0 %1509
    %v1515 = vadd.f32 %v1489, %v1504
    %v1516 = vadd.f32 %v1490, %v1506
    %v1517 = vadd.f32 %v1491, %v1508
    %v1518 = vadd.f32 %v1492, %v1510
    %s1519 = sld [smem:[#allocation7 + $0x12]]
    %v1520 = vstv %s1519
    %v1521 = vmul.f32 %v1453, %v1520
    %v1522 = vmul.f32 %v1454, %v1520
    %v1523 = vmul.f32 %v1455, %v1520
    %v1524 = vmul.f32 %v1456, %v1520
    %1529 = vrot.lane.b32.xlu0 %v1521, 125
    %v1530 = vpop.permute.xlu0 %1529
    %1531 = vrot.lane.b32.xlu0 %v1522, 125
    %v1532 = vpop.permute.xlu0 %1531
    %1533 = vrot.lane.b32.xlu0 %v1523, 125
    %v1534 = vpop.permute.xlu0 %1533
    %1535 = vrot.lane.b32.xlu0 %v1524, 125
    %v1536 = vpop.permute.xlu0 %1535
    %v1541 = vadd.f32 %v1515, %v1530
    %v1542 = vadd.f32 %v1516, %v1532
    %v1543 = vadd.f32 %v1517, %v1534
    %v1544 = vadd.f32 %v1518, %v1536
    %s1545 = sld [smem:[#allocation7 + $0x13]]
    %v1546 = vstv %s1545
    %v1547 = vmul.f32 %v1453, %v1546
    %v1548 = vmul.f32 %v1454, %v1546
    %v1549 = vmul.f32 %v1455, %v1546
    %v1550 = vmul.f32 %v1456, %v1546
    %1555 = vrot.lane.b32.xlu0 %v1547, 124
    %v1556 = vpop.permute.xlu0 %1555
    %1557 = vrot.lane.b32.xlu0 %v1548, 124
    %v1558 = vpop.permute.xlu0 %1557
    %1559 = vrot.lane.b32.xlu0 %v1549, 124
    %v1560 = vpop.permute.xlu0 %1559
    %1561 = vrot.lane.b32.xlu0 %v1550, 124
    %v1562 = vpop.permute.xlu0 %1561
    %v1567 = vadd.f32 %v1541, %v1556
    %v1568 = vadd.f32 %v1542, %v1558
    %v1569 = vadd.f32 %v1543, %v1560
    %v1570 = vadd.f32 %v1544, %v1562
    %v1571 = vld [vmem:[#allocation3 + $0x4] sm:$0xff]
    %v1572 = vld [vmem:[#allocation3 + $0xc] sm:$0xff]
    %v1573 = vld [vmem:[#allocation3 + $0x14] sm:$0xff]
    %v1574 = vld [vmem:[#allocation3 + $0x1c] sm:$0x1f]
    %s1575 = sld [smem:[#allocation7 + $0x14]]
    %v1576 = vstv %s1575
    %v1577 = vmul.f32 %v1571, %v1576
    %v1578 = vmul.f32 %v1572, %v1576
    %v1579 = vmul.f32 %v1573, %v1576
    %v1580 = vmul.f32 %v1574, %v1576
    %v1581 = vadd.f32 %v1567, %v1577
    %v1582 = vadd.f32 %v1568, %v1578
    %v1583 = vadd.f32 %v1569, %v1579
    %v1584 = vadd.f32 %v1570, %v1580
    %s1585 = sld [smem:[#allocation7 + $0x15]]
    %v1586 = vstv %s1585
    %v1587 = vmul.f32 %v1571, %v1586
    %v1588 = vmul.f32 %v1572, %v1586
    %v1589 = vmul.f32 %v1573, %v1586
    %v1590 = vmul.f32 %v1574, %v1586
    %1595 = vrot.lane.b32.xlu0 %v1587, 127
    %v1596 = vpop.permute.xlu0 %1595
    %1597 = vrot.lane.b32.xlu0 %v1588, 127
    %v1598 = vpop.permute.xlu0 %1597
    %1599 = vrot.lane.b32.xlu0 %v1589, 127
    %v1600 = vpop.permute.xlu0 %1599
    %1601 = vrot.lane.b32.xlu0 %v1590, 127
    %v1602 = vpop.permute.xlu0 %1601
    %v1607 = vadd.f32 %v1581, %v1596
    %v1608 = vadd.f32 %v1582, %v1598
    %v1609 = vadd.f32 %v1583, %v1600
    %v1610 = vadd.f32 %v1584, %v1602
    %s1611 = sld [smem:[#allocation7 + $0x16]]
    %v1612 = vstv %s1611
    %v1613 = vmul.f32 %v1571, %v1612
    %v1614 = vmul.f32 %v1572, %v1612
    %v1615 = vmul.f32 %v1573, %v1612
    %v1616 = vmul.f32 %v1574, %v1612
    %1621 = vrot.lane.b32.xlu0 %v1613, 126
    %v1622 = vpop.permute.xlu0 %1621
    %1623 = vrot.lane.b32.xlu0 %v1614, 126
    %v1624 = vpop.permute.xlu0 %1623
    %1625 = vrot.lane.b32.xlu0 %v1615, 126
    %v1626 = vpop.permute.xlu0 %1625
    %1627 = vrot.lane.b32.xlu0 %v1616, 126
    %v1628 = vpop.permute.xlu0 %1627
    %v1633 = vadd.f32 %v1607, %v1622
    %v1634 = vadd.f32 %v1608, %v1624
    %v1635 = vadd.f32 %v1609, %v1626
    %v1636 = vadd.f32 %v1610, %v1628
    %s1637 = sld [smem:[#allocation7 + $0x17]]
    %v1638 = vstv %s1637
    %v1639 = vmul.f32 %v1571, %v1638
    %v1640 = vmul.f32 %v1572, %v1638
    %v1641 = vmul.f32 %v1573, %v1638
    %v1642 = vmul.f32 %v1574, %v1638
    %1647 = vrot.lane.b32.xlu0 %v1639, 125
    %v1648 = vpop.permute.xlu0 %1647
    %1649 = vrot.lane.b32.xlu0 %v1640, 125
    %v1650 = vpop.permute.xlu0 %1649
    %1651 = vrot.lane.b32.xlu0 %v1641, 125
    %v1652 = vpop.permute.xlu0 %1651
    %1653 = vrot.lane.b32.xlu0 %v1642, 125
    %v1654 = vpop.permute.xlu0 %1653
    %v1659 = vadd.f32 %v1633, %v1648
    %v1660 = vadd.f32 %v1634, %v1650
    %v1661 = vadd.f32 %v1635, %v1652
    %v1662 = vadd.f32 %v1636, %v1654
    %s1663 = sld [smem:[#allocation7 + $0x18]]
    %v1664 = vstv %s1663
    %v1665 = vmul.f32 %v1571, %v1664
    %v1666 = vmul.f32 %v1572, %v1664
    %v1667 = vmul.f32 %v1573, %v1664
    %v1668 = vmul.f32 %v1574, %v1664
    %1673 = vrot.lane.b32.xlu0 %v1665, 124
    %v1674 = vpop.permute.xlu0 %1673
    %1675 = vrot.lane.b32.xlu0 %v1666, 124
    %v1676 = vpop.permute.xlu0 %1675
    %1677 = vrot.lane.b32.xlu0 %v1667, 124
    %v1678 = vpop.permute.xlu0 %1677
    %1679 = vrot.lane.b32.xlu0 %v1668, 124
    %v1680 = vpop.permute.xlu0 %1679
    %v1685 = vadd.f32 %v1659, %v1674
    %v1686 = vadd.f32 %v1660, %v1676
    %v1687 = vadd.f32 %v1661, %v1678
    %v1688 = vadd.f32 %v1662, %v1680
    %v1689 = vadd.s32 %v432, 40
    %v1690 = vadd.s32 %v432, 48
    %v1691 = vadd.s32 %v432, 56
    %v1692 = vadd.s32 %v432, 64
    %vm1693 = vcmp.eq.s32.totalorder %v1689, %v869
    %vm1694 = vcmp.eq.s32.totalorder %v1690, %v869
    %vm1695 = vcmp.eq.s32.totalorder %v1691, %v869
    %vm1696 = vcmp.eq.s32.totalorder %v1692, %v869
    %v1697 = vsel %vm1693, 1, 0
    %v1698 = vsel %vm1694, 1, 0
    %v1699 = vsel %vm1695, 1, 0
    %v1700 = vsel %vm1696, 1, 0
    %v1701 = vcvt.s32.f32 %v1697
    %v1702 = vcvt.s32.f32 %v1698
    %v1703 = vcvt.s32.f32 %v1699
    %v1704 = vcvt.s32.f32 %v1700
    %v1705 = vmul.u32 %v434, 2
    %v1706 = vmul.u32 %v867, 2
    %v1707 = vadd.s32 %v1705, 4
    %v1708 = vadd.s32 %v1706, 4
    %vm1709 = vcmp.eq.s32.totalorder %v436, %v1707
    %vm1710 = vcmp.eq.s32.totalorder %v436, %v1708
    %v1711 = vsel %vm1709, 1, 0
    %v1712 = vsel %vm1710, 1, 0
    %v1713 = vcvt.s32.f32 %v1711
    %v1714 = vcvt.s32.f32 %v1712
    %vm1715 = vcmask 236544
    %v1717 = vsel %vm1715, %v1685, 0
    %v1720 = vsel %vm1715, %v1686, 0
    %v1723 = vsel %vm1715, %v1687, 0
    %v1726 = vsel %vm1715, %v1688, 0
    %v1729 = vsel %vm905, %v1714, 0
    %1731 = vmatprep.subr.mxu0 0.0
    %1732 = vmatpush1.msra.mxu0 %v892
    %1733 = vmatprep.subr.mxu0 0.0
    %1734 = vmatpush1.msra.mxu0 %v893
    %1735 = vmatprep.subr.mxu0 0.0
    %1736 = vmatpush1.msra.mxu0 %v1713
    %1737 = vmatprep.subr.mxu0 0.0
    %1738 = vmatpush1.msra.mxu0 %v1729
    %1739 = vmatprep.subr.mxu0 0.0
    %1740 = vmatpush1.msra.mxu0 0.0
    %1741 = vmatprep.subr.mxu0 0.0
    %1742 = vmatpush1.msra.mxu0 0.0
    %1743 = vmatprep.subr.mxu0 0.0
    %1744 = vmatpush1.msra.mxu0 0.0
    %1745 = vmatprep.subr.mxu0 0.0
    %1746 = vmatpush1.msra.mxu0 0.0
    %1747 = vmatprep.subr.mxu0 0.0
    %1748 = vmatpush1.msra.mxu0 0.0
    %1749 = vmatprep.subr.mxu0 0.0
    %1750 = vmatpush1.msra.mxu0 0.0
    %1751 = vmatprep.subr.mxu0 0.0
    %1752 = vmatpush1.msra.mxu0 0.0
    %1753 = vmatprep.subr.mxu0 0.0
    %1754 = vmatpush1.msra.mxu0 0.0
    %1755 = vmatprep.subr.mxu0 0.0
    %1756 = vmatpush1.msra.mxu0 0.0
    %1757 = vmatprep.subr.mxu0 0.0
    %1758 = vmatpush1.msra.mxu0 0.0
    %1759 = vmatprep.subr.mxu0 0.0
    %1760 = vmatpush1.msra.mxu0 0.0
    %1761 = vmatprep.subr.mxu0 0.0
    %1762 = vmatpush1.msra.mxu0 0.0
    %1763 = vmatprep.subr.mxu0 0.0
    %1764 = vmatpush1.msra.mxu0 0.0
    %1765 = vmatprep.subr.mxu0 0.0
    %1766 = vmatpush1.msra.mxu0 0.0
    %1767 = vmatprep.subr.mxu0 0.0
    %1768 = vmatpush1.msra.mxu0 0.0
    %1769 = vmatprep.subr.mxu0 0.0
    %1770 = vmatpush1.msra.mxu0 0.0
    %1771 = vmatprep.subr.mxu0 0.0
    %1772 = vmatpush1.msra.mxu0 0.0
    %1773 = vmatprep.subr.mxu0 0.0
    %1774 = vmatpush1.msra.mxu0 0.0
    %1775 = vmatprep.subr.mxu0 0.0
    %1776 = vmatpush1.msra.mxu0 0.0
    %1777 = vmatprep.subr.mxu0 0.0
    %1778 = vmatpush1.msra.mxu0 0.0
    %1779 = vmatprep.subr.mxu0 0.0
    %1780 = vmatpush1.msra.mxu0 0.0
    %1781 = vmatprep.subr.mxu0 0.0
    %1782 = vmatpush1.msra.mxu0 0.0
    %1783 = vmatprep.subr.mxu0 0.0
    %1784 = vmatpush1.msra.mxu0 0.0
    %1785 = vmatprep.subr.mxu0 0.0
    %1786 = vmatpush1.msra.mxu0 0.0
    %1787 = vmatprep.subr.mxu0 0.0
    %1788 = vmatpush1.msra.mxu0 0.0
    %1789 = vmatprep.subr.mxu0 0.0
    %1790 = vmatpush1.msra.mxu0 0.0
    %1791 = vmatprep.subr.mxu0 0.0
    %1792 = vmatpush1.msra.mxu0 0.0
    %1793 = vmatprep.subr.mxu0 0.0
    %1794 = vmatpush1.msra.mxu0 0.0
    %1795 = vmatprep.mubr.f32.mxu0 0.0
    %1796 = vmatmul.mubr.f32.gmra.mrb[0].mxu0 %v1717
    %v1797 = vpop.f32.mrb[0].mxu0
    %v1798 = vadd.f32 0.0, %v1797
    %v1799 = vpop.f32.mrb[0].mxu0
    %1800 = vmatprep.mubr.f32.mxu0 0.0
    %1801 = vmatmul.mubr.f32.gmra.mrb[0].mxu0 %v1720
    %v1802 = vpop.f32.mrb[0].mxu0
    %v1803 = vadd.f32 0.0, %v1802
    %v1804 = vpop.f32.mrb[0].mxu0
    %1805 = vmatprep.mubr.f32.mxu0 0.0
    %1806 = vmatmul.mubr.f32.gmra.mrb[0].mxu0 %v1723
    %v1807 = vpop.f32.mrb[0].mxu0
    %v1808 = vadd.f32 0.0, %v1807
    %v1809 = vpop.f32.mrb[0].mxu0
    %1810 = vmatprep.mubr.f32.mxu0 0.0
    %1811 = vmatmul.mubr.f32.gmra.mrb[0].mxu0 %v1726
    %v1812 = vpop.f32.mrb[0].mxu0
    %v1813 = vadd.f32 0.0, %v1812
    %v1814 = vpop.f32.mrb[0].mxu0
    %1815 = vdwg.mxu0
    %v1816 = vsel %vm1715, %v880, 0
    %v1818 = vsel %vm1715, %v881, 0
    %v1820 = vsel %vm1715, %v882, 0
    %v1822 = vsel %vm1715, %v883, 0
    %v1824 = vsel %vm1715, %v884, 0
    %v1827 = vsel %vm1715, %v1701, 0
    %v1830 = vsel %vm1715, %v1702, 0
    %v1833 = vsel %vm1715, %v1703, 0
    %v1836 = vsel %vm1715, %v1704, 0
    %v1839 = vsel %vm905, %v1813, 0
    %1841 = vmatprep.subr.mxu0 0.0
    %1842 = vmatpush1.msra.mxu0 %v1798
    %1843 = vmatprep.subr.mxu0 0.0
    %1844 = vmatpush1.msra.mxu0 %v1803
    %1845 = vmatprep.subr.mxu0 0.0
    %1846 = vmatpush1.msra.mxu0 %v1808
    %1847 = vmatprep.subr.mxu0 0.0
    %1848 = vmatpush1.msra.mxu0 %v1839
    %1849 = vmatprep.subr.mxu0 0.0
    %1850 = vmatpush1.msra.mxu0 0.0
    %1851 = vmatprep.subr.mxu0 0.0
    %1852 = vmatpush1.msra.mxu0 0.0
    %1853 = vmatprep.subr.mxu0 0.0
    %1854 = vmatpush1.msra.mxu0 0.0
    %1855 = vmatprep.subr.mxu0 0.0
    %1856 = vmatpush1.msra.mxu0 0.0
    %1857 = vmatprep.subr.mxu0 0.0
    %1858 = vmatpush1.msra.mxu0 0.0
    %1859 = vmatprep.subr.mxu0 0.0
    %1860 = vmatpush1.msra.mxu0 0.0
    %1861 = vmatprep.subr.mxu0 0.0
    %1862 = vmatpush1.msra.mxu0 0.0
    %1863 = vmatprep.subr.mxu0 0.0
    %1864 = vmatpush1.msra.mxu0 0.0
    %1865 = vmatprep.subr.mxu0 0.0
    %1866 = vmatpush1.msra.mxu0 0.0
    %1867 = vmatprep.subr.mxu0 0.0
    %1868 = vmatpush1.msra.mxu0 0.0
    %1869 = vmatprep.subr.mxu0 0.0
    %1870 = vmatpush1.msra.mxu0 0.0
    %1871 = vmatprep.subr.mxu0 0.0
    %1872 = vmatpush1.msra.mxu0 0.0
    %1873 = vmatprep.subr.mxu0 0.0
    %1874 = vmatpush1.msra.mxu0 0.0
    %1875 = vmatprep.subr.mxu0 0.0
    %1876 = vmatpush1.msra.mxu0 0.0
    %1877 = vmatprep.subr.mxu0 0.0
    %1878 = vmatpush1.msra.mxu0 0.0
    %1879 = vmatprep.subr.mxu0 0.0
    %1880 = vmatpush1.msra.mxu0 0.0
    %1881 = vmatprep.subr.mxu0 0.0
    %1882 = vmatpush1.msra.mxu0 0.0
    %1883 = vmatprep.subr.mxu0 0.0
    %1884 = vmatpush1.msra.mxu0 0.0
    %1885 = vmatprep.subr.mxu0 0.0
    %1886 = vmatpush1.msra.mxu0 0.0
    %1887 = vmatprep.subr.mxu0 0.0
    %1888 = vmatpush1.msra.mxu0 0.0
    %1889 = vmatprep.subr.mxu0 0.0
    %1890 = vmatpush1.msra.mxu0 0.0
    %1891 = vmatprep.subr.mxu0 0.0
    %1892 = vmatpush1.msra.mxu0 0.0
    %1893 = vmatprep.subr.mxu0 0.0
    %1894 = vmatpush1.msra.mxu0 0.0
    %1895 = vmatprep.subr.mxu0 0.0
    %1896 = vmatpush1.msra.mxu0 0.0
    %1897 = vmatprep.subr.mxu0 0.0
    %1898 = vmatpush1.msra.mxu0 0.0
    %1899 = vmatprep.subr.mxu0 0.0
    %1900 = vmatpush1.msra.mxu0 0.0
    %1901 = vmatprep.subr.mxu0 0.0
    %1902 = vmatpush1.msra.mxu0 0.0
    %1903 = vmatprep.subr.mxu0 0.0
    %1904 = vmatpush1.msra.mxu0 0.0
    %1905 = vmatprep.mubr.f32.mxu0 0.0
    %1906 = vmatmul.mubr.f32.gmra.mrb[0].mxu0 %v1816
    %v1907 = vpop.f32.mrb[0].mxu0
    %v1908 = vadd.f32 0.0, %v1907
    %v1909 = vpop.f32.mrb[0].mxu0
    %1910 = vmatprep.mubr.f32.mxu0 0.0
    %1911 = vmatmul.mubr.f32.gmra.mrb[0].mxu0 %v1818
    %v1912 = vpop.f32.mrb[0].mxu0
    %v1913 = vadd.f32 0.0, %v1912
    %v1914 = vpop.f32.mrb[0].mxu0
    %1915 = vmatprep.mubr.f32.mxu0 0.0
    %1916 = vmatmul.mubr.f32.gmra.mrb[0].mxu0 %v1820
    %v1917 = vpop.f32.mrb[0].mxu0
    %v1918 = vadd.f32 0.0, %v1917
    %v1919 = vpop.f32.mrb[0].mxu0
    %1920 = vmatprep.mubr.f32.mxu0 0.0
    %1921 = vmatmul.mubr.f32.gmra.mrb[0].mxu0 %v1822
    %v1922 = vpop.f32.mrb[0].mxu0
    %v1923 = vadd.f32 0.0, %v1922
    %v1924 = vpop.f32.mrb[0].mxu0
    %1925 = vmatprep.mubr.f32.mxu0 0.0
    %1926 = vmatmul.mubr.f32.gmra.mrb[0].mxu0 %v1824
    %v1927 = vpop.f32.mrb[0].mxu0
    %v1928 = vadd.f32 0.0, %v1927
    %v1929 = vpop.f32.mrb[0].mxu0
    %1930 = vmatprep.mubr.f32.mxu0 0.0
    %1931 = vmatmul.mubr.f32.gmra.mrb[0].mxu0 %v1827
    %v1932 = vpop.f32.mrb[0].mxu0
    %v1933 = vadd.f32 0.0, %v1932
    %v1934 = vpop.f32.mrb[0].mxu0
    %1935 = vmatprep.mubr.f32.mxu0 0.0
    %1936 = vmatmul.mubr.f32.gmra.mrb[0].mxu0 %v1830
    %v1937 = vpop.f32.mrb[0].mxu0
    %v1938 = vadd.f32 0.0, %v1937
    %v1939 = vpop.f32.mrb[0].mxu0
    %1940 = vmatprep.mubr.f32.mxu0 0.0
    %1941 = vmatmul.mubr.f32.gmra.mrb[0].mxu0 %v1833
    %v1942 = vpop.f32.mrb[0].mxu0
    %v1943 = vadd.f32 0.0, %v1942
    %v1944 = vpop.f32.mrb[0].mxu0
    %1945 = vmatprep.mubr.f32.mxu0 0.0
    %1946 = vmatmul.mubr.f32.gmra.mrb[0].mxu0 %v1836
    %v1947 = vpop.f32.mrb[0].mxu0
    %v1948 = vadd.f32 0.0, %v1947
    %v1949 = vpop.f32.mrb[0].mxu0
    %1950 = vdwg.mxu0
    %vm1951 = vcmask 531456
    %1952 = vst.msk [vmem:[#allocation4] sm:$0xff] %vm1951, %v1908
    %1953 = vst.msk [vmem:[#allocation4 + $0x8] sm:$0xff] %vm1951, %v1913
    %1954 = vst.msk [vmem:[#allocation4 + $0x10] sm:$0xff] %vm1951, %v1918
    %1955 = vst.msk [vmem:[#allocation4 + $0x18] sm:$0xff] %vm1951, %v1923
    %1956 = vst.msk [vmem:[#allocation4 + $0x20] sm:$0xff] %vm1951, %v1928
    %1957 = vst.msk [vmem:[#allocation4 + $0x28] sm:$0xff] %vm1951, %v1933
    %1958 = vst.msk [vmem:[#allocation4 + $0x30] sm:$0xff] %vm1951, %v1938
    %1959 = vst.msk [vmem:[#allocation4 + $0x38] sm:$0xff] %vm1951, %v1943
    %vm1960 = vcmask 524288
    %1961 = vst.msk [vmem:[#allocation4 + $0x40] sm:$0x1] %vm1960, %v1948
    %v1962 = vld [vmem:[#allocation4] sm:$0xff]
    %v1963 = vld [vmem:[#allocation4 + $0x8] sm:$0xff]
    %v1964 = vld [vmem:[#allocation4 + $0x10] sm:$0xff]
    %v1965 = vld [vmem:[#allocation4 + $0x18] sm:$0xff]
    %v1966 = vld [vmem:[#allocation4 + $0x20] sm:$0xff]
    %v1967 = vld [vmem:[#allocation4 + $0x28] sm:$0xff]
    %v1968 = vld [vmem:[#allocation4 + $0x30] sm:$0xff]
    %v1969 = vld [vmem:[#allocation4 + $0x38] sm:$0x3]
    %s1970 = sld [smem:[#allocation9]]
    %v1971 = vstv %s1970
    %v1972 = vmul.f32 %v1962, %v1971
    %v1973 = vmul.f32 %v1963, %v1971
    %v1974 = vmul.f32 %v1964, %v1971
    %v1975 = vmul.f32 %v1965, %v1971
    %v1976 = vmul.f32 %v1966, %v1971
    %v1977 = vmul.f32 %v1967, %v1971
    %v1978 = vmul.f32 %v1968, %v1971
    %v1979 = vmul.f32 %v1969, %v1971
    %v1980 = vadd.f32 %v1972, 0.0
    %v1981 = vadd.f32 %v1973, 0.0
    %v1982 = vadd.f32 %v1974, 0.0
    %v1983 = vadd.f32 %v1975, 0.0
    %v1984 = vadd.f32 %v1976, 0.0
    %v1985 = vadd.f32 %v1977, 0.0
    %v1986 = vadd.f32 %v1978, 0.0
    %v1987 = vadd.f32 %v1979, 0.0
    %s1988 = sld [smem:[#allocation9 + $0x1]]
    %v1989 = vstv %s1988
    %v1990 = vmul.f32 %v1962, %v1989
    %v1991 = vmul.f32 %v1963, %v1989
    %v1992 = vmul.f32 %v1964, %v1989
    %v1993 = vmul.f32 %v1965, %v1989
    %v1994 = vmul.f32 %v1966, %v1989
    %v1995 = vmul.f32 %v1967, %v1989
    %v1996 = vmul.f32 %v1968, %v1989
    %v1997 = vmul.f32 %v1969, %v1989
    %2006 = vrot.lane.b32.xlu0 %v1990, 127
    %v2007 = vpop.permute.xlu0 %2006
    %2008 = vrot.lane.b32.xlu0 %v1991, 127
    %v2009 = vpop.permute.xlu0 %2008
    %2010 = vrot.lane.b32.xlu0 %v1992, 127
    %v2011 = vpop.permute.xlu0 %2010
    %2012 = vrot.lane.b32.xlu0 %v1993, 127
    %v2013 = vpop.permute.xlu0 %2012
    %2014 = vrot.lane.b32.xlu0 %v1994, 127
    %v2015 = vpop.permute.xlu0 %2014
    %2016 = vrot.lane.b32.xlu0 %v1995, 127
    %v2017 = vpop.permute.xlu0 %2016
    %2018 = vrot.lane.b32.xlu0 %v1996, 127
    %v2019 = vpop.permute.xlu0 %2018
    %2020 = vrot.lane.b32.xlu0 %v1997, 127
    %v2021 = vpop.permute.xlu0 %2020
    %v2030 = vadd.f32 %v1980, %v2007
    %v2031 = vadd.f32 %v1981, %v2009
    %v2032 = vadd.f32 %v1982, %v2011
    %v2033 = vadd.f32 %v1983, %v2013
    %v2034 = vadd.f32 %v1984, %v2015
    %v2035 = vadd.f32 %v1985, %v2017
    %v2036 = vadd.f32 %v1986, %v2019
    %v2037 = vadd.f32 %v1987, %v2021
    %s2038 = sld [smem:[#allocation9 + $0x2]]
    %v2039 = vstv %s2038
    %v2040 = vmul.f32 %v1962, %v2039
    %v2041 = vmul.f32 %v1963, %v2039
    %v2042 = vmul.f32 %v1964, %v2039
    %v2043 = vmul.f32 %v1965, %v2039
    %v2044 = vmul.f32 %v1966, %v2039
    %v2045 = vmul.f32 %v1967, %v2039
    %v2046 = vmul.f32 %v1968, %v2039
    %v2047 = vmul.f32 %v1969, %v2039
    %2056 = vrot.lane.b32.xlu0 %v2040, 126
    %v2057 = vpop.permute.xlu0 %2056
    %2058 = vrot.lane.b32.xlu0 %v2041, 126
    %v2059 = vpop.permute.xlu0 %2058
    %2060 = vrot.lane.b32.xlu0 %v2042, 126
    %v2061 = vpop.permute.xlu0 %2060
    %2062 = vrot.lane.b32.xlu0 %v2043, 126
    %v2063 = vpop.permute.xlu0 %2062
    %2064 = vrot.lane.b32.xlu0 %v2044, 126
    %v2065 = vpop.permute.xlu0 %2064
    %2066 = vrot.lane.b32.xlu0 %v2045, 126
    %v2067 = vpop.permute.xlu0 %2066
    %2068 = vrot.lane.b32.xlu0 %v2046, 126
    %v2069 = vpop.permute.xlu0 %2068
    %2070 = vrot.lane.b32.xlu0 %v2047, 126
    %v2071 = vpop.permute.xlu0 %2070
    %v2080 = vadd.f32 %v2030, %v2057
    %v2081 = vadd.f32 %v2031, %v2059
    %v2082 = vadd.f32 %v2032, %v2061
    %v2083 = vadd.f32 %v2033, %v2063
    %v2084 = vadd.f32 %v2034, %v2065
    %v2085 = vadd.f32 %v2035, %v2067
    %v2086 = vadd.f32 %v2036, %v2069
    %v2087 = vadd.f32 %v2037, %v2071
    %s2088 = sld [smem:[#allocation9 + $0x3]]
    %v2089 = vstv %s2088
    %v2090 = vmul.f32 %v1962, %v2089
    %v2091 = vmul.f32 %v1963, %v2089
    %v2092 = vmul.f32 %v1964, %v2089
    %v2093 = vmul.f32 %v1965, %v2089
    %v2094 = vmul.f32 %v1966, %v2089
    %v2095 = vmul.f32 %v1967, %v2089
    %v2096 = vmul.f32 %v1968, %v2089
    %v2097 = vmul.f32 %v1969, %v2089
    %2106 = vrot.lane.b32.xlu0 %v2090, 125
    %v2107 = vpop.permute.xlu0 %2106
    %2108 = vrot.lane.b32.xlu0 %v2091, 125
    %v2109 = vpop.permute.xlu0 %2108
    %2110 = vrot.lane.b32.xlu0 %v2092, 125
    %v2111 = vpop.permute.xlu0 %2110
    %2112 = vrot.lane.b32.xlu0 %v2093, 125
    %v2113 = vpop.permute.xlu0 %2112
    %2114 = vrot.lane.b32.xlu0 %v2094, 125
    %v2115 = vpop.permute.xlu0 %2114
    %2116 = vrot.lane.b32.xlu0 %v2095, 125
    %v2117 = vpop.permute.xlu0 %2116
    %2118 = vrot.lane.b32.xlu0 %v2096, 125
    %v2119 = vpop.permute.xlu0 %2118
    %2120 = vrot.lane.b32.xlu0 %v2097, 125
    %v2121 = vpop.permute.xlu0 %2120
    %v2130 = vadd.f32 %v2080, %v2107
    %v2131 = vadd.f32 %v2081, %v2109
    %v2132 = vadd.f32 %v2082, %v2111
    %v2133 = vadd.f32 %v2083, %v2113
    %v2134 = vadd.f32 %v2084, %v2115
    %v2135 = vadd.f32 %v2085, %v2117
    %v2136 = vadd.f32 %v2086, %v2119
    %v2137 = vadd.f32 %v2087, %v2121
    %s2138 = sld [smem:[#allocation9 + $0x4]]
    %v2139 = vstv %s2138
    %v2140 = vmul.f32 %v1962, %v2139
    %v2141 = vmul.f32 %v1963, %v2139
    %v2142 = vmul.f32 %v1964, %v2139
    %v2143 = vmul.f32 %v1965, %v2139
    %v2144 = vmul.f32 %v1966, %v2139
    %v2145 = vmul.f32 %v1967, %v2139
    %v2146 = vmul.f32 %v1968, %v2139
    %v2147 = vmul.f32 %v1969, %v2139
    %2156 = vrot.lane.b32.xlu0 %v2140, 124
    %v2157 = vpop.permute.xlu0 %2156
    %2158 = vrot.lane.b32.xlu0 %v2141, 124
    %v2159 = vpop.permute.xlu0 %2158
    %2160 = vrot.lane.b32.xlu0 %v2142, 124
    %v2161 = vpop.permute.xlu0 %2160
    %2162 = vrot.lane.b32.xlu0 %v2143, 124
    %v2163 = vpop.permute.xlu0 %2162
    %2164 = vrot.lane.b32.xlu0 %v2144, 124
    %v2165 = vpop.permute.xlu0 %2164
    %2166 = vrot.lane.b32.xlu0 %v2145, 124
    %v2167 = vpop.permute.xlu0 %2166
    %2168 = vrot.lane.b32.xlu0 %v2146, 124
    %v2169 = vpop.permute.xlu0 %2168
    %2170 = vrot.lane.b32.xlu0 %v2147, 124
    %v2171 = vpop.permute.xlu0 %2170
    %v2180 = vadd.f32 %v2130, %v2157
    %v2181 = vadd.f32 %v2131, %v2159
    %v2182 = vadd.f32 %v2132, %v2161
    %v2183 = vadd.f32 %v2133, %v2163
    %v2184 = vadd.f32 %v2134, %v2165
    %v2185 = vadd.f32 %v2135, %v2167
    %v2186 = vadd.f32 %v2136, %v2169
    %v2187 = vadd.f32 %v2137, %v2171
    %v2188 = vld [vmem:[#allocation4 + $0x1] sm:$0xff]
    %v2189 = vld [vmem:[#allocation4 + $0x9] sm:$0xff]
    %v2190 = vld [vmem:[#allocation4 + $0x11] sm:$0xff]
    %v2191 = vld [vmem:[#allocation4 + $0x19] sm:$0xff]
    %v2192 = vld [vmem:[#allocation4 + $0x21] sm:$0xff]
    %v2193 = vld [vmem:[#allocation4 + $0x29] sm:$0xff]
    %v2194 = vld [vmem:[#allocation4 + $0x31] sm:$0xff]
    %v2195 = vld [vmem:[#allocation4 + $0x39] sm:$0x3]
    %s2196 = sld [smem:[#allocation9 + $0x5]]
    %v2197 = vstv %s2196
    %v2198 = vmul.f32 %v2188, %v2197
    %v2199 = vmul.f32 %v2189, %v2197
    %v2200 = vmul.f32 %v2190, %v2197
    %v2201 = vmul.f32 %v2191, %v2197
    %v2202 = vmul.f32 %v2192, %v2197
    %v2203 = vmul.f32 %v2193, %v2197
    %v2204 = vmul.f32 %v2194, %v2197
    %v2205 = vmul.f32 %v2195, %v2197
    %v2206 = vadd.f32 %v2180, %v2198
    %v2207 = vadd.f32 %v2181, %v2199
    %v2208 = vadd.f32 %v2182, %v2200
    %v2209 = vadd.f32 %v2183, %v2201
    %v2210 = vadd.f32 %v2184, %v2202
    %v2211 = vadd.f32 %v2185, %v2203
    %v2212 = vadd.f32 %v2186, %v2204
    %v2213 = vadd.f32 %v2187, %v2205
    %s2214 = sld [smem:[#allocation9 + $0x6]]
    %v2215 = vstv %s2214
    %v2216 = vmul.f32 %v2188, %v2215
    %v2217 = vmul.f32 %v2189, %v2215
    %v2218 = vmul.f32 %v2190, %v2215
    %v2219 = vmul.f32 %v2191, %v2215
    %v2220 = vmul.f32 %v2192, %v2215
    %v2221 = vmul.f32 %v2193, %v2215
    %v2222 = vmul.f32 %v2194, %v2215
    %v2223 = vmul.f32 %v2195, %v2215
    %2232 = vrot.lane.b32.xlu0 %v2216, 127
    %v2233 = vpop.permute.xlu0 %2232
    %2234 = vrot.lane.b32.xlu0 %v2217, 127
    %v2235 = vpop.permute.xlu0 %2234
    %2236 = vrot.lane.b32.xlu0 %v2218, 127
    %v2237 = vpop.permute.xlu0 %2236
    %2238 = vrot.lane.b32.xlu0 %v2219, 127
    %v2239 = vpop.permute.xlu0 %2238
    %2240 = vrot.lane.b32.xlu0 %v2220, 127
    %v2241 = vpop.permute.xlu0 %2240
    %2242 = vrot.lane.b32.xlu0 %v2221, 127
    %v2243 = vpop.permute.xlu0 %2242
    %2244 = vrot.lane.b32.xlu0 %v2222, 127
    %v2245 = vpop.permute.xlu0 %2244
    %2246 = vrot.lane.b32.xlu0 %v2223, 127
    %v2247 = vpop.permute.xlu0 %2246
    %v2256 = vadd.f32 %v2206, %v2233
    %v2257 = vadd.f32 %v2207, %v2235
    %v2258 = vadd.f32 %v2208, %v2237
    %v2259 = vadd.f32 %v2209, %v2239
    %v2260 = vadd.f32 %v2210, %v2241
    %v2261 = vadd.f32 %v2211, %v2243
    %v2262 = vadd.f32 %v2212, %v2245
    %v2263 = vadd.f32 %v2213, %v2247
    %s2264 = sld [smem:[#allocation9 + $0x7]]
    %v2265 = vstv %s2264
    %v2266 = vmul.f32 %v2188, %v2265
    %v2267 = vmul.f32 %v2189, %v2265
    %v2268 = vmul.f32 %v2190, %v2265
    %v2269 = vmul.f32 %v2191, %v2265
    %v2270 = vmul.f32 %v2192, %v2265
    %v2271 = vmul.f32 %v2193, %v2265
    %v2272 = vmul.f32 %v2194, %v2265
    %v2273 = vmul.f32 %v2195, %v2265
    %2282 = vrot.lane.b32.xlu0 %v2266, 126
    %v2283 = vpop.permute.xlu0 %2282
    %2284 = vrot.lane.b32.xlu0 %v2267, 126
    %v2285 = vpop.permute.xlu0 %2284
    %2286 = vrot.lane.b32.xlu0 %v2268, 126
    %v2287 = vpop.permute.xlu0 %2286
    %2288 = vrot.lane.b32.xlu0 %v2269, 126
    %v2289 = vpop.permute.xlu0 %2288
    %2290 = vrot.lane.b32.xlu0 %v2270, 126
    %v2291 = vpop.permute.xlu0 %2290
    %2292 = vrot.lane.b32.xlu0 %v2271, 126
    %v2293 = vpop.permute.xlu0 %2292
    %2294 = vrot.lane.b32.xlu0 %v2272, 126
    %v2295 = vpop.permute.xlu0 %2294
    %2296 = vrot.lane.b32.xlu0 %v2273, 126
    %v2297 = vpop.permute.xlu0 %2296
    %v2306 = vadd.f32 %v2256, %v2283
    %v2307 = vadd.f32 %v2257, %v2285
    %v2308 = vadd.f32 %v2258, %v2287
    %v2309 = vadd.f32 %v2259, %v2289
    %v2310 = vadd.f32 %v2260, %v2291
    %v2311 = vadd.f32 %v2261, %v2293
    %v2312 = vadd.f32 %v2262, %v2295
    %v2313 = vadd.f32 %v2263, %v2297
    %s2314 = sld [smem:[#allocation9 + $0x8]]
    %v2315 = vstv %s2314
    %v2316 = vmul.f32 %v2188, %v2315
    %v2317 = vmul.f32 %v2189, %v2315
    %v2318 = vmul.f32 %v2190, %v2315
    %v2319 = vmul.f32 %v2191, %v2315
    %v2320 = vmul.f32 %v2192, %v2315
    %v2321 = vmul.f32 %v2193, %v2315
    %v2322 = vmul.f32 %v2194, %v2315
    %v2323 = vmul.f32 %v2195, %v2315
    %2332 = vrot.lane.b32.xlu0 %v2316, 125
    %v2333 = vpop.permute.xlu0 %2332
    %2334 = vrot.lane.b32.xlu0 %v2317, 125
    %v2335 = vpop.permute.xlu0 %2334
    %2336 = vrot.lane.b32.xlu0 %v2318, 125
    %v2337 = vpop.permute.xlu0 %2336
    %2338 = vrot.lane.b32.xlu0 %v2319, 125
    %v2339 = vpop.permute.xlu0 %2338
    %2340 = vrot.lane.b32.xlu0 %v2320, 125
    %v2341 = vpop.permute.xlu0 %2340
    %2342 = vrot.lane.b32.xlu0 %v2321, 125
    %v2343 = vpop.permute.xlu0 %2342
    %2344 = vrot.lane.b32.xlu0 %v2322, 125
    %v2345 = vpop.permute.xlu0 %2344
    %2346 = vrot.lane.b32.xlu0 %v2323, 125
    %v2347 = vpop.permute.xlu0 %2346
    %v2356 = vadd.f32 %v2306, %v2333
    %v2357 = vadd.f32 %v2307, %v2335
    %v2358 = vadd.f32 %v2308, %v2337
    %v2359 = vadd.f32 %v2309, %v2339
    %v2360 = vadd.f32 %v2310, %v2341
    %v2361 = vadd.f32 %v2311, %v2343
    %v2362 = vadd.f32 %v2312, %v2345
    %v2363 = vadd.f32 %v2313, %v2347
    %s2364 = sld [smem:[#allocation9 + $0x9]]
    %v2365 = vstv %s2364
    %v2366 = vmul.f32 %v2188, %v2365
    %v2367 = vmul.f32 %v2189, %v2365
    %v2368 = vmul.f32 %v2190, %v2365
    %v2369 = vmul.f32 %v2191, %v2365
    %v2370 = vmul.f32 %v2192, %v2365
    %v2371 = vmul.f32 %v2193, %v2365
    %v2372 = vmul.f32 %v2194, %v2365
    %v2373 = vmul.f32 %v2195, %v2365
    %2382 = vrot.lane.b32.xlu0 %v2366, 124
    %v2383 = vpop.permute.xlu0 %2382
    %2384 = vrot.lane.b32.xlu0 %v2367, 124
    %v2385 = vpop.permute.xlu0 %2384
    %2386 = vrot.lane.b32.xlu0 %v2368, 124
    %v2387 = vpop.permute.xlu0 %2386
    %2388 = vrot.lane.b32.xlu0 %v2369, 124
    %v2389 = vpop.permute.xlu0 %2388
    %2390 = vrot.lane.b32.xlu0 %v2370, 124
    %v2391 = vpop.permute.xlu0 %2390
    %2392 = vrot.lane.b32.xlu0 %v2371, 124
    %v2393 = vpop.permute.xlu0 %2392
    %2394 = vrot.lane.b32.xlu0 %v2372, 124
    %v2395 = vpop.permute.xlu0 %2394
    %2396 = vrot.lane.b32.xlu0 %v2373, 124
    %v2397 = vpop.permute.xlu0 %2396
    %v2406 = vadd.f32 %v2356, %v2383
    %v2407 = vadd.f32 %v2357, %v2385
    %v2408 = vadd.f32 %v2358, %v2387
    %v2409 = vadd.f32 %v2359, %v2389
    %v2410 = vadd.f32 %v2360, %v2391
    %v2411 = vadd.f32 %v2361, %v2393
    %v2412 = vadd.f32 %v2362, %v2395
    %v2413 = vadd.f32 %v2363, %v2397
    %v2414 = vld [vmem:[#allocation4 + $0x2] sm:$0xff]
    %v2415 = vld [vmem:[#allocation4 + $0xa] sm:$0xff]
    %v2416 = vld [vmem:[#allocation4 + $0x12] sm:$0xff]
    %v2417 = vld [vmem:[#allocation4 + $0x1a] sm:$0xff]
    %v2418 = vld [vmem:[#allocation4 + $0x22] sm:$0xff]
    %v2419 = vld [vmem:[#allocation4 + $0x2a] sm:$0xff]
    %v2420 = vld [vmem:[#allocation4 + $0x32] sm:$0xff]
    %v2421 = vld [vmem:[#allocation4 + $0x3a] sm:$0x3]
    %s2422 = sld [smem:[#allocation9 + $0xa]]
    %v2423 = vstv %s2422
    %v2424 = vmul.f32 %v2414, %v2423
    %v2425 = vmul.f32 %v2415, %v2423
    %v2426 = vmul.f32 %v2416, %v2423
    %v2427 = vmul.f32 %v2417, %v2423
    %v2428 = vmul.f32 %v2418, %v2423
    %v2429 = vmul.f32 %v2419, %v2423
    %v2430 = vmul.f32 %v2420, %v2423
    %v2431 = vmul.f32 %v2421, %v2423
    %v2432 = vadd.f32 %v2406, %v2424
    %v2433 = vadd.f32 %v2407, %v2425
    %v2434 = vadd.f32 %v2408, %v2426
    %v2435 = vadd.f32 %v2409, %v2427
    %v2436 = vadd.f32 %v2410, %v2428
    %v2437 = vadd.f32 %v2411, %v2429
    %v2438 = vadd.f32 %v2412, %v2430
    %v2439 = vadd.f32 %v2413, %v2431
    %s2440 = sld [smem:[#allocation9 + $0xb]]
    %v2441 = vstv %s2440
    %v2442 = vmul.f32 %v2414, %v2441
    %v2443 = vmul.f32 %v2415, %v2441
    %v2444 = vmul.f32 %v2416, %v2441
    %v2445 = vmul.f32 %v2417, %v2441
    %v2446 = vmul.f32 %v2418, %v2441
    %v2447 = vmul.f32 %v2419, %v2441
    %v2448 = vmul.f32 %v2420, %v2441
    %v2449 = vmul.f32 %v2421, %v2441
    %2458 = vrot.lane.b32.xlu0 %v2442, 127
    %v2459 = vpop.permute.xlu0 %2458
    %2460 = vrot.lane.b32.xlu0 %v2443, 127
    %v2461 = vpop.permute.xlu0 %2460
    %2462 = vrot.lane.b32.xlu0 %v2444, 127
    %v2463 = vpop.permute.xlu0 %2462
    %2464 = vrot.lane.b32.xlu0 %v2445, 127
    %v2465 = vpop.permute.xlu0 %2464
    %2466 = vrot.lane.b32.xlu0 %v2446, 127
    %v2467 = vpop.permute.xlu0 %2466
    %2468 = vrot.lane.b32.xlu0 %v2447, 127
    %v2469 = vpop.permute.xlu0 %2468
    %2470 = vrot.lane.b32.xlu0 %v2448, 127
    %v2471 = vpop.permute.xlu0 %2470
    %2472 = vrot.lane.b32.xlu0 %v2449, 127
    %v2473 = vpop.permute.xlu0 %2472
    %v2482 = vadd.f32 %v2432, %v2459
    %v2483 = vadd.f32 %v2433, %v2461
    %v2484 = vadd.f32 %v2434, %v2463
    %v2485 = vadd.f32 %v2435, %v2465
    %v2486 = vadd.f32 %v2436, %v2467
    %v2487 = vadd.f32 %v2437, %v2469
    %v2488 = vadd.f32 %v2438, %v2471
    %v2489 = vadd.f32 %v2439, %v2473
    %s2490 = sld [smem:[#allocation9 + $0xc]]
    %v2491 = vstv %s2490
    %v2492 = vmul.f32 %v2414, %v2491
    %v2493 = vmul.f32 %v2415, %v2491
    %v2494 = vmul.f32 %v2416, %v2491
    %v2495 = vmul.f32 %v2417, %v2491
    %v2496 = vmul.f32 %v2418, %v2491
    %v2497 = vmul.f32 %v2419, %v2491
    %v2498 = vmul.f32 %v2420, %v2491
    %v2499 = vmul.f32 %v2421, %v2491
    %2508 = vrot.lane.b32.xlu0 %v2492, 126
    %v2509 = vpop.permute.xlu0 %2508
    %2510 = vrot.lane.b32.xlu0 %v2493, 126
    %v2511 = vpop.permute.xlu0 %2510
    %2512 = vrot.lane.b32.xlu0 %v2494, 126
    %v2513 = vpop.permute.xlu0 %2512
    %2514 = vrot.lane.b32.xlu0 %v2495, 126
    %v2515 = vpop.permute.xlu0 %2514
    %2516 = vrot.lane.b32.xlu0 %v2496, 126
    %v2517 = vpop.permute.xlu0 %2516
    %2518 = vrot.lane.b32.xlu0 %v2497, 126
    %v2519 = vpop.permute.xlu0 %2518
    %2520 = vrot.lane.b32.xlu0 %v2498, 126
    %v2521 = vpop.permute.xlu0 %2520
    %2522 = vrot.lane.b32.xlu0 %v2499, 126
    %v2523 = vpop.permute.xlu0 %2522
    %v2532 = vadd.f32 %v2482, %v2509
    %v2533 = vadd.f32 %v2483, %v2511
    %v2534 = vadd.f32 %v2484, %v2513
    %v2535 = vadd.f32 %v2485, %v2515
    %v2536 = vadd.f32 %v2486, %v2517
    %v2537 = vadd.f32 %v2487, %v2519
    %v2538 = vadd.f32 %v2488, %v2521
    %v2539 = vadd.f32 %v2489, %v2523
    %s2540 = sld [smem:[#allocation9 + $0xd]]
    %v2541 = vstv %s2540
    %v2542 = vmul.f32 %v2414, %v2541
    %v2543 = vmul.f32 %v2415, %v2541
    %v2544 = vmul.f32 %v2416, %v2541
    %v2545 = vmul.f32 %v2417, %v2541
    %v2546 = vmul.f32 %v2418, %v2541
    %v2547 = vmul.f32 %v2419, %v2541
    %v2548 = vmul.f32 %v2420, %v2541
    %v2549 = vmul.f32 %v2421, %v2541
    %2558 = vrot.lane.b32.xlu0 %v2542, 125
    %v2559 = vpop.permute.xlu0 %2558
    %2560 = vrot.lane.b32.xlu0 %v2543, 125
    %v2561 = vpop.permute.xlu0 %2560
    %2562 = vrot.lane.b32.xlu0 %v2544, 125
    %v2563 = vpop.permute.xlu0 %2562
    %2564 = vrot.lane.b32.xlu0 %v2545, 125
    %v2565 = vpop.permute.xlu0 %2564
    %2566 = vrot.lane.b32.xlu0 %v2546, 125
    %v2567 = vpop.permute.xlu0 %2566
    %2568 = vrot.lane.b32.xlu0 %v2547, 125
    %v2569 = vpop.permute.xlu0 %2568
    %2570 = vrot.lane.b32.xlu0 %v2548, 125
    %v2571 = vpop.permute.xlu0 %2570
    %2572 = vrot.lane.b32.xlu0 %v2549, 125
    %v2573 = vpop.permute.xlu0 %2572
    %v2582 = vadd.f32 %v2532, %v2559
    %v2583 = vadd.f32 %v2533, %v2561
    %v2584 = vadd.f32 %v2534, %v2563
    %v2585 = vadd.f32 %v2535, %v2565
    %v2586 = vadd.f32 %v2536, %v2567
    %v2587 = vadd.f32 %v2537, %v2569
    %v2588 = vadd.f32 %v2538, %v2571
    %v2589 = vadd.f32 %v2539, %v2573
    %s2590 = sld [smem:[#allocation9 + $0xe]]
    %v2591 = vstv %s2590
    %v2592 = vmul.f32 %v2414, %v2591
    %v2593 = vmul.f32 %v2415, %v2591
    %v2594 = vmul.f32 %v2416, %v2591
    %v2595 = vmul.f32 %v2417, %v2591
    %v2596 = vmul.f32 %v2418, %v2591
    %v2597 = vmul.f32 %v2419, %v2591
    %v2598 = vmul.f32 %v2420, %v2591
    %v2599 = vmul.f32 %v2421, %v2591
    %2608 = vrot.lane.b32.xlu0 %v2592, 124
    %v2609 = vpop.permute.xlu0 %2608
    %2610 = vrot.lane.b32.xlu0 %v2593, 124
    %v2611 = vpop.permute.xlu0 %2610
    %2612 = vrot.lane.b32.xlu0 %v2594, 124
    %v2613 = vpop.permute.xlu0 %2612
    %2614 = vrot.lane.b32.xlu0 %v2595, 124
    %v2615 = vpop.permute.xlu0 %2614
    %2616 = vrot.lane.b32.xlu0 %v2596, 124
    %v2617 = vpop.permute.xlu0 %2616
    %2618 = vrot.lane.b32.xlu0 %v2597, 124
    %v2619 = vpop.permute.xlu0 %2618
    %2620 = vrot.lane.b32.xlu0 %v2598, 124
    %v2621 = vpop.permute.xlu0 %2620
    %2622 = vrot.lane.b32.xlu0 %v2599, 124
    %v2623 = vpop.permute.xlu0 %2622
    %v2632 = vadd.f32 %v2582, %v2609
    %v2633 = vadd.f32 %v2583, %v2611
    %v2634 = vadd.f32 %v2584, %v2613
    %v2635 = vadd.f32 %v2585, %v2615
    %v2636 = vadd.f32 %v2586, %v2617
    %v2637 = vadd.f32 %v2587, %v2619
    %v2638 = vadd.f32 %v2588, %v2621
    %v2639 = vadd.f32 %v2589, %v2623
    %v2640 = vld [vmem:[#allocation4 + $0x3] sm:$0xff]
    %v2641 = vld [vmem:[#allocation4 + $0xb] sm:$0xff]
    %v2642 = vld [vmem:[#allocation4 + $0x13] sm:$0xff]
    %v2643 = vld [vmem:[#allocation4 + $0x1b] sm:$0xff]
    %v2644 = vld [vmem:[#allocation4 + $0x23] sm:$0xff]
    %v2645 = vld [vmem:[#allocation4 + $0x2b] sm:$0xff]
    %v2646 = vld [vmem:[#allocation4 + $0x33] sm:$0xff]
    %v2647 = vld [vmem:[#allocation4 + $0x3b] sm:$0x3]
    %s2648 = sld [smem:[#allocation9 + $0xf]]
    %v2649 = vstv %s2648
    %v2650 = vmul.f32 %v2640, %v2649
    %v2651 = vmul.f32 %v2641, %v2649
    %v2652 = vmul.f32 %v2642, %v2649
    %v2653 = vmul.f32 %v2643, %v2649
    %v2654 = vmul.f32 %v2644, %v2649
    %v2655 = vmul.f32 %v2645, %v2649
    %v2656 = vmul.f32 %v2646, %v2649
    %v2657 = vmul.f32 %v2647, %v2649
    %v2658 = vadd.f32 %v2632, %v2650
    %v2659 = vadd.f32 %v2633, %v2651
    %v2660 = vadd.f32 %v2634, %v2652
    %v2661 = vadd.f32 %v2635, %v2653
    %v2662 = vadd.f32 %v2636, %v2654
    %v2663 = vadd.f32 %v2637, %v2655
    %v2664 = vadd.f32 %v2638, %v2656
    %v2665 = vadd.f32 %v2639, %v2657
    %s2666 = sld [smem:[#allocation9 + $0x10]]
    %v2667 = vstv %s2666
    %v2668 = vmul.f32 %v2640, %v2667
    %v2669 = vmul.f32 %v2641, %v2667
    %v2670 = vmul.f32 %v2642, %v2667
    %v2671 = vmul.f32 %v2643, %v2667
    %v2672 = vmul.f32 %v2644, %v2667
    %v2673 = vmul.f32 %v2645, %v2667
    %v2674 = vmul.f32 %v2646, %v2667
    %v2675 = vmul.f32 %v2647, %v2667
    %2684 = vrot.lane.b32.xlu0 %v2668, 127
    %v2685 = vpop.permute.xlu0 %2684
    %2686 = vrot.lane.b32.xlu0 %v2669, 127
    %v2687 = vpop.permute.xlu0 %2686
    %2688 = vrot.lane.b32.xlu0 %v2670, 127
    %v2689 = vpop.permute.xlu0 %2688
    %2690 = vrot.lane.b32.xlu0 %v2671, 127
    %v2691 = vpop.permute.xlu0 %2690
    %2692 = vrot.lane.b32.xlu0 %v2672, 127
    %v2693 = vpop.permute.xlu0 %2692
    %2694 = vrot.lane.b32.xlu0 %v2673, 127
    %v2695 = vpop.permute.xlu0 %2694
    %2696 = vrot.lane.b32.xlu0 %v2674, 127
    %v2697 = vpop.permute.xlu0 %2696
    %2698 = vrot.lane.b32.xlu0 %v2675, 127
    %v2699 = vpop.permute.xlu0 %2698
    %v2708 = vadd.f32 %v2658, %v2685
    %v2709 = vadd.f32 %v2659, %v2687
    %v2710 = vadd.f32 %v2660, %v2689
    %v2711 = vadd.f32 %v2661, %v2691
    %v2712 = vadd.f32 %v2662, %v2693
    %v2713 = vadd.f32 %v2663, %v2695
    %v2714 = vadd.f32 %v2664, %v2697
    %v2715 = vadd.f32 %v2665, %v2699
    %s2716 = sld [smem:[#allocation9 + $0x11]]
    %v2717 = vstv %s2716
    %v2718 = vmul.f32 %v2640, %v2717
    %v2719 = vmul.f32 %v2641, %v2717
    %v2720 = vmul.f32 %v2642, %v2717
    %v2721 = vmul.f32 %v2643, %v2717
    %v2722 = vmul.f32 %v2644, %v2717
    %v2723 = vmul.f32 %v2645, %v2717
    %v2724 = vmul.f32 %v2646, %v2717
    %v2725 = vmul.f32 %v2647, %v2717
    %2734 = vrot.lane.b32.xlu0 %v2718, 126
    %v2735 = vpop.permute.xlu0 %2734
    %2736 = vrot.lane.b32.xlu0 %v2719, 126
    %v2737 = vpop.permute.xlu0 %2736
    %2738 = vrot.lane.b32.xlu0 %v2720, 126
    %v2739 = vpop.permute.xlu0 %2738
    %2740 = vrot.lane.b32.xlu0 %v2721, 126
    %v2741 = vpop.permute.xlu0 %2740
    %2742 = vrot.lane.b32.xlu0 %v2722, 126
    %v2743 = vpop.permute.xlu0 %2742
    %2744 = vrot.lane.b32.xlu0 %v2723, 126
    %v2745 = vpop.permute.xlu0 %2744
    %2746 = vrot.lane.b32.xlu0 %v2724, 126
    %v2747 = vpop.permute.xlu0 %2746
    %2748 = vrot.lane.b32.xlu0 %v2725, 126
    %v2749 = vpop.permute.xlu0 %2748
    %v2758 = vadd.f32 %v2708, %v2735
    %v2759 = vadd.f32 %v2709, %v2737
    %v2760 = vadd.f32 %v2710, %v2739
    %v2761 = vadd.f32 %v2711, %v2741
    %v2762 = vadd.f32 %v2712, %v2743
    %v2763 = vadd.f32 %v2713, %v2745
    %v2764 = vadd.f32 %v2714, %v2747
    %v2765 = vadd.f32 %v2715, %v2749
    %s2766 = sld [smem:[#allocation9 + $0x12]]
    %v2767 = vstv %s2766
    %v2768 = vmul.f32 %v2640, %v2767
    %v2769 = vmul.f32 %v2641, %v2767
    %v2770 = vmul.f32 %v2642, %v2767
    %v2771 = vmul.f32 %v2643, %v2767
    %v2772 = vmul.f32 %v2644, %v2767
    %v2773 = vmul.f32 %v2645, %v2767
    %v2774 = vmul.f32 %v2646, %v2767
    %v2775 = vmul.f32 %v2647, %v2767
    %2784 = vrot.lane.b32.xlu0 %v2768, 125
    %v2785 = vpop.permute.xlu0 %2784
    %2786 = vrot.lane.b32.xlu0 %v2769, 125
    %v2787 = vpop.permute.xlu0 %2786
    %2788 = vrot.lane.b32.xlu0 %v2770, 125
    %v2789 = vpop.permute.xlu0 %2788
    %2790 = vrot.lane.b32.xlu0 %v2771, 125
    %v2791 = vpop.permute.xlu0 %2790
    %2792 = vrot.lane.b32.xlu0 %v2772, 125
    %v2793 = vpop.permute.xlu0 %2792
    %2794 = vrot.lane.b32.xlu0 %v2773, 125
    %v2795 = vpop.permute.xlu0 %2794
    %2796 = vrot.lane.b32.xlu0 %v2774, 125
    %v2797 = vpop.permute.xlu0 %2796
    %2798 = vrot.lane.b32.xlu0 %v2775, 125
    %v2799 = vpop.permute.xlu0 %2798
    %v2808 = vadd.f32 %v2758, %v2785
    %v2809 = vadd.f32 %v2759, %v2787
    %v2810 = vadd.f32 %v2760, %v2789
    %v2811 = vadd.f32 %v2761, %v2791
    %v2812 = vadd.f32 %v2762, %v2793
    %v2813 = vadd.f32 %v2763, %v2795
    %v2814 = vadd.f32 %v2764, %v2797
    %v2815 = vadd.f32 %v2765, %v2799
    %s2816 = sld [smem:[#allocation9 + $0x13]]
    %v2817 = vstv %s2816
    %v2818 = vmul.f32 %v2640, %v2817
    %v2819 = vmul.f32 %v2641, %v2817
    %v2820 = vmul.f32 %v2642, %v2817
    %v2821 = vmul.f32 %v2643, %v2817
    %v2822 = vmul.f32 %v2644, %v2817
    %v2823 = vmul.f32 %v2645, %v2817
    %v2824 = vmul.f32 %v2646, %v2817
    %v2825 = vmul.f32 %v2647, %v2817
    %2834 = vrot.lane.b32.xlu0 %v2818, 124
    %v2835 = vpop.permute.xlu0 %2834
    %2836 = vrot.lane.b32.xlu0 %v2819, 124
    %v2837 = vpop.permute.xlu0 %2836
    %2838 = vrot.lane.b32.xlu0 %v2820, 124
    %v2839 = vpop.permute.xlu0 %2838
    %2840 = vrot.lane.b32.xlu0 %v2821, 124
    %v2841 = vpop.permute.xlu0 %2840
    %2842 = vrot.lane.b32.xlu0 %v2822, 124
    %v2843 = vpop.permute.xlu0 %2842
    %2844 = vrot.lane.b32.xlu0 %v2823, 124
    %v2845 = vpop.permute.xlu0 %2844
    %2846 = vrot.lane.b32.xlu0 %v2824, 124
    %v2847 = vpop.permute.xlu0 %2846
    %2848 = vrot.lane.b32.xlu0 %v2825, 124
    %v2849 = vpop.permute.xlu0 %2848
    %v2858 = vadd.f32 %v2808, %v2835
    %v2859 = vadd.f32 %v2809, %v2837
    %v2860 = vadd.f32 %v2810, %v2839
    %v2861 = vadd.f32 %v2811, %v2841
    %v2862 = vadd.f32 %v2812, %v2843
    %v2863 = vadd.f32 %v2813, %v2845
    %v2864 = vadd.f32 %v2814, %v2847
    %v2865 = vadd.f32 %v2815, %v2849
    %v2866 = vld [vmem:[#allocation4 + $0x4] sm:$0xff]
    %v2867 = vld [vmem:[#allocation4 + $0xc] sm:$0xff]
    %v2868 = vld [vmem:[#allocation4 + $0x14] sm:$0xff]
    %v2869 = vld [vmem:[#allocation4 + $0x1c] sm:$0xff]
    %v2870 = vld [vmem:[#allocation4 + $0x24] sm:$0xff]
    %v2871 = vld [vmem:[#allocation4 + $0x2c] sm:$0xff]
    %v2872 = vld [vmem:[#allocation4 + $0x34] sm:$0xff]
    %v2873 = vld [vmem:[#allocation4 + $0x3c] sm:$0x3]
    %s2874 = sld [smem:[#allocation9 + $0x14]]
    %v2875 = vstv %s2874
    %v2876 = vmul.f32 %v2866, %v2875
    %v2877 = vmul.f32 %v2867, %v2875
    %v2878 = vmul.f32 %v2868, %v2875
    %v2879 = vmul.f32 %v2869, %v2875
    %v2880 = vmul.f32 %v2870, %v2875
    %v2881 = vmul.f32 %v2871, %v2875
    %v2882 = vmul.f32 %v2872, %v2875
    %v2883 = vmul.f32 %v2873, %v2875
    %v2884 = vadd.f32 %v2858, %v2876
    %v2885 = vadd.f32 %v2859, %v2877
    %v2886 = vadd.f32 %v2860, %v2878
    %v2887 = vadd.f32 %v2861, %v2879
    %v2888 = vadd.f32 %v2862, %v2880
    %v2889 = vadd.f32 %v2863, %v2881
    %v2890 = vadd.f32 %v2864, %v2882
    %v2891 = vadd.f32 %v2865, %v2883
    %s2892 = sld [smem:[#allocation9 + $0x15]]
    %v2893 = vstv %s2892
    %v2894 = vmul.f32 %v2866, %v2893
    %v2895 = vmul.f32 %v2867, %v2893
    %v2896 = vmul.f32 %v2868, %v2893
    %v2897 = vmul.f32 %v2869, %v2893
    %v2898 = vmul.f32 %v2870, %v2893
    %v2899 = vmul.f32 %v2871, %v2893
    %v2900 = vmul.f32 %v2872, %v2893
    %v2901 = vmul.f32 %v2873, %v2893
    %2910 = vrot.lane.b32.xlu0 %v2894, 127
    %v2911 = vpop.permute.xlu0 %2910
    %2912 = vrot.lane.b32.xlu0 %v2895, 127
    %v2913 = vpop.permute.xlu0 %2912
    %2914 = vrot.lane.b32.xlu0 %v2896, 127
    %v2915 = vpop.permute.xlu0 %2914
    %2916 = vrot.lane.b32.xlu0 %v2897, 127
    %v2917 = vpop.permute.xlu0 %2916
    %2918 = vrot.lane.b32.xlu0 %v2898, 127
    %v2919 = vpop.permute.xlu0 %2918
    %2920 = vrot.lane.b32.xlu0 %v2899, 127
    %v2921 = vpop.permute.xlu0 %2920
    %2922 = vrot.lane.b32.xlu0 %v2900, 127
    %v2923 = vpop.permute.xlu0 %2922
    %2924 = vrot.lane.b32.xlu0 %v2901, 127
    %v2925 = vpop.permute.xlu0 %2924
    %v2934 = vadd.f32 %v2884, %v2911
    %v2935 = vadd.f32 %v2885, %v2913
    %v2936 = vadd.f32 %v2886, %v2915
    %v2937 = vadd.f32 %v2887, %v2917
    %v2938 = vadd.f32 %v2888, %v2919
    %v2939 = vadd.f32 %v2889, %v2921
    %v2940 = vadd.f32 %v2890, %v2923
    %v2941 = vadd.f32 %v2891, %v2925
    %s2942 = sld [smem:[#allocation9 + $0x16]]
    %v2943 = vstv %s2942
    %v2944 = vmul.f32 %v2866, %v2943
    %v2945 = vmul.f32 %v2867, %v2943
    %v2946 = vmul.f32 %v2868, %v2943
    %v2947 = vmul.f32 %v2869, %v2943
    %v2948 = vmul.f32 %v2870, %v2943
    %v2949 = vmul.f32 %v2871, %v2943
    %v2950 = vmul.f32 %v2872, %v2943
    %v2951 = vmul.f32 %v2873, %v2943
    %2960 = vrot.lane.b32.xlu0 %v2944, 126
    %v2961 = vpop.permute.xlu0 %2960
    %2962 = vrot.lane.b32.xlu0 %v2945, 126
    %v2963 = vpop.permute.xlu0 %2962
    %2964 = vrot.lane.b32.xlu0 %v2946, 126
    %v2965 = vpop.permute.xlu0 %2964
    %2966 = vrot.lane.b32.xlu0 %v2947, 126
    %v2967 = vpop.permute.xlu0 %2966
    %2968 = vrot.lane.b32.xlu0 %v2948, 126
    %v2969 = vpop.permute.xlu0 %2968
    %2970 = vrot.lane.b32.xlu0 %v2949, 126
    %v2971 = vpop.permute.xlu0 %2970
    %2972 = vrot.lane.b32.xlu0 %v2950, 126
    %v2973 = vpop.permute.xlu0 %2972
    %2974 = vrot.lane.b32.xlu0 %v2951, 126
    %v2975 = vpop.permute.xlu0 %2974
    %v2984 = vadd.f32 %v2934, %v2961
    %v2985 = vadd.f32 %v2935, %v2963
    %v2986 = vadd.f32 %v2936, %v2965
    %v2987 = vadd.f32 %v2937, %v2967
    %v2988 = vadd.f32 %v2938, %v2969
    %v2989 = vadd.f32 %v2939, %v2971
    %v2990 = vadd.f32 %v2940, %v2973
    %v2991 = vadd.f32 %v2941, %v2975
    %s2992 = sld [smem:[#allocation9 + $0x17]]
    %v2993 = vstv %s2992
    %v2994 = vmul.f32 %v2866, %v2993
    %v2995 = vmul.f32 %v2867, %v2993
    %v2996 = vmul.f32 %v2868, %v2993
    %v2997 = vmul.f32 %v2869, %v2993
    %v2998 = vmul.f32 %v2870, %v2993
    %v2999 = vmul.f32 %v2871, %v2993
    %v3000 = vmul.f32 %v2872, %v2993
    %v3001 = vmul.f32 %v2873, %v2993
    %3010 = vrot.lane.b32.xlu0 %v2994, 125
    %v3011 = vpop.permute.xlu0 %3010
    %3012 = vrot.lane.b32.xlu0 %v2995, 125
    %v3013 = vpop.permute.xlu0 %3012
    %3014 = vrot.lane.b32.xlu0 %v2996, 125
    %v3015 = vpop.permute.xlu0 %3014
    %3016 = vrot.lane.b32.xlu0 %v2997, 125
    %v3017 = vpop.permute.xlu0 %3016
    %3018 = vrot.lane.b32.xlu0 %v2998, 125
    %v3019 = vpop.permute.xlu0 %3018
    %3020 = vrot.lane.b32.xlu0 %v2999, 125
    %v3021 = vpop.permute.xlu0 %3020
    %3022 = vrot.lane.b32.xlu0 %v3000, 125
    %v3023 = vpop.permute.xlu0 %3022
    %3024 = vrot.lane.b32.xlu0 %v3001, 125
    %v3025 = vpop.permute.xlu0 %3024
    %v3034 = vadd.f32 %v2984, %v3011
    %v3035 = vadd.f32 %v2985, %v3013
    %v3036 = vadd.f32 %v2986, %v3015
    %v3037 = vadd.f32 %v2987, %v3017
    %v3038 = vadd.f32 %v2988, %v3019
    %v3039 = vadd.f32 %v2989, %v3021
    %v3040 = vadd.f32 %v2990, %v3023
    %v3041 = vadd.f32 %v2991, %v3025
    %s3042 = sld [smem:[#allocation9 + $0x18]]
    %v3043 = vstv %s3042
    %v3044 = vmul.f32 %v2866, %v3043
    %v3045 = vmul.f32 %v2867, %v3043
    %v3046 = vmul.f32 %v2868, %v3043
    %v3047 = vmul.f32 %v2869, %v3043
    %v3048 = vmul.f32 %v2870, %v3043
    %v3049 = vmul.f32 %v2871, %v3043
    %v3050 = vmul.f32 %v2872, %v3043
    %v3051 = vmul.f32 %v2873, %v3043
    %3060 = vrot.lane.b32.xlu0 %v3044, 124
    %v3061 = vpop.permute.xlu0 %3060
    %3062 = vrot.lane.b32.xlu0 %v3045, 124
    %v3063 = vpop.permute.xlu0 %3062
    %3064 = vrot.lane.b32.xlu0 %v3046, 124
    %v3065 = vpop.permute.xlu0 %3064
    %3066 = vrot.lane.b32.xlu0 %v3047, 124
    %v3067 = vpop.permute.xlu0 %3066
    %3068 = vrot.lane.b32.xlu0 %v3048, 124
    %v3069 = vpop.permute.xlu0 %3068
    %3070 = vrot.lane.b32.xlu0 %v3049, 124
    %v3071 = vpop.permute.xlu0 %3070
    %3072 = vrot.lane.b32.xlu0 %v3050, 124
    %v3073 = vpop.permute.xlu0 %3072
    %3074 = vrot.lane.b32.xlu0 %v3051, 124
    %v3075 = vpop.permute.xlu0 %3074
    %v3084 = vadd.f32 %v3034, %v3061
    %v3085 = vadd.f32 %v3035, %v3063
    %v3086 = vadd.f32 %v3036, %v3065
    %v3087 = vadd.f32 %v3037, %v3067
    %v3088 = vadd.f32 %v3038, %v3069
    %v3089 = vadd.f32 %v3039, %v3071
    %v3090 = vadd.f32 %v3040, %v3073
    %v3091 = vadd.f32 %v3041, %v3075
    %vm3092 = vcmask 457728
    %3093 = vst.msk [vmem:[%s5] sm:$0xff] %vm3092, %v3084
    %3094 = vst.msk [vmem:[%s5 + $0x8] sm:$0xff] %vm3092, %v3085
    %3095 = vst.msk [vmem:[%s5 + $0x10] sm:$0xff] %vm3092, %v3086
    %3096 = vst.msk [vmem:[%s5 + $0x18] sm:$0xff] %vm3092, %v3087
    %3097 = vst.msk [vmem:[%s5 + $0x20] sm:$0xff] %vm3092, %v3088
    %3098 = vst.msk [vmem:[%s5 + $0x28] sm:$0xff] %vm3092, %v3089
    %3099 = vst.msk [vmem:[%s5 + $0x30] sm:$0xff] %vm3092, %v3090
    %vm3100 = vcmask 451584
    %3101 = vst.msk [vmem:[%s5 + $0x38] sm:$0x3] %vm3100, %v3091
    // Predicated region
    $region34: #{a3c_lstm_forward.5} parent=1 // pred_check
      _
    $region35: #{a3c_lstm_forward.5} parent=1 // pred_check_branch
      %3103 = sbr.rel (0) target = $region37
    $region36: #{a3c_lstm_forward.5} parent=1 // pred_region
      _
    $region37: #{a3c_lstm_forward.5} parent=1 // pred_fallthru
      _
    // Predicated region
    $region38: #{a3c_lstm_forward.5} parent=1 // pred_check
      _
    $region39: #{a3c_lstm_forward.5} parent=1 // pred_check_branch
      %3105 = sbr.rel (0) target = $region41
    $region40: #{a3c_lstm_forward.5} parent=1 // pred_region
      _
    $region41: #{a3c_lstm_forward.5} parent=1 // pred_fallthru
      _
    %3106 = vsyncpa [#allocation6], 1
    %3107 = vsyncpa [#allocation8], 1

// kernel: a3c_lstm_forward.3
$region0: #{a3c_lstm_forward.3}
  #allocation0 [shape = 'u32[]', space=smem, size = 0x4, offset = 0x4, fixed_abs, tag = 'smem constant byte address 0x4 - core index']
  #allocation1 [shape = 'u32[144,128]{1,0:T(1,128)}', space=vmem, size = 0x12000, scoped, tag = 'internal scratch']
  #allocation2 [shape = 'f32[34,30,160]{2,1,0:T(8,128)}', space=vmem, size = 0x110000, scoped, tag = 'scratch operand']
  #allocation3 [shape = 'f32[17,14,128]{2,1,0:T(8,128)}', space=vmem, size = 0x22000, scoped, tag = 'scratch operand']
  #allocation4 [shape = 'f32[9,7,192]{2,1,0:T(8,128)}', space=vmem, size = 0x12000, scoped, tag = 'scratch operand']
  #allocation5 [shape = 'f32[64,32]{1,0:T(8,128)}', space=vmem, size = 0x8000, scoped, tag = 'scratch operand']
  #allocation6 [shape = 'f32[30,32]{1,0:T(8,128)}', space=vmem, size = 0x4000, scoped, tag = 'scratch operand']
  #allocation7 [shape = 'f32[14,64]{1,0:T(8,128)}', space=vmem, size = 0x2000, scoped, tag = 'scratch operand']
  #allocation8 [shape = 'f32[7,64]{1,0:T(8,128)}', space=vmem, size = 0x1000, scoped, tag = 'scratch operand']
  %s0 = inlined_call_operand.vmem [shape: f32[4096,100], index: 0, kind: input, shape index: {}]
  %s1 = inlined_call_operand.vmem [shape: f32[100,32], index: 1, kind: input, shape index: {}]
  %s2 = inlined_call_operand.vmem [shape: f32[1,32], index: 2, kind: input, shape index: {}]
  %s3 = inlined_call_operand.vmem [shape: f32[5,160,32], index: 3, kind: input, shape index: {}]
  %s4 = inlined_call_operand.vmem [shape: f32[1,32], index: 4, kind: input, shape index: {}]
  %s5 = inlined_call_operand.vmem [shape: f32[4,128,64], index: 5, kind: input, shape index: {}]
  %s6 = inlined_call_operand.vmem [shape: f32[1,64], index: 6, kind: input, shape index: {}]
  %s7 = inlined_call_operand.vmem [shape: f32[3,192,64], index: 7, kind: input, shape index: {}]
  %s8 = inlined_call_operand.vmem [shape: f32[1,64], index: 8, kind: input, shape index: {}]
  %s9 = inlined_call_operand.vmem [shape: f32[3,3,64], index: 9, kind: output, shape index: {}]
  %s10 = sld [smem:[#allocation0]]
  $region74: #{a3c_lstm_forward.3} parent=0
    _
  %s12 = ssub.s32 1, %s10
  %s13 = scalar_select 0, %s12, %s10
  // Predicated region
  $region2: #{a3c_lstm_forward.3} parent=0 // pred_check
    _
  $region3: #{a3c_lstm_forward.3} parent=0 // pred_check_branch
    %15 = sbr.rel (0) target = $region5
  $region4: #{a3c_lstm_forward.3} parent=0 // pred_region
    _
  $region5: #{a3c_lstm_forward.3} parent=0 // pred_fallthru
    _
  // Predicated region
  $region6: #{a3c_lstm_forward.3} parent=0 // pred_check
    _
  $region7: #{a3c_lstm_forward.3} parent=0 // pred_check_branch
    %17 = sbr.rel (0) target = $region9
  $region8: #{a3c_lstm_forward.3} parent=0 // pred_region
    _
  $region9: #{a3c_lstm_forward.3} parent=0 // pred_fallthru
    _
  // Predicated region
  $region10: #{a3c_lstm_forward.3} parent=0 // pred_check
    _
  $region11: #{a3c_lstm_forward.3} parent=0 // pred_check_branch
    %19 = sbr.rel (0) target = $region13
  $region12: #{a3c_lstm_forward.3} parent=0 // pred_region
    _
  $region13: #{a3c_lstm_forward.3} parent=0 // pred_fallthru
    _
  // Predicated region
  $region14: #{a3c_lstm_forward.3} parent=0 // pred_check
    _
  $region15: #{a3c_lstm_forward.3} parent=0 // pred_check_branch
    %21 = sbr.rel (0) target = $region17
  $region16: #{a3c_lstm_forward.3} parent=0 // pred_region
    _
  $region17: #{a3c_lstm_forward.3} parent=0 // pred_fallthru
    _
  // Predicated region
  $region18: #{a3c_lstm_forward.3} parent=0 // pred_check
    _
  $region19: #{a3c_lstm_forward.3} parent=0 // pred_check_branch
    %23 = sbr.rel (0) target = $region21
  $region20: #{a3c_lstm_forward.3} parent=0 // pred_region
    _
  $region21: #{a3c_lstm_forward.3} parent=0 // pred_fallthru
    _
  // Predicated region
  $region22: #{a3c_lstm_forward.3} parent=0 // pred_check
    _
  $region23: #{a3c_lstm_forward.3} parent=0 // pred_check_branch
    %25 = sbr.rel (0) target = $region25
  $region24: #{a3c_lstm_forward.3} parent=0 // pred_region
    _
  $region25: #{a3c_lstm_forward.3} parent=0 // pred_fallthru
    _
  // Predicated region
  $region26: #{a3c_lstm_forward.3} parent=0 // pred_check
    _
  $region27: #{a3c_lstm_forward.3} parent=0 // pred_check_branch
    %27 = sbr.rel (0) target = $region29
  $region28: #{a3c_lstm_forward.3} parent=0 // pred_region
    _
  $region29: #{a3c_lstm_forward.3} parent=0 // pred_fallthru
    _
  // Predicated region
  $region30: #{a3c_lstm_forward.3} parent=0 // pred_check
    _
  $region31: #{a3c_lstm_forward.3} parent=0 // pred_check_branch
    %29 = sbr.rel (0) target = $region33
  $region32: #{a3c_lstm_forward.3} parent=0 // pred_region
    _
  $region33: #{a3c_lstm_forward.3} parent=0 // pred_fallthru
    _
  // Predicated region
  $region34: #{a3c_lstm_forward.3} parent=0 // pred_check
    _
  $region35: #{a3c_lstm_forward.3} parent=0 // pred_check_branch
    %31 = sbr.rel (0) target = $region37
  $region36: #{a3c_lstm_forward.3} parent=0 // pred_region
    _
  $region37: #{a3c_lstm_forward.3} parent=0 // pred_fallthru
    _
  %32 = vst [vmem:[#allocation2] sm:$0xff] 0.0
  %vm33 = vcmask 261120
  %34 = vst.msk [vmem:[#allocation2 + $0x8] sm:$0xff] %vm33, 0.0
  %35 = vst [vmem:[#allocation2 + $0x10] sm:$0xff] 0.0
  %36 = vst.msk [vmem:[#allocation2 + $0x18] sm:$0xff] %vm33, 0.0
  %37 = vst [vmem:[#allocation2 + $0x20] sm:$0xff] 0.0
  %38 = vst.msk [vmem:[#allocation2 + $0x28] sm:$0xff] %vm33, 0.0
  %39 = vst [vmem:[#allocation2 + $0x30] sm:$0x3f] 0.0
  %vm40 = vcmask 259072
  %41 = vst.msk [vmem:[#allocation2 + $0x38] sm:$0x3f] %vm40, 0.0
  %42 = vst [vmem:[#allocation2 + $0x40] sm:$0xff] 0.0
  %43 = vst.msk [vmem:[#allocation2 + $0x48] sm:$0xff] %vm33, 0.0
  %44 = vst [vmem:[#allocation2 + $0x50] sm:$0xff] 0.0
  %45 = vst.msk [vmem:[#allocation2 + $0x58] sm:$0xff] %vm33, 0.0
  %46 = vst [vmem:[#allocation2 + $0x60] sm:$0xff] 0.0
  %47 = vst.msk [vmem:[#allocation2 + $0x68] sm:$0xff] %vm33, 0.0
  %48 = vst [vmem:[#allocation2 + $0x70] sm:$0x3f] 0.0
  %49 = vst.msk [vmem:[#allocation2 + $0x78] sm:$0x3f] %vm40, 0.0
  %50 = vst [vmem:[#allocation2 + $0x80] sm:$0xff] 0.0
  %51 = vst.msk [vmem:[#allocation2 + $0x88] sm:$0xff] %vm33, 0.0
  %52 = vst [vmem:[#allocation2 + $0x90] sm:$0xff] 0.0
  %53 = vst.msk [vmem:[#allocation2 + $0x98] sm:$0xff] %vm33, 0.0
  %54 = vst [vmem:[#allocation2 + $0xa0] sm:$0xff] 0.0
  %55 = vst.msk [vmem:[#allocation2 + $0xa8] sm:$0xff] %vm33, 0.0
  %56 = vst [vmem:[#allocation2 + $0xb0] sm:$0x3f] 0.0
  %57 = vst.msk [vmem:[#allocation2 + $0xb8] sm:$0x3f] %vm40, 0.0
  %58 = vst [vmem:[#allocation2 + $0xc0] sm:$0xff] 0.0
  %59 = vst.msk [vmem:[#allocation2 + $0xc8] sm:$0xff] %vm33, 0.0
  %60 = vst [vmem:[#allocation2 + $0xd0] sm:$0xff] 0.0
  %61 = vst.msk [vmem:[#allocation2 + $0xd8] sm:$0xff] %vm33, 0.0
  %62 = vst [vmem:[#allocation2 + $0xe0] sm:$0xff] 0.0
  %63 = vst.msk [vmem:[#allocation2 + $0xe8] sm:$0xff] %vm33, 0.0
  %64 = vst [vmem:[#allocation2 + $0xf0] sm:$0x3f] 0.0
  %65 = vst.msk [vmem:[#allocation2 + $0xf8] sm:$0x3f] %vm40, 0.0
  %66 = vst [vmem:[#allocation2 + $0x100] sm:$0xff] 0.0
  %67 = vst.msk [vmem:[#allocation2 + $0x108] sm:$0xff] %vm33, 0.0
  %68 = vst [vmem:[#allocation2 + $0x110] sm:$0xff] 0.0
  %69 = vst.msk [vmem:[#allocation2 + $0x118] sm:$0xff] %vm33, 0.0
  %70 = vst [vmem:[#allocation2 + $0x120] sm:$0xff] 0.0
  %71 = vst.msk [vmem:[#allocation2 + $0x128] sm:$0xff] %vm33, 0.0
  %72 = vst [vmem:[#allocation2 + $0x130] sm:$0x3f] 0.0
  %73 = vst.msk [vmem:[#allocation2 + $0x138] sm:$0x3f] %vm40, 0.0
  %74 = vst [vmem:[#allocation2 + $0x140] sm:$0xff] 0.0
  %75 = vst.msk [vmem:[#allocation2 + $0x148] sm:$0xff] %vm33, 0.0
  %76 = vst [vmem:[#allocation2 + $0x150] sm:$0xff] 0.0
  %77 = vst.msk [vmem:[#allocation2 + $0x158] sm:$0xff] %vm33, 0.0
  %78 = vst [vmem:[#allocation2 + $0x160] sm:$0xff] 0.0
  %79 = vst.msk [vmem:[#allocation2 + $0x168] sm:$0xff] %vm33, 0.0
  %80 = vst [vmem:[#allocation2 + $0x170] sm:$0x3f] 0.0
  %81 = vst.msk [vmem:[#allocation2 + $0x178] sm:$0x3f] %vm40, 0.0
  %82 = vst [vmem:[#allocation2 + $0x180] sm:$0xff] 0.0
  %83 = vst.msk [vmem:[#allocation2 + $0x188] sm:$0xff] %vm33, 0.0
  %84 = vst [vmem:[#allocation2 + $0x190] sm:$0xff] 0.0
  %85 = vst.msk [vmem:[#allocation2 + $0x198] sm:$0xff] %vm33, 0.0
  %86 = vst [vmem:[#allocation2 + $0x1a0] sm:$0xff] 0.0
  %87 = vst.msk [vmem:[#allocation2 + $0x1a8] sm:$0xff] %vm33, 0.0
  %88 = vst [vmem:[#allocation2 + $0x1b0] sm:$0x3f] 0.0
  %89 = vst.msk [vmem:[#allocation2 + $0x1b8] sm:$0x3f] %vm40, 0.0
  %90 = vst [vmem:[#allocation2 + $0x1c0] sm:$0xff] 0.0
  %91 = vst.msk [vmem:[#allocation2 + $0x1c8] sm:$0xff] %vm33, 0.0
  %92 = vst [vmem:[#allocation2 + $0x1d0] sm:$0xff] 0.0
  %93 = vst.msk [vmem:[#allocation2 + $0x1d8] sm:$0xff] %vm33, 0.0
  %94 = vst [vmem:[#allocation2 + $0x1e0] sm:$0xff] 0.0
  %95 = vst.msk [vmem:[#allocation2 + $0x1e8] sm:$0xff] %vm33, 0.0
  %96 = vst [vmem:[#allocation2 + $0x1f0] sm:$0x3f] 0.0
  %97 = vst.msk [vmem:[#allocation2 + $0x1f8] sm:$0x3f] %vm40, 0.0
  %98 = vst [vmem:[#allocation2 + $0x200] sm:$0xff] 0.0
  %99 = vst.msk [vmem:[#allocation2 + $0x208] sm:$0xff] %vm33, 0.0
  %100 = vst [vmem:[#allocation2 + $0x210] sm:$0xff] 0.0
  %101 = vst.msk [vmem:[#allocation2 + $0x218] sm:$0xff] %vm33, 0.0
  %102 = vst [vmem:[#allocation2 + $0x220] sm:$0xff] 0.0
  %103 = vst.msk [vmem:[#allocation2 + $0x228] sm:$0xff] %vm33, 0.0
  %104 = vst [vmem:[#allocation2 + $0x230] sm:$0x3f] 0.0
  %105 = vst.msk [vmem:[#allocation2 + $0x238] sm:$0x3f] %vm40, 0.0
  %106 = vst [vmem:[#allocation2 + $0x240] sm:$0xff] 0.0
  %107 = vst.msk [vmem:[#allocation2 + $0x248] sm:$0xff] %vm33, 0.0
  %108 = vst [vmem:[#allocation2 + $0x250] sm:$0xff] 0.0
  %109 = vst.msk [vmem:[#allocation2 + $0x258] sm:$0xff] %vm33, 0.0
  %110 = vst [vmem:[#allocation2 + $0x260] sm:$0xff] 0.0
  %111 = vst.msk [vmem:[#allocation2 + $0x268] sm:$0xff] %vm33, 0.0
  %112 = vst [vmem:[#allocation2 + $0x270] sm:$0x3f] 0.0
  %113 = vst.msk [vmem:[#allocation2 + $0x278] sm:$0x3f] %vm40, 0.0
  %114 = vst [vmem:[#allocation2 + $0x280] sm:$0xff] 0.0
  %115 = vst.msk [vmem:[#allocation2 + $0x288] sm:$0xff] %vm33, 0.0
  %116 = vst [vmem:[#allocation2 + $0x290] sm:$0xff] 0.0
  %117 = vst.msk [vmem:[#allocation2 + $0x298] sm:$0xff] %vm33, 0.0
  %118 = vst [vmem:[#allocation2 + $0x2a0] sm:$0xff] 0.0
  %119 = vst.msk [vmem:[#allocation2 + $0x2a8] sm:$0xff] %vm33, 0.0
  %120 = vst [vmem:[#allocation2 + $0x2b0] sm:$0x3f] 0.0
  %121 = vst.msk [vmem:[#allocation2 + $0x2b8] sm:$0x3f] %vm40, 0.0
  %122 = vst [vmem:[#allocation2 + $0x2c0] sm:$0xff] 0.0
  %123 = vst.msk [vmem:[#allocation2 + $0x2c8] sm:$0xff] %vm33, 0.0
  %124 = vst [vmem:[#allocation2 + $0x2d0] sm:$0xff] 0.0
  %125 = vst.msk [vmem:[#allocation2 + $0x2d8] sm:$0xff] %vm33, 0.0
  %126 = vst [vmem:[#allocation2 + $0x2e0] sm:$0xff] 0.0
  %127 = vst.msk [vmem:[#allocation2 + $0x2e8] sm:$0xff] %vm33, 0.0
  %128 = vst [vmem:[#allocation2 + $0x2f0] sm:$0x3f] 0.0
  %129 = vst.msk [vmem:[#allocation2 + $0x2f8] sm:$0x3f] %vm40, 0.0
  %130 = vst [vmem:[#allocation2 + $0x300] sm:$0xff] 0.0
  %131 = vst.msk [vmem:[#allocation2 + $0x308] sm:$0xff] %vm33, 0.0
  %132 = vst [vmem:[#allocation2 + $0x310] sm:$0xff] 0.0
  %133 = vst.msk [vmem:[#allocation2 + $0x318] sm:$0xff] %vm33, 0.0
  %134 = vst [vmem:[#allocation2 + $0x320] sm:$0xff] 0.0
  %135 = vst.msk [vmem:[#allocation2 + $0x328] sm:$0xff] %vm33, 0.0
  %136 = vst [vmem:[#allocation2 + $0x330] sm:$0x3f] 0.0
  %137 = vst.msk [vmem:[#allocation2 + $0x338] sm:$0x3f] %vm40, 0.0
  %138 = vst [vmem:[#allocation2 + $0x340] sm:$0xff] 0.0
  %139 = vst.msk [vmem:[#allocation2 + $0x348] sm:$0xff] %vm33, 0.0
  %140 = vst [vmem:[#allocation2 + $0x350] sm:$0xff] 0.0
  %141 = vst.msk [vmem:[#allocation2 + $0x358] sm:$0xff] %vm33, 0.0
  %142 = vst [vmem:[#allocation2 + $0x360] sm:$0xff] 0.0
  %143 = vst.msk [vmem:[#allocation2 + $0x368] sm:$0xff] %vm33, 0.0
  %144 = vst [vmem:[#allocation2 + $0x370] sm:$0x3f] 0.0
  %145 = vst.msk [vmem:[#allocation2 + $0x378] sm:$0x3f] %vm40, 0.0
  %146 = vst [vmem:[#allocation2 + $0x380] sm:$0xff] 0.0
  %147 = vst.msk [vmem:[#allocation2 + $0x388] sm:$0xff] %vm33, 0.0
  %148 = vst [vmem:[#allocation2 + $0x390] sm:$0xff] 0.0
  %149 = vst.msk [vmem:[#allocation2 + $0x398] sm:$0xff] %vm33, 0.0
  %150 = vst [vmem:[#allocation2 + $0x3a0] sm:$0xff] 0.0
  %151 = vst.msk [vmem:[#allocation2 + $0x3a8] sm:$0xff] %vm33, 0.0
  %152 = vst [vmem:[#allocation2 + $0x3b0] sm:$0x3f] 0.0
  %153 = vst.msk [vmem:[#allocation2 + $0x3b8] sm:$0x3f] %vm40, 0.0
  %154 = vst [vmem:[#allocation2 + $0x3c0] sm:$0xff] 0.0
  %155 = vst.msk [vmem:[#allocation2 + $0x3c8] sm:$0xff] %vm33, 0.0
  %156 = vst [vmem:[#allocation2 + $0x3d0] sm:$0xff] 0.0
  %157 = vst.msk [vmem:[#allocation2 + $0x3d8] sm:$0xff] %vm33, 0.0
  %158 = vst [vmem:[#allocation2 + $0x3e0] sm:$0xff] 0.0
  %159 = vst.msk [vmem:[#allocation2 + $0x3e8] sm:$0xff] %vm33, 0.0
  %160 = vst [vmem:[#allocation2 + $0x3f0] sm:$0x3f] 0.0
  %161 = vst.msk [vmem:[#allocation2 + $0x3f8] sm:$0x3f] %vm40, 0.0
  %162 = vst [vmem:[#allocation2 + $0x400] sm:$0xff] 0.0
  %163 = vst.msk [vmem:[#allocation2 + $0x408] sm:$0xff] %vm33, 0.0
  %164 = vst [vmem:[#allocation2 + $0x410] sm:$0xff] 0.0
  %165 = vst.msk [vmem:[#allocation2 + $0x418] sm:$0xff] %vm33, 0.0
  %166 = vst [vmem:[#allocation2 + $0x420] sm:$0xff] 0.0
  %167 = vst.msk [vmem:[#allocation2 + $0x428] sm:$0xff] %vm33, 0.0
  %168 = vst [vmem:[#allocation2 + $0x430] sm:$0x3f] 0.0
  %169 = vst.msk [vmem:[#allocation2 + $0x438] sm:$0x3f] %vm40, 0.0
  %170 = vst [vmem:[#allocation2 + $0x440] sm:$0xff] 0.0
  %171 = vst.msk [vmem:[#allocation2 + $0x448] sm:$0xff] %vm33, 0.0
  %172 = vst [vmem:[#allocation2 + $0x450] sm:$0xff] 0.0
  %173 = vst.msk [vmem:[#allocation2 + $0x458] sm:$0xff] %vm33, 0.0
  %174 = vst [vmem:[#allocation2 + $0x460] sm:$0xff] 0.0
  %175 = vst.msk [vmem:[#allocation2 + $0x468] sm:$0xff] %vm33, 0.0
  %176 = vst [vmem:[#allocation2 + $0x470] sm:$0x3f] 0.0
  %177 = vst.msk [vmem:[#allocation2 + $0x478] sm:$0x3f] %vm40, 0.0
  %178 = vst [vmem:[#allocation2 + $0x480] sm:$0xff] 0.0
  %179 = vst.msk [vmem:[#allocation2 + $0x488] sm:$0xff] %vm33, 0.0
  %180 = vst [vmem:[#allocation2 + $0x490] sm:$0xff] 0.0
  %181 = vst.msk [vmem:[#allocation2 + $0x498] sm:$0xff] %vm33, 0.0
  %182 = vst [vmem:[#allocation2 + $0x4a0] sm:$0xff] 0.0
  %183 = vst.msk [vmem:[#allocation2 + $0x4a8] sm:$0xff] %vm33, 0.0
  %184 = vst [vmem:[#allocation2 + $0x4b0] sm:$0x3f] 0.0
  %185 = vst.msk [vmem:[#allocation2 + $0x4b8] sm:$0x3f] %vm40, 0.0
  %186 = vst [vmem:[#allocation2 + $0x4c0] sm:$0xff] 0.0
  %187 = vst.msk [vmem:[#allocation2 + $0x4c8] sm:$0xff] %vm33, 0.0
  %188 = vst [vmem:[#allocation2 + $0x4d0] sm:$0xff] 0.0
  %189 = vst.msk [vmem:[#allocation2 + $0x4d8] sm:$0xff] %vm33, 0.0
  %190 = vst [vmem:[#allocation2 + $0x4e0] sm:$0xff] 0.0
  %191 = vst.msk [vmem:[#allocation2 + $0x4e8] sm:$0xff] %vm33, 0.0
  %192 = vst [vmem:[#allocation2 + $0x4f0] sm:$0x3f] 0.0
  %193 = vst.msk [vmem:[#allocation2 + $0x4f8] sm:$0x3f] %vm40, 0.0
  %194 = vst [vmem:[#allocation2 + $0x500] sm:$0xff] 0.0
  %195 = vst.msk [vmem:[#allocation2 + $0x508] sm:$0xff] %vm33, 0.0
  %196 = vst [vmem:[#allocation2 + $0x510] sm:$0xff] 0.0
  %197 = vst.msk [vmem:[#allocation2 + $0x518] sm:$0xff] %vm33, 0.0
  %198 = vst [vmem:[#allocation2 + $0x520] sm:$0xff] 0.0
  %199 = vst.msk [vmem:[#allocation2 + $0x528] sm:$0xff] %vm33, 0.0
  %200 = vst [vmem:[#allocation2 + $0x530] sm:$0x3f] 0.0
  %201 = vst.msk [vmem:[#allocation2 + $0x538] sm:$0x3f] %vm40, 0.0
  %202 = vst [vmem:[#allocation2 + $0x540] sm:$0xff] 0.0
  %203 = vst.msk [vmem:[#allocation2 + $0x548] sm:$0xff] %vm33, 0.0
  %204 = vst [vmem:[#allocation2 + $0x550] sm:$0xff] 0.0
  %205 = vst.msk [vmem:[#allocation2 + $0x558] sm:$0xff] %vm33, 0.0
  %206 = vst [vmem:[#allocation2 + $0x560] sm:$0xff] 0.0
  %207 = vst.msk [vmem:[#allocation2 + $0x568] sm:$0xff] %vm33, 0.0
  %208 = vst [vmem:[#allocation2 + $0x570] sm:$0x3f] 0.0
  %209 = vst.msk [vmem:[#allocation2 + $0x578] sm:$0x3f] %vm40, 0.0
  %210 = vst [vmem:[#allocation2 + $0x580] sm:$0xff] 0.0
  %211 = vst.msk [vmem:[#allocation2 + $0x588] sm:$0xff] %vm33, 0.0
  %212 = vst [vmem:[#allocation2 + $0x590] sm:$0xff] 0.0
  %213 = vst.msk [vmem:[#allocation2 + $0x598] sm:$0xff] %vm33, 0.0
  %214 = vst [vmem:[#allocation2 + $0x5a0] sm:$0xff] 0.0
  %215 = vst.msk [vmem:[#allocation2 + $0x5a8] sm:$0xff] %vm33, 0.0
  %216 = vst [vmem:[#allocation2 + $0x5b0] sm:$0x3f] 0.0
  %217 = vst.msk [vmem:[#allocation2 + $0x5b8] sm:$0x3f] %vm40, 0.0
  %218 = vst [vmem:[#allocation2 + $0x5c0] sm:$0xff] 0.0
  %219 = vst.msk [vmem:[#allocation2 + $0x5c8] sm:$0xff] %vm33, 0.0
  %220 = vst [vmem:[#allocation2 + $0x5d0] sm:$0xff] 0.0
  %221 = vst.msk [vmem:[#allocation2 + $0x5d8] sm:$0xff] %vm33, 0.0
  %222 = vst [vmem:[#allocation2 + $0x5e0] sm:$0xff] 0.0
  %223 = vst.msk [vmem:[#allocation2 + $0x5e8] sm:$0xff] %vm33, 0.0
  %224 = vst [vmem:[#allocation2 + $0x5f0] sm:$0x3f] 0.0
  %225 = vst.msk [vmem:[#allocation2 + $0x5f8] sm:$0x3f] %vm40, 0.0
  %226 = vst [vmem:[#allocation2 + $0x600] sm:$0xff] 0.0
  %227 = vst.msk [vmem:[#allocation2 + $0x608] sm:$0xff] %vm33, 0.0
  %228 = vst [vmem:[#allocation2 + $0x610] sm:$0xff] 0.0
  %229 = vst.msk [vmem:[#allocation2 + $0x618] sm:$0xff] %vm33, 0.0
  %230 = vst [vmem:[#allocation2 + $0x620] sm:$0xff] 0.0
  %231 = vst.msk [vmem:[#allocation2 + $0x628] sm:$0xff] %vm33, 0.0
  %232 = vst [vmem:[#allocation2 + $0x630] sm:$0x3f] 0.0
  %233 = vst.msk [vmem:[#allocation2 + $0x638] sm:$0x3f] %vm40, 0.0
  %234 = vst [vmem:[#allocation2 + $0x640] sm:$0xff] 0.0
  %235 = vst.msk [vmem:[#allocation2 + $0x648] sm:$0xff] %vm33, 0.0
  %236 = vst [vmem:[#allocation2 + $0x650] sm:$0xff] 0.0
  %237 = vst.msk [vmem:[#allocation2 + $0x658] sm:$0xff] %vm33, 0.0
  %238 = vst [vmem:[#allocation2 + $0x660] sm:$0xff] 0.0
  %239 = vst.msk [vmem:[#allocation2 + $0x668] sm:$0xff] %vm33, 0.0
  %240 = vst [vmem:[#allocation2 + $0x670] sm:$0x3f] 0.0
  %241 = vst.msk [vmem:[#allocation2 + $0x678] sm:$0x3f] %vm40, 0.0
  %242 = vst [vmem:[#allocation2 + $0x680] sm:$0xff] 0.0
  %243 = vst.msk [vmem:[#allocation2 + $0x688] sm:$0xff] %vm33, 0.0
  %244 = vst [vmem:[#allocation2 + $0x690] sm:$0xff] 0.0
  %245 = vst.msk [vmem:[#allocation2 + $0x698] sm:$0xff] %vm33, 0.0
  %246 = vst [vmem:[#allocation2 + $0x6a0] sm:$0xff] 0.0
  %247 = vst.msk [vmem:[#allocation2 + $0x6a8] sm:$0xff] %vm33, 0.0
  %248 = vst [vmem:[#allocation2 + $0x6b0] sm:$0x3f] 0.0
  %249 = vst.msk [vmem:[#allocation2 + $0x6b8] sm:$0x3f] %vm40, 0.0
  %250 = vst [vmem:[#allocation2 + $0x6c0] sm:$0xff] 0.0
  %251 = vst.msk [vmem:[#allocation2 + $0x6c8] sm:$0xff] %vm33, 0.0
  %252 = vst [vmem:[#allocation2 + $0x6d0] sm:$0xff] 0.0
  %253 = vst.msk [vmem:[#allocation2 + $0x6d8] sm:$0xff] %vm33, 0.0
  %254 = vst [vmem:[#allocation2 + $0x6e0] sm:$0xff] 0.0
  %255 = vst.msk [vmem:[#allocation2 + $0x6e8] sm:$0xff] %vm33, 0.0
  %256 = vst [vmem:[#allocation2 + $0x6f0] sm:$0x3f] 0.0
  %257 = vst.msk [vmem:[#allocation2 + $0x6f8] sm:$0x3f] %vm40, 0.0
  %258 = vst [vmem:[#allocation2 + $0x700] sm:$0xff] 0.0
  %259 = vst.msk [vmem:[#allocation2 + $0x708] sm:$0xff] %vm33, 0.0
  %260 = vst [vmem:[#allocation2 + $0x710] sm:$0xff] 0.0
  %261 = vst.msk [vmem:[#allocation2 + $0x718] sm:$0xff] %vm33, 0.0
  %262 = vst [vmem:[#allocation2 + $0x720] sm:$0xff] 0.0
  %263 = vst.msk [vmem:[#allocation2 + $0x728] sm:$0xff] %vm33, 0.0
  %264 = vst [vmem:[#allocation2 + $0x730] sm:$0x3f] 0.0
  %265 = vst.msk [vmem:[#allocation2 + $0x738] sm:$0x3f] %vm40, 0.0
  %266 = vst [vmem:[#allocation2 + $0x740] sm:$0xff] 0.0
  %267 = vst.msk [vmem:[#allocation2 + $0x748] sm:$0xff] %vm33, 0.0
  %268 = vst [vmem:[#allocation2 + $0x750] sm:$0xff] 0.0
  %269 = vst.msk [vmem:[#allocation2 + $0x758] sm:$0xff] %vm33, 0.0
  %270 = vst [vmem:[#allocation2 + $0x760] sm:$0xff] 0.0
  %271 = vst.msk [vmem:[#allocation2 + $0x768] sm:$0xff] %vm33, 0.0
  %272 = vst [vmem:[#allocation2 + $0x770] sm:$0x3f] 0.0
  %273 = vst.msk [vmem:[#allocation2 + $0x778] sm:$0x3f] %vm40, 0.0
  %274 = vst [vmem:[#allocation2 + $0x780] sm:$0xff] 0.0
  %275 = vst.msk [vmem:[#allocation2 + $0x788] sm:$0xff] %vm33, 0.0
  %276 = vst [vmem:[#allocation2 + $0x790] sm:$0xff] 0.0
  %277 = vst.msk [vmem:[#allocation2 + $0x798] sm:$0xff] %vm33, 0.0
  %278 = vst [vmem:[#allocation2 + $0x7a0] sm:$0xff] 0.0
  %279 = vst.msk [vmem:[#allocation2 + $0x7a8] sm:$0xff] %vm33, 0.0
  %280 = vst [vmem:[#allocation2 + $0x7b0] sm:$0x3f] 0.0
  %281 = vst.msk [vmem:[#allocation2 + $0x7b8] sm:$0x3f] %vm40, 0.0
  %282 = vst [vmem:[#allocation2 + $0x7c0] sm:$0xff] 0.0
  %283 = vst.msk [vmem:[#allocation2 + $0x7c8] sm:$0xff] %vm33, 0.0
  %284 = vst [vmem:[#allocation2 + $0x7d0] sm:$0xff] 0.0
  %285 = vst.msk [vmem:[#allocation2 + $0x7d8] sm:$0xff] %vm33, 0.0
  %286 = vst [vmem:[#allocation2 + $0x7e0] sm:$0xff] 0.0
  %287 = vst.msk [vmem:[#allocation2 + $0x7e8] sm:$0xff] %vm33, 0.0
  %288 = vst [vmem:[#allocation2 + $0x7f0] sm:$0x3f] 0.0
  %289 = vst.msk [vmem:[#allocation2 + $0x7f8] sm:$0x3f] %vm40, 0.0
  %290 = vst [vmem:[#allocation2 + $0x800] sm:$0xff] 0.0
  %291 = vst.msk [vmem:[#allocation2 + $0x808] sm:$0xff] %vm33, 0.0
  %292 = vst [vmem:[#allocation2 + $0x810] sm:$0xff] 0.0
  %293 = vst.msk [vmem:[#allocation2 + $0x818] sm:$0xff] %vm33, 0.0
  %294 = vst [vmem:[#allocation2 + $0x820] sm:$0xff] 0.0
  %295 = vst.msk [vmem:[#allocation2 + $0x828] sm:$0xff] %vm33, 0.0
  %296 = vst [vmem:[#allocation2 + $0x830] sm:$0x3f] 0.0
  %297 = vst.msk [vmem:[#allocation2 + $0x838] sm:$0x3f] %vm40, 0.0
  %298 = vst [vmem:[#allocation2 + $0x840] sm:$0xff] 0.0
  %299 = vst.msk [vmem:[#allocation2 + $0x848] sm:$0xff] %vm33, 0.0
  %300 = vst [vmem:[#allocation2 + $0x850] sm:$0xff] 0.0
  %301 = vst.msk [vmem:[#allocation2 + $0x858] sm:$0xff] %vm33, 0.0
  %302 = vst [vmem:[#allocation2 + $0x860] sm:$0xff] 0.0
  %303 = vst.msk [vmem:[#allocation2 + $0x868] sm:$0xff] %vm33, 0.0
  %304 = vst [vmem:[#allocation2 + $0x870] sm:$0x3f] 0.0
  %305 = vst.msk [vmem:[#allocation2 + $0x878] sm:$0x3f] %vm40, 0.0
  %306 = vst [vmem:[#allocation3] sm:$0xff] 0.0
  %307 = vst [vmem:[#allocation3 + $0x8] sm:$0x3f] 0.0
  %308 = vst [vmem:[#allocation3 + $0x10] sm:$0xff] 0.0
  %309 = vst [vmem:[#allocation3 + $0x18] sm:$0x3f] 0.0
  %310 = vst [vmem:[#allocation3 + $0x20] sm:$0xff] 0.0
  %311 = vst [vmem:[#allocation3 + $0x28] sm:$0x3f] 0.0
  %312 = vst [vmem:[#allocation3 + $0x30] sm:$0xff] 0.0
  %313 = vst [vmem:[#allocation3 + $0x38] sm:$0x3f] 0.0
  %314 = vst [vmem:[#allocation3 + $0x40] sm:$0xff] 0.0
  %315 = vst [vmem:[#allocation3 + $0x48] sm:$0x3f] 0.0
  %316 = vst [vmem:[#allocation3 + $0x50] sm:$0xff] 0.0
  %317 = vst [vmem:[#allocation3 + $0x58] sm:$0x3f] 0.0
  %318 = vst [vmem:[#allocation3 + $0x60] sm:$0xff] 0.0
  %319 = vst [vmem:[#allocation3 + $0x68] sm:$0x3f] 0.0
  %320 = vst [vmem:[#allocation3 + $0x70] sm:$0xff] 0.0
  %321 = vst [vmem:[#allocation3 + $0x78] sm:$0x3f] 0.0
  %322 = vst [vmem:[#allocation3 + $0x80] sm:$0xff] 0.0
  %323 = vst [vmem:[#allocation3 + $0x88] sm:$0x3f] 0.0
  %324 = vst [vmem:[#allocation3 + $0x90] sm:$0xff] 0.0
  %325 = vst [vmem:[#allocation3 + $0x98] sm:$0x3f] 0.0
  %326 = vst [vmem:[#allocation3 + $0xa0] sm:$0xff] 0.0
  %327 = vst [vmem:[#allocation3 + $0xa8] sm:$0x3f] 0.0
  %328 = vst [vmem:[#allocation3 + $0xb0] sm:$0xff] 0.0
  %329 = vst [vmem:[#allocation3 + $0xb8] sm:$0x3f] 0.0
  %330 = vst [vmem:[#allocation3 + $0xc0] sm:$0xff] 0.0
  %331 = vst [vmem:[#allocation3 + $0xc8] sm:$0x3f] 0.0
  %332 = vst [vmem:[#allocation3 + $0xd0] sm:$0xff] 0.0
  %333 = vst [vmem:[#allocation3 + $0xd8] sm:$0x3f] 0.0
  %334 = vst [vmem:[#allocation3 + $0xe0] sm:$0xff] 0.0
  %335 = vst [vmem:[#allocation3 + $0xe8] sm:$0x3f] 0.0
  %336 = vst [vmem:[#allocation3 + $0xf0] sm:$0xff] 0.0
  %337 = vst [vmem:[#allocation3 + $0xf8] sm:$0x3f] 0.0
  %338 = vst [vmem:[#allocation3 + $0x100] sm:$0xff] 0.0
  %339 = vst [vmem:[#allocation3 + $0x108] sm:$0x3f] 0.0
  %340 = vst [vmem:[#allocation4] sm:$0x7f] 0.0
  %vm341 = vcmask 522240
  %342 = vst.msk [vmem:[#allocation4 + $0x8] sm:$0x7f] %vm341, 0.0
  %343 = vst [vmem:[#allocation4 + $0x10] sm:$0x7f] 0.0
  %344 = vst.msk [vmem:[#allocation4 + $0x18] sm:$0x7f] %vm341, 0.0
  %345 = vst [vmem:[#allocation4 + $0x20] sm:$0x7f] 0.0
  %346 = vst.msk [vmem:[#allocation4 + $0x28] sm:$0x7f] %vm341, 0.0
  %347 = vst [vmem:[#allocation4 + $0x30] sm:$0x7f] 0.0
  %348 = vst.msk [vmem:[#allocation4 + $0x38] sm:$0x7f] %vm341, 0.0
  %349 = vst [vmem:[#allocation4 + $0x40] sm:$0x7f] 0.0
  %350 = vst.msk [vmem:[#allocation4 + $0x48] sm:$0x7f] %vm341, 0.0
  %351 = vst [vmem:[#allocation4 + $0x50] sm:$0x7f] 0.0
  %352 = vst.msk [vmem:[#allocation4 + $0x58] sm:$0x7f] %vm341, 0.0
  %353 = vst [vmem:[#allocation4 + $0x60] sm:$0x7f] 0.0
  %354 = vst.msk [vmem:[#allocation4 + $0x68] sm:$0x7f] %vm341, 0.0
  %355 = vst [vmem:[#allocation4 + $0x70] sm:$0x7f] 0.0
  %356 = vst.msk [vmem:[#allocation4 + $0x78] sm:$0x7f] %vm341, 0.0
  %357 = vst [vmem:[#allocation4 + $0x80] sm:$0x7f] 0.0
  %358 = vst.msk [vmem:[#allocation4 + $0x88] sm:$0x7f] %vm341, 0.0
  %v359 = vld [vmem:[%s1] sm:$0xff]
  %v360 = vld [vmem:[%s1 + $0x8] sm:$0xff]
  %v361 = vld [vmem:[%s1 + $0x10] sm:$0xff]
  %v362 = vld [vmem:[%s1 + $0x18] sm:$0xff]
  %v363 = vld [vmem:[%s1 + $0x20] sm:$0xff]
  %v364 = vld [vmem:[%s1 + $0x28] sm:$0xff]
  %v365 = vld [vmem:[%s1 + $0x30] sm:$0xff]
  %v366 = vld [vmem:[%s1 + $0x38] sm:$0xff]
  %v367 = vld [vmem:[%s1 + $0x40] sm:$0xff]
  %v368 = vld [vmem:[%s1 + $0x48] sm:$0xff]
  %v369 = vld [vmem:[%s1 + $0x50] sm:$0xff]
  %v370 = vld [vmem:[%s1 + $0x58] sm:$0xff]
  %v371 = vld [vmem:[%s1 + $0x60] sm:$0xf]
  %v372 = vld [vmem:[%s2] sm:$0x1]
  loop: start=0, step=1, limit=32
  $region38: #{a3c_lstm_forward.3} parent=0 // loop_pre_header
    _
  $region39: #{a3c_lstm_forward.3} parent=0 // loop_header
    %s374 = sphi 0, %s378
    %p375 = scmp.ge.s32.totalorder %s374, 32
  $region40: #{a3c_lstm_forward.3} parent=0 // loop_header_branch
    %377 = sbr.rel (%p375) target = $region44
  $region41: #{a3c_lstm_forward.3} parent=0 // loop_body
    %s379 = smul.u32 %s374, 128
    %s380 = scalar_lea.vmem %s0, %s379
    %v381 = vld [vmem:[%s380] sm:$0xff]
    %v382 = vld [vmem:[%s380 + $0x8] sm:$0xff]
    %v383 = vld [vmem:[%s380 + $0x10] sm:$0xff]
    %v384 = vld [vmem:[%s380 + $0x18] sm:$0xff]
    %v385 = vld [vmem:[%s380 + $0x20] sm:$0xff]
    %v386 = vld [vmem:[%s380 + $0x28] sm:$0xff]
    %v387 = vld [vmem:[%s380 + $0x30] sm:$0xff]
    %v388 = vld [vmem:[%s380 + $0x38] sm:$0xff]
    %v389 = vld [vmem:[%s380 + $0x40] sm:$0xff]
    %v390 = vld [vmem:[%s380 + $0x48] sm:$0xff]
    %v391 = vld [vmem:[%s380 + $0x50] sm:$0xff]
    %v392 = vld [vmem:[%s380 + $0x58] sm:$0xff]
    %v393 = vld [vmem:[%s380 + $0x60] sm:$0xff]
    %v394 = vld [vmem:[%s380 + $0x68] sm:$0xff]
    %v395 = vld [vmem:[%s380 + $0x70] sm:$0xff]
    %v396 = vld [vmem:[%s380 + $0x78] sm:$0xff]
    %v398 = vlaneseq
    %v399 = vshrl.u32 %v398, 7
    %v400 = vsub.s32 0, %v399
    %v401 = vrot.slane %v372, %v400
    %vm403 = vcmask 818176
    %v405 = vsel %vm403, %v381, 0
    %v408 = vsel %vm403, %v382, 0
    %v411 = vsel %vm403, %v383, 0
    %v414 = vsel %vm403, %v384, 0
    %v417 = vsel %vm403, %v385, 0
    %v420 = vsel %vm403, %v386, 0
    %v423 = vsel %vm403, %v387, 0
    %v426 = vsel %vm403, %v388, 0
    %v429 = vsel %vm403, %v389, 0
    %v432 = vsel %vm403, %v390, 0
    %v435 = vsel %vm403, %v391, 0
    %v438 = vsel %vm403, %v392, 0
    %v441 = vsel %vm403, %v393, 0
    %v444 = vsel %vm403, %v394, 0
    %v447 = vsel %vm403, %v395, 0
    %v450 = vsel %vm403, %v396, 0
    %vm452 = vcmask 1043456
    %v454 = vsel %vm452, %v371, 0
    %456 = vmatprep.subr.mxu0 0.0
    %457 = vmatpush1.msra.mxu0 %v359
    %458 = vmatprep.subr.mxu0 0.0
    %459 = vmatpush1.msra.mxu0 %v360
    %460 = vmatprep.subr.mxu0 0.0
    %461 = vmatpush1.msra.mxu0 %v361
    %462 = vmatprep.subr.mxu0 0.0
    %463 = vmatpush1.msra.mxu0 %v362
    %464 = vmatprep.subr.mxu0 0.0
    %465 = vmatpush1.msra.mxu0 %v363
    %466 = vmatprep.subr.mxu0 0.0
    %467 = vmatpush1.msra.mxu0 %v364
    %468 = vmatprep.subr.mxu0 0.0
    %469 = vmatpush1.msra.mxu0 %v365
    %470 = vmatprep.subr.mxu0 0.0
    %471 = vmatpush1.msra.mxu0 %v366
    %472 = vmatprep.subr.mxu0 0.0
    %473 = vmatpush1.msra.mxu0 %v367
    %474 = vmatprep.subr.mxu0 0.0
    %475 = vmatpush1.msra.mxu0 %v368
    %476 = vmatprep.subr.mxu0 0.0
    %477 = vmatpush1.msra.mxu0 %v369
    %478 = vmatprep.subr.mxu0 0.0
    %479 = vmatpush1.msra.mxu0 %v370
    %480 = vmatprep.subr.mxu0 0.0
    %481 = vmatpush1.msra.mxu0 %v454
    %482 = vmatprep.subr.mxu0 0.0
    %483 = vmatpush1.msra.mxu0 0.0
    %484 = vmatprep.subr.mxu0 0.0
    %485 = vmatpush1.msra.mxu0 0.0
    %486 = vmatprep.subr.mxu0 0.0
    %487 = vmatpush1.msra.mxu0 0.0
    %488 = vmatprep.subr.mxu0 0.0
    %489 = vmatpush1.msra.mxu0 0.0
    %490 = vmatprep.subr.mxu0 0.0
    %491 = vmatpush1.msra.mxu0 0.0
    %492 = vmatprep.subr.mxu0 0.0
    %493 = vmatpush1.msra.mxu0 0.0
    %494 = vmatprep.subr.mxu0 0.0
    %495 = vmatpush1.msra.mxu0 0.0
    %496 = vmatprep.subr.mxu0 0.0
    %497 = vmatpush1.msra.mxu0 0.0
    %498 = vmatprep.subr.mxu0 0.0
    %499 = vmatpush1.msra.mxu0 0.0
    %500 = vmatprep.subr.mxu0 0.0
    %501 = vmatpush1.msra.mxu0 0.0
    %502 = vmatprep.subr.mxu0 0.0
    %503 = vmatpush1.msra.mxu0 0.0
    %504 = vmatprep.subr.mxu0 0.0
    %505 = vmatpush1.msra.mxu0 0.0
    %506 = vmatprep.subr.mxu0 0.0
    %507 = vmatpush1.msra.mxu0 0.0
    %508 = vmatprep.subr.mxu0 0.0
    %509 = vmatpush1.msra.mxu0 0.0
    %510 = vmatprep.subr.mxu0 0.0
    %511 = vmatpush1.msra.mxu0 0.0
    %512 = vmatprep.subr.mxu0 0.0
    %513 = vmatpush1.msra.mxu0 0.0
    %514 = vmatprep.subr.mxu0 0.0
    %515 = vmatpush1.msra.mxu0 0.0
    %516 = vmatprep.subr.mxu0 0.0
    %517 = vmatpush1.msra.mxu0 0.0
    %518 = vmatprep.subr.mxu0 0.0
    %519 = vmatpush1.msra.mxu0 0.0
    %520 = vmatprep.mubr.f32.mxu0 0.0
    %521 = vmatmul.mubr.f32.gmra.mrb[0].mxu0 %v405
    %v522 = vpop.f32.mrb[0].mxu0
    %v523 = vadd.f32 %v401, %v522
    %v524 = vpop.f32.mrb[0].mxu0
    %525 = vmatprep.mubr.f32.mxu0 0.0
    %526 = vmatmul.mubr.f32.gmra.mrb[0].mxu0 %v408
    %v527 = vpop.f32.mrb[0].mxu0
    %v528 = vadd.f32 %v401, %v527
    %v529 = vpop.f32.mrb[0].mxu0
    %530 = vmatprep.mubr.f32.mxu0 0.0
    %531 = vmatmul.mubr.f32.gmra.mrb[0].mxu0 %v411
    %v532 = vpop.f32.mrb[0].mxu0
    %v533 = vadd.f32 %v401, %v532
    %v534 = vpop.f32.mrb[0].mxu0
    %535 = vmatprep.mubr.f32.mxu0 0.0
    %536 = vmatmul.mubr.f32.gmra.mrb[0].mxu0 %v414
    %v537 = vpop.f32.mrb[0].mxu0
    %v538 = vadd.f32 %v401, %v537
    %v539 = vpop.f32.mrb[0].mxu0
    %540 = vmatprep.mubr.f32.mxu0 0.0
    %541 = vmatmul.mubr.f32.gmra.mrb[0].mxu0 %v417
    %v542 = vpop.f32.mrb[0].mxu0
    %v543 = vadd.f32 %v401, %v542
    %v544 = vpop.f32.mrb[0].mxu0
    %545 = vmatprep.mubr.f32.mxu0 0.0
    %546 = vmatmul.mubr.f32.gmra.mrb[0].mxu0 %v420
    %v547 = vpop.f32.mrb[0].mxu0
    %v548 = vadd.f32 %v401, %v547
    %v549 = vpop.f32.mrb[0].mxu0
    %550 = vmatprep.mubr.f32.mxu0 0.0
    %551 = vmatmul.mubr.f32.gmra.mrb[0].mxu0 %v423
    %v552 = vpop.f32.mrb[0].mxu0
    %v553 = vadd.f32 %v401, %v552
    %v554 = vpop.f32.mrb[0].mxu0
    %555 = vmatprep.mubr.f32.mxu0 0.0
    %556 = vmatmul.mubr.f32.gmra.mrb[0].mxu0 %v426
    %v557 = vpop.f32.mrb[0].mxu0
    %v558 = vadd.f32 %v401, %v557
    %v559 = vpop.f32.mrb[0].mxu0
    %560 = vmatprep.mubr.f32.mxu0 0.0
    %561 = vmatmul.mubr.f32.gmra.mrb[0].mxu0 %v429
    %v562 = vpop.f32.mrb[0].mxu0
    %v563 = vadd.f32 %v401, %v562
    %v564 = vpop.f32.mrb[0].mxu0
    %565 = vmatprep.mubr.f32.mxu0 0.0
    %566 = vmatmul.mubr.f32.gmra.mrb[0].mxu0 %v432
    %v567 = vpop.f32.mrb[0].mxu0
    %v568 = vadd.f32 %v401, %v567
    %v569 = vpop.f32.mrb[0].mxu0
    %570 = vmatprep.mubr.f32.mxu0 0.0
    %571 = vmatmul.mubr.f32.gmra.mrb[0].mxu0 %v435
    %v572 = vpop.f32.mrb[0].mxu0
    %v573 = vadd.f32 %v401, %v572
    %v574 = vpop.f32.mrb[0].mxu0
    %575 = vmatprep.mubr.f32.mxu0 0.0
    %576 = vmatmul.mubr.f32.gmra.mrb[0].mxu0 %v438
    %v577 = vpop.f32.mrb[0].mxu0
    %v578 = vadd.f32 %v401, %v577
    %v579 = vpop.f32.mrb[0].mxu0
    %580 = vmatprep.mubr.f32.mxu0 0.0
    %581 = vmatmul.mubr.f32.gmra.mrb[0].mxu0 %v441
    %v582 = vpop.f32.mrb[0].mxu0
    %v583 = vadd.f32 %v401, %v582
    %v584 = vpop.f32.mrb[0].mxu0
    %585 = vmatprep.mubr.f32.mxu0 0.0
    %586 = vmatmul.mubr.f32.gmra.mrb[0].mxu0 %v444
    %v587 = vpop.f32.mrb[0].mxu0
    %v588 = vadd.f32 %v401, %v587
    %v589 = vpop.f32.mrb[0].mxu0
    %590 = vmatprep.mubr.f32.mxu0 0.0
    %591 = vmatmul.mubr.f32.gmra.mrb[0].mxu0 %v447
    %v592 = vpop.f32.mrb[0].mxu0
    %v593 = vadd.f32 %v401, %v592
    %v594 = vpop.f32.mrb[0].mxu0
    %595 = vmatprep.mubr.f32.mxu0 0.0
    %596 = vmatmul.mubr.f32.gmra.mrb[0].mxu0 %v450
    %v597 = vpop.f32.mrb[0].mxu0
    %v598 = vadd.f32 %v401, %v597
    %v599 = vpop.f32.mrb[0].mxu0
    %600 = vdwg.mxu0
    %v601 = vmax.f32 %v523, %v563
    %v602 = vmax.f32 %v528, %v568
    %v603 = vmax.f32 %v533, %v573
    %v604 = vmax.f32 %v538, %v578
    %v605 = vmax.f32 %v543, %v583
    %v606 = vmax.f32 %v548, %v588
    %v607 = vmax.f32 %v553, %v593
    %v608 = vmax.f32 %v558, %v598
    %609 = vst.msk [vmem:[#allocation5] sm:$0xff] %vm33, %v601
    %610 = vst.msk [vmem:[#allocation5 + $0x8] sm:$0xff] %vm33, %v602
    %611 = vst.msk [vmem:[#allocation5 + $0x10] sm:$0xff] %vm33, %v603
    %612 = vst.msk [vmem:[#allocation5 + $0x18] sm:$0xff] %vm33, %v604
    %613 = vst.msk [vmem:[#allocation5 + $0x20] sm:$0xff] %vm33, %v605
    %614 = vst.msk [vmem:[#allocation5 + $0x28] sm:$0xff] %vm33, %v606
    %615 = vst.msk [vmem:[#allocation5 + $0x30] sm:$0xff] %vm33, %v607
    %616 = vst.msk [vmem:[#allocation5 + $0x38] sm:$0xff] %vm33, %v608
    %v617 = vld [vmem:[#allocation5] ss:$2 sm:$0xff]
    %s618 = scalar_lea.vmem [#allocation5], 16
    %v619 = vld [vmem:[%s618] ss:$2 sm:$0xff]
    %s620 = scalar_lea.vmem [#allocation5], 32
    %v621 = vld [vmem:[%s620] ss:$2 sm:$0xff]
    %s622 = scalar_lea.vmem [#allocation5], 48
    %v623 = vld [vmem:[%s622] ss:$2 sm:$0xff]
    %s624 = scalar_lea.vmem [#allocation5], 1
    %v625 = vld [vmem:[%s624] ss:$2 sm:$0xff]
    %s626 = scalar_lea.vmem [#allocation5], 17
    %v627 = vld [vmem:[%s626] ss:$2 sm:$0xff]
    %s628 = scalar_lea.vmem [#allocation5], 33
    %v629 = vld [vmem:[%s628] ss:$2 sm:$0xff]
    %s630 = scalar_lea.vmem [#allocation5], 49
    %v631 = vld [vmem:[%s630] ss:$2 sm:$0xff]
    %v632 = vmax.f32 %v617, %v625
    %v633 = vmax.f32 %v619, %v627
    %v634 = vmax.f32 %v621, %v629
    %v635 = vmax.f32 %v623, %v631
    %s636 = sadd.s32 %s374, 1
    %vm641 = vcmask 1040384
    %v642 = vrot.slane %v632, 7
    %v643 = vrot.slane %v633, 7
    %v644 = vsel %vm641, %v642, %v643
    %v645 = vrot.slane %v634, 7
    %v646 = vsel %vm641, %v643, %v645
    %v647 = vrot.slane %v635, 7
    %v648 = vsel %vm641, %v645, %v647
    %s653 = smul.u32 %s636, 8
    %s654 = smul.addr %s653, 8
    %s655 = scalar_lea.vmem [#allocation2], %s654
    %vm656 = vcmask 261121
    %657 = vst.msk [vmem:[%s655] sm:$0xfe] %vm656, %v642
    %658 = vst.msk [vmem:[%s655 + $0x10] sm:$0xff] %vm33, %v644
    %659 = vst.msk [vmem:[%s655 + $0x20] sm:$0xff] %vm33, %v646
    %660 = vst.msk [vmem:[%s655 + $0x30] sm:$0x3f] %vm40, %v648
    %661 = vrot.lane.b32.xlu0 %v632, 32
    %v662 = vpop.permute.xlu0 %661
    %663 = vrot.lane.b32.xlu0 %v633, 32
    %v664 = vpop.permute.xlu0 %663
    %665 = vrot.lane.b32.xlu0 %v634, 32
    %v666 = vpop.permute.xlu0 %665
    %667 = vrot.lane.b32.xlu0 %v635, 32
    %v668 = vpop.permute.xlu0 %667
    %vm673 = vcmask 523520
    %674 = vst.msk [vmem:[%s655] sm:$0xff] %vm673, %v662
    %675 = vst.msk [vmem:[%s655 + $0x10] sm:$0xff] %vm673, %v664
    %676 = vst.msk [vmem:[%s655 + $0x20] sm:$0xff] %vm673, %v666
    %vm677 = vcmask 521472
    %678 = vst.msk [vmem:[%s655 + $0x30] sm:$0x3f] %vm677, %v668
    %vm679 = vcmask 1046528
    %v680 = vrot.slane %v632, 1
    %v681 = vrot.slane %v633, 1
    %v682 = vsel %vm679, %v680, %v681
    %v683 = vrot.slane %v634, 1
    %v684 = vsel %vm679, %v681, %v683
    %v685 = vrot.slane %v635, 1
    %v686 = vsel %vm679, %v683, %v685
    %687 = vrot.lane.b32.xlu0 %v682, 64
    %v688 = vpop.permute.xlu0 %687
    %689 = vrot.lane.b32.xlu0 %v684, 64
    %v690 = vpop.permute.xlu0 %689
    %691 = vrot.lane.b32.xlu0 %v686, 64
    %v692 = vpop.permute.xlu0 %691
    %693 = vrot.lane.b32.xlu0 %v685, 64
    %v694 = vpop.permute.xlu0 %693
    %vm699 = vcmask 785920
    %700 = vst.msk [vmem:[%s655] sm:$0xff] %vm699, %v688
    %701 = vst.msk [vmem:[%s655 + $0x10] sm:$0xff] %vm699, %v690
    %702 = vst.msk [vmem:[%s655 + $0x20] sm:$0xff] %vm699, %v692
    %vm703 = vcmask 783872
    %704 = vst.msk [vmem:[%s655 + $0x30] sm:$0x3f] %vm703, %v694
    %vm705 = vcmask 1045504
    %v706 = vrot.slane %v632, 2
    %v707 = vrot.slane %v633, 2
    %v708 = vsel %vm705, %v706, %v707
    %v709 = vrot.slane %v634, 2
    %v710 = vsel %vm705, %v707, %v709
    %v711 = vrot.slane %v635, 2
    %v712 = vsel %vm705, %v709, %v711
    %713 = vrot.lane.b32.xlu0 %v708, 96
    %v714 = vpop.permute.xlu0 %713
    %715 = vrot.lane.b32.xlu0 %v710, 96
    %v716 = vpop.permute.xlu0 %715
    %717 = vrot.lane.b32.xlu0 %v712, 96
    %v718 = vpop.permute.xlu0 %717
    %719 = vrot.lane.b32.xlu0 %v711, 96
    %v720 = vpop.permute.xlu0 %719
    %vm725 = vcmask 1048320
    %726 = vst.msk [vmem:[%s655] sm:$0xff] %vm725, %v714
    %727 = vst.msk [vmem:[%s655 + $0x10] sm:$0xff] %vm725, %v716
    %728 = vst.msk [vmem:[%s655 + $0x20] sm:$0xff] %vm725, %v718
    %vm729 = vcmask 1046272
    %730 = vst.msk [vmem:[%s655 + $0x30] sm:$0x3f] %vm729, %v720
    %vm731 = vcmask 1044480
    %v732 = vrot.slane %v632, 3
    %v733 = vrot.slane %v633, 3
    %v734 = vsel %vm731, %v732, %v733
    %v735 = vrot.slane %v634, 3
    %v736 = vsel %vm731, %v733, %v735
    %v737 = vrot.slane %v635, 3
    %v738 = vsel %vm731, %v735, %v737
    %743 = vst.msk [vmem:[%s655 + $0x8] sm:$0xff] %vm33, %v734
    %744 = vst.msk [vmem:[%s655 + $0x18] sm:$0xff] %vm33, %v736
    %745 = vst.msk [vmem:[%s655 + $0x28] sm:$0xff] %vm33, %v738
    %vm746 = vcmask 258048
    %747 = vst.msk [vmem:[%s655 + $0x38] sm:$0x1f] %vm746, %v737
  $region42: #{a3c_lstm_forward.3} parent=0 // loop_footer
    %s378 = sadd.s32 1, %s374
  $region43: #{a3c_lstm_forward.3} parent=0 // loop_footer_branch
    %373 = sbr.rel target = $region39
  $region44: #{a3c_lstm_forward.3} parent=0 // loop_exit
    _
  loop: start=0, step=1, limit=15
  $region45: #{a3c_lstm_forward.3} parent=0 // loop_pre_header
    _
  $region46: #{a3c_lstm_forward.3} parent=0 // loop_header
    %s749 = sphi 0, %s753
    %p750 = scmp.ge.s32.totalorder %s749, 15
  $region47: #{a3c_lstm_forward.3} parent=0 // loop_header_branch
    %752 = sbr.rel (%p750) target = $region51
  $region48: #{a3c_lstm_forward.3} parent=0 // loop_body
    %s754 = smul.u32 %s749, 2
    %v755 = vld [vmem:[%s4] sm:$0x1]
    %v757 = vlaneseq
    %v758 = vshrl.u32 %v757, 7
    %v759 = vsub.s32 0, %v758
    %v760 = vrot.slane %v755, %v759
    %v762 = vadd.f32 %v760, 0.0
    %s763 = smul.u32 %s754, 8
    %s764 = smul.addr %s763, 8
    %s765 = scalar_lea.vmem [#allocation2], %s764
    %v766 = vld [vmem:[%s765] sm:$0xff]
    %v767 = vld [vmem:[%s765 + $0x8] sm:$0xff]
    %v768 = vld [vmem:[%s765 + $0x10] sm:$0xff]
    %v769 = vld [vmem:[%s765 + $0x18] sm:$0xff]
    %v770 = vld [vmem:[%s765 + $0x20] sm:$0xff]
    %v771 = vld [vmem:[%s765 + $0x28] sm:$0xff]
    %v772 = vld [vmem:[%s765 + $0x30] sm:$0x3f]
    %v773 = vld [vmem:[%s765 + $0x38] sm:$0x3f]
    %v774 = vld [vmem:[%s3] sm:$0xff]
    %v775 = vld [vmem:[%s3 + $0x8] sm:$0xff]
    %v776 = vld [vmem:[%s3 + $0x10] sm:$0xff]
    %v777 = vld [vmem:[%s3 + $0x18] sm:$0xff]
    %v778 = vld [vmem:[%s3 + $0x20] sm:$0xff]
    %v779 = vld [vmem:[%s3 + $0x28] sm:$0xff]
    %v780 = vld [vmem:[%s3 + $0x30] sm:$0xff]
    %v781 = vld [vmem:[%s3 + $0x38] sm:$0xff]
    %v782 = vld [vmem:[%s3 + $0x40] sm:$0xff]
    %v783 = vld [vmem:[%s3 + $0x48] sm:$0xff]
    %v784 = vld [vmem:[%s3 + $0x50] sm:$0xff]
    %v785 = vld [vmem:[%s3 + $0x58] sm:$0xff]
    %v786 = vld [vmem:[%s3 + $0x60] sm:$0xff]
    %v787 = vld [vmem:[%s3 + $0x68] sm:$0xff]
    %v788 = vld [vmem:[%s3 + $0x70] sm:$0xff]
    %v789 = vld [vmem:[%s3 + $0x78] sm:$0xff]
    %v790 = vld [vmem:[%s3 + $0x80] sm:$0xff]
    %v791 = vld [vmem:[%s3 + $0x88] sm:$0xff]
    %v792 = vld [vmem:[%s3 + $0x90] sm:$0xff]
    %v793 = vld [vmem:[%s3 + $0x98] sm:$0xff]
    %v795 = vsel %vm33, %v767, 0
    %v798 = vsel %vm33, %v769, 0
    %v801 = vsel %vm33, %v771, 0
    %v804 = vsel %vm33, %v773, 0
    %806 = vmatprep.subr.mxu0 0.0
    %807 = vmatpush1.msra.mxu0 %v774
    %808 = vmatprep.subr.mxu0 0.0
    %809 = vmatpush1.msra.mxu0 %v775
    %810 = vmatprep.subr.mxu0 0.0
    %811 = vmatpush1.msra.mxu0 %v776
    %812 = vmatprep.subr.mxu0 0.0
    %813 = vmatpush1.msra.mxu0 %v777
    %814 = vmatprep.subr.mxu0 0.0
    %815 = vmatpush1.msra.mxu0 %v778
    %816 = vmatprep.subr.mxu0 0.0
    %817 = vmatpush1.msra.mxu0 %v779
    %818 = vmatprep.subr.mxu0 0.0
    %819 = vmatpush1.msra.mxu0 %v780
    %820 = vmatprep.subr.mxu0 0.0
    %821 = vmatpush1.msra.mxu0 %v781
    %822 = vmatprep.subr.mxu0 0.0
    %823 = vmatpush1.msra.mxu0 %v782
    %824 = vmatprep.subr.mxu0 0.0
    %825 = vmatpush1.msra.mxu0 %v783
    %826 = vmatprep.subr.mxu0 0.0
    %827 = vmatpush1.msra.mxu0 %v784
    %828 = vmatprep.subr.mxu0 0.0
    %829 = vmatpush1.msra.mxu0 %v785
    %830 = vmatprep.subr.mxu0 0.0
    %831 = vmatpush1.msra.mxu0 %v786
    %832 = vmatprep.subr.mxu0 0.0
    %833 = vmatpush1.msra.mxu0 %v787
    %834 = vmatprep.subr.mxu0 0.0
    %835 = vmatpush1.msra.mxu0 %v788
    %836 = vmatprep.subr.mxu0 0.0
    %837 = vmatpush1.msra.mxu0 %v789
    %838 = vmatprep.subr.mxu0 0.0
    %839 = vmatpush1.msra.mxu0 %v790
    %840 = vmatprep.subr.mxu0 0.0
    %841 = vmatpush1.msra.mxu0 %v791
    %842 = vmatprep.subr.mxu0 0.0
    %843 = vmatpush1.msra.mxu0 %v792
    %844 = vmatprep.subr.mxu0 0.0
    %845 = vmatpush1.msra.mxu0 %v793
    %846 = vmatprep.subr.mxu0 0.0
    %847 = vmatpush1.msra.mxu0 0.0
    %848 = vmatprep.subr.mxu0 0.0
    %849 = vmatpush1.msra.mxu0 0.0
    %850 = vmatprep.subr.mxu0 0.0
    %851 = vmatpush1.msra.mxu0 0.0
    %852 = vmatprep.subr.mxu0 0.0
    %853 = vmatpush1.msra.mxu0 0.0
    %854 = vmatprep.subr.mxu0 0.0
    %855 = vmatpush1.msra.mxu0 0.0
    %856 = vmatprep.subr.mxu0 0.0
    %857 = vmatpush1.msra.mxu0 0.0
    %858 = vmatprep.subr.mxu0 0.0
    %859 = vmatpush1.msra.mxu0 0.0
    %860 = vmatprep.subr.mxu0 0.0
    %861 = vmatpush1.msra.mxu0 0.0
    %862 = vmatprep.subr.mxu0 0.0
    %863 = vmatpush1.msra.mxu0 0.0
    %864 = vmatprep.subr.mxu0 0.0
    %865 = vmatpush1.msra.mxu0 0.0
    %866 = vmatprep.subr.mxu0 0.0
    %867 = vmatpush1.msra.mxu0 0.0
    %868 = vmatprep.subr.mxu0 0.0
    %869 = vmatpush1.msra.mxu0 0.0
    %870 = vmatprep.mubr.f32.mxu0 %v795
    %871 = vmatmul.mubr.f32.gmra.mrb[0].mxu0 %v766
    %v872 = vpop.f32.mrb[0].mxu0
    %v873 = vadd.f32 0.0, %v872
    %v874 = vpop.f32.mrb[0].mxu0
    %875 = vmatprep.mubr.f32.mxu0 %v798
    %876 = vmatmul.mubr.f32.gmra.mrb[0].mxu0 %v768
    %v877 = vpop.f32.mrb[0].mxu0
    %v878 = vadd.f32 0.0, %v877
    %v879 = vpop.f32.mrb[0].mxu0
    %880 = vmatprep.mubr.f32.mxu0 %v801
    %881 = vmatmul.mubr.f32.gmra.mrb[0].mxu0 %v770
    %v882 = vpop.f32.mrb[0].mxu0
    %v883 = vadd.f32 0.0, %v882
    %v884 = vpop.f32.mrb[0].mxu0
    %885 = vmatprep.mubr.f32.mxu0 %v804
    %886 = vmatmul.mubr.f32.gmra.mrb[0].mxu0 %v772
    %v887 = vpop.f32.mrb[0].mxu0
    %v888 = vadd.f32 0.0, %v887
    %v889 = vpop.f32.mrb[0].mxu0
    %890 = vdwg.mxu0
    %v891 = vadd.f32 %v762, %v873
    %v892 = vadd.f32 %v762, %v878
    %v893 = vadd.f32 %v762, %v883
    %v894 = vadd.f32 %v762, %v888
    %s895 = sadd.s32 %s754, 1
    %s896 = smul.u32 %s895, 8
    %s897 = smul.addr %s896, 8
    %s898 = scalar_lea.vmem [#allocation2], %s897
    %v899 = vld [vmem:[%s898] sm:$0xff]
    %v900 = vld [vmem:[%s898 + $0x8] sm:$0xff]
    %v901 = vld [vmem:[%s898 + $0x10] sm:$0xff]
    %v902 = vld [vmem:[%s898 + $0x18] sm:$0xff]
    %v903 = vld [vmem:[%s898 + $0x20] sm:$0xff]
    %v904 = vld [vmem:[%s898 + $0x28] sm:$0xff]
    %v905 = vld [vmem:[%s898 + $0x30] sm:$0x3f]
    %v906 = vld [vmem:[%s898 + $0x38] sm:$0x3f]
    %s907 = scalar_lea.vmem %s3, 160
    %v908 = vld [vmem:[%s907] sm:$0xff]
    %v909 = vld [vmem:[%s907 + $0x8] sm:$0xff]
    %v910 = vld [vmem:[%s907 + $0x10] sm:$0xff]
    %v911 = vld [vmem:[%s907 + $0x18] sm:$0xff]
    %v912 = vld [vmem:[%s907 + $0x20] sm:$0xff]
    %v913 = vld [vmem:[%s907 + $0x28] sm:$0xff]
    %v914 = vld [vmem:[%s907 + $0x30] sm:$0xff]
    %v915 = vld [vmem:[%s907 + $0x38] sm:$0xff]
    %v916 = vld [vmem:[%s907 + $0x40] sm:$0xff]
    %v917 = vld [vmem:[%s907 + $0x48] sm:$0xff]
    %v918 = vld [vmem:[%s907 + $0x50] sm:$0xff]
    %v919 = vld [vmem:[%s907 + $0x58] sm:$0xff]
    %v920 = vld [vmem:[%s907 + $0x60] sm:$0xff]
    %v921 = vld [vmem:[%s907 + $0x68] sm:$0xff]
    %v922 = vld [vmem:[%s907 + $0x70] sm:$0xff]
    %v923 = vld [vmem:[%s907 + $0x78] sm:$0xff]
    %v924 = vld [vmem:[%s907 + $0x80] sm:$0xff]
    %v925 = vld [vmem:[%s907 + $0x88] sm:$0xff]
    %v926 = vld [vmem:[%s907 + $0x90] sm:$0xff]
    %v927 = vld [vmem:[%s907 + $0x98] sm:$0xff]
    %v929 = vsel %vm33, %v900, 0
    %v932 = vsel %vm33, %v902, 0
    %v935 = vsel %vm33, %v904, 0
    %v938 = vsel %vm33, %v906, 0
    %940 = vmatprep.subr.mxu0 0.0
    %941 = vmatpush1.msra.mxu0 %v908
    %942 = vmatprep.subr.mxu0 0.0
    %943 = vmatpush1.msra.mxu0 %v909
    %944 = vmatprep.subr.mxu0 0.0
    %945 = vmatpush1.msra.mxu0 %v910
    %946 = vmatprep.subr.mxu0 0.0
    %947 = vmatpush1.msra.mxu0 %v911
    %948 = vmatprep.subr.mxu0 0.0
    %949 = vmatpush1.msra.mxu0 %v912
    %950 = vmatprep.subr.mxu0 0.0
    %951 = vmatpush1.msra.mxu0 %v913
    %952 = vmatprep.subr.mxu0 0.0
    %953 = vmatpush1.msra.mxu0 %v914
    %954 = vmatprep.subr.mxu0 0.0
    %955 = vmatpush1.msra.mxu0 %v915
    %956 = vmatprep.subr.mxu0 0.0
    %957 = vmatpush1.msra.mxu0 %v916
    %958 = vmatprep.subr.mxu0 0.0
    %959 = vmatpush1.msra.mxu0 %v917
    %960 = vmatprep.subr.mxu0 0.0
    %961 = vmatpush1.msra.mxu0 %v918
    %962 = vmatprep.subr.mxu0 0.0
    %963 = vmatpush1.msra.mxu0 %v919
    %964 = vmatprep.subr.mxu0 0.0
    %965 = vmatpush1.msra.mxu0 %v920
    %966 = vmatprep.subr.mxu0 0.0
    %967 = vmatpush1.msra.mxu0 %v921
    %968 = vmatprep.subr.mxu0 0.0
    %969 = vmatpush1.msra.mxu0 %v922
    %970 = vmatprep.subr.mxu0 0.0
    %971 = vmatpush1.msra.mxu0 %v923
    %972 = vmatprep.subr.mxu0 0.0
    %973 = vmatpush1.msra.mxu0 %v924
    %974 = vmatprep.subr.mxu0 0.0
    %975 = vmatpush1.msra.mxu0 %v925
    %976 = vmatprep.subr.mxu0 0.0
    %977 = vmatpush1.msra.mxu0 %v926
    %978 = vmatprep.subr.mxu0 0.0
    %979 = vmatpush1.msra.mxu0 %v927
    %980 = vmatprep.subr.mxu0 0.0
    %981 = vmatpush1.msra.mxu0 0.0
    %982 = vmatprep.subr.mxu0 0.0
    %983 = vmatpush1.msra.mxu0 0.0
    %984 = vmatprep.subr.mxu0 0.0
    %985 = vmatpush1.msra.mxu0 0.0
    %986 = vmatprep.subr.mxu0 0.0
    %987 = vmatpush1.msra.mxu0 0.0
    %988 = vmatprep.subr.mxu0 0.0
    %989 = vmatpush1.msra.mxu0 0.0
    %990 = vmatprep.subr.mxu0 0.0
    %991 = vmatpush1.msra.mxu0 0.0
    %992 = vmatprep.subr.mxu0 0.0
    %993 = vmatpush1.msra.mxu0 0.0
    %994 = vmatprep.subr.mxu0 0.0
    %995 = vmatpush1.msra.mxu0 0.0
    %996 = vmatprep.subr.mxu0 0.0
    %997 = vmatpush1.msra.mxu0 0.0
    %998 = vmatprep.subr.mxu0 0.0
    %999 = vmatpush1.msra.mxu0 0.0
    %1000 = vmatprep.subr.mxu0 0.0
    %1001 = vmatpush1.msra.mxu0 0.0
    %1002 = vmatprep.subr.mxu0 0.0
    %1003 = vmatpush1.msra.mxu0 0.0
    %1004 = vmatprep.mubr.f32.mxu0 %v929
    %1005 = vmatmul.mubr.f32.gmra.mrb[0].mxu0 %v899
    %v1006 = vpop.f32.mrb[0].mxu0
    %v1007 = vadd.f32 0.0, %v1006
    %v1008 = vpop.f32.mrb[0].mxu0
    %1009 = vmatprep.mubr.f32.mxu0 %v932
    %1010 = vmatmul.mubr.f32.gmra.mrb[0].mxu0 %v901
    %v1011 = vpop.f32.mrb[0].mxu0
    %v1012 = vadd.f32 0.0, %v1011
    %v1013 = vpop.f32.mrb[0].mxu0
    %1014 = vmatprep.mubr.f32.mxu0 %v935
    %1015 = vmatmul.mubr.f32.gmra.mrb[0].mxu0 %v903
    %v1016 = vpop.f32.mrb[0].mxu0
    %v1017 = vadd.f32 0.0, %v1016
    %v1018 = vpop.f32.mrb[0].mxu0
    %1019 = vmatprep.mubr.f32.mxu0 %v938
    %1020 = vmatmul.mubr.f32.gmra.mrb[0].mxu0 %v905
    %v1021 = vpop.f32.mrb[0].mxu0
    %v1022 = vadd.f32 0.0, %v1021
    %v1023 = vpop.f32.mrb[0].mxu0
    %1024 = vdwg.mxu0
    %v1025 = vadd.f32 %v891, %v1007
    %v1026 = vadd.f32 %v892, %v1012
    %v1027 = vadd.f32 %v893, %v1017
    %v1028 = vadd.f32 %v894, %v1022
    %s1029 = sadd.s32 %s754, 2
    %s1030 = smul.u32 %s1029, 8
    %s1031 = smul.addr %s1030, 8
    %s1032 = scalar_lea.vmem [#allocation2], %s1031
    %v1033 = vld [vmem:[%s1032] sm:$0xff]
    %v1034 = vld [vmem:[%s1032 + $0x8] sm:$0xff]
    %v1035 = vld [vmem:[%s1032 + $0x10] sm:$0xff]
    %v1036 = vld [vmem:[%s1032 + $0x18] sm:$0xff]
    %v1037 = vld [vmem:[%s1032 + $0x20] sm:$0xff]
    %v1038 = vld [vmem:[%s1032 + $0x28] sm:$0xff]
    %v1039 = vld [vmem:[%s1032 + $0x30] sm:$0x3f]
    %v1040 = vld [vmem:[%s1032 + $0x38] sm:$0x3f]
    %s1041 = scalar_lea.vmem %s3, 320
    %v1042 = vld [vmem:[%s1041] sm:$0xff]
    %v1043 = vld [vmem:[%s1041 + $0x8] sm:$0xff]
    %v1044 = vld [vmem:[%s1041 + $0x10] sm:$0xff]
    %v1045 = vld [vmem:[%s1041 + $0x18] sm:$0xff]
    %v1046 = vld [vmem:[%s1041 + $0x20] sm:$0xff]
    %v1047 = vld [vmem:[%s1041 + $0x28] sm:$0xff]
    %v1048 = vld [vmem:[%s1041 + $0x30] sm:$0xff]
    %v1049 = vld [vmem:[%s1041 + $0x38] sm:$0xff]
    %v1050 = vld [vmem:[%s1041 + $0x40] sm:$0xff]
    %v1051 = vld [vmem:[%s1041 + $0x48] sm:$0xff]
    %v1052 = vld [vmem:[%s1041 + $0x50] sm:$0xff]
    %v1053 = vld [vmem:[%s1041 + $0x58] sm:$0xff]
    %v1054 = vld [vmem:[%s1041 + $0x60] sm:$0xff]
    %v1055 = vld [vmem:[%s1041 + $0x68] sm:$0xff]
    %v1056 = vld [vmem:[%s1041 + $0x70] sm:$0xff]
    %v1057 = vld [vmem:[%s1041 + $0x78] sm:$0xff]
    %v1058 = vld [vmem:[%s1041 + $0x80] sm:$0xff]
    %v1059 = vld [vmem:[%s1041 + $0x88] sm:$0xff]
    %v1060 = vld [vmem:[%s1041 + $0x90] sm:$0xff]
    %v1061 = vld [vmem:[%s1041 + $0x98] sm:$0xff]
    %v1063 = vsel %vm33, %v1034, 0
    %v1066 = vsel %vm33, %v1036, 0
    %v1069 = vsel %vm33, %v1038, 0
    %v1072 = vsel %vm33, %v1040, 0
    %1074 = vmatprep.subr.mxu0 0.0
    %1075 = vmatpush1.msra.mxu0 %v1042
    %1076 = vmatprep.subr.mxu0 0.0
    %1077 = vmatpush1.msra.mxu0 %v1043
    %1078 = vmatprep.subr.mxu0 0.0
    %1079 = vmatpush1.msra.mxu0 %v1044
    %1080 = vmatprep.subr.mxu0 0.0
    %1081 = vmatpush1.msra.mxu0 %v1045
    %1082 = vmatprep.subr.mxu0 0.0
    %1083 = vmatpush1.msra.mxu0 %v1046
    %1084 = vmatprep.subr.mxu0 0.0
    %1085 = vmatpush1.msra.mxu0 %v1047
    %1086 = vmatprep.subr.mxu0 0.0
    %1087 = vmatpush1.msra.mxu0 %v1048
    %1088 = vmatprep.subr.mxu0 0.0
    %1089 = vmatpush1.msra.mxu0 %v1049
    %1090 = vmatprep.subr.mxu0 0.0
    %1091 = vmatpush1.msra.mxu0 %v1050
    %1092 = vmatprep.subr.mxu0 0.0
    %1093 = vmatpush1.msra.mxu0 %v1051
    %1094 = vmatprep.subr.mxu0 0.0
    %1095 = vmatpush1.msra.mxu0 %v1052
    %1096 = vmatprep.subr.mxu0 0.0
    %1097 = vmatpush1.msra.mxu0 %v1053
    %1098 = vmatprep.subr.mxu0 0.0
    %1099 = vmatpush1.msra.mxu0 %v1054
    %1100 = vmatprep.subr.mxu0 0.0
    %1101 = vmatpush1.msra.mxu0 %v1055
    %1102 = vmatprep.subr.mxu0 0.0
    %1103 = vmatpush1.msra.mxu0 %v1056
    %1104 = vmatprep.subr.mxu0 0.0
    %1105 = vmatpush1.msra.mxu0 %v1057
    %1106 = vmatprep.subr.mxu0 0.0
    %1107 = vmatpush1.msra.mxu0 %v1058
    %1108 = vmatprep.subr.mxu0 0.0
    %1109 = vmatpush1.msra.mxu0 %v1059
    %1110 = vmatprep.subr.mxu0 0.0
    %1111 = vmatpush1.msra.mxu0 %v1060
    %1112 = vmatprep.subr.mxu0 0.0
    %1113 = vmatpush1.msra.mxu0 %v1061
    %1114 = vmatprep.subr.mxu0 0.0
    %1115 = vmatpush1.msra.mxu0 0.0
    %1116 = vmatprep.subr.mxu0 0.0
    %1117 = vmatpush1.msra.mxu0 0.0
    %1118 = vmatprep.subr.mxu0 0.0
    %1119 = vmatpush1.msra.mxu0 0.0
    %1120 = vmatprep.subr.mxu0 0.0
    %1121 = vmatpush1.msra.mxu0 0.0
    %1122 = vmatprep.subr.mxu0 0.0
    %1123 = vmatpush1.msra.mxu0 0.0
    %1124 = vmatprep.subr.mxu0 0.0
    %1125 = vmatpush1.msra.mxu0 0.0
    %1126 = vmatprep.subr.mxu0 0.0
    %1127 = vmatpush1.msra.mxu0 0.0
    %1128 = vmatprep.subr.mxu0 0.0
    %1129 = vmatpush1.msra.mxu0 0.0
    %1130 = vmatprep.subr.mxu0 0.0
    %1131 = vmatpush1.msra.mxu0 0.0
    %1132 = vmatprep.subr.mxu0 0.0
    %1133 = vmatpush1.msra.mxu0 0.0
    %1134 = vmatprep.subr.mxu0 0.0
    %1135 = vmatpush1.msra.mxu0 0.0
    %1136 = vmatprep.subr.mxu0 0.0
    %1137 = vmatpush1.msra.mxu0 0.0
    %1138 = vmatprep.mubr.f32.mxu0 %v1063
    %1139 = vmatmul.mubr.f32.gmra.mrb[0].mxu0 %v1033
    %v1140 = vpop.f32.mrb[0].mxu0
    %v1141 = vadd.f32 0.0, %v1140
    %v1142 = vpop.f32.mrb[0].mxu0
    %1143 = vmatprep.mubr.f32.mxu0 %v1066
    %1144 = vmatmul.mubr.f32.gmra.mrb[0].mxu0 %v1035
    %v1145 = vpop.f32.mrb[0].mxu0
    %v1146 = vadd.f32 0.0, %v1145
    %v1147 = vpop.f32.mrb[0].mxu0
    %1148 = vmatprep.mubr.f32.mxu0 %v1069
    %1149 = vmatmul.mubr.f32.gmra.mrb[0].mxu0 %v1037
    %v1150 = vpop.f32.mrb[0].mxu0
    %v1151 = vadd.f32 0.0, %v1150
    %v1152 = vpop.f32.mrb[0].mxu0
    %1153 = vmatprep.mubr.f32.mxu0 %v1072
    %1154 = vmatmul.mubr.f32.gmra.mrb[0].mxu0 %v1039
    %v1155 = vpop.f32.mrb[0].mxu0
    %v1156 = vadd.f32 0.0, %v1155
    %v1157 = vpop.f32.mrb[0].mxu0
    %1158 = vdwg.mxu0
    %v1159 = vadd.f32 %v1025, %v1141
    %v1160 = vadd.f32 %v1026, %v1146
    %v1161 = vadd.f32 %v1027, %v1151
    %v1162 = vadd.f32 %v1028, %v1156
    %s1163 = sadd.s32 %s754, 3
    %s1164 = smul.u32 %s1163, 8
    %s1165 = smul.addr %s1164, 8
    %s1166 = scalar_lea.vmem [#allocation2], %s1165
    %v1167 = vld [vmem:[%s1166] sm:$0xff]
    %v1168 = vld [vmem:[%s1166 + $0x8] sm:$0xff]
    %v1169 = vld [vmem:[%s1166 + $0x10] sm:$0xff]
    %v1170 = vld [vmem:[%s1166 + $0x18] sm:$0xff]
    %v1171 = vld [vmem:[%s1166 + $0x20] sm:$0xff]
    %v1172 = vld [vmem:[%s1166 + $0x28] sm:$0xff]
    %v1173 = vld [vmem:[%s1166 + $0x30] sm:$0x3f]
    %v1174 = vld [vmem:[%s1166 + $0x38] sm:$0x3f]
    %s1175 = scalar_lea.vmem %s3, 480
    %v1176 = vld [vmem:[%s1175] sm:$0xff]
    %v1177 = vld [vmem:[%s1175 + $0x8] sm:$0xff]
    %v1178 = vld [vmem:[%s1175 + $0x10] sm:$0xff]
    %v1179 = vld [vmem:[%s1175 + $0x18] sm:$0xff]
    %v1180 = vld [vmem:[%s1175 + $0x20] sm:$0xff]
    %v1181 = vld [vmem:[%s1175 + $0x28] sm:$0xff]
    %v1182 = vld [vmem:[%s1175 + $0x30] sm:$0xff]
    %v1183 = vld [vmem:[%s1175 + $0x38] sm:$0xff]
    %v1184 = vld [vmem:[%s1175 + $0x40] sm:$0xff]
    %v1185 = vld [vmem:[%s1175 + $0x48] sm:$0xff]
    %v1186 = vld [vmem:[%s1175 + $0x50] sm:$0xff]
    %v1187 = vld [vmem:[%s1175 + $0x58] sm:$0xff]
    %v1188 = vld [vmem:[%s1175 + $0x60] sm:$0xff]
    %v1189 = vld [vmem:[%s1175 + $0x68] sm:$0xff]
    %v1190 = vld [vmem:[%s1175 + $0x70] sm:$0xff]
    %v1191 = vld [vmem:[%s1175 + $0x78] sm:$0xff]
    %v1192 = vld [vmem:[%s1175 + $0x80] sm:$0xff]
    %v1193 = vld [vmem:[%s1175 + $0x88] sm:$0xff]
    %v1194 = vld [vmem:[%s1175 + $0x90] sm:$0xff]
    %v1195 = vld [vmem:[%s1175 + $0x98] sm:$0xff]
    %v1197 = vsel %vm33, %v1168, 0
    %v1200 = vsel %vm33, %v1170, 0
    %v1203 = vsel %vm33, %v1172, 0
    %v1206 = vsel %vm33, %v1174, 0
    %1208 = vmatprep.subr.mxu0 0.0
    %1209 = vmatpush1.msra.mxu0 %v1176
    %1210 = vmatprep.subr.mxu0 0.0
    %1211 = vmatpush1.msra.mxu0 %v1177
    %1212 = vmatprep.subr.mxu0 0.0
    %1213 = vmatpush1.msra.mxu0 %v1178
    %1214 = vmatprep.subr.mxu0 0.0
    %1215 = vmatpush1.msra.mxu0 %v1179
    %1216 = vmatprep.subr.mxu0 0.0
    %1217 = vmatpush1.msra.mxu0 %v1180
    %1218 = vmatprep.subr.mxu0 0.0
    %1219 = vmatpush1.msra.mxu0 %v1181
    %1220 = vmatprep.subr.mxu0 0.0
    %1221 = vmatpush1.msra.mxu0 %v1182
    %1222 = vmatprep.subr.mxu0 0.0
    %1223 = vmatpush1.msra.mxu0 %v1183
    %1224 = vmatprep.subr.mxu0 0.0
    %1225 = vmatpush1.msra.mxu0 %v1184
    %1226 = vmatprep.subr.mxu0 0.0
    %1227 = vmatpush1.msra.mxu0 %v1185
    %1228 = vmatprep.subr.mxu0 0.0
    %1229 = vmatpush1.msra.mxu0 %v1186
    %1230 = vmatprep.subr.mxu0 0.0
    %1231 = vmatpush1.msra.mxu0 %v1187
    %1232 = vmatprep.subr.mxu0 0.0
    %1233 = vmatpush1.msra.mxu0 %v1188
    %1234 = vmatprep.subr.mxu0 0.0
    %1235 = vmatpush1.msra.mxu0 %v1189
    %1236 = vmatprep.subr.mxu0 0.0
    %1237 = vmatpush1.msra.mxu0 %v1190
    %1238 = vmatprep.subr.mxu0 0.0
    %1239 = vmatpush1.msra.mxu0 %v1191
    %1240 = vmatprep.subr.mxu0 0.0
    %1241 = vmatpush1.msra.mxu0 %v1192
    %1242 = vmatprep.subr.mxu0 0.0
    %1243 = vmatpush1.msra.mxu0 %v1193
    %1244 = vmatprep.subr.mxu0 0.0
    %1245 = vmatpush1.msra.mxu0 %v1194
    %1246 = vmatprep.subr.mxu0 0.0
    %1247 = vmatpush1.msra.mxu0 %v1195
    %1248 = vmatprep.subr.mxu0 0.0
    %1249 = vmatpush1.msra.mxu0 0.0
    %1250 = vmatprep.subr.mxu0 0.0
    %1251 = vmatpush1.msra.mxu0 0.0
    %1252 = vmatprep.subr.mxu0 0.0
    %1253 = vmatpush1.msra.mxu0 0.0
    %1254 = vmatprep.subr.mxu0 0.0
    %1255 = vmatpush1.msra.mxu0 0.0
    %1256 = vmatprep.subr.mxu0 0.0
    %1257 = vmatpush1.msra.mxu0 0.0
    %1258 = vmatprep.subr.mxu0 0.0
    %1259 = vmatpush1.msra.mxu0 0.0
    %1260 = vmatprep.subr.mxu0 0.0
    %1261 = vmatpush1.msra.mxu0 0.0
    %1262 = vmatprep.subr.mxu0 0.0
    %1263 = vmatpush1.msra.mxu0 0.0
    %1264 = vmatprep.subr.mxu0 0.0
    %1265 = vmatpush1.msra.mxu0 0.0
    %1266 = vmatprep.subr.mxu0 0.0
    %1267 = vmatpush1.msra.mxu0 0.0
    %1268 = vmatprep.subr.mxu0 0.0
    %1269 = vmatpush1.msra.mxu0 0.0
    %1270 = vmatprep.subr.mxu0 0.0
    %1271 = vmatpush1.msra.mxu0 0.0
    %1272 = vmatprep.mubr.f32.mxu0 %v1197
    %1273 = vmatmul.mubr.f32.gmra.mrb[0].mxu0 %v1167
    %v1274 = vpop.f32.mrb[0].mxu0
    %v1275 = vadd.f32 0.0, %v1274
    %v1276 = vpop.f32.mrb[0].mxu0
    %1277 = vmatprep.mubr.f32.mxu0 %v1200
    %1278 = vmatmul.mubr.f32.gmra.mrb[0].mxu0 %v1169
    %v1279 = vpop.f32.mrb[0].mxu0
    %v1280 = vadd.f32 0.0, %v1279
    %v1281 = vpop.f32.mrb[0].mxu0
    %1282 = vmatprep.mubr.f32.mxu0 %v1203
    %1283 = vmatmul.mubr.f32.gmra.mrb[0].mxu0 %v1171
    %v1284 = vpop.f32.mrb[0].mxu0
    %v1285 = vadd.f32 0.0, %v1284
    %v1286 = vpop.f32.mrb[0].mxu0
    %1287 = vmatprep.mubr.f32.mxu0 %v1206
    %1288 = vmatmul.mubr.f32.gmra.mrb[0].mxu0 %v1173
    %v1289 = vpop.f32.mrb[0].mxu0
    %v1290 = vadd.f32 0.0, %v1289
    %v1291 = vpop.f32.mrb[0].mxu0
    %1292 = vdwg.mxu0
    %v1293 = vadd.f32 %v1159, %v1275
    %v1294 = vadd.f32 %v1160, %v1280
    %v1295 = vadd.f32 %v1161, %v1285
    %v1296 = vadd.f32 %v1162, %v1290
    %s1297 = sadd.s32 %s754, 4
    %s1298 = smul.u32 %s1297, 8
    %s1299 = smul.addr %s1298, 8
    %s1300 = scalar_lea.vmem [#allocation2], %s1299
    %v1301 = vld [vmem:[%s1300] sm:$0xff]
    %v1302 = vld [vmem:[%s1300 + $0x8] sm:$0xff]
    %v1303 = vld [vmem:[%s1300 + $0x10] sm:$0xff]
    %v1304 = vld [vmem:[%s1300 + $0x18] sm:$0xff]
    %v1305 = vld [vmem:[%s1300 + $0x20] sm:$0xff]
    %v1306 = vld [vmem:[%s1300 + $0x28] sm:$0xff]
    %v1307 = vld [vmem:[%s1300 + $0x30] sm:$0x3f]
    %v1308 = vld [vmem:[%s1300 + $0x38] sm:$0x3f]
    %s1309 = scalar_lea.vmem %s3, 640
    %v1310 = vld [vmem:[%s1309] sm:$0xff]
    %v1311 = vld [vmem:[%s1309 + $0x8] sm:$0xff]
    %v1312 = vld [vmem:[%s1309 + $0x10] sm:$0xff]
    %v1313 = vld [vmem:[%s1309 + $0x18] sm:$0xff]
    %v1314 = vld [vmem:[%s1309 + $0x20] sm:$0xff]
    %v1315 = vld [vmem:[%s1309 + $0x28] sm:$0xff]
    %v1316 = vld [vmem:[%s1309 + $0x30] sm:$0xff]
    %v1317 = vld [vmem:[%s1309 + $0x38] sm:$0xff]
    %v1318 = vld [vmem:[%s1309 + $0x40] sm:$0xff]
    %v1319 = vld [vmem:[%s1309 + $0x48] sm:$0xff]
    %v1320 = vld [vmem:[%s1309 + $0x50] sm:$0xff]
    %v1321 = vld [vmem:[%s1309 + $0x58] sm:$0xff]
    %v1322 = vld [vmem:[%s1309 + $0x60] sm:$0xff]
    %v1323 = vld [vmem:[%s1309 + $0x68] sm:$0xff]
    %v1324 = vld [vmem:[%s1309 + $0x70] sm:$0xff]
    %v1325 = vld [vmem:[%s1309 + $0x78] sm:$0xff]
    %v1326 = vld [vmem:[%s1309 + $0x80] sm:$0xff]
    %v1327 = vld [vmem:[%s1309 + $0x88] sm:$0xff]
    %v1328 = vld [vmem:[%s1309 + $0x90] sm:$0xff]
    %v1329 = vld [vmem:[%s1309 + $0x98] sm:$0xff]
    %v1331 = vsel %vm33, %v1302, 0
    %v1334 = vsel %vm33, %v1304, 0
    %v1337 = vsel %vm33, %v1306, 0
    %v1340 = vsel %vm33, %v1308, 0
    %1342 = vmatprep.subr.mxu0 0.0
    %1343 = vmatpush1.msra.mxu0 %v1310
    %1344 = vmatprep.subr.mxu0 0.0
    %1345 = vmatpush1.msra.mxu0 %v1311
    %1346 = vmatprep.subr.mxu0 0.0
    %1347 = vmatpush1.msra.mxu0 %v1312
    %1348 = vmatprep.subr.mxu0 0.0
    %1349 = vmatpush1.msra.mxu0 %v1313
    %1350 = vmatprep.subr.mxu0 0.0
    %1351 = vmatpush1.msra.mxu0 %v1314
    %1352 = vmatprep.subr.mxu0 0.0
    %1353 = vmatpush1.msra.mxu0 %v1315
    %1354 = vmatprep.subr.mxu0 0.0
    %1355 = vmatpush1.msra.mxu0 %v1316
    %1356 = vmatprep.subr.mxu0 0.0
    %1357 = vmatpush1.msra.mxu0 %v1317
    %1358 = vmatprep.subr.mxu0 0.0
    %1359 = vmatpush1.msra.mxu0 %v1318
    %1360 = vmatprep.subr.mxu0 0.0
    %1361 = vmatpush1.msra.mxu0 %v1319
    %1362 = vmatprep.subr.mxu0 0.0
    %1363 = vmatpush1.msra.mxu0 %v1320
    %1364 = vmatprep.subr.mxu0 0.0
    %1365 = vmatpush1.msra.mxu0 %v1321
    %1366 = vmatprep.subr.mxu0 0.0
    %1367 = vmatpush1.msra.mxu0 %v1322
    %1368 = vmatprep.subr.mxu0 0.0
    %1369 = vmatpush1.msra.mxu0 %v1323
    %1370 = vmatprep.subr.mxu0 0.0
    %1371 = vmatpush1.msra.mxu0 %v1324
    %1372 = vmatprep.subr.mxu0 0.0
    %1373 = vmatpush1.msra.mxu0 %v1325
    %1374 = vmatprep.subr.mxu0 0.0
    %1375 = vmatpush1.msra.mxu0 %v1326
    %1376 = vmatprep.subr.mxu0 0.0
    %1377 = vmatpush1.msra.mxu0 %v1327
    %1378 = vmatprep.subr.mxu0 0.0
    %1379 = vmatpush1.msra.mxu0 %v1328
    %1380 = vmatprep.subr.mxu0 0.0
    %1381 = vmatpush1.msra.mxu0 %v1329
    %1382 = vmatprep.subr.mxu0 0.0
    %1383 = vmatpush1.msra.mxu0 0.0
    %1384 = vmatprep.subr.mxu0 0.0
    %1385 = vmatpush1.msra.mxu0 0.0
    %1386 = vmatprep.subr.mxu0 0.0
    %1387 = vmatpush1.msra.mxu0 0.0
    %1388 = vmatprep.subr.mxu0 0.0
    %1389 = vmatpush1.msra.mxu0 0.0
    %1390 = vmatprep.subr.mxu0 0.0
    %1391 = vmatpush1.msra.mxu0 0.0
    %1392 = vmatprep.subr.mxu0 0.0
    %1393 = vmatpush1.msra.mxu0 0.0
    %1394 = vmatprep.subr.mxu0 0.0
    %1395 = vmatpush1.msra.mxu0 0.0
    %1396 = vmatprep.subr.mxu0 0.0
    %1397 = vmatpush1.msra.mxu0 0.0
    %1398 = vmatprep.subr.mxu0 0.0
    %1399 = vmatpush1.msra.mxu0 0.0
    %1400 = vmatprep.subr.mxu0 0.0
    %1401 = vmatpush1.msra.mxu0 0.0
    %1402 = vmatprep.subr.mxu0 0.0
    %1403 = vmatpush1.msra.mxu0 0.0
    %1404 = vmatprep.subr.mxu0 0.0
    %1405 = vmatpush1.msra.mxu0 0.0
    %1406 = vmatprep.mubr.f32.mxu0 %v1331
    %1407 = vmatmul.mubr.f32.gmra.mrb[0].mxu0 %v1301
    %v1408 = vpop.f32.mrb[0].mxu0
    %v1409 = vadd.f32 0.0, %v1408
    %v1410 = vpop.f32.mrb[0].mxu0
    %1411 = vmatprep.mubr.f32.mxu0 %v1334
    %1412 = vmatmul.mubr.f32.gmra.mrb[0].mxu0 %v1303
    %v1413 = vpop.f32.mrb[0].mxu0
    %v1414 = vadd.f32 0.0, %v1413
    %v1415 = vpop.f32.mrb[0].mxu0
    %1416 = vmatprep.mubr.f32.mxu0 %v1337
    %1417 = vmatmul.mubr.f32.gmra.mrb[0].mxu0 %v1305
    %v1418 = vpop.f32.mrb[0].mxu0
    %v1419 = vadd.f32 0.0, %v1418
    %v1420 = vpop.f32.mrb[0].mxu0
    %1421 = vmatprep.mubr.f32.mxu0 %v1340
    %1422 = vmatmul.mubr.f32.gmra.mrb[0].mxu0 %v1307
    %v1423 = vpop.f32.mrb[0].mxu0
    %v1424 = vadd.f32 0.0, %v1423
    %v1425 = vpop.f32.mrb[0].mxu0
    %1426 = vdwg.mxu0
    %v1427 = vadd.f32 %v1293, %v1409
    %v1428 = vadd.f32 %v1294, %v1414
    %v1429 = vadd.f32 %v1295, %v1419
    %v1430 = vadd.f32 %v1296, %v1424
    %1431 = vmatprep.subr.mxu0 0.0
    %1432 = vmatpush1.msra.mxu0 %v774
    %1433 = vmatprep.subr.mxu0 0.0
    %1434 = vmatpush1.msra.mxu0 %v775
    %1435 = vmatprep.subr.mxu0 0.0
    %1436 = vmatpush1.msra.mxu0 %v776
    %1437 = vmatprep.subr.mxu0 0.0
    %1438 = vmatpush1.msra.mxu0 %v777
    %1439 = vmatprep.subr.mxu0 0.0
    %1440 = vmatpush1.msra.mxu0 %v778
    %1441 = vmatprep.subr.mxu0 0.0
    %1442 = vmatpush1.msra.mxu0 %v779
    %1443 = vmatprep.subr.mxu0 0.0
    %1444 = vmatpush1.msra.mxu0 %v780
    %1445 = vmatprep.subr.mxu0 0.0
    %1446 = vmatpush1.msra.mxu0 %v781
    %1447 = vmatprep.subr.mxu0 0.0
    %1448 = vmatpush1.msra.mxu0 %v782
    %1449 = vmatprep.subr.mxu0 0.0
    %1450 = vmatpush1.msra.mxu0 %v783
    %1451 = vmatprep.subr.mxu0 0.0
    %1452 = vmatpush1.msra.mxu0 %v784
    %1453 = vmatprep.subr.mxu0 0.0
    %1454 = vmatpush1.msra.mxu0 %v785
    %1455 = vmatprep.subr.mxu0 0.0
    %1456 = vmatpush1.msra.mxu0 %v786
    %1457 = vmatprep.subr.mxu0 0.0
    %1458 = vmatpush1.msra.mxu0 %v787
    %1459 = vmatprep.subr.mxu0 0.0
    %1460 = vmatpush1.msra.mxu0 %v788
    %1461 = vmatprep.subr.mxu0 0.0
    %1462 = vmatpush1.msra.mxu0 %v789
    %1463 = vmatprep.subr.mxu0 0.0
    %1464 = vmatpush1.msra.mxu0 %v790
    %1465 = vmatprep.subr.mxu0 0.0
    %1466 = vmatpush1.msra.mxu0 %v791
    %1467 = vmatprep.subr.mxu0 0.0
    %1468 = vmatpush1.msra.mxu0 %v792
    %1469 = vmatprep.subr.mxu0 0.0
    %1470 = vmatpush1.msra.mxu0 %v793
    %1471 = vmatprep.subr.mxu0 0.0
    %1472 = vmatpush1.msra.mxu0 0.0
    %1473 = vmatprep.subr.mxu0 0.0
    %1474 = vmatpush1.msra.mxu0 0.0
    %1475 = vmatprep.subr.mxu0 0.0
    %1476 = vmatpush1.msra.mxu0 0.0
    %1477 = vmatprep.subr.mxu0 0.0
    %1478 = vmatpush1.msra.mxu0 0.0
    %1479 = vmatprep.subr.mxu0 0.0
    %1480 = vmatpush1.msra.mxu0 0.0
    %1481 = vmatprep.subr.mxu0 0.0
    %1482 = vmatpush1.msra.mxu0 0.0
    %1483 = vmatprep.subr.mxu0 0.0
    %1484 = vmatpush1.msra.mxu0 0.0
    %1485 = vmatprep.subr.mxu0 0.0
    %1486 = vmatpush1.msra.mxu0 0.0
    %1487 = vmatprep.subr.mxu0 0.0
    %1488 = vmatpush1.msra.mxu0 0.0
    %1489 = vmatprep.subr.mxu0 0.0
    %1490 = vmatpush1.msra.mxu0 0.0
    %1491 = vmatprep.subr.mxu0 0.0
    %1492 = vmatpush1.msra.mxu0 0.0
    %1493 = vmatprep.subr.mxu0 0.0
    %1494 = vmatpush1.msra.mxu0 0.0
    %1495 = vmatprep.mubr.f32.mxu0 %v929
    %1496 = vmatmul.mubr.f32.gmra.mrb[0].mxu0 %v899
    %v1497 = vpop.f32.mrb[0].mxu0
    %v1498 = vadd.f32 0.0, %v1497
    %v1499 = vpop.f32.mrb[0].mxu0
    %1500 = vmatprep.mubr.f32.mxu0 %v932
    %1501 = vmatmul.mubr.f32.gmra.mrb[0].mxu0 %v901
    %v1502 = vpop.f32.mrb[0].mxu0
    %v1503 = vadd.f32 0.0, %v1502
    %v1504 = vpop.f32.mrb[0].mxu0
    %1505 = vmatprep.mubr.f32.mxu0 %v935
    %1506 = vmatmul.mubr.f32.gmra.mrb[0].mxu0 %v903
    %v1507 = vpop.f32.mrb[0].mxu0
    %v1508 = vadd.f32 0.0, %v1507
    %v1509 = vpop.f32.mrb[0].mxu0
    %1510 = vmatprep.mubr.f32.mxu0 %v938
    %1511 = vmatmul.mubr.f32.gmra.mrb[0].mxu0 %v905
    %v1512 = vpop.f32.mrb[0].mxu0
    %v1513 = vadd.f32 0.0, %v1512
    %v1514 = vpop.f32.mrb[0].mxu0
    %1515 = vdwg.mxu0
    %v1516 = vadd.f32 %v762, %v1498
    %v1517 = vadd.f32 %v762, %v1503
    %v1518 = vadd.f32 %v762, %v1508
    %v1519 = vadd.f32 %v762, %v1513
    %1520 = vmatprep.subr.mxu0 0.0
    %1521 = vmatpush1.msra.mxu0 %v908
    %1522 = vmatprep.subr.mxu0 0.0
    %1523 = vmatpush1.msra.mxu0 %v909
    %1524 = vmatprep.subr.mxu0 0.0
    %1525 = vmatpush1.msra.mxu0 %v910
    %1526 = vmatprep.subr.mxu0 0.0
    %1527 = vmatpush1.msra.mxu0 %v911
    %1528 = vmatprep.subr.mxu0 0.0
    %1529 = vmatpush1.msra.mxu0 %v912
    %1530 = vmatprep.subr.mxu0 0.0
    %1531 = vmatpush1.msra.mxu0 %v913
    %1532 = vmatprep.subr.mxu0 0.0
    %1533 = vmatpush1.msra.mxu0 %v914
    %1534 = vmatprep.subr.mxu0 0.0
    %1535 = vmatpush1.msra.mxu0 %v915
    %1536 = vmatprep.subr.mxu0 0.0
    %1537 = vmatpush1.msra.mxu0 %v916
    %1538 = vmatprep.subr.mxu0 0.0
    %1539 = vmatpush1.msra.mxu0 %v917
    %1540 = vmatprep.subr.mxu0 0.0
    %1541 = vmatpush1.msra.mxu0 %v918
    %1542 = vmatprep.subr.mxu0 0.0
    %1543 = vmatpush1.msra.mxu0 %v919
    %1544 = vmatprep.subr.mxu0 0.0
    %1545 = vmatpush1.msra.mxu0 %v920
    %1546 = vmatprep.subr.mxu0 0.0
    %1547 = vmatpush1.msra.mxu0 %v921
    %1548 = vmatprep.subr.mxu0 0.0
    %1549 = vmatpush1.msra.mxu0 %v922
    %1550 = vmatprep.subr.mxu0 0.0
    %1551 = vmatpush1.msra.mxu0 %v923
    %1552 = vmatprep.subr.mxu0 0.0
    %1553 = vmatpush1.msra.mxu0 %v924
    %1554 = vmatprep.subr.mxu0 0.0
    %1555 = vmatpush1.msra.mxu0 %v925
    %1556 = vmatprep.subr.mxu0 0.0
    %1557 = vmatpush1.msra.mxu0 %v926
    %1558 = vmatprep.subr.mxu0 0.0
    %1559 = vmatpush1.msra.mxu0 %v927
    %1560 = vmatprep.subr.mxu0 0.0
    %1561 = vmatpush1.msra.mxu0 0.0
    %1562 = vmatprep.subr.mxu0 0.0
    %1563 = vmatpush1.msra.mxu0 0.0
    %1564 = vmatprep.subr.mxu0 0.0
    %1565 = vmatpush1.msra.mxu0 0.0
    %1566 = vmatprep.subr.mxu0 0.0
    %1567 = vmatpush1.msra.mxu0 0.0
    %1568 = vmatprep.subr.mxu0 0.0
    %1569 = vmatpush1.msra.mxu0 0.0
    %1570 = vmatprep.subr.mxu0 0.0
    %1571 = vmatpush1.msra.mxu0 0.0
    %1572 = vmatprep.subr.mxu0 0.0
    %1573 = vmatpush1.msra.mxu0 0.0
    %1574 = vmatprep.subr.mxu0 0.0
    %1575 = vmatpush1.msra.mxu0 0.0
    %1576 = vmatprep.subr.mxu0 0.0
    %1577 = vmatpush1.msra.mxu0 0.0
    %1578 = vmatprep.subr.mxu0 0.0
    %1579 = vmatpush1.msra.mxu0 0.0
    %1580 = vmatprep.subr.mxu0 0.0
    %1581 = vmatpush1.msra.mxu0 0.0
    %1582 = vmatprep.subr.mxu0 0.0
    %1583 = vmatpush1.msra.mxu0 0.0
    %1584 = vmatprep.mubr.f32.mxu0 %v1063
    %1585 = vmatmul.mubr.f32.gmra.mrb[0].mxu0 %v1033
    %v1586 = vpop.f32.mrb[0].mxu0
    %v1587 = vadd.f32 0.0, %v1586
    %v1588 = vpop.f32.mrb[0].mxu0
    %1589 = vmatprep.mubr.f32.mxu0 %v1066
    %1590 = vmatmul.mubr.f32.gmra.mrb[0].mxu0 %v1035
    %v1591 = vpop.f32.mrb[0].mxu0
    %v1592 = vadd.f32 0.0, %v1591
    %v1593 = vpop.f32.mrb[0].mxu0
    %1594 = vmatprep.mubr.f32.mxu0 %v1069
    %1595 = vmatmul.mubr.f32.gmra.mrb[0].mxu0 %v1037
    %v1596 = vpop.f32.mrb[0].mxu0
    %v1597 = vadd.f32 0.0, %v1596
    %v1598 = vpop.f32.mrb[0].mxu0
    %1599 = vmatprep.mubr.f32.mxu0 %v1072
    %1600 = vmatmul.mubr.f32.gmra.mrb[0].mxu0 %v1039
    %v1601 = vpop.f32.mrb[0].mxu0
    %v1602 = vadd.f32 0.0, %v1601
    %v1603 = vpop.f32.mrb[0].mxu0
    %1604 = vdwg.mxu0
    %v1605 = vadd.f32 %v1516, %v1587
    %v1606 = vadd.f32 %v1517, %v1592
    %v1607 = vadd.f32 %v1518, %v1597
    %v1608 = vadd.f32 %v1519, %v1602
    %1609 = vmatprep.subr.mxu0 0.0
    %1610 = vmatpush1.msra.mxu0 %v1042
    %1611 = vmatprep.subr.mxu0 0.0
    %1612 = vmatpush1.msra.mxu0 %v1043
    %1613 = vmatprep.subr.mxu0 0.0
    %1614 = vmatpush1.msra.mxu0 %v1044
    %1615 = vmatprep.subr.mxu0 0.0
    %1616 = vmatpush1.msra.mxu0 %v1045
    %1617 = vmatprep.subr.mxu0 0.0
    %1618 = vmatpush1.msra.mxu0 %v1046
    %1619 = vmatprep.subr.mxu0 0.0
    %1620 = vmatpush1.msra.mxu0 %v1047
    %1621 = vmatprep.subr.mxu0 0.0
    %1622 = vmatpush1.msra.mxu0 %v1048
    %1623 = vmatprep.subr.mxu0 0.0
    %1624 = vmatpush1.msra.mxu0 %v1049
    %1625 = vmatprep.subr.mxu0 0.0
    %1626 = vmatpush1.msra.mxu0 %v1050
    %1627 = vmatprep.subr.mxu0 0.0
    %1628 = vmatpush1.msra.mxu0 %v1051
    %1629 = vmatprep.subr.mxu0 0.0
    %1630 = vmatpush1.msra.mxu0 %v1052
    %1631 = vmatprep.subr.mxu0 0.0
    %1632 = vmatpush1.msra.mxu0 %v1053
    %1633 = vmatprep.subr.mxu0 0.0
    %1634 = vmatpush1.msra.mxu0 %v1054
    %1635 = vmatprep.subr.mxu0 0.0
    %1636 = vmatpush1.msra.mxu0 %v1055
    %1637 = vmatprep.subr.mxu0 0.0
    %1638 = vmatpush1.msra.mxu0 %v1056
    %1639 = vmatprep.subr.mxu0 0.0
    %1640 = vmatpush1.msra.mxu0 %v1057
    %1641 = vmatprep.subr.mxu0 0.0
    %1642 = vmatpush1.msra.mxu0 %v1058
    %1643 = vmatprep.subr.mxu0 0.0
    %1644 = vmatpush1.msra.mxu0 %v1059
    %1645 = vmatprep.subr.mxu0 0.0
    %1646 = vmatpush1.msra.mxu0 %v1060
    %1647 = vmatprep.subr.mxu0 0.0
    %1648 = vmatpush1.msra.mxu0 %v1061
    %1649 = vmatprep.subr.mxu0 0.0
    %1650 = vmatpush1.msra.mxu0 0.0
    %1651 = vmatprep.subr.mxu0 0.0
    %1652 = vmatpush1.msra.mxu0 0.0
    %1653 = vmatprep.subr.mxu0 0.0
    %1654 = vmatpush1.msra.mxu0 0.0
    %1655 = vmatprep.subr.mxu0 0.0
    %1656 = vmatpush1.msra.mxu0 0.0
    %1657 = vmatprep.subr.mxu0 0.0
    %1658 = vmatpush1.msra.mxu0 0.0
    %1659 = vmatprep.subr.mxu0 0.0
    %1660 = vmatpush1.msra.mxu0 0.0
    %1661 = vmatprep.subr.mxu0 0.0
    %1662 = vmatpush1.msra.mxu0 0.0
    %1663 = vmatprep.subr.mxu0 0.0
    %1664 = vmatpush1.msra.mxu0 0.0
    %1665 = vmatprep.subr.mxu0 0.0
    %1666 = vmatpush1.msra.mxu0 0.0
    %1667 = vmatprep.subr.mxu0 0.0
    %1668 = vmatpush1.msra.mxu0 0.0
    %1669 = vmatprep.subr.mxu0 0.0
    %1670 = vmatpush1.msra.mxu0 0.0
    %1671 = vmatprep.subr.mxu0 0.0
    %1672 = vmatpush1.msra.mxu0 0.0
    %1673 = vmatprep.mubr.f32.mxu0 %v1197
    %1674 = vmatmul.mubr.f32.gmra.mrb[0].mxu0 %v1167
    %v1675 = vpop.f32.mrb[0].mxu0
    %v1676 = vadd.f32 0.0, %v1675
    %v1677 = vpop.f32.mrb[0].mxu0
    %1678 = vmatprep.mubr.f32.mxu0 %v1200
    %1679 = vmatmul.mubr.f32.gmra.mrb[0].mxu0 %v1169
    %v1680 = vpop.f32.mrb[0].mxu0
    %v1681 = vadd.f32 0.0, %v1680
    %v1682 = vpop.f32.mrb[0].mxu0
    %1683 = vmatprep.mubr.f32.mxu0 %v1203
    %1684 = vmatmul.mubr.f32.gmra.mrb[0].mxu0 %v1171
    %v1685 = vpop.f32.mrb[0].mxu0
    %v1686 = vadd.f32 0.0, %v1685
    %v1687 = vpop.f32.mrb[0].mxu0
    %1688 = vmatprep.mubr.f32.mxu0 %v1206
    %1689 = vmatmul.mubr.f32.gmra.mrb[0].mxu0 %v1173
    %v1690 = vpop.f32.mrb[0].mxu0
    %v1691 = vadd.f32 0.0, %v1690
    %v1692 = vpop.f32.mrb[0].mxu0
    %1693 = vdwg.mxu0
    %v1694 = vadd.f32 %v1605, %v1676
    %v1695 = vadd.f32 %v1606, %v1681
    %v1696 = vadd.f32 %v1607, %v1686
    %v1697 = vadd.f32 %v1608, %v1691
    %1698 = vmatprep.subr.mxu0 0.0
    %1699 = vmatpush1.msra.mxu0 %v1176
    %1700 = vmatprep.subr.mxu0 0.0
    %1701 = vmatpush1.msra.mxu0 %v1177
    %1702 = vmatprep.subr.mxu0 0.0
    %1703 = vmatpush1.msra.mxu0 %v1178
    %1704 = vmatprep.subr.mxu0 0.0
    %1705 = vmatpush1.msra.mxu0 %v1179
    %1706 = vmatprep.subr.mxu0 0.0
    %1707 = vmatpush1.msra.mxu0 %v1180
    %1708 = vmatprep.subr.mxu0 0.0
    %1709 = vmatpush1.msra.mxu0 %v1181
    %1710 = vmatprep.subr.mxu0 0.0
    %1711 = vmatpush1.msra.mxu0 %v1182
    %1712 = vmatprep.subr.mxu0 0.0
    %1713 = vmatpush1.msra.mxu0 %v1183
    %1714 = vmatprep.subr.mxu0 0.0
    %1715 = vmatpush1.msra.mxu0 %v1184
    %1716 = vmatprep.subr.mxu0 0.0
    %1717 = vmatpush1.msra.mxu0 %v1185
    %1718 = vmatprep.subr.mxu0 0.0
    %1719 = vmatpush1.msra.mxu0 %v1186
    %1720 = vmatprep.subr.mxu0 0.0
    %1721 = vmatpush1.msra.mxu0 %v1187
    %1722 = vmatprep.subr.mxu0 0.0
    %1723 = vmatpush1.msra.mxu0 %v1188
    %1724 = vmatprep.subr.mxu0 0.0
    %1725 = vmatpush1.msra.mxu0 %v1189
    %1726 = vmatprep.subr.mxu0 0.0
    %1727 = vmatpush1.msra.mxu0 %v1190
    %1728 = vmatprep.subr.mxu0 0.0
    %1729 = vmatpush1.msra.mxu0 %v1191
    %1730 = vmatprep.subr.mxu0 0.0
    %1731 = vmatpush1.msra.mxu0 %v1192
    %1732 = vmatprep.subr.mxu0 0.0
    %1733 = vmatpush1.msra.mxu0 %v1193
    %1734 = vmatprep.subr.mxu0 0.0
    %1735 = vmatpush1.msra.mxu0 %v1194
    %1736 = vmatprep.subr.mxu0 0.0
    %1737 = vmatpush1.msra.mxu0 %v1195
    %1738 = vmatprep.subr.mxu0 0.0
    %1739 = vmatpush1.msra.mxu0 0.0
    %1740 = vmatprep.subr.mxu0 0.0
    %1741 = vmatpush1.msra.mxu0 0.0
    %1742 = vmatprep.subr.mxu0 0.0
    %1743 = vmatpush1.msra.mxu0 0.0
    %1744 = vmatprep.subr.mxu0 0.0
    %1745 = vmatpush1.msra.mxu0 0.0
    %1746 = vmatprep.subr.mxu0 0.0
    %1747 = vmatpush1.msra.mxu0 0.0
    %1748 = vmatprep.subr.mxu0 0.0
    %1749 = vmatpush1.msra.mxu0 0.0
    %1750 = vmatprep.subr.mxu0 0.0
    %1751 = vmatpush1.msra.mxu0 0.0
    %1752 = vmatprep.subr.mxu0 0.0
    %1753 = vmatpush1.msra.mxu0 0.0
    %1754 = vmatprep.subr.mxu0 0.0
    %1755 = vmatpush1.msra.mxu0 0.0
    %1756 = vmatprep.subr.mxu0 0.0
    %1757 = vmatpush1.msra.mxu0 0.0
    %1758 = vmatprep.subr.mxu0 0.0
    %1759 = vmatpush1.msra.mxu0 0.0
    %1760 = vmatprep.subr.mxu0 0.0
    %1761 = vmatpush1.msra.mxu0 0.0
    %1762 = vmatprep.mubr.f32.mxu0 %v1331
    %1763 = vmatmul.mubr.f32.gmra.mrb[0].mxu0 %v1301
    %v1764 = vpop.f32.mrb[0].mxu0
    %v1765 = vadd.f32 0.0, %v1764
    %v1766 = vpop.f32.mrb[0].mxu0
    %1767 = vmatprep.mubr.f32.mxu0 %v1334
    %1768 = vmatmul.mubr.f32.gmra.mrb[0].mxu0 %v1303
    %v1769 = vpop.f32.mrb[0].mxu0
    %v1770 = vadd.f32 0.0, %v1769
    %v1771 = vpop.f32.mrb[0].mxu0
    %1772 = vmatprep.mubr.f32.mxu0 %v1337
    %1773 = vmatmul.mubr.f32.gmra.mrb[0].mxu0 %v1305
    %v1774 = vpop.f32.mrb[0].mxu0
    %v1775 = vadd.f32 0.0, %v1774
    %v1776 = vpop.f32.mrb[0].mxu0
    %1777 = vmatprep.mubr.f32.mxu0 %v1340
    %1778 = vmatmul.mubr.f32.gmra.mrb[0].mxu0 %v1307
    %v1779 = vpop.f32.mrb[0].mxu0
    %v1780 = vadd.f32 0.0, %v1779
    %v1781 = vpop.f32.mrb[0].mxu0
    %1782 = vdwg.mxu0
    %v1783 = vadd.f32 %v1694, %v1765
    %v1784 = vadd.f32 %v1695, %v1770
    %v1785 = vadd.f32 %v1696, %v1775
    %v1786 = vadd.f32 %v1697, %v1780
    %s1787 = sadd.s32 %s754, 5
    %s1788 = smul.u32 %s1787, 8
    %s1789 = smul.addr %s1788, 8
    %s1790 = scalar_lea.vmem [#allocation2], %s1789
    %v1791 = vld [vmem:[%s1790] sm:$0xff]
    %v1792 = vld [vmem:[%s1790 + $0x8] sm:$0xff]
    %v1793 = vld [vmem:[%s1790 + $0x10] sm:$0xff]
    %v1794 = vld [vmem:[%s1790 + $0x18] sm:$0xff]
    %v1795 = vld [vmem:[%s1790 + $0x20] sm:$0xff]
    %v1796 = vld [vmem:[%s1790 + $0x28] sm:$0xff]
    %v1797 = vld [vmem:[%s1790 + $0x30] sm:$0x3f]
    %v1798 = vld [vmem:[%s1790 + $0x38] sm:$0x3f]
    %v1800 = vsel %vm33, %v1792, 0
    %v1803 = vsel %vm33, %v1794, 0
    %v1806 = vsel %vm33, %v1796, 0
    %v1809 = vsel %vm33, %v1798, 0
    %1811 = vmatprep.subr.mxu0 0.0
    %1812 = vmatpush1.msra.mxu0 %v1310
    %1813 = vmatprep.subr.mxu0 0.0
    %1814 = vmatpush1.msra.mxu0 %v1311
    %1815 = vmatprep.subr.mxu0 0.0
    %1816 = vmatpush1.msra.mxu0 %v1312
    %1817 = vmatprep.subr.mxu0 0.0
    %1818 = vmatpush1.msra.mxu0 %v1313
    %1819 = vmatprep.subr.mxu0 0.0
    %1820 = vmatpush1.msra.mxu0 %v1314
    %1821 = vmatprep.subr.mxu0 0.0
    %1822 = vmatpush1.msra.mxu0 %v1315
    %1823 = vmatprep.subr.mxu0 0.0
    %1824 = vmatpush1.msra.mxu0 %v1316
    %1825 = vmatprep.subr.mxu0 0.0
    %1826 = vmatpush1.msra.mxu0 %v1317
    %1827 = vmatprep.subr.mxu0 0.0
    %1828 = vmatpush1.msra.mxu0 %v1318
    %1829 = vmatprep.subr.mxu0 0.0
    %1830 = vmatpush1.msra.mxu0 %v1319
    %1831 = vmatprep.subr.mxu0 0.0
    %1832 = vmatpush1.msra.mxu0 %v1320
    %1833 = vmatprep.subr.mxu0 0.0
    %1834 = vmatpush1.msra.mxu0 %v1321
    %1835 = vmatprep.subr.mxu0 0.0
    %1836 = vmatpush1.msra.mxu0 %v1322
    %1837 = vmatprep.subr.mxu0 0.0
    %1838 = vmatpush1.msra.mxu0 %v1323
    %1839 = vmatprep.subr.mxu0 0.0
    %1840 = vmatpush1.msra.mxu0 %v1324
    %1841 = vmatprep.subr.mxu0 0.0
    %1842 = vmatpush1.msra.mxu0 %v1325
    %1843 = vmatprep.subr.mxu0 0.0
    %1844 = vmatpush1.msra.mxu0 %v1326
    %1845 = vmatprep.subr.mxu0 0.0
    %1846 = vmatpush1.msra.mxu0 %v1327
    %1847 = vmatprep.subr.mxu0 0.0
    %1848 = vmatpush1.msra.mxu0 %v1328
    %1849 = vmatprep.subr.mxu0 0.0
    %1850 = vmatpush1.msra.mxu0 %v1329
    %1851 = vmatprep.subr.mxu0 0.0
    %1852 = vmatpush1.msra.mxu0 0.0
    %1853 = vmatprep.subr.mxu0 0.0
    %1854 = vmatpush1.msra.mxu0 0.0
    %1855 = vmatprep.subr.mxu0 0.0
    %1856 = vmatpush1.msra.mxu0 0.0
    %1857 = vmatprep.subr.mxu0 0.0
    %1858 = vmatpush1.msra.mxu0 0.0
    %1859 = vmatprep.subr.mxu0 0.0
    %1860 = vmatpush1.msra.mxu0 0.0
    %1861 = vmatprep.subr.mxu0 0.0
    %1862 = vmatpush1.msra.mxu0 0.0
    %1863 = vmatprep.subr.mxu0 0.0
    %1864 = vmatpush1.msra.mxu0 0.0
    %1865 = vmatprep.subr.mxu0 0.0
    %1866 = vmatpush1.msra.mxu0 0.0
    %1867 = vmatprep.subr.mxu0 0.0
    %1868 = vmatpush1.msra.mxu0 0.0
    %1869 = vmatprep.subr.mxu0 0.0
    %1870 = vmatpush1.msra.mxu0 0.0
    %1871 = vmatprep.subr.mxu0 0.0
    %1872 = vmatpush1.msra.mxu0 0.0
    %1873 = vmatprep.subr.mxu0 0.0
    %1874 = vmatpush1.msra.mxu0 0.0
    %1875 = vmatprep.mubr.f32.mxu0 %v1800
    %1876 = vmatmul.mubr.f32.gmra.mrb[0].mxu0 %v1791
    %v1877 = vpop.f32.mrb[0].mxu0
    %v1878 = vadd.f32 0.0, %v1877
    %v1879 = vpop.f32.mrb[0].mxu0
    %1880 = vmatprep.mubr.f32.mxu0 %v1803
    %1881 = vmatmul.mubr.f32.gmra.mrb[0].mxu0 %v1793
    %v1882 = vpop.f32.mrb[0].mxu0
    %v1883 = vadd.f32 0.0, %v1882
    %v1884 = vpop.f32.mrb[0].mxu0
    %1885 = vmatprep.mubr.f32.mxu0 %v1806
    %1886 = vmatmul.mubr.f32.gmra.mrb[0].mxu0 %v1795
    %v1887 = vpop.f32.mrb[0].mxu0
    %v1888 = vadd.f32 0.0, %v1887
    %v1889 = vpop.f32.mrb[0].mxu0
    %1890 = vmatprep.mubr.f32.mxu0 %v1809
    %1891 = vmatmul.mubr.f32.gmra.mrb[0].mxu0 %v1797
    %v1892 = vpop.f32.mrb[0].mxu0
    %v1893 = vadd.f32 0.0, %v1892
    %v1894 = vpop.f32.mrb[0].mxu0
    %1895 = vdwg.mxu0
    %v1896 = vadd.f32 %v1783, %v1878
    %v1897 = vadd.f32 %v1784, %v1883
    %v1898 = vadd.f32 %v1785, %v1888
    %v1899 = vadd.f32 %v1786, %v1893
    %v1900 = vmax.f32 %v1427, %v1896
    %v1901 = vmax.f32 %v1428, %v1897
    %v1902 = vmax.f32 %v1429, %v1898
    %v1903 = vmax.f32 %v1430, %v1899
    %1904 = vst.msk [vmem:[#allocation6] sm:$0xff] %vm33, %v1900
    %1905 = vst.msk [vmem:[#allocation6 + $0x8] sm:$0xff] %vm33, %v1901
    %1906 = vst.msk [vmem:[#allocation6 + $0x10] sm:$0xff] %vm33, %v1902
    %1907 = vst.msk [vmem:[#allocation6 + $0x18] sm:$0x3f] %vm40, %v1903
    %v1908 = vld [vmem:[#allocation6] ss:$2 sm:$0xff]
    %s1909 = scalar_lea.vmem [#allocation6], 16
    %v1910 = vld [vmem:[%s1909] ss:$2 sm:$0x7f]
    %s1911 = scalar_lea.vmem [#allocation6], 1
    %v1912 = vld [vmem:[%s1911] ss:$2 sm:$0xff]
    %s1913 = scalar_lea.vmem [#allocation6], 17
    %v1914 = vld [vmem:[%s1913] ss:$2 sm:$0x7f]
    %v1915 = vmax.f32 %v1908, %v1912
    %v1916 = vmax.f32 %v1910, %v1914
    %s1917 = sadd.s32 %s749, 1
    %s1918 = smul.u32 %s1917, 16
    %s1919 = scalar_lea.vmem [#allocation3], %s1918
    %1920 = vst.msk [vmem:[%s1919 + $0x1] sm:$0xff] %vm33, %v1915
    %vm1921 = vcmask 258048
    %1922 = vst.msk [vmem:[%s1919 + $0x9] sm:$0x1f] %vm1921, %v1916
    %1925 = vrot.lane.b32.xlu0 %v1915, 32
    %v1926 = vpop.permute.xlu0 %1925
    %1927 = vrot.lane.b32.xlu0 %v1916, 32
    %v1928 = vpop.permute.xlu0 %1927
    %vm1931 = vcmask 523520
    %1932 = vst.msk [vmem:[%s1919] sm:$0xff] %vm1931, %v1926
    %vm1933 = vcmask 521472
    %1934 = vst.msk [vmem:[%s1919 + $0x8] sm:$0x3f] %vm1933, %v1928
    %1935 = vrot.lane.b32.xlu0 %v1915, 64
    %v1936 = vpop.permute.xlu0 %1935
    %1937 = vrot.lane.b32.xlu0 %v1916, 64
    %v1938 = vpop.permute.xlu0 %1937
    %vm1941 = vcmask 785921
    %1942 = vst.msk [vmem:[%s1919 - $0x1] sm:$0xfe] %vm1941, %v1936
    %vm1943 = vcmask 784896
    %1944 = vst.msk [vmem:[%s1919 + $0x7] sm:$0x7f] %vm1943, %v1938
    %1945 = vrot.lane.b32.xlu0 %v1915, 96
    %v1946 = vpop.permute.xlu0 %1945
    %1947 = vrot.lane.b32.xlu0 %v1916, 96
    %v1948 = vpop.permute.xlu0 %1947
    %vm1951 = vcmask 1048322
    %1952 = vst.msk [vmem:[%s1919 - $0x2] sm:$0xfc] %vm1951, %v1946
    %vm1953 = vcmask 1047296
    %1954 = vst.msk [vmem:[%s1919 + $0x6] sm:$0x7f] %vm1953, %v1948
  $region49: #{a3c_lstm_forward.3} parent=0 // loop_footer
    %s753 = sadd.s32 1, %s749
  $region50: #{a3c_lstm_forward.3} parent=0 // loop_footer_branch
    %748 = sbr.rel target = $region46
  $region51: #{a3c_lstm_forward.3} parent=0 // loop_exit
    _
  loop: start=0, step=1, limit=7
  $region52: #{a3c_lstm_forward.3} parent=0 // loop_pre_header
    _
  $region53: #{a3c_lstm_forward.3} parent=0 // loop_header
    %s1956 = sphi 0, %s1960
    %p1957 = scmp.ge.s32.totalorder %s1956, 7
  $region54: #{a3c_lstm_forward.3} parent=0 // loop_header_branch
    %1959 = sbr.rel (%p1957) target = $region58
  $region55: #{a3c_lstm_forward.3} parent=0 // loop_body
    %s1961 = smul.u32 %s1956, 2
    %v1962 = vld [vmem:[%s6] sm:$0x1]
    %v1964 = vlaneseq
    %v1965 = vshrl.u32 %v1964, 7
    %v1966 = vsub.s32 0, %v1965
    %v1967 = vrot.slane %v1962, %v1966
    %v1969 = vadd.f32 %v1967, 0.0
    %s1970 = smul.u32 %s1961, 16
    %s1971 = scalar_lea.vmem [#allocation3], %s1970
    %v1972 = vld [vmem:[%s1971] sm:$0xff]
    %v1973 = vld [vmem:[%s1971 + $0x8] sm:$0x3f]
    %v1974 = vld [vmem:[%s5] sm:$0xff]
    %v1975 = vld [vmem:[%s5 + $0x8] sm:$0xff]
    %v1976 = vld [vmem:[%s5 + $0x10] sm:$0xff]
    %v1977 = vld [vmem:[%s5 + $0x18] sm:$0xff]
    %v1978 = vld [vmem:[%s5 + $0x20] sm:$0xff]
    %v1979 = vld [vmem:[%s5 + $0x28] sm:$0xff]
    %v1980 = vld [vmem:[%s5 + $0x30] sm:$0xff]
    %v1981 = vld [vmem:[%s5 + $0x38] sm:$0xff]
    %v1982 = vld [vmem:[%s5 + $0x40] sm:$0xff]
    %v1983 = vld [vmem:[%s5 + $0x48] sm:$0xff]
    %v1984 = vld [vmem:[%s5 + $0x50] sm:$0xff]
    %v1985 = vld [vmem:[%s5 + $0x58] sm:$0xff]
    %v1986 = vld [vmem:[%s5 + $0x60] sm:$0xff]
    %v1987 = vld [vmem:[%s5 + $0x68] sm:$0xff]
    %v1988 = vld [vmem:[%s5 + $0x70] sm:$0xff]
    %v1989 = vld [vmem:[%s5 + $0x78] sm:$0xff]
    %1990 = vmatprep.subr.mxu0 0.0
    %1991 = vmatpush1.msra.mxu0 %v1974
    %1992 = vmatprep.subr.mxu0 0.0
    %1993 = vmatpush1.msra.mxu0 %v1975
    %1994 = vmatprep.subr.mxu0 0.0
    %1995 = vmatpush1.msra.mxu0 %v1976
    %1996 = vmatprep.subr.mxu0 0.0
    %1997 = vmatpush1.msra.mxu0 %v1977
    %1998 = vmatprep.subr.mxu0 0.0
    %1999 = vmatpush1.msra.mxu0 %v1978
    %2000 = vmatprep.subr.mxu0 0.0
    %2001 = vmatpush1.msra.mxu0 %v1979
    %2002 = vmatprep.subr.mxu0 0.0
    %2003 = vmatpush1.msra.mxu0 %v1980
    %2004 = vmatprep.subr.mxu0 0.0
    %2005 = vmatpush1.msra.mxu0 %v1981
    %2006 = vmatprep.subr.mxu0 0.0
    %2007 = vmatpush1.msra.mxu0 %v1982
    %2008 = vmatprep.subr.mxu0 0.0
    %2009 = vmatpush1.msra.mxu0 %v1983
    %2010 = vmatprep.subr.mxu0 0.0
    %2011 = vmatpush1.msra.mxu0 %v1984
    %2012 = vmatprep.subr.mxu0 0.0
    %2013 = vmatpush1.msra.mxu0 %v1985
    %2014 = vmatprep.subr.mxu0 0.0
    %2015 = vmatpush1.msra.mxu0 %v1986
    %2016 = vmatprep.subr.mxu0 0.0
    %2017 = vmatpush1.msra.mxu0 %v1987
    %2018 = vmatprep.subr.mxu0 0.0
    %2019 = vmatpush1.msra.mxu0 %v1988
    %2020 = vmatprep.subr.mxu0 0.0
    %2021 = vmatpush1.msra.mxu0 %v1989
    %2022 = vmatprep.subr.mxu0 0.0
    %2023 = vmatpush1.msra.mxu0 0.0
    %2024 = vmatprep.subr.mxu0 0.0
    %2025 = vmatpush1.msra.mxu0 0.0
    %2026 = vmatprep.subr.mxu0 0.0
    %2027 = vmatpush1.msra.mxu0 0.0
    %2028 = vmatprep.subr.mxu0 0.0
    %2029 = vmatpush1.msra.mxu0 0.0
    %2030 = vmatprep.subr.mxu0 0.0
    %2031 = vmatpush1.msra.mxu0 0.0
    %2032 = vmatprep.subr.mxu0 0.0
    %2033 = vmatpush1.msra.mxu0 0.0
    %2034 = vmatprep.subr.mxu0 0.0
    %2035 = vmatpush1.msra.mxu0 0.0
    %2036 = vmatprep.subr.mxu0 0.0
    %2037 = vmatpush1.msra.mxu0 0.0
    %2038 = vmatprep.subr.mxu0 0.0
    %2039 = vmatpush1.msra.mxu0 0.0
    %2040 = vmatprep.subr.mxu0 0.0
    %2041 = vmatpush1.msra.mxu0 0.0
    %2042 = vmatprep.subr.mxu0 0.0
    %2043 = vmatpush1.msra.mxu0 0.0
    %2044 = vmatprep.subr.mxu0 0.0
    %2045 = vmatpush1.msra.mxu0 0.0
    %2046 = vmatprep.subr.mxu0 0.0
    %2047 = vmatpush1.msra.mxu0 0.0
    %2048 = vmatprep.subr.mxu0 0.0
    %2049 = vmatpush1.msra.mxu0 0.0
    %2050 = vmatprep.subr.mxu0 0.0
    %2051 = vmatpush1.msra.mxu0 0.0
    %2052 = vmatprep.subr.mxu0 0.0
    %2053 = vmatpush1.msra.mxu0 0.0
    %2054 = vmatprep.mubr.f32.mxu0 0.0
    %2055 = vmatmul.mubr.f32.gmra.mrb[0].mxu0 %v1972
    %v2056 = vpop.f32.mrb[0].mxu0
    %v2057 = vadd.f32 0.0, %v2056
    %v2058 = vpop.f32.mrb[0].mxu0
    %2059 = vmatprep.mubr.f32.mxu0 0.0
    %2060 = vmatmul.mubr.f32.gmra.mrb[0].mxu0 %v1973
    %v2061 = vpop.f32.mrb[0].mxu0
    %v2062 = vadd.f32 0.0, %v2061
    %v2063 = vpop.f32.mrb[0].mxu0
    %2064 = vdwg.mxu0
    %v2065 = vadd.f32 %v1969, %v2057
    %v2066 = vadd.f32 %v1969, %v2062
    %s2067 = sadd.s32 %s1961, 1
    %s2068 = smul.u32 %s2067, 16
    %s2069 = scalar_lea.vmem [#allocation3], %s2068
    %v2070 = vld [vmem:[%s2069] sm:$0xff]
    %v2071 = vld [vmem:[%s2069 + $0x8] sm:$0x3f]
    %s2072 = scalar_lea.vmem %s5, 128
    %v2073 = vld [vmem:[%s2072] sm:$0xff]
    %v2074 = vld [vmem:[%s2072 + $0x8] sm:$0xff]
    %v2075 = vld [vmem:[%s2072 + $0x10] sm:$0xff]
    %v2076 = vld [vmem:[%s2072 + $0x18] sm:$0xff]
    %v2077 = vld [vmem:[%s2072 + $0x20] sm:$0xff]
    %v2078 = vld [vmem:[%s2072 + $0x28] sm:$0xff]
    %v2079 = vld [vmem:[%s2072 + $0x30] sm:$0xff]
    %v2080 = vld [vmem:[%s2072 + $0x38] sm:$0xff]
    %v2081 = vld [vmem:[%s2072 + $0x40] sm:$0xff]
    %v2082 = vld [vmem:[%s2072 + $0x48] sm:$0xff]
    %v2083 = vld [vmem:[%s2072 + $0x50] sm:$0xff]
    %v2084 = vld [vmem:[%s2072 + $0x58] sm:$0xff]
    %v2085 = vld [vmem:[%s2072 + $0x60] sm:$0xff]
    %v2086 = vld [vmem:[%s2072 + $0x68] sm:$0xff]
    %v2087 = vld [vmem:[%s2072 + $0x70] sm:$0xff]
    %v2088 = vld [vmem:[%s2072 + $0x78] sm:$0xff]
    %2089 = vmatprep.subr.mxu0 0.0
    %2090 = vmatpush1.msra.mxu0 %v2073
    %2091 = vmatprep.subr.mxu0 0.0
    %2092 = vmatpush1.msra.mxu0 %v2074
    %2093 = vmatprep.subr.mxu0 0.0
    %2094 = vmatpush1.msra.mxu0 %v2075
    %2095 = vmatprep.subr.mxu0 0.0
    %2096 = vmatpush1.msra.mxu0 %v2076
    %2097 = vmatprep.subr.mxu0 0.0
    %2098 = vmatpush1.msra.mxu0 %v2077
    %2099 = vmatprep.subr.mxu0 0.0
    %2100 = vmatpush1.msra.mxu0 %v2078
    %2101 = vmatprep.subr.mxu0 0.0
    %2102 = vmatpush1.msra.mxu0 %v2079
    %2103 = vmatprep.subr.mxu0 0.0
    %2104 = vmatpush1.msra.mxu0 %v2080
    %2105 = vmatprep.subr.mxu0 0.0
    %2106 = vmatpush1.msra.mxu0 %v2081
    %2107 = vmatprep.subr.mxu0 0.0
    %2108 = vmatpush1.msra.mxu0 %v2082
    %2109 = vmatprep.subr.mxu0 0.0
    %2110 = vmatpush1.msra.mxu0 %v2083
    %2111 = vmatprep.subr.mxu0 0.0
    %2112 = vmatpush1.msra.mxu0 %v2084
    %2113 = vmatprep.subr.mxu0 0.0
    %2114 = vmatpush1.msra.mxu0 %v2085
    %2115 = vmatprep.subr.mxu0 0.0
    %2116 = vmatpush1.msra.mxu0 %v2086
    %2117 = vmatprep.subr.mxu0 0.0
    %2118 = vmatpush1.msra.mxu0 %v2087
    %2119 = vmatprep.subr.mxu0 0.0
    %2120 = vmatpush1.msra.mxu0 %v2088
    %2121 = vmatprep.subr.mxu0 0.0
    %2122 = vmatpush1.msra.mxu0 0.0
    %2123 = vmatprep.subr.mxu0 0.0
    %2124 = vmatpush1.msra.mxu0 0.0
    %2125 = vmatprep.subr.mxu0 0.0
    %2126 = vmatpush1.msra.mxu0 0.0
    %2127 = vmatprep.subr.mxu0 0.0
    %2128 = vmatpush1.msra.mxu0 0.0
    %2129 = vmatprep.subr.mxu0 0.0
    %2130 = vmatpush1.msra.mxu0 0.0
    %2131 = vmatprep.subr.mxu0 0.0
    %2132 = vmatpush1.msra.mxu0 0.0
    %2133 = vmatprep.subr.mxu0 0.0
    %2134 = vmatpush1.msra.mxu0 0.0
    %2135 = vmatprep.subr.mxu0 0.0
    %2136 = vmatpush1.msra.mxu0 0.0
    %2137 = vmatprep.subr.mxu0 0.0
    %2138 = vmatpush1.msra.mxu0 0.0
    %2139 = vmatprep.subr.mxu0 0.0
    %2140 = vmatpush1.msra.mxu0 0.0
    %2141 = vmatprep.subr.mxu0 0.0
    %2142 = vmatpush1.msra.mxu0 0.0
    %2143 = vmatprep.subr.mxu0 0.0
    %2144 = vmatpush1.msra.mxu0 0.0
    %2145 = vmatprep.subr.mxu0 0.0
    %2146 = vmatpush1.msra.mxu0 0.0
    %2147 = vmatprep.subr.mxu0 0.0
    %2148 = vmatpush1.msra.mxu0 0.0
    %2149 = vmatprep.subr.mxu0 0.0
    %2150 = vmatpush1.msra.mxu0 0.0
    %2151 = vmatprep.subr.mxu0 0.0
    %2152 = vmatpush1.msra.mxu0 0.0
    %2153 = vmatprep.mubr.f32.mxu0 0.0
    %2154 = vmatmul.mubr.f32.gmra.mrb[0].mxu0 %v2070
    %v2155 = vpop.f32.mrb[0].mxu0
    %v2156 = vadd.f32 0.0, %v2155
    %v2157 = vpop.f32.mrb[0].mxu0
    %2158 = vmatprep.mubr.f32.mxu0 0.0
    %2159 = vmatmul.mubr.f32.gmra.mrb[0].mxu0 %v2071
    %v2160 = vpop.f32.mrb[0].mxu0
    %v2161 = vadd.f32 0.0, %v2160
    %v2162 = vpop.f32.mrb[0].mxu0
    %2163 = vdwg.mxu0
    %v2164 = vadd.f32 %v2065, %v2156
    %v2165 = vadd.f32 %v2066, %v2161
    %s2166 = sadd.s32 %s1961, 2
    %s2167 = smul.u32 %s2166, 16
    %s2168 = scalar_lea.vmem [#allocation3], %s2167
    %v2169 = vld [vmem:[%s2168] sm:$0xff]
    %v2170 = vld [vmem:[%s2168 + $0x8] sm:$0x3f]
    %s2171 = scalar_lea.vmem %s5, 256
    %v2172 = vld [vmem:[%s2171] sm:$0xff]
    %v2173 = vld [vmem:[%s2171 + $0x8] sm:$0xff]
    %v2174 = vld [vmem:[%s2171 + $0x10] sm:$0xff]
    %v2175 = vld [vmem:[%s2171 + $0x18] sm:$0xff]
    %v2176 = vld [vmem:[%s2171 + $0x20] sm:$0xff]
    %v2177 = vld [vmem:[%s2171 + $0x28] sm:$0xff]
    %v2178 = vld [vmem:[%s2171 + $0x30] sm:$0xff]
    %v2179 = vld [vmem:[%s2171 + $0x38] sm:$0xff]
    %v2180 = vld [vmem:[%s2171 + $0x40] sm:$0xff]
    %v2181 = vld [vmem:[%s2171 + $0x48] sm:$0xff]
    %v2182 = vld [vmem:[%s2171 + $0x50] sm:$0xff]
    %v2183 = vld [vmem:[%s2171 + $0x58] sm:$0xff]
    %v2184 = vld [vmem:[%s2171 + $0x60] sm:$0xff]
    %v2185 = vld [vmem:[%s2171 + $0x68] sm:$0xff]
    %v2186 = vld [vmem:[%s2171 + $0x70] sm:$0xff]
    %v2187 = vld [vmem:[%s2171 + $0x78] sm:$0xff]
    %2188 = vmatprep.subr.mxu0 0.0
    %2189 = vmatpush1.msra.mxu0 %v2172
    %2190 = vmatprep.subr.mxu0 0.0
    %2191 = vmatpush1.msra.mxu0 %v2173
    %2192 = vmatprep.subr.mxu0 0.0
    %2193 = vmatpush1.msra.mxu0 %v2174
    %2194 = vmatprep.subr.mxu0 0.0
    %2195 = vmatpush1.msra.mxu0 %v2175
    %2196 = vmatprep.subr.mxu0 0.0
    %2197 = vmatpush1.msra.mxu0 %v2176
    %2198 = vmatprep.subr.mxu0 0.0
    %2199 = vmatpush1.msra.mxu0 %v2177
    %2200 = vmatprep.subr.mxu0 0.0
    %2201 = vmatpush1.msra.mxu0 %v2178
    %2202 = vmatprep.subr.mxu0 0.0
    %2203 = vmatpush1.msra.mxu0 %v2179
    %2204 = vmatprep.subr.mxu0 0.0
    %2205 = vmatpush1.msra.mxu0 %v2180
    %2206 = vmatprep.subr.mxu0 0.0
    %2207 = vmatpush1.msra.mxu0 %v2181
    %2208 = vmatprep.subr.mxu0 0.0
    %2209 = vmatpush1.msra.mxu0 %v2182
    %2210 = vmatprep.subr.mxu0 0.0
    %2211 = vmatpush1.msra.mxu0 %v2183
    %2212 = vmatprep.subr.mxu0 0.0
    %2213 = vmatpush1.msra.mxu0 %v2184
    %2214 = vmatprep.subr.mxu0 0.0
    %2215 = vmatpush1.msra.mxu0 %v2185
    %2216 = vmatprep.subr.mxu0 0.0
    %2217 = vmatpush1.msra.mxu0 %v2186
    %2218 = vmatprep.subr.mxu0 0.0
    %2219 = vmatpush1.msra.mxu0 %v2187
    %2220 = vmatprep.subr.mxu0 0.0
    %2221 = vmatpush1.msra.mxu0 0.0
    %2222 = vmatprep.subr.mxu0 0.0
    %2223 = vmatpush1.msra.mxu0 0.0
    %2224 = vmatprep.subr.mxu0 0.0
    %2225 = vmatpush1.msra.mxu0 0.0
    %2226 = vmatprep.subr.mxu0 0.0
    %2227 = vmatpush1.msra.mxu0 0.0
    %2228 = vmatprep.subr.mxu0 0.0
    %2229 = vmatpush1.msra.mxu0 0.0
    %2230 = vmatprep.subr.mxu0 0.0
    %2231 = vmatpush1.msra.mxu0 0.0
    %2232 = vmatprep.subr.mxu0 0.0
    %2233 = vmatpush1.msra.mxu0 0.0
    %2234 = vmatprep.subr.mxu0 0.0
    %2235 = vmatpush1.msra.mxu0 0.0
    %2236 = vmatprep.subr.mxu0 0.0
    %2237 = vmatpush1.msra.mxu0 0.0
    %2238 = vmatprep.subr.mxu0 0.0
    %2239 = vmatpush1.msra.mxu0 0.0
    %2240 = vmatprep.subr.mxu0 0.0
    %2241 = vmatpush1.msra.mxu0 0.0
    %2242 = vmatprep.subr.mxu0 0.0
    %2243 = vmatpush1.msra.mxu0 0.0
    %2244 = vmatprep.subr.mxu0 0.0
    %2245 = vmatpush1.msra.mxu0 0.0
    %2246 = vmatprep.subr.mxu0 0.0
    %2247 = vmatpush1.msra.mxu0 0.0
    %2248 = vmatprep.subr.mxu0 0.0
    %2249 = vmatpush1.msra.mxu0 0.0
    %2250 = vmatprep.subr.mxu0 0.0
    %2251 = vmatpush1.msra.mxu0 0.0
    %2252 = vmatprep.mubr.f32.mxu0 0.0
    %2253 = vmatmul.mubr.f32.gmra.mrb[0].mxu0 %v2169
    %v2254 = vpop.f32.mrb[0].mxu0
    %v2255 = vadd.f32 0.0, %v2254
    %v2256 = vpop.f32.mrb[0].mxu0
    %2257 = vmatprep.mubr.f32.mxu0 0.0
    %2258 = vmatmul.mubr.f32.gmra.mrb[0].mxu0 %v2170
    %v2259 = vpop.f32.mrb[0].mxu0
    %v2260 = vadd.f32 0.0, %v2259
    %v2261 = vpop.f32.mrb[0].mxu0
    %2262 = vdwg.mxu0
    %v2263 = vadd.f32 %v2164, %v2255
    %v2264 = vadd.f32 %v2165, %v2260
    %s2265 = sadd.s32 %s1961, 3
    %s2266 = smul.u32 %s2265, 16
    %s2267 = scalar_lea.vmem [#allocation3], %s2266
    %v2268 = vld [vmem:[%s2267] sm:$0xff]
    %v2269 = vld [vmem:[%s2267 + $0x8] sm:$0x3f]
    %s2270 = scalar_lea.vmem %s5, 384
    %v2271 = vld [vmem:[%s2270] sm:$0xff]
    %v2272 = vld [vmem:[%s2270 + $0x8] sm:$0xff]
    %v2273 = vld [vmem:[%s2270 + $0x10] sm:$0xff]
    %v2274 = vld [vmem:[%s2270 + $0x18] sm:$0xff]
    %v2275 = vld [vmem:[%s2270 + $0x20] sm:$0xff]
    %v2276 = vld [vmem:[%s2270 + $0x28] sm:$0xff]
    %v2277 = vld [vmem:[%s2270 + $0x30] sm:$0xff]
    %v2278 = vld [vmem:[%s2270 + $0x38] sm:$0xff]
    %v2279 = vld [vmem:[%s2270 + $0x40] sm:$0xff]
    %v2280 = vld [vmem:[%s2270 + $0x48] sm:$0xff]
    %v2281 = vld [vmem:[%s2270 + $0x50] sm:$0xff]
    %v2282 = vld [vmem:[%s2270 + $0x58] sm:$0xff]
    %v2283 = vld [vmem:[%s2270 + $0x60] sm:$0xff]
    %v2284 = vld [vmem:[%s2270 + $0x68] sm:$0xff]
    %v2285 = vld [vmem:[%s2270 + $0x70] sm:$0xff]
    %v2286 = vld [vmem:[%s2270 + $0x78] sm:$0xff]
    %2287 = vmatprep.subr.mxu0 0.0
    %2288 = vmatpush1.msra.mxu0 %v2271
    %2289 = vmatprep.subr.mxu0 0.0
    %2290 = vmatpush1.msra.mxu0 %v2272
    %2291 = vmatprep.subr.mxu0 0.0
    %2292 = vmatpush1.msra.mxu0 %v2273
    %2293 = vmatprep.subr.mxu0 0.0
    %2294 = vmatpush1.msra.mxu0 %v2274
    %2295 = vmatprep.subr.mxu0 0.0
    %2296 = vmatpush1.msra.mxu0 %v2275
    %2297 = vmatprep.subr.mxu0 0.0
    %2298 = vmatpush1.msra.mxu0 %v2276
    %2299 = vmatprep.subr.mxu0 0.0
    %2300 = vmatpush1.msra.mxu0 %v2277
    %2301 = vmatprep.subr.mxu0 0.0
    %2302 = vmatpush1.msra.mxu0 %v2278
    %2303 = vmatprep.subr.mxu0 0.0
    %2304 = vmatpush1.msra.mxu0 %v2279
    %2305 = vmatprep.subr.mxu0 0.0
    %2306 = vmatpush1.msra.mxu0 %v2280
    %2307 = vmatprep.subr.mxu0 0.0
    %2308 = vmatpush1.msra.mxu0 %v2281
    %2309 = vmatprep.subr.mxu0 0.0
    %2310 = vmatpush1.msra.mxu0 %v2282
    %2311 = vmatprep.subr.mxu0 0.0
    %2312 = vmatpush1.msra.mxu0 %v2283
    %2313 = vmatprep.subr.mxu0 0.0
    %2314 = vmatpush1.msra.mxu0 %v2284
    %2315 = vmatprep.subr.mxu0 0.0
    %2316 = vmatpush1.msra.mxu0 %v2285
    %2317 = vmatprep.subr.mxu0 0.0
    %2318 = vmatpush1.msra.mxu0 %v2286
    %2319 = vmatprep.subr.mxu0 0.0
    %2320 = vmatpush1.msra.mxu0 0.0
    %2321 = vmatprep.subr.mxu0 0.0
    %2322 = vmatpush1.msra.mxu0 0.0
    %2323 = vmatprep.subr.mxu0 0.0
    %2324 = vmatpush1.msra.mxu0 0.0
    %2325 = vmatprep.subr.mxu0 0.0
    %2326 = vmatpush1.msra.mxu0 0.0
    %2327 = vmatprep.subr.mxu0 0.0
    %2328 = vmatpush1.msra.mxu0 0.0
    %2329 = vmatprep.subr.mxu0 0.0
    %2330 = vmatpush1.msra.mxu0 0.0
    %2331 = vmatprep.subr.mxu0 0.0
    %2332 = vmatpush1.msra.mxu0 0.0
    %2333 = vmatprep.subr.mxu0 0.0
    %2334 = vmatpush1.msra.mxu0 0.0
    %2335 = vmatprep.subr.mxu0 0.0
    %2336 = vmatpush1.msra.mxu0 0.0
    %2337 = vmatprep.subr.mxu0 0.0
    %2338 = vmatpush1.msra.mxu0 0.0
    %2339 = vmatprep.subr.mxu0 0.0
    %2340 = vmatpush1.msra.mxu0 0.0
    %2341 = vmatprep.subr.mxu0 0.0
    %2342 = vmatpush1.msra.mxu0 0.0
    %2343 = vmatprep.subr.mxu0 0.0
    %2344 = vmatpush1.msra.mxu0 0.0
    %2345 = vmatprep.subr.mxu0 0.0
    %2346 = vmatpush1.msra.mxu0 0.0
    %2347 = vmatprep.subr.mxu0 0.0
    %2348 = vmatpush1.msra.mxu0 0.0
    %2349 = vmatprep.subr.mxu0 0.0
    %2350 = vmatpush1.msra.mxu0 0.0
    %2351 = vmatprep.mubr.f32.mxu0 0.0
    %2352 = vmatmul.mubr.f32.gmra.mrb[0].mxu0 %v2268
    %v2353 = vpop.f32.mrb[0].mxu0
    %v2354 = vadd.f32 0.0, %v2353
    %v2355 = vpop.f32.mrb[0].mxu0
    %2356 = vmatprep.mubr.f32.mxu0 0.0
    %2357 = vmatmul.mubr.f32.gmra.mrb[0].mxu0 %v2269
    %v2358 = vpop.f32.mrb[0].mxu0
    %v2359 = vadd.f32 0.0, %v2358
    %v2360 = vpop.f32.mrb[0].mxu0
    %2361 = vdwg.mxu0
    %v2362 = vadd.f32 %v2263, %v2354
    %v2363 = vadd.f32 %v2264, %v2359
    %2364 = vmatprep.subr.mxu0 0.0
    %2365 = vmatpush1.msra.mxu0 %v1974
    %2366 = vmatprep.subr.mxu0 0.0
    %2367 = vmatpush1.msra.mxu0 %v1975
    %2368 = vmatprep.subr.mxu0 0.0
    %2369 = vmatpush1.msra.mxu0 %v1976
    %2370 = vmatprep.subr.mxu0 0.0
    %2371 = vmatpush1.msra.mxu0 %v1977
    %2372 = vmatprep.subr.mxu0 0.0
    %2373 = vmatpush1.msra.mxu0 %v1978
    %2374 = vmatprep.subr.mxu0 0.0
    %2375 = vmatpush1.msra.mxu0 %v1979
    %2376 = vmatprep.subr.mxu0 0.0
    %2377 = vmatpush1.msra.mxu0 %v1980
    %2378 = vmatprep.subr.mxu0 0.0
    %2379 = vmatpush1.msra.mxu0 %v1981
    %2380 = vmatprep.subr.mxu0 0.0
    %2381 = vmatpush1.msra.mxu0 %v1982
    %2382 = vmatprep.subr.mxu0 0.0
    %2383 = vmatpush1.msra.mxu0 %v1983
    %2384 = vmatprep.subr.mxu0 0.0
    %2385 = vmatpush1.msra.mxu0 %v1984
    %2386 = vmatprep.subr.mxu0 0.0
    %2387 = vmatpush1.msra.mxu0 %v1985
    %2388 = vmatprep.subr.mxu0 0.0
    %2389 = vmatpush1.msra.mxu0 %v1986
    %2390 = vmatprep.subr.mxu0 0.0
    %2391 = vmatpush1.msra.mxu0 %v1987
    %2392 = vmatprep.subr.mxu0 0.0
    %2393 = vmatpush1.msra.mxu0 %v1988
    %2394 = vmatprep.subr.mxu0 0.0
    %2395 = vmatpush1.msra.mxu0 %v1989
    %2396 = vmatprep.subr.mxu0 0.0
    %2397 = vmatpush1.msra.mxu0 0.0
    %2398 = vmatprep.subr.mxu0 0.0
    %2399 = vmatpush1.msra.mxu0 0.0
    %2400 = vmatprep.subr.mxu0 0.0
    %2401 = vmatpush1.msra.mxu0 0.0
    %2402 = vmatprep.subr.mxu0 0.0
    %2403 = vmatpush1.msra.mxu0 0.0
    %2404 = vmatprep.subr.mxu0 0.0
    %2405 = vmatpush1.msra.mxu0 0.0
    %2406 = vmatprep.subr.mxu0 0.0
    %2407 = vmatpush1.msra.mxu0 0.0
    %2408 = vmatprep.subr.mxu0 0.0
    %2409 = vmatpush1.msra.mxu0 0.0
    %2410 = vmatprep.subr.mxu0 0.0
    %2411 = vmatpush1.msra.mxu0 0.0
    %2412 = vmatprep.subr.mxu0 0.0
    %2413 = vmatpush1.msra.mxu0 0.0
    %2414 = vmatprep.subr.mxu0 0.0
    %2415 = vmatpush1.msra.mxu0 0.0
    %2416 = vmatprep.subr.mxu0 0.0
    %2417 = vmatpush1.msra.mxu0 0.0
    %2418 = vmatprep.subr.mxu0 0.0
    %2419 = vmatpush1.msra.mxu0 0.0
    %2420 = vmatprep.subr.mxu0 0.0
    %2421 = vmatpush1.msra.mxu0 0.0
    %2422 = vmatprep.subr.mxu0 0.0
    %2423 = vmatpush1.msra.mxu0 0.0
    %2424 = vmatprep.subr.mxu0 0.0
    %2425 = vmatpush1.msra.mxu0 0.0
    %2426 = vmatprep.subr.mxu0 0.0
    %2427 = vmatpush1.msra.mxu0 0.0
    %2428 = vmatprep.mubr.f32.mxu0 0.0
    %2429 = vmatmul.mubr.f32.gmra.mrb[0].mxu0 %v2070
    %v2430 = vpop.f32.mrb[0].mxu0
    %v2431 = vadd.f32 0.0, %v2430
    %v2432 = vpop.f32.mrb[0].mxu0
    %2433 = vmatprep.mubr.f32.mxu0 0.0
    %2434 = vmatmul.mubr.f32.gmra.mrb[0].mxu0 %v2071
    %v2435 = vpop.f32.mrb[0].mxu0
    %v2436 = vadd.f32 0.0, %v2435
    %v2437 = vpop.f32.mrb[0].mxu0
    %2438 = vdwg.mxu0
    %v2439 = vadd.f32 %v1969, %v2431
    %v2440 = vadd.f32 %v1969, %v2436
    %2441 = vmatprep.subr.mxu0 0.0
    %2442 = vmatpush1.msra.mxu0 %v2073
    %2443 = vmatprep.subr.mxu0 0.0
    %2444 = vmatpush1.msra.mxu0 %v2074
    %2445 = vmatprep.subr.mxu0 0.0
    %2446 = vmatpush1.msra.mxu0 %v2075
    %2447 = vmatprep.subr.mxu0 0.0
    %2448 = vmatpush1.msra.mxu0 %v2076
    %2449 = vmatprep.subr.mxu0 0.0
    %2450 = vmatpush1.msra.mxu0 %v2077
    %2451 = vmatprep.subr.mxu0 0.0
    %2452 = vmatpush1.msra.mxu0 %v2078
    %2453 = vmatprep.subr.mxu0 0.0
    %2454 = vmatpush1.msra.mxu0 %v2079
    %2455 = vmatprep.subr.mxu0 0.0
    %2456 = vmatpush1.msra.mxu0 %v2080
    %2457 = vmatprep.subr.mxu0 0.0
    %2458 = vmatpush1.msra.mxu0 %v2081
    %2459 = vmatprep.subr.mxu0 0.0
    %2460 = vmatpush1.msra.mxu0 %v2082
    %2461 = vmatprep.subr.mxu0 0.0
    %2462 = vmatpush1.msra.mxu0 %v2083
    %2463 = vmatprep.subr.mxu0 0.0
    %2464 = vmatpush1.msra.mxu0 %v2084
    %2465 = vmatprep.subr.mxu0 0.0
    %2466 = vmatpush1.msra.mxu0 %v2085
    %2467 = vmatprep.subr.mxu0 0.0
    %2468 = vmatpush1.msra.mxu0 %v2086
    %2469 = vmatprep.subr.mxu0 0.0
    %2470 = vmatpush1.msra.mxu0 %v2087
    %2471 = vmatprep.subr.mxu0 0.0
    %2472 = vmatpush1.msra.mxu0 %v2088
    %2473 = vmatprep.subr.mxu0 0.0
    %2474 = vmatpush1.msra.mxu0 0.0
    %2475 = vmatprep.subr.mxu0 0.0
    %2476 = vmatpush1.msra.mxu0 0.0
    %2477 = vmatprep.subr.mxu0 0.0
    %2478 = vmatpush1.msra.mxu0 0.0
    %2479 = vmatprep.subr.mxu0 0.0
    %2480 = vmatpush1.msra.mxu0 0.0
    %2481 = vmatprep.subr.mxu0 0.0
    %2482 = vmatpush1.msra.mxu0 0.0
    %2483 = vmatprep.subr.mxu0 0.0
    %2484 = vmatpush1.msra.mxu0 0.0
    %2485 = vmatprep.subr.mxu0 0.0
    %2486 = vmatpush1.msra.mxu0 0.0
    %2487 = vmatprep.subr.mxu0 0.0
    %2488 = vmatpush1.msra.mxu0 0.0
    %2489 = vmatprep.subr.mxu0 0.0
    %2490 = vmatpush1.msra.mxu0 0.0
    %2491 = vmatprep.subr.mxu0 0.0
    %2492 = vmatpush1.msra.mxu0 0.0
    %2493 = vmatprep.subr.mxu0 0.0
    %2494 = vmatpush1.msra.mxu0 0.0
    %2495 = vmatprep.subr.mxu0 0.0
    %2496 = vmatpush1.msra.mxu0 0.0
    %2497 = vmatprep.subr.mxu0 0.0
    %2498 = vmatpush1.msra.mxu0 0.0
    %2499 = vmatprep.subr.mxu0 0.0
    %2500 = vmatpush1.msra.mxu0 0.0
    %2501 = vmatprep.subr.mxu0 0.0
    %2502 = vmatpush1.msra.mxu0 0.0
    %2503 = vmatprep.subr.mxu0 0.0
    %2504 = vmatpush1.msra.mxu0 0.0
    %2505 = vmatprep.mubr.f32.mxu0 0.0
    %2506 = vmatmul.mubr.f32.gmra.mrb[0].mxu0 %v2169
    %v2507 = vpop.f32.mrb[0].mxu0
    %v2508 = vadd.f32 0.0, %v2507
    %v2509 = vpop.f32.mrb[0].mxu0
    %2510 = vmatprep.mubr.f32.mxu0 0.0
    %2511 = vmatmul.mubr.f32.gmra.mrb[0].mxu0 %v2170
    %v2512 = vpop.f32.mrb[0].mxu0
    %v2513 = vadd.f32 0.0, %v2512
    %v2514 = vpop.f32.mrb[0].mxu0
    %2515 = vdwg.mxu0
    %v2516 = vadd.f32 %v2439, %v2508
    %v2517 = vadd.f32 %v2440, %v2513
    %2518 = vmatprep.subr.mxu0 0.0
    %2519 = vmatpush1.msra.mxu0 %v2172
    %2520 = vmatprep.subr.mxu0 0.0
    %2521 = vmatpush1.msra.mxu0 %v2173
    %2522 = vmatprep.subr.mxu0 0.0
    %2523 = vmatpush1.msra.mxu0 %v2174
    %2524 = vmatprep.subr.mxu0 0.0
    %2525 = vmatpush1.msra.mxu0 %v2175
    %2526 = vmatprep.subr.mxu0 0.0
    %2527 = vmatpush1.msra.mxu0 %v2176
    %2528 = vmatprep.subr.mxu0 0.0
    %2529 = vmatpush1.msra.mxu0 %v2177
    %2530 = vmatprep.subr.mxu0 0.0
    %2531 = vmatpush1.msra.mxu0 %v2178
    %2532 = vmatprep.subr.mxu0 0.0
    %2533 = vmatpush1.msra.mxu0 %v2179
    %2534 = vmatprep.subr.mxu0 0.0
    %2535 = vmatpush1.msra.mxu0 %v2180
    %2536 = vmatprep.subr.mxu0 0.0
    %2537 = vmatpush1.msra.mxu0 %v2181
    %2538 = vmatprep.subr.mxu0 0.0
    %2539 = vmatpush1.msra.mxu0 %v2182
    %2540 = vmatprep.subr.mxu0 0.0
    %2541 = vmatpush1.msra.mxu0 %v2183
    %2542 = vmatprep.subr.mxu0 0.0
    %2543 = vmatpush1.msra.mxu0 %v2184
    %2544 = vmatprep.subr.mxu0 0.0
    %2545 = vmatpush1.msra.mxu0 %v2185
    %2546 = vmatprep.subr.mxu0 0.0
    %2547 = vmatpush1.msra.mxu0 %v2186
    %2548 = vmatprep.subr.mxu0 0.0
    %2549 = vmatpush1.msra.mxu0 %v2187
    %2550 = vmatprep.subr.mxu0 0.0
    %2551 = vmatpush1.msra.mxu0 0.0
    %2552 = vmatprep.subr.mxu0 0.0
    %2553 = vmatpush1.msra.mxu0 0.0
    %2554 = vmatprep.subr.mxu0 0.0
    %2555 = vmatpush1.msra.mxu0 0.0
    %2556 = vmatprep.subr.mxu0 0.0
    %2557 = vmatpush1.msra.mxu0 0.0
    %2558 = vmatprep.subr.mxu0 0.0
    %2559 = vmatpush1.msra.mxu0 0.0
    %2560 = vmatprep.subr.mxu0 0.0
    %2561 = vmatpush1.msra.mxu0 0.0
    %2562 = vmatprep.subr.mxu0 0.0
    %2563 = vmatpush1.msra.mxu0 0.0
    %2564 = vmatprep.subr.mxu0 0.0
    %2565 = vmatpush1.msra.mxu0 0.0
    %2566 = vmatprep.subr.mxu0 0.0
    %2567 = vmatpush1.msra.mxu0 0.0
    %2568 = vmatprep.subr.mxu0 0.0
    %2569 = vmatpush1.msra.mxu0 0.0
    %2570 = vmatprep.subr.mxu0 0.0
    %2571 = vmatpush1.msra.mxu0 0.0
    %2572 = vmatprep.subr.mxu0 0.0
    %2573 = vmatpush1.msra.mxu0 0.0
    %2574 = vmatprep.subr.mxu0 0.0
    %2575 = vmatpush1.msra.mxu0 0.0
    %2576 = vmatprep.subr.mxu0 0.0
    %2577 = vmatpush1.msra.mxu0 0.0
    %2578 = vmatprep.subr.mxu0 0.0
    %2579 = vmatpush1.msra.mxu0 0.0
    %2580 = vmatprep.subr.mxu0 0.0
    %2581 = vmatpush1.msra.mxu0 0.0
    %2582 = vmatprep.mubr.f32.mxu0 0.0
    %2583 = vmatmul.mubr.f32.gmra.mrb[0].mxu0 %v2268
    %v2584 = vpop.f32.mrb[0].mxu0
    %v2585 = vadd.f32 0.0, %v2584
    %v2586 = vpop.f32.mrb[0].mxu0
    %2587 = vmatprep.mubr.f32.mxu0 0.0
    %2588 = vmatmul.mubr.f32.gmra.mrb[0].mxu0 %v2269
    %v2589 = vpop.f32.mrb[0].mxu0
    %v2590 = vadd.f32 0.0, %v2589
    %v2591 = vpop.f32.mrb[0].mxu0
    %2592 = vdwg.mxu0
    %v2593 = vadd.f32 %v2516, %v2585
    %v2594 = vadd.f32 %v2517, %v2590
    %s2595 = sadd.s32 %s1961, 4
    %s2596 = smul.u32 %s2595, 16
    %s2597 = scalar_lea.vmem [#allocation3], %s2596
    %v2598 = vld [vmem:[%s2597] sm:$0xff]
    %v2599 = vld [vmem:[%s2597 + $0x8] sm:$0x3f]
    %2600 = vmatprep.subr.mxu0 0.0
    %2601 = vmatpush1.msra.mxu0 %v2271
    %2602 = vmatprep.subr.mxu0 0.0
    %2603 = vmatpush1.msra.mxu0 %v2272
    %2604 = vmatprep.subr.mxu0 0.0
    %2605 = vmatpush1.msra.mxu0 %v2273
    %2606 = vmatprep.subr.mxu0 0.0
    %2607 = vmatpush1.msra.mxu0 %v2274
    %2608 = vmatprep.subr.mxu0 0.0
    %2609 = vmatpush1.msra.mxu0 %v2275
    %2610 = vmatprep.subr.mxu0 0.0
    %2611 = vmatpush1.msra.mxu0 %v2276
    %2612 = vmatprep.subr.mxu0 0.0
    %2613 = vmatpush1.msra.mxu0 %v2277
    %2614 = vmatprep.subr.mxu0 0.0
    %2615 = vmatpush1.msra.mxu0 %v2278
    %2616 = vmatprep.subr.mxu0 0.0
    %2617 = vmatpush1.msra.mxu0 %v2279
    %2618 = vmatprep.subr.mxu0 0.0
    %2619 = vmatpush1.msra.mxu0 %v2280
    %2620 = vmatprep.subr.mxu0 0.0
    %2621 = vmatpush1.msra.mxu0 %v2281
    %2622 = vmatprep.subr.mxu0 0.0
    %2623 = vmatpush1.msra.mxu0 %v2282
    %2624 = vmatprep.subr.mxu0 0.0
    %2625 = vmatpush1.msra.mxu0 %v2283
    %2626 = vmatprep.subr.mxu0 0.0
    %2627 = vmatpush1.msra.mxu0 %v2284
    %2628 = vmatprep.subr.mxu0 0.0
    %2629 = vmatpush1.msra.mxu0 %v2285
    %2630 = vmatprep.subr.mxu0 0.0
    %2631 = vmatpush1.msra.mxu0 %v2286
    %2632 = vmatprep.subr.mxu0 0.0
    %2633 = vmatpush1.msra.mxu0 0.0
    %2634 = vmatprep.subr.mxu0 0.0
    %2635 = vmatpush1.msra.mxu0 0.0
    %2636 = vmatprep.subr.mxu0 0.0
    %2637 = vmatpush1.msra.mxu0 0.0
    %2638 = vmatprep.subr.mxu0 0.0
    %2639 = vmatpush1.msra.mxu0 0.0
    %2640 = vmatprep.subr.mxu0 0.0
    %2641 = vmatpush1.msra.mxu0 0.0
    %2642 = vmatprep.subr.mxu0 0.0
    %2643 = vmatpush1.msra.mxu0 0.0
    %2644 = vmatprep.subr.mxu0 0.0
    %2645 = vmatpush1.msra.mxu0 0.0
    %2646 = vmatprep.subr.mxu0 0.0
    %2647 = vmatpush1.msra.mxu0 0.0
    %2648 = vmatprep.subr.mxu0 0.0
    %2649 = vmatpush1.msra.mxu0 0.0
    %2650 = vmatprep.subr.mxu0 0.0
    %2651 = vmatpush1.msra.mxu0 0.0
    %2652 = vmatprep.subr.mxu0 0.0
    %2653 = vmatpush1.msra.mxu0 0.0
    %2654 = vmatprep.subr.mxu0 0.0
    %2655 = vmatpush1.msra.mxu0 0.0
    %2656 = vmatprep.subr.mxu0 0.0
    %2657 = vmatpush1.msra.mxu0 0.0
    %2658 = vmatprep.subr.mxu0 0.0
    %2659 = vmatpush1.msra.mxu0 0.0
    %2660 = vmatprep.subr.mxu0 0.0
    %2661 = vmatpush1.msra.mxu0 0.0
    %2662 = vmatprep.subr.mxu0 0.0
    %2663 = vmatpush1.msra.mxu0 0.0
    %2664 = vmatprep.mubr.f32.mxu0 0.0
    %2665 = vmatmul.mubr.f32.gmra.mrb[0].mxu0 %v2598
    %v2666 = vpop.f32.mrb[0].mxu0
    %v2667 = vadd.f32 0.0, %v2666
    %v2668 = vpop.f32.mrb[0].mxu0
    %2669 = vmatprep.mubr.f32.mxu0 0.0
    %2670 = vmatmul.mubr.f32.gmra.mrb[0].mxu0 %v2599
    %v2671 = vpop.f32.mrb[0].mxu0
    %v2672 = vadd.f32 0.0, %v2671
    %v2673 = vpop.f32.mrb[0].mxu0
    %2674 = vdwg.mxu0
    %v2675 = vadd.f32 %v2593, %v2667
    %v2676 = vadd.f32 %v2594, %v2672
    %v2677 = vmax.f32 %v2362, %v2675
    %v2678 = vmax.f32 %v2363, %v2676
    %vm2679 = vcmask 523264
    %2680 = vst.msk [vmem:[#allocation7] sm:$0xff] %vm2679, %v2677
    %vm2681 = vcmask 521216
    %2682 = vst.msk [vmem:[#allocation7 + $0x8] sm:$0x3f] %vm2681, %v2678
    %v2683 = vld [vmem:[#allocation7] ss:$2 sm:$0x7f]
    %s2684 = scalar_lea.vmem [#allocation7], 1
    %v2685 = vld [vmem:[%s2684] ss:$2 sm:$0x7f]
    %v2686 = vmax.f32 %v2683, %v2685
    %s2687 = sadd.s32 %s1956, 1
    %v2689 = vrot.slane %v2686, 7
    %s2691 = smul.u32 %s2687, 2
    %s2692 = smul.addr %s2691, 8
    %s2693 = scalar_lea.vmem [#allocation4], %s2692
    %vm2694 = vcmask 522241
    %2695 = vst.msk [vmem:[%s2693] sm:$0x7e] %vm2694, %v2689
    %2696 = vrot.lane.b32.xlu0 %v2686, 64
    %v2697 = vpop.permute.xlu0 %2696
    %vm2699 = vcmask 1047040
    %2700 = vst.msk [vmem:[%s2693] sm:$0x7f] %vm2699, %v2697
    %v2701 = vrot.slane %v2686, 1
    %2703 = vst.msk [vmem:[%s2693 + $0x8] sm:$0x3f] %vm2681, %v2701
  $region56: #{a3c_lstm_forward.3} parent=0 // loop_footer
    %s1960 = sadd.s32 1, %s1956
  $region57: #{a3c_lstm_forward.3} parent=0 // loop_footer_branch
    %1955 = sbr.rel target = $region53
  $region58: #{a3c_lstm_forward.3} parent=0 // loop_exit
    _
  loop: start=0, step=1, limit=3
  $region59: #{a3c_lstm_forward.3} parent=0 // loop_pre_header
    _
  $region60: #{a3c_lstm_forward.3} parent=0 // loop_header
    %s2705 = sphi 0, %s2709
    %p2706 = scmp.ge.s32.totalorder %s2705, 3
  $region61: #{a3c_lstm_forward.3} parent=0 // loop_header_branch
    %2708 = sbr.rel (%p2706) target = $region65
  $region62: #{a3c_lstm_forward.3} parent=0 // loop_body
    %s2710 = smul.u32 %s2705, 2
    %v2711 = vld [vmem:[%s8] sm:$0x1]
    %v2713 = vlaneseq
    %v2714 = vshrl.u32 %v2713, 7
    %v2715 = vsub.s32 0, %v2714
    %v2716 = vrot.slane %v2711, %v2715
    %v2718 = vadd.f32 %v2716, 0.0
    %s2719 = smul.u32 %s2710, 2
    %s2720 = smul.addr %s2719, 8
    %s2721 = scalar_lea.vmem [#allocation4], %s2720
    %v2722 = vld [vmem:[%s2721] sm:$0x7f]
    %v2723 = vld [vmem:[%s2721 + $0x8] sm:$0x7f]
    %v2724 = vld [vmem:[%s7] sm:$0xff]
    %v2725 = vld [vmem:[%s7 + $0x8] sm:$0xff]
    %v2726 = vld [vmem:[%s7 + $0x10] sm:$0xff]
    %v2727 = vld [vmem:[%s7 + $0x18] sm:$0xff]
    %v2728 = vld [vmem:[%s7 + $0x20] sm:$0xff]
    %v2729 = vld [vmem:[%s7 + $0x28] sm:$0xff]
    %v2730 = vld [vmem:[%s7 + $0x30] sm:$0xff]
    %v2731 = vld [vmem:[%s7 + $0x38] sm:$0xff]
    %v2732 = vld [vmem:[%s7 + $0x40] sm:$0xff]
    %v2733 = vld [vmem:[%s7 + $0x48] sm:$0xff]
    %v2734 = vld [vmem:[%s7 + $0x50] sm:$0xff]
    %v2735 = vld [vmem:[%s7 + $0x58] sm:$0xff]
    %v2736 = vld [vmem:[%s7 + $0x60] sm:$0xff]
    %v2737 = vld [vmem:[%s7 + $0x68] sm:$0xff]
    %v2738 = vld [vmem:[%s7 + $0x70] sm:$0xff]
    %v2739 = vld [vmem:[%s7 + $0x78] sm:$0xff]
    %v2740 = vld [vmem:[%s7 + $0x80] sm:$0xff]
    %v2741 = vld [vmem:[%s7 + $0x88] sm:$0xff]
    %v2742 = vld [vmem:[%s7 + $0x90] sm:$0xff]
    %v2743 = vld [vmem:[%s7 + $0x98] sm:$0xff]
    %v2744 = vld [vmem:[%s7 + $0xa0] sm:$0xff]
    %v2745 = vld [vmem:[%s7 + $0xa8] sm:$0xff]
    %v2746 = vld [vmem:[%s7 + $0xb0] sm:$0xff]
    %v2747 = vld [vmem:[%s7 + $0xb8] sm:$0xff]
    %vm2748 = vcmask 523264
    %v2750 = vsel %vm2748, %v2723, 0
    %2752 = vmatprep.subr.mxu0 0.0
    %2753 = vmatpush1.msra.mxu0 %v2724
    %2754 = vmatprep.subr.mxu0 0.0
    %2755 = vmatpush1.msra.mxu0 %v2725
    %2756 = vmatprep.subr.mxu0 0.0
    %2757 = vmatpush1.msra.mxu0 %v2726
    %2758 = vmatprep.subr.mxu0 0.0
    %2759 = vmatpush1.msra.mxu0 %v2727
    %2760 = vmatprep.subr.mxu0 0.0
    %2761 = vmatpush1.msra.mxu0 %v2728
    %2762 = vmatprep.subr.mxu0 0.0
    %2763 = vmatpush1.msra.mxu0 %v2729
    %2764 = vmatprep.subr.mxu0 0.0
    %2765 = vmatpush1.msra.mxu0 %v2730
    %2766 = vmatprep.subr.mxu0 0.0
    %2767 = vmatpush1.msra.mxu0 %v2731
    %2768 = vmatprep.subr.mxu0 0.0
    %2769 = vmatpush1.msra.mxu0 %v2732
    %2770 = vmatprep.subr.mxu0 0.0
    %2771 = vmatpush1.msra.mxu0 %v2733
    %2772 = vmatprep.subr.mxu0 0.0
    %2773 = vmatpush1.msra.mxu0 %v2734
    %2774 = vmatprep.subr.mxu0 0.0
    %2775 = vmatpush1.msra.mxu0 %v2735
    %2776 = vmatprep.subr.mxu0 0.0
    %2777 = vmatpush1.msra.mxu0 %v2736
    %2778 = vmatprep.subr.mxu0 0.0
    %2779 = vmatpush1.msra.mxu0 %v2737
    %2780 = vmatprep.subr.mxu0 0.0
    %2781 = vmatpush1.msra.mxu0 %v2738
    %2782 = vmatprep.subr.mxu0 0.0
    %2783 = vmatpush1.msra.mxu0 %v2739
    %2784 = vmatprep.subr.mxu0 0.0
    %2785 = vmatpush1.msra.mxu0 %v2740
    %2786 = vmatprep.subr.mxu0 0.0
    %2787 = vmatpush1.msra.mxu0 %v2741
    %2788 = vmatprep.subr.mxu0 0.0
    %2789 = vmatpush1.msra.mxu0 %v2742
    %2790 = vmatprep.subr.mxu0 0.0
    %2791 = vmatpush1.msra.mxu0 %v2743
    %2792 = vmatprep.subr.mxu0 0.0
    %2793 = vmatpush1.msra.mxu0 %v2744
    %2794 = vmatprep.subr.mxu0 0.0
    %2795 = vmatpush1.msra.mxu0 %v2745
    %2796 = vmatprep.subr.mxu0 0.0
    %2797 = vmatpush1.msra.mxu0 %v2746
    %2798 = vmatprep.subr.mxu0 0.0
    %2799 = vmatpush1.msra.mxu0 %v2747
    %2800 = vmatprep.subr.mxu0 0.0
    %2801 = vmatpush1.msra.mxu0 0.0
    %2802 = vmatprep.subr.mxu0 0.0
    %2803 = vmatpush1.msra.mxu0 0.0
    %2804 = vmatprep.subr.mxu0 0.0
    %2805 = vmatpush1.msra.mxu0 0.0
    %2806 = vmatprep.subr.mxu0 0.0
    %2807 = vmatpush1.msra.mxu0 0.0
    %2808 = vmatprep.subr.mxu0 0.0
    %2809 = vmatpush1.msra.mxu0 0.0
    %2810 = vmatprep.subr.mxu0 0.0
    %2811 = vmatpush1.msra.mxu0 0.0
    %2812 = vmatprep.subr.mxu0 0.0
    %2813 = vmatpush1.msra.mxu0 0.0
    %2814 = vmatprep.subr.mxu0 0.0
    %2815 = vmatpush1.msra.mxu0 0.0
    %2816 = vmatprep.mubr.f32.mxu0 %v2750
    %2817 = vmatmul.mubr.f32.gmra.mrb[0].mxu0 %v2722
    %v2818 = vpop.f32.mrb[0].mxu0
    %v2819 = vadd.f32 0.0, %v2818
    %v2820 = vpop.f32.mrb[0].mxu0
    %2821 = vdwg.mxu0
    %v2822 = vadd.f32 %v2718, %v2819
    %s2823 = sadd.s32 %s2710, 1
    %s2824 = smul.u32 %s2823, 2
    %s2825 = smul.addr %s2824, 8
    %s2826 = scalar_lea.vmem [#allocation4], %s2825
    %v2827 = vld [vmem:[%s2826] sm:$0x7f]
    %v2828 = vld [vmem:[%s2826 + $0x8] sm:$0x7f]
    %s2829 = scalar_lea.vmem %s7, 192
    %v2830 = vld [vmem:[%s2829] sm:$0xff]
    %v2831 = vld [vmem:[%s2829 + $0x8] sm:$0xff]
    %v2832 = vld [vmem:[%s2829 + $0x10] sm:$0xff]
    %v2833 = vld [vmem:[%s2829 + $0x18] sm:$0xff]
    %v2834 = vld [vmem:[%s2829 + $0x20] sm:$0xff]
    %v2835 = vld [vmem:[%s2829 + $0x28] sm:$0xff]
    %v2836 = vld [vmem:[%s2829 + $0x30] sm:$0xff]
    %v2837 = vld [vmem:[%s2829 + $0x38] sm:$0xff]
    %v2838 = vld [vmem:[%s2829 + $0x40] sm:$0xff]
    %v2839 = vld [vmem:[%s2829 + $0x48] sm:$0xff]
    %v2840 = vld [vmem:[%s2829 + $0x50] sm:$0xff]
    %v2841 = vld [vmem:[%s2829 + $0x58] sm:$0xff]
    %v2842 = vld [vmem:[%s2829 + $0x60] sm:$0xff]
    %v2843 = vld [vmem:[%s2829 + $0x68] sm:$0xff]
    %v2844 = vld [vmem:[%s2829 + $0x70] sm:$0xff]
    %v2845 = vld [vmem:[%s2829 + $0x78] sm:$0xff]
    %v2846 = vld [vmem:[%s2829 + $0x80] sm:$0xff]
    %v2847 = vld [vmem:[%s2829 + $0x88] sm:$0xff]
    %v2848 = vld [vmem:[%s2829 + $0x90] sm:$0xff]
    %v2849 = vld [vmem:[%s2829 + $0x98] sm:$0xff]
    %v2850 = vld [vmem:[%s2829 + $0xa0] sm:$0xff]
    %v2851 = vld [vmem:[%s2829 + $0xa8] sm:$0xff]
    %v2852 = vld [vmem:[%s2829 + $0xb0] sm:$0xff]
    %v2853 = vld [vmem:[%s2829 + $0xb8] sm:$0xff]
    %v2855 = vsel %vm2748, %v2828, 0
    %2857 = vmatprep.subr.mxu0 0.0
    %2858 = vmatpush1.msra.mxu0 %v2830
    %2859 = vmatprep.subr.mxu0 0.0
    %2860 = vmatpush1.msra.mxu0 %v2831
    %2861 = vmatprep.subr.mxu0 0.0
    %2862 = vmatpush1.msra.mxu0 %v2832
    %2863 = vmatprep.subr.mxu0 0.0
    %2864 = vmatpush1.msra.mxu0 %v2833
    %2865 = vmatprep.subr.mxu0 0.0
    %2866 = vmatpush1.msra.mxu0 %v2834
    %2867 = vmatprep.subr.mxu0 0.0
    %2868 = vmatpush1.msra.mxu0 %v2835
    %2869 = vmatprep.subr.mxu0 0.0
    %2870 = vmatpush1.msra.mxu0 %v2836
    %2871 = vmatprep.subr.mxu0 0.0
    %2872 = vmatpush1.msra.mxu0 %v2837
    %2873 = vmatprep.subr.mxu0 0.0
    %2874 = vmatpush1.msra.mxu0 %v2838
    %2875 = vmatprep.subr.mxu0 0.0
    %2876 = vmatpush1.msra.mxu0 %v2839
    %2877 = vmatprep.subr.mxu0 0.0
    %2878 = vmatpush1.msra.mxu0 %v2840
    %2879 = vmatprep.subr.mxu0 0.0
    %2880 = vmatpush1.msra.mxu0 %v2841
    %2881 = vmatprep.subr.mxu0 0.0
    %2882 = vmatpush1.msra.mxu0 %v2842
    %2883 = vmatprep.subr.mxu0 0.0
    %2884 = vmatpush1.msra.mxu0 %v2843
    %2885 = vmatprep.subr.mxu0 0.0
    %2886 = vmatpush1.msra.mxu0 %v2844
    %2887 = vmatprep.subr.mxu0 0.0
    %2888 = vmatpush1.msra.mxu0 %v2845
    %2889 = vmatprep.subr.mxu0 0.0
    %2890 = vmatpush1.msra.mxu0 %v2846
    %2891 = vmatprep.subr.mxu0 0.0
    %2892 = vmatpush1.msra.mxu0 %v2847
    %2893 = vmatprep.subr.mxu0 0.0
    %2894 = vmatpush1.msra.mxu0 %v2848
    %2895 = vmatprep.subr.mxu0 0.0
    %2896 = vmatpush1.msra.mxu0 %v2849
    %2897 = vmatprep.subr.mxu0 0.0
    %2898 = vmatpush1.msra.mxu0 %v2850
    %2899 = vmatprep.subr.mxu0 0.0
    %2900 = vmatpush1.msra.mxu0 %v2851
    %2901 = vmatprep.subr.mxu0 0.0
    %2902 = vmatpush1.msra.mxu0 %v2852
    %2903 = vmatprep.subr.mxu0 0.0
    %2904 = vmatpush1.msra.mxu0 %v2853
    %2905 = vmatprep.subr.mxu0 0.0
    %2906 = vmatpush1.msra.mxu0 0.0
    %2907 = vmatprep.subr.mxu0 0.0
    %2908 = vmatpush1.msra.mxu0 0.0
    %2909 = vmatprep.subr.mxu0 0.0
    %2910 = vmatpush1.msra.mxu0 0.0
    %2911 = vmatprep.subr.mxu0 0.0
    %2912 = vmatpush1.msra.mxu0 0.0
    %2913 = vmatprep.subr.mxu0 0.0
    %2914 = vmatpush1.msra.mxu0 0.0
    %2915 = vmatprep.subr.mxu0 0.0
    %2916 = vmatpush1.msra.mxu0 0.0
    %2917 = vmatprep.subr.mxu0 0.0
    %2918 = vmatpush1.msra.mxu0 0.0
    %2919 = vmatprep.subr.mxu0 0.0
    %2920 = vmatpush1.msra.mxu0 0.0
    %2921 = vmatprep.mubr.f32.mxu0 %v2855
    %2922 = vmatmul.mubr.f32.gmra.mrb[0].mxu0 %v2827
    %v2923 = vpop.f32.mrb[0].mxu0
    %v2924 = vadd.f32 0.0, %v2923
    %v2925 = vpop.f32.mrb[0].mxu0
    %2926 = vdwg.mxu0
    %v2927 = vadd.f32 %v2822, %v2924
    %s2928 = sadd.s32 %s2710, 2
    %s2929 = smul.u32 %s2928, 2
    %s2930 = smul.addr %s2929, 8
    %s2931 = scalar_lea.vmem [#allocation4], %s2930
    %v2932 = vld [vmem:[%s2931] sm:$0x7f]
    %v2933 = vld [vmem:[%s2931 + $0x8] sm:$0x7f]
    %s2934 = scalar_lea.vmem %s7, 384
    %v2935 = vld [vmem:[%s2934] sm:$0xff]
    %v2936 = vld [vmem:[%s2934 + $0x8] sm:$0xff]
    %v2937 = vld [vmem:[%s2934 + $0x10] sm:$0xff]
    %v2938 = vld [vmem:[%s2934 + $0x18] sm:$0xff]
    %v2939 = vld [vmem:[%s2934 + $0x20] sm:$0xff]
    %v2940 = vld [vmem:[%s2934 + $0x28] sm:$0xff]
    %v2941 = vld [vmem:[%s2934 + $0x30] sm:$0xff]
    %v2942 = vld [vmem:[%s2934 + $0x38] sm:$0xff]
    %v2943 = vld [vmem:[%s2934 + $0x40] sm:$0xff]
    %v2944 = vld [vmem:[%s2934 + $0x48] sm:$0xff]
    %v2945 = vld [vmem:[%s2934 + $0x50] sm:$0xff]
    %v2946 = vld [vmem:[%s2934 + $0x58] sm:$0xff]
    %v2947 = vld [vmem:[%s2934 + $0x60] sm:$0xff]
    %v2948 = vld [vmem:[%s2934 + $0x68] sm:$0xff]
    %v2949 = vld [vmem:[%s2934 + $0x70] sm:$0xff]
    %v2950 = vld [vmem:[%s2934 + $0x78] sm:$0xff]
    %v2951 = vld [vmem:[%s2934 + $0x80] sm:$0xff]
    %v2952 = vld [vmem:[%s2934 + $0x88] sm:$0xff]
    %v2953 = vld [vmem:[%s2934 + $0x90] sm:$0xff]
    %v2954 = vld [vmem:[%s2934 + $0x98] sm:$0xff]
    %v2955 = vld [vmem:[%s2934 + $0xa0] sm:$0xff]
    %v2956 = vld [vmem:[%s2934 + $0xa8] sm:$0xff]
    %v2957 = vld [vmem:[%s2934 + $0xb0] sm:$0xff]
    %v2958 = vld [vmem:[%s2934 + $0xb8] sm:$0xff]
    %v2960 = vsel %vm2748, %v2933, 0
    %2962 = vmatprep.subr.mxu0 0.0
    %2963 = vmatpush1.msra.mxu0 %v2935
    %2964 = vmatprep.subr.mxu0 0.0
    %2965 = vmatpush1.msra.mxu0 %v2936
    %2966 = vmatprep.subr.mxu0 0.0
    %2967 = vmatpush1.msra.mxu0 %v2937
    %2968 = vmatprep.subr.mxu0 0.0
    %2969 = vmatpush1.msra.mxu0 %v2938
    %2970 = vmatprep.subr.mxu0 0.0
    %2971 = vmatpush1.msra.mxu0 %v2939
    %2972 = vmatprep.subr.mxu0 0.0
    %2973 = vmatpush1.msra.mxu0 %v2940
    %2974 = vmatprep.subr.mxu0 0.0
    %2975 = vmatpush1.msra.mxu0 %v2941
    %2976 = vmatprep.subr.mxu0 0.0
    %2977 = vmatpush1.msra.mxu0 %v2942
    %2978 = vmatprep.subr.mxu0 0.0
    %2979 = vmatpush1.msra.mxu0 %v2943
    %2980 = vmatprep.subr.mxu0 0.0
    %2981 = vmatpush1.msra.mxu0 %v2944
    %2982 = vmatprep.subr.mxu0 0.0
    %2983 = vmatpush1.msra.mxu0 %v2945
    %2984 = vmatprep.subr.mxu0 0.0
    %2985 = vmatpush1.msra.mxu0 %v2946
    %2986 = vmatprep.subr.mxu0 0.0
    %2987 = vmatpush1.msra.mxu0 %v2947
    %2988 = vmatprep.subr.mxu0 0.0
    %2989 = vmatpush1.msra.mxu0 %v2948
    %2990 = vmatprep.subr.mxu0 0.0
    %2991 = vmatpush1.msra.mxu0 %v2949
    %2992 = vmatprep.subr.mxu0 0.0
    %2993 = vmatpush1.msra.mxu0 %v2950
    %2994 = vmatprep.subr.mxu0 0.0
    %2995 = vmatpush1.msra.mxu0 %v2951
    %2996 = vmatprep.subr.mxu0 0.0
    %2997 = vmatpush1.msra.mxu0 %v2952
    %2998 = vmatprep.subr.mxu0 0.0
    %2999 = vmatpush1.msra.mxu0 %v2953
    %3000 = vmatprep.subr.mxu0 0.0
    %3001 = vmatpush1.msra.mxu0 %v2954
    %3002 = vmatprep.subr.mxu0 0.0
    %3003 = vmatpush1.msra.mxu0 %v2955
    %3004 = vmatprep.subr.mxu0 0.0
    %3005 = vmatpush1.msra.mxu0 %v2956
    %3006 = vmatprep.subr.mxu0 0.0
    %3007 = vmatpush1.msra.mxu0 %v2957
    %3008 = vmatprep.subr.mxu0 0.0
    %3009 = vmatpush1.msra.mxu0 %v2958
    %3010 = vmatprep.subr.mxu0 0.0
    %3011 = vmatpush1.msra.mxu0 0.0
    %3012 = vmatprep.subr.mxu0 0.0
    %3013 = vmatpush1.msra.mxu0 0.0
    %3014 = vmatprep.subr.mxu0 0.0
    %3015 = vmatpush1.msra.mxu0 0.0
    %3016 = vmatprep.subr.mxu0 0.0
    %3017 = vmatpush1.msra.mxu0 0.0
    %3018 = vmatprep.subr.mxu0 0.0
    %3019 = vmatpush1.msra.mxu0 0.0
    %3020 = vmatprep.subr.mxu0 0.0
    %3021 = vmatpush1.msra.mxu0 0.0
    %3022 = vmatprep.subr.mxu0 0.0
    %3023 = vmatpush1.msra.mxu0 0.0
    %3024 = vmatprep.subr.mxu0 0.0
    %3025 = vmatpush1.msra.mxu0 0.0
    %3026 = vmatprep.mubr.f32.mxu0 %v2960
    %3027 = vmatmul.mubr.f32.gmra.mrb[0].mxu0 %v2932
    %v3028 = vpop.f32.mrb[0].mxu0
    %v3029 = vadd.f32 0.0, %v3028
    %v3030 = vpop.f32.mrb[0].mxu0
    %3031 = vdwg.mxu0
    %v3032 = vadd.f32 %v2927, %v3029
    %3033 = vmatprep.subr.mxu0 0.0
    %3034 = vmatpush1.msra.mxu0 %v2724
    %3035 = vmatprep.subr.mxu0 0.0
    %3036 = vmatpush1.msra.mxu0 %v2725
    %3037 = vmatprep.subr.mxu0 0.0
    %3038 = vmatpush1.msra.mxu0 %v2726
    %3039 = vmatprep.subr.mxu0 0.0
    %3040 = vmatpush1.msra.mxu0 %v2727
    %3041 = vmatprep.subr.mxu0 0.0
    %3042 = vmatpush1.msra.mxu0 %v2728
    %3043 = vmatprep.subr.mxu0 0.0
    %3044 = vmatpush1.msra.mxu0 %v2729
    %3045 = vmatprep.subr.mxu0 0.0
    %3046 = vmatpush1.msra.mxu0 %v2730
    %3047 = vmatprep.subr.mxu0 0.0
    %3048 = vmatpush1.msra.mxu0 %v2731
    %3049 = vmatprep.subr.mxu0 0.0
    %3050 = vmatpush1.msra.mxu0 %v2732
    %3051 = vmatprep.subr.mxu0 0.0
    %3052 = vmatpush1.msra.mxu0 %v2733
    %3053 = vmatprep.subr.mxu0 0.0
    %3054 = vmatpush1.msra.mxu0 %v2734
    %3055 = vmatprep.subr.mxu0 0.0
    %3056 = vmatpush1.msra.mxu0 %v2735
    %3057 = vmatprep.subr.mxu0 0.0
    %3058 = vmatpush1.msra.mxu0 %v2736
    %3059 = vmatprep.subr.mxu0 0.0
    %3060 = vmatpush1.msra.mxu0 %v2737
    %3061 = vmatprep.subr.mxu0 0.0
    %3062 = vmatpush1.msra.mxu0 %v2738
    %3063 = vmatprep.subr.mxu0 0.0
    %3064 = vmatpush1.msra.mxu0 %v2739
    %3065 = vmatprep.subr.mxu0 0.0
    %3066 = vmatpush1.msra.mxu0 %v2740
    %3067 = vmatprep.subr.mxu0 0.0
    %3068 = vmatpush1.msra.mxu0 %v2741
    %3069 = vmatprep.subr.mxu0 0.0
    %3070 = vmatpush1.msra.mxu0 %v2742
    %3071 = vmatprep.subr.mxu0 0.0
    %3072 = vmatpush1.msra.mxu0 %v2743
    %3073 = vmatprep.subr.mxu0 0.0
    %3074 = vmatpush1.msra.mxu0 %v2744
    %3075 = vmatprep.subr.mxu0 0.0
    %3076 = vmatpush1.msra.mxu0 %v2745
    %3077 = vmatprep.subr.mxu0 0.0
    %3078 = vmatpush1.msra.mxu0 %v2746
    %3079 = vmatprep.subr.mxu0 0.0
    %3080 = vmatpush1.msra.mxu0 %v2747
    %3081 = vmatprep.subr.mxu0 0.0
    %3082 = vmatpush1.msra.mxu0 0.0
    %3083 = vmatprep.subr.mxu0 0.0
    %3084 = vmatpush1.msra.mxu0 0.0
    %3085 = vmatprep.subr.mxu0 0.0
    %3086 = vmatpush1.msra.mxu0 0.0
    %3087 = vmatprep.subr.mxu0 0.0
    %3088 = vmatpush1.msra.mxu0 0.0
    %3089 = vmatprep.subr.mxu0 0.0
    %3090 = vmatpush1.msra.mxu0 0.0
    %3091 = vmatprep.subr.mxu0 0.0
    %3092 = vmatpush1.msra.mxu0 0.0
    %3093 = vmatprep.subr.mxu0 0.0
    %3094 = vmatpush1.msra.mxu0 0.0
    %3095 = vmatprep.subr.mxu0 0.0
    %3096 = vmatpush1.msra.mxu0 0.0
    %3097 = vmatprep.mubr.f32.mxu0 %v2855
    %3098 = vmatmul.mubr.f32.gmra.mrb[0].mxu0 %v2827
    %v3099 = vpop.f32.mrb[0].mxu0
    %v3100 = vadd.f32 0.0, %v3099
    %v3101 = vpop.f32.mrb[0].mxu0
    %3102 = vdwg.mxu0
    %v3103 = vadd.f32 %v2718, %v3100
    %3104 = vmatprep.subr.mxu0 0.0
    %3105 = vmatpush1.msra.mxu0 %v2830
    %3106 = vmatprep.subr.mxu0 0.0
    %3107 = vmatpush1.msra.mxu0 %v2831
    %3108 = vmatprep.subr.mxu0 0.0
    %3109 = vmatpush1.msra.mxu0 %v2832
    %3110 = vmatprep.subr.mxu0 0.0
    %3111 = vmatpush1.msra.mxu0 %v2833
    %3112 = vmatprep.subr.mxu0 0.0
    %3113 = vmatpush1.msra.mxu0 %v2834
    %3114 = vmatprep.subr.mxu0 0.0
    %3115 = vmatpush1.msra.mxu0 %v2835
    %3116 = vmatprep.subr.mxu0 0.0
    %3117 = vmatpush1.msra.mxu0 %v2836
    %3118 = vmatprep.subr.mxu0 0.0
    %3119 = vmatpush1.msra.mxu0 %v2837
    %3120 = vmatprep.subr.mxu0 0.0
    %3121 = vmatpush1.msra.mxu0 %v2838
    %3122 = vmatprep.subr.mxu0 0.0
    %3123 = vmatpush1.msra.mxu0 %v2839
    %3124 = vmatprep.subr.mxu0 0.0
    %3125 = vmatpush1.msra.mxu0 %v2840
    %3126 = vmatprep.subr.mxu0 0.0
    %3127 = vmatpush1.msra.mxu0 %v2841
    %3128 = vmatprep.subr.mxu0 0.0
    %3129 = vmatpush1.msra.mxu0 %v2842
    %3130 = vmatprep.subr.mxu0 0.0
    %3131 = vmatpush1.msra.mxu0 %v2843
    %3132 = vmatprep.subr.mxu0 0.0
    %3133 = vmatpush1.msra.mxu0 %v2844
    %3134 = vmatprep.subr.mxu0 0.0
    %3135 = vmatpush1.msra.mxu0 %v2845
    %3136 = vmatprep.subr.mxu0 0.0
    %3137 = vmatpush1.msra.mxu0 %v2846
    %3138 = vmatprep.subr.mxu0 0.0
    %3139 = vmatpush1.msra.mxu0 %v2847
    %3140 = vmatprep.subr.mxu0 0.0
    %3141 = vmatpush1.msra.mxu0 %v2848
    %3142 = vmatprep.subr.mxu0 0.0
    %3143 = vmatpush1.msra.mxu0 %v2849
    %3144 = vmatprep.subr.mxu0 0.0
    %3145 = vmatpush1.msra.mxu0 %v2850
    %3146 = vmatprep.subr.mxu0 0.0
    %3147 = vmatpush1.msra.mxu0 %v2851
    %3148 = vmatprep.subr.mxu0 0.0
    %3149 = vmatpush1.msra.mxu0 %v2852
    %3150 = vmatprep.subr.mxu0 0.0
    %3151 = vmatpush1.msra.mxu0 %v2853
    %3152 = vmatprep.subr.mxu0 0.0
    %3153 = vmatpush1.msra.mxu0 0.0
    %3154 = vmatprep.subr.mxu0 0.0
    %3155 = vmatpush1.msra.mxu0 0.0
    %3156 = vmatprep.subr.mxu0 0.0
    %3157 = vmatpush1.msra.mxu0 0.0
    %3158 = vmatprep.subr.mxu0 0.0
    %3159 = vmatpush1.msra.mxu0 0.0
    %3160 = vmatprep.subr.mxu0 0.0
    %3161 = vmatpush1.msra.mxu0 0.0
    %3162 = vmatprep.subr.mxu0 0.0
    %3163 = vmatpush1.msra.mxu0 0.0
    %3164 = vmatprep.subr.mxu0 0.0
    %3165 = vmatpush1.msra.mxu0 0.0
    %3166 = vmatprep.subr.mxu0 0.0
    %3167 = vmatpush1.msra.mxu0 0.0
    %3168 = vmatprep.mubr.f32.mxu0 %v2960
    %3169 = vmatmul.mubr.f32.gmra.mrb[0].mxu0 %v2932
    %v3170 = vpop.f32.mrb[0].mxu0
    %v3171 = vadd.f32 0.0, %v3170
    %v3172 = vpop.f32.mrb[0].mxu0
    %3173 = vdwg.mxu0
    %v3174 = vadd.f32 %v3103, %v3171
    %s3175 = sadd.s32 %s2710, 3
    %s3176 = smul.u32 %s3175, 2
    %s3177 = smul.addr %s3176, 8
    %s3178 = scalar_lea.vmem [#allocation4], %s3177
    %v3179 = vld [vmem:[%s3178] sm:$0x7f]
    %v3180 = vld [vmem:[%s3178 + $0x8] sm:$0x7f]
    %v3182 = vsel %vm2748, %v3180, 0
    %3184 = vmatprep.subr.mxu0 0.0
    %3185 = vmatpush1.msra.mxu0 %v2935
    %3186 = vmatprep.subr.mxu0 0.0
    %3187 = vmatpush1.msra.mxu0 %v2936
    %3188 = vmatprep.subr.mxu0 0.0
    %3189 = vmatpush1.msra.mxu0 %v2937
    %3190 = vmatprep.subr.mxu0 0.0
    %3191 = vmatpush1.msra.mxu0 %v2938
    %3192 = vmatprep.subr.mxu0 0.0
    %3193 = vmatpush1.msra.mxu0 %v2939
    %3194 = vmatprep.subr.mxu0 0.0
    %3195 = vmatpush1.msra.mxu0 %v2940
    %3196 = vmatprep.subr.mxu0 0.0
    %3197 = vmatpush1.msra.mxu0 %v2941
    %3198 = vmatprep.subr.mxu0 0.0
    %3199 = vmatpush1.msra.mxu0 %v2942
    %3200 = vmatprep.subr.mxu0 0.0
    %3201 = vmatpush1.msra.mxu0 %v2943
    %3202 = vmatprep.subr.mxu0 0.0
    %3203 = vmatpush1.msra.mxu0 %v2944
    %3204 = vmatprep.subr.mxu0 0.0
    %3205 = vmatpush1.msra.mxu0 %v2945
    %3206 = vmatprep.subr.mxu0 0.0
    %3207 = vmatpush1.msra.mxu0 %v2946
    %3208 = vmatprep.subr.mxu0 0.0
    %3209 = vmatpush1.msra.mxu0 %v2947
    %3210 = vmatprep.subr.mxu0 0.0
    %3211 = vmatpush1.msra.mxu0 %v2948
    %3212 = vmatprep.subr.mxu0 0.0
    %3213 = vmatpush1.msra.mxu0 %v2949
    %3214 = vmatprep.subr.mxu0 0.0
    %3215 = vmatpush1.msra.mxu0 %v2950
    %3216 = vmatprep.subr.mxu0 0.0
    %3217 = vmatpush1.msra.mxu0 %v2951
    %3218 = vmatprep.subr.mxu0 0.0
    %3219 = vmatpush1.msra.mxu0 %v2952
    %3220 = vmatprep.subr.mxu0 0.0
    %3221 = vmatpush1.msra.mxu0 %v2953
    %3222 = vmatprep.subr.mxu0 0.0
    %3223 = vmatpush1.msra.mxu0 %v2954
    %3224 = vmatprep.subr.mxu0 0.0
    %3225 = vmatpush1.msra.mxu0 %v2955
    %3226 = vmatprep.subr.mxu0 0.0
    %3227 = vmatpush1.msra.mxu0 %v2956
    %3228 = vmatprep.subr.mxu0 0.0
    %3229 = vmatpush1.msra.mxu0 %v2957
    %3230 = vmatprep.subr.mxu0 0.0
    %3231 = vmatpush1.msra.mxu0 %v2958
    %3232 = vmatprep.subr.mxu0 0.0
    %3233 = vmatpush1.msra.mxu0 0.0
    %3234 = vmatprep.subr.mxu0 0.0
    %3235 = vmatpush1.msra.mxu0 0.0
    %3236 = vmatprep.subr.mxu0 0.0
    %3237 = vmatpush1.msra.mxu0 0.0
    %3238 = vmatprep.subr.mxu0 0.0
    %3239 = vmatpush1.msra.mxu0 0.0
    %3240 = vmatprep.subr.mxu0 0.0
    %3241 = vmatpush1.msra.mxu0 0.0
    %3242 = vmatprep.subr.mxu0 0.0
    %3243 = vmatpush1.msra.mxu0 0.0
    %3244 = vmatprep.subr.mxu0 0.0
    %3245 = vmatpush1.msra.mxu0 0.0
    %3246 = vmatprep.subr.mxu0 0.0
    %3247 = vmatpush1.msra.mxu0 0.0
    %3248 = vmatprep.mubr.f32.mxu0 %v3182
    %3249 = vmatmul.mubr.f32.gmra.mrb[0].mxu0 %v3179
    %v3250 = vpop.f32.mrb[0].mxu0
    %v3251 = vadd.f32 0.0, %v3250
    %v3252 = vpop.f32.mrb[0].mxu0
    %3253 = vdwg.mxu0
    %v3254 = vadd.f32 %v3174, %v3251
    %v3255 = vmax.f32 %v3032, %v3254
    %3256 = vst.msk [vmem:[#allocation8] sm:$0x7f] %vm341, %v3255
    %v3257 = vld [vmem:[#allocation8] ss:$2 sm:$0x7]
    %s3258 = scalar_lea.vmem [#allocation8], 1
    %v3259 = vld [vmem:[%s3258] ss:$2 sm:$0x7]
    %v3260 = vmax.f32 %v3257, %v3259
    %s3261 = smul.u32 %s2705, 4
    %s3262 = scalar_lea.vmem %s9, %s3261
    %vm3263 = vcmask 518144
    %3264 = vst.msk [vmem:[%s3262] sm:$0x7] %vm3263, %v3260
  $region63: #{a3c_lstm_forward.3} parent=0 // loop_footer
    %s2709 = sadd.s32 1, %s2705
  $region64: #{a3c_lstm_forward.3} parent=0 // loop_footer_branch
    %2704 = sbr.rel target = $region60
  $region65: #{a3c_lstm_forward.3} parent=0 // loop_exit
    _
  // Predicated region
  $region66: #{a3c_lstm_forward.3} parent=0 // pred_check
    _
  $region67: #{a3c_lstm_forward.3} parent=0 // pred_check_branch
    %3266 = sbr.rel (0) target = $region69
  $region68: #{a3c_lstm_forward.3} parent=0 // pred_region
    _
  $region69: #{a3c_lstm_forward.3} parent=0 // pred_fallthru
    _
  // Predicated region
  $region70: #{a3c_lstm_forward.3} parent=0 // pred_check
    _
  $region71: #{a3c_lstm_forward.3} parent=0 // pred_check_branch
    %3268 = sbr.rel (0) target = $region73
  $region72: #{a3c_lstm_forward.3} parent=0 // pred_region
    _
  $region73: #{a3c_lstm_forward.3} parent=0 // pred_fallthru
    _

</llo_original>
